<compile_context>
chip_gen: v5e
topology: v5e:2x2
jax: 0.10.0
libtpu: 0.0.40
codegen_flags: <defaults>
</compile_context>

<pallas_src>
import functools

import jax
import jax.numpy as jnp
from jax.experimental import pallas as pl
from jax.experimental.pallas import tpu as pltpu


# ----------------------------------------------------------------------------
# Pallas kernels
# ----------------------------------------------------------------------------
def _convT_kernel(p_ref, w_ref, s_ref, b_ref, o_ref, *, relu):
    # p: (K, Mb) bf16   w: (Cout, K) bf16   s, b: (Cout, 1) f32   o: (Cout, Mb) f32
    acc = jnp.dot(w_ref[...], p_ref[...], preferred_element_type=jnp.float32)
    acc = acc * s_ref[...] + b_ref[...]
    if relu:
        acc = jnp.maximum(acc, 0.0)
    o_ref[...] = acc


def _convT_res_kernel(p_ref, w_ref, s_ref, b_ref, r_ref, o_ref):
    # conv + folded BN + residual add + ReLU  (residual r: (Cout, Mb) f32)
    acc = jnp.dot(w_ref[...], p_ref[...], preferred_element_type=jnp.float32)
    acc = acc * s_ref[...] + b_ref[...] + r_ref[...]
    o_ref[...] = jnp.maximum(acc, 0.0)


def _convT_shortcut_kernel(p_ref, w_ref, s_ref, b_ref,
                           sp_ref, sw_ref, ss_ref, sb_ref, o_ref):
    # conv + folded BN, plus fused 1x1-conv(+BN) shortcut, then ReLU.
    acc = jnp.dot(w_ref[...], p_ref[...], preferred_element_type=jnp.float32)
    acc = acc * s_ref[...] + b_ref[...]
    sc = jnp.dot(sw_ref[...], sp_ref[...], preferred_element_type=jnp.float32)
    sc = sc * ss_ref[...] + sb_ref[...]
    o_ref[...] = jnp.maximum(acc + sc, 0.0)


def _sigmoid(x):
    # EUP path: exp + approx reciprocal (gate math stays f32).
    return pl.reciprocal(1.0 + jnp.exp(-x), approx=True)


def _rnn_head_kernel(*refs, T, N, H, n_layers):
    """CNN fc1 (+ReLU) -> n_layers LSTM -> RNN fc1 (+ReLU) -> final fc.

    refs layout:
      x (T*N, E_in) bf16, fc1_w (E_in, E) bf16, fc1_b (1, E) f32,
      per layer: w_ih (D, 4H) bf16, w_hh (H, 4H) bf16, b (1, 4H) f32,
      rnn_fc1_w (H, F) bf16, rnn_fc1_b (1, F) f32, fc_w (F, C) bf16,
      fc_b (1, C) f32, then outputs hidden (N, F) f32, output (N, C) f32.
    """
    x_ref, fw_ref, fb_ref = refs[:3]
    lstm = refs[3:3 + 3 * n_layers]
    rw_ref, rb_ref, ow_ref, ob_ref, hid_ref, out_ref = refs[3 + 3 * n_layers:]

    def bf(v):
        return v.astype(jnp.bfloat16)

    # CNN fc1 + ReLU over all frames at once (dropout = identity in eval).
    emb = jnp.dot(x_ref[...], fw_ref[...], preferred_element_type=jnp.float32)
    emb = jnp.maximum(emb + fb_ref[...], 0.0)                 # (T*N, E) f32

    # Hoist LSTM weights / biases out of the time loop.
    w_ih = [lstm[3 * l][...] for l in range(n_layers)]
    w_hh = [lstm[3 * l + 1][...] for l in range(n_layers)]
    b_g = [lstm[3 * l + 2][...] for l in range(n_layers)]

    # Precompute the layer-0 input projection for the whole sequence: removes
    # half of the serialized MXU work from the recurrence.
    gx0 = jnp.dot(bf(emb), w_ih[0], preferred_element_type=jnp.float32) + b_g[0]

    def cell(gates, c_prev):
        i = _sigmoid(gates[:, 0 * H:1 * H])
        f = _sigmoid(gates[:, 1 * H:2 * H])
        g = jnp.tanh(gates[:, 2 * H:3 * H])
        o = _sigmoid(gates[:, 3 * H:4 * H])
        c = f * c_prev + i * g
        h = o * jnp.tanh(c)
        return h, c

    h = [jnp.zeros((N, H), jnp.float32) for _ in range(n_layers)]
    c = [jnp.zeros((N, H), jnp.float32) for _ in range(n_layers)]

    # T is a small static constant -> fully unrolled recurrence.
    for t in range(T):
        g = gx0[t * N:(t + 1) * N, :] + jnp.dot(
            bf(h[0]), w_hh[0], preferred_element_type=jnp.float32)
        h[0], c[0] = cell(g, c[0])
        for l in range(1, n_layers):
            g = (jnp.dot(bf(h[l - 1]), w_ih[l], preferred_element_type=jnp.float32)
                 + b_g[l]
                 + jnp.dot(bf(h[l]), w_hh[l], preferred_element_type=jnp.float32))
            h[l], c[l] = cell(g, c[l])

    hidden = jnp.dot(bf(h[-1]), rw_ref[...], preferred_element_type=jnp.float32)
    hidden = jnp.maximum(hidden + rb_ref[...], 0.0)           # ReLU; dropout = id
    out = jnp.dot(bf(hidden), ow_ref[...],
                  preferred_element_type=jnp.float32) + ob_ref[...]
    hid_ref[...] = hidden
    out_ref[...] = out


# ----------------------------------------------------------------------------
# Pallas wrappers
# ----------------------------------------------------------------------------
def _round_up(x, m):
    return (x + m - 1) // m * m


def conv_gemm_t(patches, w_t, scale, bias, *, relu=True,
                residual=None, shortcut=None):
    """Lane-dense transposed conv GEMM: returns (Cout, M) f32.

    patches: (K, M) f32; w_t: (Cout, K); scale/bias: (Cout,).
    residual: (Cout, M) f32 (adds before ReLU).
    shortcut: (sc_patches (Cin, M), sc_w (Cout, Cin), sc_scale, sc_bias).
    M is zero-padded to a multiple of 256 and split over a 2-wide parallel
    grid (each half 128-aligned) so both TensorCores get work on v7x.
    """
    K, M = patches.shape
    Cout = w_t.shape[0]
    Mp = _round_up(M, 256)
    Mb = Mp // 2
    pad = Mp - M

    def pad_m(a):
        return jnp.pad(a, ((0, 0), (0, pad))) if pad else a

    args = [pad_m(patches).astype(jnp.bfloat16),
            w_t.astype(jnp.bfloat16),
            scale.reshape(Cout, 1).astype(jnp.float32),
            bias.reshape(Cout, 1).astype(jnp.float32)]
    in_specs = [pl.BlockSpec((K, Mb), lambda i: (0, i)),
                pl.BlockSpec((Cout, K), lambda i: (0, 0)),
                pl.BlockSpec((Cout, 1), lambda i: (0, 0)),
                pl.BlockSpec((Cout, 1), lambda i: (0, 0))]

    if shortcut is not None:
        sc_patches, sc_w, sc_scale, sc_bias = shortcut
        Ksc = sc_patches.shape[0]
        args += [pad_m(sc_patches).astype(jnp.bfloat16),
                 sc_w.astype(jnp.bfloat16),
                 sc_scale.reshape(Cout, 1).astype(jnp.float32),
                 sc_bias.reshape(Cout, 1).astype(jnp.float32)]
        in_specs += [pl.BlockSpec((Ksc, Mb), lambda i: (0, i)),
                     pl.BlockSpec((Cout, Ksc), lambda i: (0, 0)),
                     pl.BlockSpec((Cout, 1), lambda i: (0, 0)),
                     pl.BlockSpec((Cout, 1), lambda i: (0, 0))]
        kernel = _convT_shortcut_kernel
    elif residual is not None:
        args += [pad_m(residual).astype(jnp.float32)]
        in_specs += [pl.BlockSpec((Cout, Mb), lambda i: (0, i))]
        kernel = _convT_res_kernel
    else:
        kernel = functools.partial(_convT_kernel, relu=relu)

    out = pl.pallas_call(
        kernel,
        out_shape=jax.ShapeDtypeStruct((Cout, Mp), jnp.float32),
        grid=(2,),
        in_specs=in_specs,
        out_specs=pl.BlockSpec((Cout, Mb), lambda i: (0, i)),
        compiler_params=pltpu.CompilerParams(
            dimension_semantics=("parallel",)),
    )(*args)
    return out[:, :M] if pad else out


def _fs(shape):
    nd = len(shape)
    return pl.BlockSpec(shape, lambda i: (0,) * nd)


def rnn_head(xf_tm, fc1_cnn, lstm_layers, fc1_rnn, fc_out, *, T, N):
    """Fused CNN-fc1 + LSTM stack + RNN-fc1 + final-fc in one Pallas kernel.

    xf_tm: (T*N, E_in) time-major (row = t*N + n). Returns (hidden, output).
    """
    E_in = xf_tm.shape[1]
    E = fc1_cnn['w'].shape[1]
    H = lstm_layers[0]['w_hh'].shape[0]
    F = fc1_rnn['w'].shape[1]
    C = fc_out['w'].shape[1]
    L = len(lstm_layers)

    args = [xf_tm.astype(jnp.bfloat16),
            fc1_cnn['w'].astype(jnp.bfloat16),
            fc1_cnn['b'].reshape(1, E).astype(jnp.float32)]
    for lp in lstm_layers:
        args += [lp['w_ih'].astype(jnp.bfloat16),
                 lp['w_hh'].astype(jnp.bfloat16),
                 lp['b'].reshape(1, 4 * H).astype(jnp.float32)]
    args += [fc1_rnn['w'].astype(jnp.bfloat16),
             fc1_rnn['b'].reshape(1, F).astype(jnp.float32),
             fc_out['w'].astype(jnp.bfloat16),
             fc_out['b'].reshape(1, C).astype(jnp.float32)]

    hidden, output = pl.pallas_call(
        functools.partial(_rnn_head_kernel, T=T, N=N, H=H, n_layers=L),
        out_shape=(jax.ShapeDtypeStruct((N, F), jnp.float32),
                   jax.ShapeDtypeStruct((N, C), jnp.float32)),
        grid=(1,),
        in_specs=[_fs(a.shape) for a in args],
        out_specs=[_fs((N, F)), _fs((N, C))],
        compiler_params=pltpu.CompilerParams(
            dimension_semantics=("arbitrary",)),
    )(*args)
    return hidden, output


# ----------------------------------------------------------------------------
# Model building blocks (im2col / reshapes are XLA glue; all matmul + BN
# affine + residual + ReLU hot paths run inside the Pallas kernels above).
# Activations are carried channels-first as (C, B, H, W).
# ----------------------------------------------------------------------------
def conv_layer(x, cp, *, stride, padding, relu=True, residual=None, shortcut=None):
    # x: (Cin, B, H, W); cp['w']: (Cout, Cin, KH, KW); cp['s'], cp['b']: (Cout,)
    Cin, B, H, W = x.shape
    w = cp['w']
    Cout, _, KH, KW = w.shape
    if padding:
        x = jnp.pad(x, ((0, 0), (0, 0), (padding, padding), (padding, padding)))
    Hp, Wp = H + 2 * padding, W + 2 * padding
    Ho = (Hp - KH) // stride + 1
    Wo = (Wp - KW) // stride + 1
    shifts = [x[:, :, i:i + stride * (Ho - 1) + 1:stride,
                j:j + stride * (Wo - 1) + 1:stride]
              for i in range(KH) for j in range(KW)]
    patches = jnp.stack(shifts, axis=1)                      # (Cin, KH*KW, B, Ho, Wo)
    M = B * Ho * Wo
    patches = patches.reshape(Cin * KH * KW, M)              # K order matches w flatten
    w_t = w.reshape(Cout, Cin * KH * KW)

    if shortcut is not None:
        sc_x, sc_p = shortcut                                # 1x1 stride-2 conv + BN
        sc_patches = sc_x.reshape(sc_x.shape[0], M)
        sc_w = sc_p['w'].reshape(Cout, -1)
        out = conv_gemm_t(patches, w_t, cp['s'], cp['b'], relu=True,
                          shortcut=(sc_patches, sc_w, sc_p['s'], sc_p['b']))
    else:
        res = None if residual is None else residual.reshape(Cout, M)
        out = conv_gemm_t(patches, w_t, cp['s'], cp['b'], relu=relu, residual=res)
    return out.reshape(Cout, B, Ho, Wo)


def block_forward(x, p):
    # ResNet basic block: relu(bn2(conv2(relu(bn1(conv1(x))))) + shortcut)
    same = p['same']
    stride = 1 if same else 2
    y = conv_layer(x, p['c1'], stride=stride, padding=1, relu=True)
    if same:
        return conv_layer(y, p['c2'], stride=1, padding=1, residual=x)
    sc = x[:, :, ::2, ::2]                                   # 1x1 conv stride-2 sampling
    return conv_layer(y, p['c2'], stride=1, padding=1, shortcut=(sc, p['c3']))


def cnn_image_forward(x_2d, p):
    # x_2d: (N, T, 1, H, W). All frames processed at once; channels-first layout.
    N, T, C, H, W = x_2d.shape
    x = x_2d.reshape(N * T, C, H, W).transpose(1, 0, 2, 3)   # (C, B, H, W)
    x = conv_layer(x, p['conv1'], stride=2, padding=0, relu=True)
    for bp in p['layer1']:
        x = block_forward(x, bp)
    x = conv_layer(x, p['conv2'], stride=2, padding=0, relu=True)
    for bp in p['layer2']:
        x = block_forward(x, bp)
    Cc, B, Ho, Wo = x.shape
    # PyTorch flatten order is NCHW: x.view(B, -1)
    return x.transpose(1, 0, 2, 3).reshape(B, Cc * Ho * Wo)  # (N*T, 256)


def crnn_forward(image, mat, params):
    # input_type == 'image': `mat` is unused (mirrors the PyTorch branch).
    del mat
    N, T = image.shape[0], image.shape[1]
    xf = cnn_image_forward(image, params['image_CNN'])       # (N*T, 256), row = n*T + t
    E_in = xf.shape[1]
    xf_tm = xf.reshape(N, T, E_in).transpose(1, 0, 2).reshape(T * N, E_in)
    hidden, output = rnn_head(xf_tm, params['image_CNN']['fc1'],
                              params['image_RNN']['lstm'],
                              params['image_RNN']['fc1'], params['fc'],
                              T=T, N=N)
    return hidden, output


# ----------------------------------------------------------------------------
# Deterministic synthetic parameters
# ----------------------------------------------------------------------------
def make_params(key, cnn_embed_dim=32, h_rnn_layers=2, h_rnn=32, h_fc_dim=32,
                num_classes=10):
    state = {'k': key}

    def nxt():
        state['k'], sub = jax.random.split(state['k'])
        return sub

    def conv_p(cout, cin, kh, kw, conv_bias=True):
        w = 0.1 * jax.random.normal(nxt(), (cout, cin, kh, kw), jnp.float32)
        cb = (0.1 * jax.random.normal(nxt(), (cout,), jnp.float32)
              if conv_bias else None)
        gamma = 1.0 + 0.1 * jax.random.normal(nxt(), (cout,), jnp.float32)
        beta = 0.1 * jax.random.normal(nxt(), (cout,), jnp.float32)
        mean = jnp.zeros((cout,), jnp.float32)   # BN running stats (fresh module)
        var = jnp.ones((cout,), jnp.float32)
        scale = gamma / jnp.sqrt(var + 1e-5)
        bias = beta - mean * scale
        if cb is not None:
            bias = bias + cb * scale             # fold conv bias through BN
        return {'w': w, 's': scale, 'b': bias}

    def block_p(cin, cout, same_shape):
        p = {'c1': conv_p(cout, cin, 3, 3, conv_bias=False),
             'c2': conv_p(cout, cout, 3, 3, conv_bias=False),
             'same': same_shape}
        if not same_shape:
            p['c3'] = conv_p(cout, cin, 1, 1, conv_bias=False)
        return p

    def linear_p(din, dout):
        return {'w': 0.1 * jax.random.normal(nxt(), (din, dout), jnp.float32),
                'b': 0.1 * jax.random.normal(nxt(), (dout,), jnp.float32)}

    cnn = {
        'conv1': conv_p(8, 1, 3, 3),                         # ch1 = 8
        'layer1': [block_p(8, 8, False), block_p(8, 8, True)],
        'conv2': conv_p(16, 8, 3, 3),                        # ch2 = 16
        'layer2': [block_p(16, 16, False), block_p(16, 16, True)],
        'fc1': linear_p(256, cnn_embed_dim),                 # fc_in_dim = 256
    }

    lstm_layers = []
    d_in = cnn_embed_dim
    for _ in range(h_rnn_layers):
        lstm_layers.append({
            # Fused (i, f, g, o) gate layout along the 4H axis (4H = 128).
            'w_ih': 0.1 * jax.random.normal(nxt(), (d_in, 4 * h_rnn), jnp.float32),
            'w_hh': 0.1 * jax.random.normal(nxt(), (h_rnn, 4 * h_rnn), jnp.float32),
            # torch has bias_ih + bias_hh; they only enter as their sum.
            'b': 0.1 * jax.random.normal(nxt(), (4 * h_rnn,), jnp.float32),
        })
        d_in = h_rnn
    rnn = {'lstm': lstm_layers, 'fc1': linear_p(h_rnn, h_fc_dim)}
    fc = linear_p(h_fc_dim, num_classes)
    return {'image_CNN': cnn, 'image_RNN': rnn, 'fc': fc}


# ----------------------------------------------------------------------------
if __name__ == "__main__":
    # CRNN(img_x=64, img_y=64, ..., CNN_embed_dim=32, h_RNN_layers=2, h_RNN=32,
    #      h_FC_dim=32, drop_p=0.3, num_classes=10, input_type='image')
    # 64x64 images give the hard-coded fc_in_dim=256 (16 ch * 4 * 4) after
    # conv1 / layer1 / conv2 / layer2.
    N, T, IMG = 2, 4, 64
    NUM_CLASSES, H_FC = 10, 32

    key = jax.random.PRNGKey(0)
    kp, kimg, kmat = jax.random.split(key, 3)
    params = make_params(kp, cnn_embed_dim=32, h_rnn_layers=2, h_rnn=32,
                         h_fc_dim=H_FC, num_classes=NUM_CLASSES)

    image = jax.random.normal(kimg, (N, T, 1, IMG, IMG), jnp.float32)
    mat = jax.random.normal(kmat, (N, 3, 16, 16), jnp.float32)   # unused ('image')

    fwd = jax.jit(lambda im, mt: crnn_forward(im, mt, params))
    hidden, output = fwd(image, mat)
    jax.block_until_ready((hidden, output))

    assert hidden.shape == (N, H_FC)
    assert output.shape == (N, NUM_CLASSES)
    assert bool(jnp.all(jnp.isfinite(hidden))) and bool(jnp.all(jnp.isfinite(output)))
    print("KERNEL_OK")
</pallas_src>

<mosaic_0001>
module attributes {stable_mosaic.version = 11 : i64} {
  func.func @_convT_kernel(%arg0: i32, %arg1: memref<9x3968xbf16, #tpu.memory_space<vmem>>, %arg2: memref<8x9xbf16, #tpu.memory_space<vmem>>, %arg3: memref<8x1xf32, #tpu.memory_space<vmem>>, %arg4: memref<8x1xf32, #tpu.memory_space<vmem>>, %arg5: memref<8x3968xf32, #tpu.memory_space<vmem>>) attributes {dimension_semantics = [#tpu.dimension_semantics<parallel>], iteration_bounds = array<i64: 2>, scalar_prefetch = 0 : i64, scratch_operands = 0 : i64, tpu.core_type = #tpu.core_type<tc>, window_params = [{transform_indices = @transform_0, window_bounds = array<i64: 9, 3968>}, {pipeline_mode = #tpu.pipeline_mode<synchronous>, transform_indices = @transform_1, window_bounds = array<i64: 8, 9>}, {pipeline_mode = #tpu.pipeline_mode<synchronous>, transform_indices = @transform_2, window_bounds = array<i64: 8, 1>}, {pipeline_mode = #tpu.pipeline_mode<synchronous>, transform_indices = @transform_3, window_bounds = array<i64: 8, 1>}, {transform_indices = @transform_4, window_bounds = array<i64: 8, 3968>}]} {
    %c0 = arith.constant 0 : index
    %c0_0 = arith.constant 0 : index
    %0 = vector.load %arg2[%c0, %c0_0] : memref<8x9xbf16, #tpu.memory_space<vmem>>, vector<8x9xbf16>
    %c0_1 = arith.constant 0 : index
    %c0_2 = arith.constant 0 : index
    %1 = vector.load %arg1[%c0_1, %c0_2] : memref<9x3968xbf16, #tpu.memory_space<vmem>>, vector<9x3968xbf16>
    %cst = arith.constant dense<0.000000e+00> : vector<8x3968xf32>
    %2 = tpu.matmul %0, %1, %cst {dimension_numbers = #tpu.dot_dimension_numbers<[1], [0], [0], [1], [0, 0, 1, 1], [], []>} : vector<8x9xbf16>, vector<9x3968xbf16>, vector<8x3968xf32> -> vector<8x3968xf32>
    %c0_3 = arith.constant 0 : index
    %c0_4 = arith.constant 0 : index
    %3 = vector.load %arg3[%c0_3, %c0_4] : memref<8x1xf32, #tpu.memory_space<vmem>>, vector<8x1xf32>
    %4 = vector.broadcast %3 : vector<8x1xf32> to vector<8x3968xf32>
    %5 = arith.mulf %2, %4 : vector<8x3968xf32>
    %c0_5 = arith.constant 0 : index
    %c0_6 = arith.constant 0 : index
    %6 = vector.load %arg4[%c0_5, %c0_6] : memref<8x1xf32, #tpu.memory_space<vmem>>, vector<8x1xf32>
    %7 = vector.broadcast %6 : vector<8x1xf32> to vector<8x3968xf32>
    %8 = arith.addf %5, %7 : vector<8x3968xf32>
    %cst_7 = arith.constant 0.000000e+00 : f32
    %9 = vector.broadcast %cst_7 : f32 to vector<8x3968xf32>
    %10 = arith.maximumf %8, %9 : vector<8x3968xf32>
    %c0_8 = arith.constant 0 : index
    %c0_9 = arith.constant 0 : index
    %11 = vector.load %arg5[%c0_8, %c0_9] : memref<8x3968xf32, #tpu.memory_space<vmem>>, vector<8x3968xf32>
    tpu.vector_store %arg5[%c0_8, %c0_9], %10 {strides = array<i32>} : memref<8x3968xf32, #tpu.memory_space<vmem>>, vector<8x3968xf32>,
    return
  }
  func.func @transform_0(%arg0: i32) -> (i32, i32) {
    %c0_i32 = arith.constant 0 : i32
    %c0_i32_0 = arith.constant 0 : i32
    return %c0_i32, %arg0 : i32, i32
  }
  func.func @transform_1(%arg0: i32) -> (i32, i32) {
    %c0_i32 = arith.constant 0 : i32
    %c0_i32_0 = arith.constant 0 : i32
    %c0_i32_1 = arith.constant 0 : i32
    return %c0_i32, %c0_i32_0 : i32, i32
  }
  func.func @transform_2(%arg0: i32) -> (i32, i32) {
    %c0_i32 = arith.constant 0 : i32
    %c0_i32_0 = arith.constant 0 : i32
    %c0_i32_1 = arith.constant 0 : i32
    return %c0_i32, %c0_i32_0 : i32, i32
  }
  func.func @transform_3(%arg0: i32) -> (i32, i32) {
    %c0_i32 = arith.constant 0 : i32
    %c0_i32_0 = arith.constant 0 : i32
    %c0_i32_1 = arith.constant 0 : i32
    return %c0_i32, %c0_i32_0 : i32, i32
  }
  func.func @transform_4(%arg0: i32) -> (i32, i32) {
    %c0_i32 = arith.constant 0 : i32
    %c0_i32_0 = arith.constant 0 : i32
    return %c0_i32, %arg0 : i32, i32
  }
}

module attributes {stable_mosaic.version = 11 : i64} {
  func.func @_convT_kernel(%arg0: i32, %arg1: memref<72x1024xbf16, #tpu.memory_space<vmem>>, %arg2: memref<8x72xbf16, #tpu.memory_space<vmem>>, %arg3: memref<8x1xf32, #tpu.memory_space<vmem>>, %arg4: memref<8x1xf32, #tpu.memory_space<vmem>>, %arg5: memref<8x1024xf32, #tpu.memory_space<vmem>>) attributes {dimension_semantics = [#tpu.dimension_semantics<parallel>], iteration_bounds = array<i64: 2>, scalar_prefetch = 0 : i64, scratch_operands = 0 : i64, tpu.core_type = #tpu.core_type<tc>, window_params = [{transform_indices = @transform_0, window_bounds = array<i64: 72, 1024>}, {pipeline_mode = #tpu.pipeline_mode<synchronous>, transform_indices = @transform_1, window_bounds = array<i64: 8, 72>}, {pipeline_mode = #tpu.pipeline_mode<synchronous>, transform_indices = @transform_2, window_bounds = array<i64: 8, 1>}, {pipeline_mode = #tpu.pipeline_mode<synchronous>, transform_indices = @transform_3, window_bounds = array<i64: 8, 1>}, {transform_indices = @transform_4, window_bounds = array<i64: 8, 1024>}]} {
    %c0 = arith.constant 0 : index
    %c0_0 = arith.constant 0 : index
    %0 = vector.load %arg2[%c0, %c0_0] : memref<8x72xbf16, #tpu.memory_space<vmem>>, vector<8x72xbf16>
    %c0_1 = arith.constant 0 : index
    %c0_2 = arith.constant 0 : index
    %1 = vector.load %arg1[%c0_1, %c0_2] : memref<72x1024xbf16, #tpu.memory_space<vmem>>, vector<72x1024xbf16>
    %cst = arith.constant dense<0.000000e+00> : vector<8x1024xf32>
    %2 = tpu.matmul %0, %1, %cst {dimension_numbers = #tpu.dot_dimension_numbers<[1], [0], [0], [1], [0, 0, 1, 1], [], []>} : vector<8x72xbf16>, vector<72x1024xbf16>, vector<8x1024xf32> -> vector<8x1024xf32>
    %c0_3 = arith.constant 0 : index
    %c0_4 = arith.constant 0 : index
    %3 = vector.load %arg3[%c0_3, %c0_4] : memref<8x1xf32, #tpu.memory_space<vmem>>, vector<8x1xf32>
    %4 = vector.broadcast %3 : vector<8x1xf32> to vector<8x1024xf32>
    %5 = arith.mulf %2, %4 : vector<8x1024xf32>
    %c0_5 = arith.constant 0 : index
    %c0_6 = arith.constant 0 : index
    %6 = vector.load %arg4[%c0_5, %c0_6] : memref<8x1xf32, #tpu.memory_space<vmem>>, vector<8x1xf32>
    %7 = vector.broadcast %6 : vector<8x1xf32> to vector<8x1024xf32>
    %8 = arith.addf %5, %7 : vector<8x1024xf32>
    %cst_7 = arith.constant 0.000000e+00 : f32
    %9 = vector.broadcast %cst_7 : f32 to vector<8x1024xf32>
    %10 = arith.maximumf %8, %9 : vector<8x1024xf32>
    %c0_8 = arith.constant 0 : index
    %c0_9 = arith.constant 0 : index
    %11 = vector.load %arg5[%c0_8, %c0_9] : memref<8x1024xf32, #tpu.memory_space<vmem>>, vector<8x1024xf32>
    tpu.vector_store %arg5[%c0_8, %c0_9], %10 {strides = array<i32>} : memref<8x1024xf32, #tpu.memory_space<vmem>>, vector<8x1024xf32>,
    return
  }
  func.func @transform_0(%arg0: i32) -> (i32, i32) {
    %c0_i32 = arith.constant 0 : i32
    %c0_i32_0 = arith.constant 0 : i32
    return %c0_i32, %arg0 : i32, i32
  }
  func.func @transform_1(%arg0: i32) -> (i32, i32) {
    %c0_i32 = arith.constant 0 : i32
    %c0_i32_0 = arith.constant 0 : i32
    %c0_i32_1 = arith.constant 0 : i32
    return %c0_i32, %c0_i32_0 : i32, i32
  }
  func.func @transform_2(%arg0: i32) -> (i32, i32) {
    %c0_i32 = arith.constant 0 : i32
    %c0_i32_0 = arith.constant 0 : i32
    %c0_i32_1 = arith.constant 0 : i32
    return %c0_i32, %c0_i32_0 : i32, i32
  }
  func.func @transform_3(%arg0: i32) -> (i32, i32) {
    %c0_i32 = arith.constant 0 : i32
    %c0_i32_0 = arith.constant 0 : i32
    %c0_i32_1 = arith.constant 0 : i32
    return %c0_i32, %c0_i32_0 : i32, i32
  }
  func.func @transform_4(%arg0: i32) -> (i32, i32) {
    %c0_i32 = arith.constant 0 : i32
    %c0_i32_0 = arith.constant 0 : i32
    return %c0_i32, %arg0 : i32, i32
  }
}

module attributes {stable_mosaic.version = 11 : i64} {
  func.func @_convT_res_kernel(%arg0: i32, %arg1: memref<72x1024xbf16, #tpu.memory_space<vmem>>, %arg2: memref<8x72xbf16, #tpu.memory_space<vmem>>, %arg3: memref<8x1xf32, #tpu.memory_space<vmem>>, %arg4: memref<8x1xf32, #tpu.memory_space<vmem>>, %arg5: memref<8x1024xf32, #tpu.memory_space<vmem>>, %arg6: memref<8x1024xf32, #tpu.memory_space<vmem>>) attributes {dimension_semantics = [#tpu.dimension_semantics<parallel>], iteration_bounds = array<i64: 2>, scalar_prefetch = 0 : i64, scratch_operands = 0 : i64, tpu.core_type = #tpu.core_type<tc>, window_params = [{transform_indices = @transform_0, window_bounds = array<i64: 72, 1024>}, {pipeline_mode = #tpu.pipeline_mode<synchronous>, transform_indices = @transform_1, window_bounds = array<i64: 8, 72>}, {pipeline_mode = #tpu.pipeline_mode<synchronous>, transform_indices = @transform_2, window_bounds = array<i64: 8, 1>}, {pipeline_mode = #tpu.pipeline_mode<synchronous>, transform_indices = @transform_3, window_bounds = array<i64: 8, 1>}, {transform_indices = @transform_4, window_bounds = array<i64: 8, 1024>}, {transform_indices = @transform_5, window_bounds = array<i64: 8, 1024>}]} {
    %c0 = arith.constant 0 : index
    %c0_0 = arith.constant 0 : index
    %0 = vector.load %arg2[%c0, %c0_0] : memref<8x72xbf16, #tpu.memory_space<vmem>>, vector<8x72xbf16>
    %c0_1 = arith.constant 0 : index
    %c0_2 = arith.constant 0 : index
    %1 = vector.load %arg1[%c0_1, %c0_2] : memref<72x1024xbf16, #tpu.memory_space<vmem>>, vector<72x1024xbf16>
    %cst = arith.constant dense<0.000000e+00> : vector<8x1024xf32>
    %2 = tpu.matmul %0, %1, %cst {dimension_numbers = #tpu.dot_dimension_numbers<[1], [0], [0], [1], [0, 0, 1, 1], [], []>} : vector<8x72xbf16>, vector<72x1024xbf16>, vector<8x1024xf32> -> vector<8x1024xf32>
    %c0_3 = arith.constant 0 : index
    %c0_4 = arith.constant 0 : index
    %3 = vector.load %arg3[%c0_3, %c0_4] : memref<8x1xf32, #tpu.memory_space<vmem>>, vector<8x1xf32>
    %4 = vector.broadcast %3 : vector<8x1xf32> to vector<8x1024xf32>
    %5 = arith.mulf %2, %4 : vector<8x1024xf32>
    %c0_5 = arith.constant 0 : index
    %c0_6 = arith.constant 0 : index
    %6 = vector.load %arg4[%c0_5, %c0_6] : memref<8x1xf32, #tpu.memory_space<vmem>>, vector<8x1xf32>
    %7 = vector.broadcast %6 : vector<8x1xf32> to vector<8x1024xf32>
    %8 = arith.addf %5, %7 : vector<8x1024xf32>
    %c0_7 = arith.constant 0 : index
    %c0_8 = arith.constant 0 : index
    %9 = vector.load %arg5[%c0_7, %c0_8] : memref<8x1024xf32, #tpu.memory_space<vmem>>, vector<8x1024xf32>
    %10 = arith.addf %8, %9 : vector<8x1024xf32>
    %cst_9 = arith.constant 0.000000e+00 : f32
    %11 = vector.broadcast %cst_9 : f32 to vector<8x1024xf32>
    %12 = arith.maximumf %10, %11 : vector<8x1024xf32>
    %c0_10 = arith.constant 0 : index
    %c0_11 = arith.constant 0 : index
    %13 = vector.load %arg6[%c0_10, %c0_11] : memref<8x1024xf32, #tpu.memory_space<vmem>>, vector<8x1024xf32>
    tpu.vector_store %arg6[%c0_10, %c0_11], %12 {strides = array<i32>} : memref<8x1024xf32, #tpu.memory_space<vmem>>, vector<8x1024xf32>,
    return
  }
  func.func @transform_0(%arg0: i32) -> (i32, i32) {
    %c0_i32 = arith.constant 0 : i32
    %c0_i32_0 = arith.constant 0 : i32
    return %c0_i32, %arg0 : i32, i32
  }
  func.func @transform_1(%arg0: i32) -> (i32, i32) {
    %c0_i32 = arith.constant 0 : i32
    %c0_i32_0 = arith.constant 0 : i32
    %c0_i32_1 = arith.constant 0 : i32
    return %c0_i32, %c0_i32_0 : i32, i32
  }
  func.func @transform_2(%arg0: i32) -> (i32, i32) {
    %c0_i32 = arith.constant 0 : i32
    %c0_i32_0 = arith.constant 0 : i32
    %c0_i32_1 = arith.constant 0 : i32
    return %c0_i32, %c0_i32_0 : i32, i32
  }
  func.func @transform_3(%arg0: i32) -> (i32, i32) {
    %c0_i32 = arith.constant 0 : i32
    %c0_i32_0 = arith.constant 0 : i32
    %c0_i32_1 = arith.constant 0 : i32
    return %c0_i32, %c0_i32_0 : i32, i32
  }
  func.func @transform_4(%arg0: i32) -> (i32, i32) {
    %c0_i32 = arith.constant 0 : i32
    %c0_i32_0 = arith.constant 0 : i32
    return %c0_i32, %arg0 : i32, i32
  }
  func.func @transform_5(%arg0: i32) -> (i32, i32) {
    %c0_i32 = arith.constant 0 : i32
    %c0_i32_0 = arith.constant 0 : i32
    return %c0_i32, %arg0 : i32, i32
  }
}

module attributes {stable_mosaic.version = 11 : i64} {
  func.func @_convT_shortcut_kernel(%arg0: i32, %arg1: memref<72x1024xbf16, #tpu.memory_space<vmem>>, %arg2: memref<8x72xbf16, #tpu.memory_space<vmem>>, %arg3: memref<8x1xf32, #tpu.memory_space<vmem>>, %arg4: memref<8x1xf32, #tpu.memory_space<vmem>>, %arg5: memref<8x1024xbf16, #tpu.memory_space<vmem>>, %arg6: memref<8x8xbf16, #tpu.memory_space<vmem>>, %arg7: memref<8x1xf32, #tpu.memory_space<vmem>>, %arg8: memref<8x1xf32, #tpu.memory_space<vmem>>, %arg9: memref<8x1024xf32, #tpu.memory_space<vmem>>) attributes {dimension_semantics = [#tpu.dimension_semantics<parallel>], iteration_bounds = array<i64: 2>, scalar_prefetch = 0 : i64, scratch_operands = 0 : i64, tpu.core_type = #tpu.core_type<tc>, window_params = [{transform_indices = @transform_0, window_bounds = array<i64: 72, 1024>}, {pipeline_mode = #tpu.pipeline_mode<synchronous>, transform_indices = @transform_1, window_bounds = array<i64: 8, 72>}, {pipeline_mode = #tpu.pipeline_mode<synchronous>, transform_indices = @transform_2, window_bounds = array<i64: 8, 1>}, {pipeline_mode = #tpu.pipeline_mode<synchronous>, transform_indices = @transform_3, window_bounds = array<i64: 8, 1>}, {transform_indices = @transform_4, window_bounds = array<i64: 8, 1024>}, {pipeline_mode = #tpu.pipeline_mode<synchronous>, transform_indices = @transform_5, window_bounds = array<i64: 8, 8>}, {pipeline_mode = #tpu.pipeline_mode<synchronous>, transform_indices = @transform_6, window_bounds = array<i64: 8, 1>}, {pipeline_mode = #tpu.pipeline_mode<synchronous>, transform_indices = @transform_7, window_bounds = array<i64: 8, 1>}, {transform_indices = @transform_8, window_bounds = array<i64: 8, 1024>}]} {
    %c0 = arith.constant 0 : index
    %c0_0 = arith.constant 0 : index
    %0 = vector.load %arg2[%c0, %c0_0] : memref<8x72xbf16, #tpu.memory_space<vmem>>, vector<8x72xbf16>
    %c0_1 = arith.constant 0 : index
    %c0_2 = arith.constant 0 : index
    %1 = vector.load %arg1[%c0_1, %c0_2] : memref<72x1024xbf16, #tpu.memory_space<vmem>>, vector<72x1024xbf16>
    %cst = arith.constant dense<0.000000e+00> : vector<8x1024xf32>
    %2 = tpu.matmul %0, %1, %cst {dimension_numbers = #tpu.dot_dimension_numbers<[1], [0], [0], [1], [0, 0, 1, 1], [], []>} : vector<8x72xbf16>, vector<72x1024xbf16>, vector<8x1024xf32> -> vector<8x1024xf32>
    %c0_3 = arith.constant 0 : index
    %c0_4 = arith.constant 0 : index
    %3 = vector.load %arg3[%c0_3, %c0_4] : memref<8x1xf32, #tpu.memory_space<vmem>>, vector<8x1xf32>
    %4 = vector.broadcast %3 : vector<8x1xf32> to vector<8x1024xf32>
    %5 = arith.mulf %2, %4 : vector<8x1024xf32>
    %c0_5 = arith.constant 0 : index
    %c0_6 = arith.constant 0 : index
    %6 = vector.load %arg4[%c0_5, %c0_6] : memref<8x1xf32, #tpu.memory_space<vmem>>, vector<8x1xf32>
    %7 = vector.broadcast %6 : vector<8x1xf32> to vector<8x1024xf32>
    %8 = arith.addf %5, %7 : vector<8x1024xf32>
    %c0_7 = arith.constant 0 : index
    %c0_8 = arith.constant 0 : index
    %9 = vector.load %arg6[%c0_7, %c0_8] : memref<8x8xbf16, #tpu.memory_space<vmem>>, vector<8x8xbf16>
    %c0_9 = arith.constant 0 : index
    %c0_10 = arith.constant 0 : index
    %10 = vector.load %arg5[%c0_9, %c0_10] : memref<8x1024xbf16, #tpu.memory_space<vmem>>, vector<8x1024xbf16>
    %cst_11 = arith.constant dense<0.000000e+00> : vector<8x1024xf32>
    %11 = tpu.matmul %9, %10, %cst_11 {dimension_numbers = #tpu.dot_dimension_numbers<[1], [0], [0], [1], [0, 0, 1, 1], [], []>} : vector<8x8xbf16>, vector<8x1024xbf16>, vector<8x1024xf32> -> vector<8x1024xf32>
    %c0_12 = arith.constant 0 : index
    %c0_13 = arith.constant 0 : index
    %12 = vector.load %arg7[%c0_12, %c0_13] : memref<8x1xf32, #tpu.memory_space<vmem>>, vector<8x1xf32>
    %13 = vector.broadcast %12 : vector<8x1xf32> to vector<8x1024xf32>
    %14 = arith.mulf %11, %13 : vector<8x1024xf32>
    %c0_14 = arith.constant 0 : index
    %c0_15 = arith.constant 0 : index
    %15 = vector.load %arg8[%c0_14, %c0_15] : memref<8x1xf32, #tpu.memory_space<vmem>>, vector<8x1xf32>
    %16 = vector.broadcast %15 : vector<8x1xf32> to vector<8x1024xf32>
    %17 = arith.addf %14, %16 : vector<8x1024xf32>
    %18 = arith.addf %8, %17 : vector<8x1024xf32>
    %cst_16 = arith.constant 0.000000e+00 : f32
    %19 = vector.broadcast %cst_16 : f32 to vector<8x1024xf32>
    %20 = arith.maximumf %18, %19 : vector<8x1024xf32>
    %c0_17 = arith.constant 0 : index
    %c0_18 = arith.constant 0 : index
    %21 = vector.load %arg9[%c0_17, %c0_18] : memref<8x1024xf32, #tpu.memory_space<vmem>>, vector<8x1024xf32>
    tpu.vector_store %arg9[%c0_17, %c0_18], %20 {strides = array<i32>} : memref<8x1024xf32, #tpu.memory_space<vmem>>, vector<8x1024xf32>,
    return
  }
  func.func @transform_0(%arg0: i32) -> (i32, i32) {
    %c0_i32 = arith.constant 0 : i32
    %c0_i32_0 = arith.constant 0 : i32
    return %c0_i32, %arg0 : i32, i32
  }
  func.func @transform_1(%arg0: i32) -> (i32, i32) {
    %c0_i32 = arith.constant 0 : i32
    %c0_i32_0 = arith.constant 0 : i32
    %c0_i32_1 = arith.constant 0 : i32
    return %c0_i32, %c0_i32_0 : i32, i32
  }
  func.func @transform_2(%arg0: i32) -> (i32, i32) {
    %c0_i32 = arith.constant 0 : i32
    %c0_i32_0 = arith.constant 0 : i32
    %c0_i32_1 = arith.constant 0 : i32
    return %c0_i32, %c0_i32_0 : i32, i32
  }
  func.func @transform_3(%arg0: i32) -> (i32, i32) {
    %c0_i32 = arith.constant 0 : i32
    %c0_i32_0 = arith.constant 0 : i32
    %c0_i32_1 = arith.constant 0 : i32
    return %c0_i32, %c0_i32_0 : i32, i32
  }
  func.func @transform_4(%arg0: i32) -> (i32, i32) {
    %c0_i32 = arith.constant 0 : i32
    %c0_i32_0 = arith.constant 0 : i32
    return %c0_i32, %arg0 : i32, i32
  }
  func.func @transform_5(%arg0: i32) -> (i32, i32) {
    %c0_i32 = arith.constant 0 : i32
    %c0_i32_0 = arith.constant 0 : i32
    %c0_i32_1 = arith.constant 0 : i32
    return %c0_i32, %c0_i32_0 : i32, i32
  }
  func.func @transform_6(%arg0: i32) -> (i32, i32) {
    %c0_i32 = arith.constant 0 : i32
    %c0_i32_0 = arith.constant 0 : i32
    %c0_i32_1 = arith.constant 0 : i32
    return %c0_i32, %c0_i32_0 : i32, i32
  }
  func.func @transform_7(%arg0: i32) -> (i32, i32) {
    %c0_i32 = arith.constant 0 : i32
    %c0_i32_0 = arith.constant 0 : i32
    %c0_i32_1 = arith.constant 0 : i32
    return %c0_i32, %c0_i32_0 : i32, i32
  }
  func.func @transform_8(%arg0: i32) -> (i32, i32) {
    %c0_i32 = arith.constant 0 : i32
    %c0_i32_0 = arith.constant 0 : i32
    return %c0_i32, %arg0 : i32, i32
  }
}

module attributes {stable_mosaic.version = 11 : i64} {
  func.func @_convT_kernel(%arg0: i32, %arg1: memref<72x256xbf16, #tpu.memory_space<vmem>>, %arg2: memref<16x72xbf16, #tpu.memory_space<vmem>>, %arg3: memref<16x1xf32, #tpu.memory_space<vmem>>, %arg4: memref<16x1xf32, #tpu.memory_space<vmem>>, %arg5: memref<16x256xf32, #tpu.memory_space<vmem>>) attributes {dimension_semantics = [#tpu.dimension_semantics<parallel>], iteration_bounds = array<i64: 2>, scalar_prefetch = 0 : i64, scratch_operands = 0 : i64, tpu.core_type = #tpu.core_type<tc>, window_params = [{transform_indices = @transform_0, window_bounds = array<i64: 72, 256>}, {pipeline_mode = #tpu.pipeline_mode<synchronous>, transform_indices = @transform_1, window_bounds = array<i64: 16, 72>}, {pipeline_mode = #tpu.pipeline_mode<synchronous>, transform_indices = @transform_2, window_bounds = array<i64: 16, 1>}, {pipeline_mode = #tpu.pipeline_mode<synchronous>, transform_indices = @transform_3, window_bounds = array<i64: 16, 1>}, {transform_indices = @transform_4, window_bounds = array<i64: 16, 256>}]} {
    %c0 = arith.constant 0 : index
    %c0_0 = arith.constant 0 : index
    %0 = vector.load %arg2[%c0, %c0_0] : memref<16x72xbf16, #tpu.memory_space<vmem>>, vector<16x72xbf16>
    %c0_1 = arith.constant 0 : index
    %c0_2 = arith.constant 0 : index
    %1 = vector.load %arg1[%c0_1, %c0_2] : memref<72x256xbf16, #tpu.memory_space<vmem>>, vector<72x256xbf16>
    %cst = arith.constant dense<0.000000e+00> : vector<16x256xf32>
    %2 = tpu.matmul %0, %1, %cst {dimension_numbers = #tpu.dot_dimension_numbers<[1], [0], [0], [1], [0, 0, 1, 1], [], []>} : vector<16x72xbf16>, vector<72x256xbf16>, vector<16x256xf32> -> vector<16x256xf32>
    %c0_3 = arith.constant 0 : index
    %c0_4 = arith.constant 0 : index
    %3 = vector.load %arg3[%c0_3, %c0_4] : memref<16x1xf32, #tpu.memory_space<vmem>>, vector<16x1xf32>
    %4 = vector.broadcast %3 : vector<16x1xf32> to vector<16x256xf32>
    %5 = arith.mulf %2, %4 : vector<16x256xf32>
    %c0_5 = arith.constant 0 : index
    %c0_6 = arith.constant 0 : index
    %6 = vector.load %arg4[%c0_5, %c0_6] : memref<16x1xf32, #tpu.memory_space<vmem>>, vector<16x1xf32>
    %7 = vector.broadcast %6 : vector<16x1xf32> to vector<16x256xf32>
    %8 = arith.addf %5, %7 : vector<16x256xf32>
    %cst_7 = arith.constant 0.000000e+00 : f32
    %9 = vector.broadcast %cst_7 : f32 to vector<16x256xf32>
    %10 = arith.maximumf %8, %9 : vector<16x256xf32>
    %c0_8 = arith.constant 0 : index
    %c0_9 = arith.constant 0 : index
    %11 = vector.load %arg5[%c0_8, %c0_9] : memref<16x256xf32, #tpu.memory_space<vmem>>, vector<16x256xf32>
    tpu.vector_store %arg5[%c0_8, %c0_9], %10 {strides = array<i32>} : memref<16x256xf32, #tpu.memory_space<vmem>>, vector<16x256xf32>,
    return
  }
  func.func @transform_0(%arg0: i32) -> (i32, i32) {
    %c0_i32 = arith.constant 0 : i32
    %c0_i32_0 = arith.constant 0 : i32
    return %c0_i32, %arg0 : i32, i32
  }
  func.func @transform_1(%arg0: i32) -> (i32, i32) {
    %c0_i32 = arith.constant 0 : i32
    %c0_i32_0 = arith.constant 0 : i32
    %c0_i32_1 = arith.constant 0 : i32
    return %c0_i32, %c0_i32_0 : i32, i32
  }
  func.func @transform_2(%arg0: i32) -> (i32, i32) {
    %c0_i32 = arith.constant 0 : i32
    %c0_i32_0 = arith.constant 0 : i32
    %c0_i32_1 = arith.constant 0 : i32
    return %c0_i32, %c0_i32_0 : i32, i32
  }
  func.func @transform_3(%arg0: i32) -> (i32, i32) {
    %c0_i32 = arith.constant 0 : i32
    %c0_i32_0 = arith.constant 0 : i32
    %c0_i32_1 = arith.constant 0 : i32
    return %c0_i32, %c0_i32_0 : i32, i32
  }
  func.func @transform_4(%arg0: i32) -> (i32, i32) {
    %c0_i32 = arith.constant 0 : i32
    %c0_i32_0 = arith.constant 0 : i32
    return %c0_i32, %arg0 : i32, i32
  }
}

module attributes {stable_mosaic.version = 11 : i64} {
  func.func @_convT_kernel(%arg0: i32, %arg1: memref<144x128xbf16, #tpu.memory_space<vmem>>, %arg2: memref<16x144xbf16, #tpu.memory_space<vmem>>, %arg3: memref<16x1xf32, #tpu.memory_space<vmem>>, %arg4: memref<16x1xf32, #tpu.memory_space<vmem>>, %arg5: memref<16x128xf32, #tpu.memory_space<vmem>>) attributes {dimension_semantics = [#tpu.dimension_semantics<parallel>], iteration_bounds = array<i64: 2>, scalar_prefetch = 0 : i64, scratch_operands = 0 : i64, tpu.core_type = #tpu.core_type<tc>, window_params = [{transform_indices = @transform_0, window_bounds = array<i64: 144, 128>}, {pipeline_mode = #tpu.pipeline_mode<synchronous>, transform_indices = @transform_1, window_bounds = array<i64: 16, 144>}, {pipeline_mode = #tpu.pipeline_mode<synchronous>, transform_indices = @transform_2, window_bounds = array<i64: 16, 1>}, {pipeline_mode = #tpu.pipeline_mode<synchronous>, transform_indices = @transform_3, window_bounds = array<i64: 16, 1>}, {transform_indices = @transform_4, window_bounds = array<i64: 16, 128>}]} {
    %c0 = arith.constant 0 : index
    %c0_0 = arith.constant 0 : index
    %0 = vector.load %arg2[%c0, %c0_0] : memref<16x144xbf16, #tpu.memory_space<vmem>>, vector<16x144xbf16>
    %c0_1 = arith.constant 0 : index
    %c0_2 = arith.constant 0 : index
    %1 = vector.load %arg1[%c0_1, %c0_2] : memref<144x128xbf16, #tpu.memory_space<vmem>>, vector<144x128xbf16>
    %cst = arith.constant dense<0.000000e+00> : vector<16x128xf32>
    %2 = tpu.matmul %0, %1, %cst {dimension_numbers = #tpu.dot_dimension_numbers<[1], [0], [0], [1], [0, 0, 1, 1], [], []>} : vector<16x144xbf16>, vector<144x128xbf16>, vector<16x128xf32> -> vector<16x128xf32>
    %c0_3 = arith.constant 0 : index
    %c0_4 = arith.constant 0 : index
    %3 = vector.load %arg3[%c0_3, %c0_4] : memref<16x1xf32, #tpu.memory_space<vmem>>, vector<16x1xf32>
    %4 = vector.broadcast %3 : vector<16x1xf32> to vector<16x128xf32>
    %5 = arith.mulf %2, %4 : vector<16x128xf32>
    %c0_5 = arith.constant 0 : index
    %c0_6 = arith.constant 0 : index
    %6 = vector.load %arg4[%c0_5, %c0_6] : memref<16x1xf32, #tpu.memory_space<vmem>>, vector<16x1xf32>
    %7 = vector.broadcast %6 : vector<16x1xf32> to vector<16x128xf32>
    %8 = arith.addf %5, %7 : vector<16x128xf32>
    %cst_7 = arith.constant 0.000000e+00 : f32
    %9 = vector.broadcast %cst_7 : f32 to vector<16x128xf32>
    %10 = arith.maximumf %8, %9 : vector<16x128xf32>
    %c0_8 = arith.constant 0 : index
    %c0_9 = arith.constant 0 : index
    %11 = vector.load %arg5[%c0_8, %c0_9] : memref<16x128xf32, #tpu.memory_space<vmem>>, vector<16x128xf32>
    tpu.vector_store %arg5[%c0_8, %c0_9], %10 {strides = array<i32>} : memref<16x128xf32, #tpu.memory_space<vmem>>, vector<16x128xf32>,
    return
  }
  func.func @transform_0(%arg0: i32) -> (i32, i32) {
    %c0_i32 = arith.constant 0 : i32
    %c0_i32_0 = arith.constant 0 : i32
    return %c0_i32, %arg0 : i32, i32
  }
  func.func @transform_1(%arg0: i32) -> (i32, i32) {
    %c0_i32 = arith.constant 0 : i32
    %c0_i32_0 = arith.constant 0 : i32
    %c0_i32_1 = arith.constant 0 : i32
    return %c0_i32, %c0_i32_0 : i32, i32
  }
  func.func @transform_2(%arg0: i32) -> (i32, i32) {
    %c0_i32 = arith.constant 0 : i32
    %c0_i32_0 = arith.constant 0 : i32
    %c0_i32_1 = arith.constant 0 : i32
    return %c0_i32, %c0_i32_0 : i32, i32
  }
  func.func @transform_3(%arg0: i32) -> (i32, i32) {
    %c0_i32 = arith.constant 0 : i32
    %c0_i32_0 = arith.constant 0 : i32
    %c0_i32_1 = arith.constant 0 : i32
    return %c0_i32, %c0_i32_0 : i32, i32
  }
  func.func @transform_4(%arg0: i32) -> (i32, i32) {
    %c0_i32 = arith.constant 0 : i32
    %c0_i32_0 = arith.constant 0 : i32
    return %c0_i32, %arg0 : i32, i32
  }
}

module attributes {stable_mosaic.version = 11 : i64} {
  func.func @_convT_shortcut_kernel(%arg0: i32, %arg1: memref<144x128xbf16, #tpu.memory_space<vmem>>, %arg2: memref<16x144xbf16, #tpu.memory_space<vmem>>, %arg3: memref<16x1xf32, #tpu.memory_space<vmem>>, %arg4: memref<16x1xf32, #tpu.memory_space<vmem>>, %arg5: memref<16x128xbf16, #tpu.memory_space<vmem>>, %arg6: memref<16x16xbf16, #tpu.memory_space<vmem>>, %arg7: memref<16x1xf32, #tpu.memory_space<vmem>>, %arg8: memref<16x1xf32, #tpu.memory_space<vmem>>, %arg9: memref<16x128xf32, #tpu.memory_space<vmem>>) attributes {dimension_semantics = [#tpu.dimension_semantics<parallel>], iteration_bounds = array<i64: 2>, scalar_prefetch = 0 : i64, scratch_operands = 0 : i64, tpu.core_type = #tpu.core_type<tc>, window_params = [{transform_indices = @transform_0, window_bounds = array<i64: 144, 128>}, {pipeline_mode = #tpu.pipeline_mode<synchronous>, transform_indices = @transform_1, window_bounds = array<i64: 16, 144>}, {pipeline_mode = #tpu.pipeline_mode<synchronous>, transform_indices = @transform_2, window_bounds = array<i64: 16, 1>}, {pipeline_mode = #tpu.pipeline_mode<synchronous>, transform_indices = @transform_3, window_bounds = array<i64: 16, 1>}, {transform_indices = @transform_4, window_bounds = array<i64: 16, 128>}, {pipeline_mode = #tpu.pipeline_mode<synchronous>, transform_indices = @transform_5, window_bounds = array<i64: 16, 16>}, {pipeline_mode = #tpu.pipeline_mode<synchronous>, transform_indices = @transform_6, window_bounds = array<i64: 16, 1>}, {pipeline_mode = #tpu.pipeline_mode<synchronous>, transform_indices = @transform_7, window_bounds = array<i64: 16, 1>}, {transform_indices = @transform_8, window_bounds = array<i64: 16, 128>}]} {
    %c0 = arith.constant 0 : index
    %c0_0 = arith.constant 0 : index
    %0 = vector.load %arg2[%c0, %c0_0] : memref<16x144xbf16, #tpu.memory_space<vmem>>, vector<16x144xbf16>
    %c0_1 = arith.constant 0 : index
    %c0_2 = arith.constant 0 : index
    %1 = vector.load %arg1[%c0_1, %c0_2] : memref<144x128xbf16, #tpu.memory_space<vmem>>, vector<144x128xbf16>
    %cst = arith.constant dense<0.000000e+00> : vector<16x128xf32>
    %2 = tpu.matmul %0, %1, %cst {dimension_numbers = #tpu.dot_dimension_numbers<[1], [0], [0], [1], [0, 0, 1, 1], [], []>} : vector<16x144xbf16>, vector<144x128xbf16>, vector<16x128xf32> -> vector<16x128xf32>
    %c0_3 = arith.constant 0 : index
    %c0_4 = arith.constant 0 : index
    %3 = vector.load %arg3[%c0_3, %c0_4] : memref<16x1xf32, #tpu.memory_space<vmem>>, vector<16x1xf32>
    %4 = vector.broadcast %3 : vector<16x1xf32> to vector<16x128xf32>
    %5 = arith.mulf %2, %4 : vector<16x128xf32>
    %c0_5 = arith.constant 0 : index
    %c0_6 = arith.constant 0 : index
    %6 = vector.load %arg4[%c0_5, %c0_6] : memref<16x1xf32, #tpu.memory_space<vmem>>, vector<16x1xf32>
    %7 = vector.broadcast %6 : vector<16x1xf32> to vector<16x128xf32>
    %8 = arith.addf %5, %7 : vector<16x128xf32>
    %c0_7 = arith.constant 0 : index
    %c0_8 = arith.constant 0 : index
    %9 = vector.load %arg6[%c0_7, %c0_8] : memref<16x16xbf16, #tpu.memory_space<vmem>>, vector<16x16xbf16>
    %c0_9 = arith.constant 0 : index
    %c0_10 = arith.constant 0 : index
    %10 = vector.load %arg5[%c0_9, %c0_10] : memref<16x128xbf16, #tpu.memory_space<vmem>>, vector<16x128xbf16>
    %cst_11 = arith.constant dense<0.000000e+00> : vector<16x128xf32>
    %11 = tpu.matmul %9, %10, %cst_11 {dimension_numbers = #tpu.dot_dimension_numbers<[1], [0], [0], [1], [0, 0, 1, 1], [], []>} : vector<16x16xbf16>, vector<16x128xbf16>, vector<16x128xf32> -> vector<16x128xf32>
    %c0_12 = arith.constant 0 : index
    %c0_13 = arith.constant 0 : index
    %12 = vector.load %arg7[%c0_12, %c0_13] : memref<16x1xf32, #tpu.memory_space<vmem>>, vector<16x1xf32>
    %13 = vector.broadcast %12 : vector<16x1xf32> to vector<16x128xf32>
    %14 = arith.mulf %11, %13 : vector<16x128xf32>
    %c0_14 = arith.constant 0 : index
    %c0_15 = arith.constant 0 : index
    %15 = vector.load %arg8[%c0_14, %c0_15] : memref<16x1xf32, #tpu.memory_space<vmem>>, vector<16x1xf32>
    %16 = vector.broadcast %15 : vector<16x1xf32> to vector<16x128xf32>
    %17 = arith.addf %14, %16 : vector<16x128xf32>
    %18 = arith.addf %8, %17 : vector<16x128xf32>
    %cst_16 = arith.constant 0.000000e+00 : f32
    %19 = vector.broadcast %cst_16 : f32 to vector<16x128xf32>
    %20 = arith.maximumf %18, %19 : vector<16x128xf32>
    %c0_17 = arith.constant 0 : index
    %c0_18 = arith.constant 0 : index
    %21 = vector.load %arg9[%c0_17, %c0_18] : memref<16x128xf32, #tpu.memory_space<vmem>>, vector<16x128xf32>
    tpu.vector_store %arg9[%c0_17, %c0_18], %20 {strides = array<i32>} : memref<16x128xf32, #tpu.memory_space<vmem>>, vector<16x128xf32>,
    return
  }
  func.func @transform_0(%arg0: i32) -> (i32, i32) {
    %c0_i32 = arith.constant 0 : i32
    %c0_i32_0 = arith.constant 0 : i32
    return %c0_i32, %arg0 : i32, i32
  }
  func.func @transform_1(%arg0: i32) -> (i32, i32) {
    %c0_i32 = arith.constant 0 : i32
    %c0_i32_0 = arith.constant 0 : i32
    %c0_i32_1 = arith.constant 0 : i32
    return %c0_i32, %c0_i32_0 : i32, i32
  }
  func.func @transform_2(%arg0: i32) -> (i32, i32) {
    %c0_i32 = arith.constant 0 : i32
    %c0_i32_0 = arith.constant 0 : i32
    %c0_i32_1 = arith.constant 0 : i32
    return %c0_i32, %c0_i32_0 : i32, i32
  }
  func.func @transform_3(%arg0: i32) -> (i32, i32) {
    %c0_i32 = arith.constant 0 : i32
    %c0_i32_0 = arith.constant 0 : i32
    %c0_i32_1 = arith.constant 0 : i32
    return %c0_i32, %c0_i32_0 : i32, i32
  }
  func.func @transform_4(%arg0: i32) -> (i32, i32) {
    %c0_i32 = arith.constant 0 : i32
    %c0_i32_0 = arith.constant 0 : i32
    return %c0_i32, %arg0 : i32, i32
  }
  func.func @transform_5(%arg0: i32) -> (i32, i32) {
    %c0_i32 = arith.constant 0 : i32
    %c0_i32_0 = arith.constant 0 : i32
    %c0_i32_1 = arith.constant 0 : i32
    return %c0_i32, %c0_i32_0 : i32, i32
  }
  func.func @transform_6(%arg0: i32) -> (i32, i32) {
    %c0_i32 = arith.constant 0 : i32
    %c0_i32_0 = arith.constant 0 : i32
    %c0_i32_1 = arith.constant 0 : i32
    return %c0_i32, %c0_i32_0 : i32, i32
  }
  func.func @transform_7(%arg0: i32) -> (i32, i32) {
    %c0_i32 = arith.constant 0 : i32
    %c0_i32_0 = arith.constant 0 : i32
    %c0_i32_1 = arith.constant 0 : i32
    return %c0_i32, %c0_i32_0 : i32, i32
  }
  func.func @transform_8(%arg0: i32) -> (i32, i32) {
    %c0_i32 = arith.constant 0 : i32
    %c0_i32_0 = arith.constant 0 : i32
    return %c0_i32, %arg0 : i32, i32
  }
}

module attributes {stable_mosaic.version = 11 : i64} {
  func.func @_convT_res_kernel(%arg0: i32, %arg1: memref<144x128xbf16, #tpu.memory_space<vmem>>, %arg2: memref<16x144xbf16, #tpu.memory_space<vmem>>, %arg3: memref<16x1xf32, #tpu.memory_space<vmem>>, %arg4: memref<16x1xf32, #tpu.memory_space<vmem>>, %arg5: memref<16x128xf32, #tpu.memory_space<vmem>>, %arg6: memref<16x128xf32, #tpu.memory_space<vmem>>) attributes {dimension_semantics = [#tpu.dimension_semantics<parallel>], iteration_bounds = array<i64: 2>, scalar_prefetch = 0 : i64, scratch_operands = 0 : i64, tpu.core_type = #tpu.core_type<tc>, window_params = [{transform_indices = @transform_0, window_bounds = array<i64: 144, 128>}, {pipeline_mode = #tpu.pipeline_mode<synchronous>, transform_indices = @transform_1, window_bounds = array<i64: 16, 144>}, {pipeline_mode = #tpu.pipeline_mode<synchronous>, transform_indices = @transform_2, window_bounds = array<i64: 16, 1>}, {pipeline_mode = #tpu.pipeline_mode<synchronous>, transform_indices = @transform_3, window_bounds = array<i64: 16, 1>}, {transform_indices = @transform_4, window_bounds = array<i64: 16, 128>}, {transform_indices = @transform_5, window_bounds = array<i64: 16, 128>}]} {
    %c0 = arith.constant 0 : index
    %c0_0 = arith.constant 0 : index
    %0 = vector.load %arg2[%c0, %c0_0] : memref<16x144xbf16, #tpu.memory_space<vmem>>, vector<16x144xbf16>
    %c0_1 = arith.constant 0 : index
    %c0_2 = arith.constant 0 : index
    %1 = vector.load %arg1[%c0_1, %c0_2] : memref<144x128xbf16, #tpu.memory_space<vmem>>, vector<144x128xbf16>
    %cst = arith.constant dense<0.000000e+00> : vector<16x128xf32>
    %2 = tpu.matmul %0, %1, %cst {dimension_numbers = #tpu.dot_dimension_numbers<[1], [0], [0], [1], [0, 0, 1, 1], [], []>} : vector<16x144xbf16>, vector<144x128xbf16>, vector<16x128xf32> -> vector<16x128xf32>
    %c0_3 = arith.constant 0 : index
    %c0_4 = arith.constant 0 : index
    %3 = vector.load %arg3[%c0_3, %c0_4] : memref<16x1xf32, #tpu.memory_space<vmem>>, vector<16x1xf32>
    %4 = vector.broadcast %3 : vector<16x1xf32> to vector<16x128xf32>
    %5 = arith.mulf %2, %4 : vector<16x128xf32>
    %c0_5 = arith.constant 0 : index
    %c0_6 = arith.constant 0 : index
    %6 = vector.load %arg4[%c0_5, %c0_6] : memref<16x1xf32, #tpu.memory_space<vmem>>, vector<16x1xf32>
    %7 = vector.broadcast %6 : vector<16x1xf32> to vector<16x128xf32>
    %8 = arith.addf %5, %7 : vector<16x128xf32>
    %c0_7 = arith.constant 0 : index
    %c0_8 = arith.constant 0 : index
    %9 = vector.load %arg5[%c0_7, %c0_8] : memref<16x128xf32, #tpu.memory_space<vmem>>, vector<16x128xf32>
    %10 = arith.addf %8, %9 : vector<16x128xf32>
    %cst_9 = arith.constant 0.000000e+00 : f32
    %11 = vector.broadcast %cst_9 : f32 to vector<16x128xf32>
    %12 = arith.maximumf %10, %11 : vector<16x128xf32>
    %c0_10 = arith.constant 0 : index
    %c0_11 = arith.constant 0 : index
    %13 = vector.load %arg6[%c0_10, %c0_11] : memref<16x128xf32, #tpu.memory_space<vmem>>, vector<16x128xf32>
    tpu.vector_store %arg6[%c0_10, %c0_11], %12 {strides = array<i32>} : memref<16x128xf32, #tpu.memory_space<vmem>>, vector<16x128xf32>,
    return
  }
  func.func @transform_0(%arg0: i32) -> (i32, i32) {
    %c0_i32 = arith.constant 0 : i32
    %c0_i32_0 = arith.constant 0 : i32
    return %c0_i32, %arg0 : i32, i32
  }
  func.func @transform_1(%arg0: i32) -> (i32, i32) {
    %c0_i32 = arith.constant 0 : i32
    %c0_i32_0 = arith.constant 0 : i32
    %c0_i32_1 = arith.constant 0 : i32
    return %c0_i32, %c0_i32_0 : i32, i32
  }
  func.func @transform_2(%arg0: i32) -> (i32, i32) {
    %c0_i32 = arith.constant 0 : i32
    %c0_i32_0 = arith.constant 0 : i32
    %c0_i32_1 = arith.constant 0 : i32
    return %c0_i32, %c0_i32_0 : i32, i32
  }
  func.func @transform_3(%arg0: i32) -> (i32, i32) {
    %c0_i32 = arith.constant 0 : i32
    %c0_i32_0 = arith.constant 0 : i32
    %c0_i32_1 = arith.constant 0 : i32
    return %c0_i32, %c0_i32_0 : i32, i32
  }
  func.func @transform_4(%arg0: i32) -> (i32, i32) {
    %c0_i32 = arith.constant 0 : i32
    %c0_i32_0 = arith.constant 0 : i32
    return %c0_i32, %arg0 : i32, i32
  }
  func.func @transform_5(%arg0: i32) -> (i32, i32) {
    %c0_i32 = arith.constant 0 : i32
    %c0_i32_0 = arith.constant 0 : i32
    return %c0_i32, %arg0 : i32, i32
  }
}

module attributes {stable_mosaic.version = 11 : i64} {
  func.func @_rnn_head_kernel(%arg0: i32, %arg1: memref<8x256xbf16, #tpu.memory_space<vmem>>, %arg2: memref<256x32xbf16, #tpu.memory_space<vmem>>, %arg3: memref<1x32xf32, #tpu.memory_space<vmem>>, %arg4: memref<32x128xbf16, #tpu.memory_space<vmem>>, %arg5: memref<32x128xbf16, #tpu.memory_space<vmem>>, %arg6: memref<1x128xf32, #tpu.memory_space<vmem>>, %arg7: memref<32x128xbf16, #tpu.memory_space<vmem>>, %arg8: memref<32x128xbf16, #tpu.memory_space<vmem>>, %arg9: memref<1x128xf32, #tpu.memory_space<vmem>>, %arg10: memref<32x32xbf16, #tpu.memory_space<vmem>>, %arg11: memref<1x32xf32, #tpu.memory_space<vmem>>, %arg12: memref<32x10xbf16, #tpu.memory_space<vmem>>, %arg13: memref<1x10xf32, #tpu.memory_space<vmem>>, %arg14: memref<2x32xf32, #tpu.memory_space<vmem>>, %arg15: memref<2x10xf32, #tpu.memory_space<vmem>>) attributes {dimension_semantics = [#tpu.dimension_semantics<arbitrary>], iteration_bounds = array<i64: 1>, scalar_prefetch = 0 : i64, scratch_operands = 0 : i64, tpu.core_type = #tpu.core_type<tc>, window_params = [{pipeline_mode = #tpu.pipeline_mode<synchronous>, transform_indices = @transform_0, window_bounds = array<i64: 8, 256>}, {pipeline_mode = #tpu.pipeline_mode<synchronous>, transform_indices = @transform_1, window_bounds = array<i64: 256, 32>}, {pipeline_mode = #tpu.pipeline_mode<synchronous>, transform_indices = @transform_2, window_bounds = array<i64: 1, 32>}, {pipeline_mode = #tpu.pipeline_mode<synchronous>, transform_indices = @transform_3, window_bounds = array<i64: 32, 128>}, {pipeline_mode = #tpu.pipeline_mode<synchronous>, transform_indices = @transform_4, window_bounds = array<i64: 32, 128>}, {pipeline_mode = #tpu.pipeline_mode<synchronous>, transform_indices = @transform_5, window_bounds = array<i64: 1, 128>}, {pipeline_mode = #tpu.pipeline_mode<synchronous>, transform_indices = @transform_6, window_bounds = array<i64: 32, 128>}, {pipeline_mode = #tpu.pipeline_mode<synchronous>, transform_indices = @transform_7, window_bounds = array<i64: 32, 128>}, {pipeline_mode = #tpu.pipeline_mode<synchronous>, transform_indices = @transform_8, window_bounds = array<i64: 1, 128>}, {pipeline_mode = #tpu.pipeline_mode<synchronous>, transform_indices = @transform_9, window_bounds = array<i64: 32, 32>}, {pipeline_mode = #tpu.pipeline_mode<synchronous>, transform_indices = @transform_10, window_bounds = array<i64: 1, 32>}, {pipeline_mode = #tpu.pipeline_mode<synchronous>, transform_indices = @transform_11, window_bounds = array<i64: 32, 10>}, {pipeline_mode = #tpu.pipeline_mode<synchronous>, transform_indices = @transform_12, window_bounds = array<i64: 1, 10>}, {pipeline_mode = #tpu.pipeline_mode<synchronous>, transform_indices = @transform_13, window_bounds = array<i64: 2, 32>}, {pipeline_mode = #tpu.pipeline_mode<synchronous>, transform_indices = @transform_14, window_bounds = array<i64: 2, 10>}]} {
    %c0 = arith.constant 0 : index
    %c0_0 = arith.constant 0 : index
    %0 = vector.load %arg1[%c0, %c0_0] : memref<8x256xbf16, #tpu.memory_space<vmem>>, vector<8x256xbf16>
    %c0_1 = arith.constant 0 : index
    %c0_2 = arith.constant 0 : index
    %1 = vector.load %arg2[%c0_1, %c0_2] : memref<256x32xbf16, #tpu.memory_space<vmem>>, vector<256x32xbf16>
    %cst = arith.constant dense<0.000000e+00> : vector<8x32xf32>
    %2 = tpu.matmul %0, %1, %cst {dimension_numbers = #tpu.dot_dimension_numbers<[1], [0], [0], [1], [0, 0, 1, 1], [], []>} : vector<8x256xbf16>, vector<256x32xbf16>, vector<8x32xf32> -> vector<8x32xf32>
    %c0_3 = arith.constant 0 : index
    %c0_4 = arith.constant 0 : index
    %3 = vector.load %arg3[%c0_3, %c0_4] : memref<1x32xf32, #tpu.memory_space<vmem>>, vector<1x32xf32>
    %4 = vector.broadcast %3 : vector<1x32xf32> to vector<8x32xf32>
    %5 = arith.addf %2, %4 : vector<8x32xf32>
    %cst_5 = arith.constant 0.000000e+00 : f32
    %6 = vector.broadcast %cst_5 : f32 to vector<8x32xf32>
    %7 = arith.maximumf %5, %6 : vector<8x32xf32>
    %c0_6 = arith.constant 0 : index
    %c0_7 = arith.constant 0 : index
    %8 = vector.load %arg4[%c0_6, %c0_7] : memref<32x128xbf16, #tpu.memory_space<vmem>>, vector<32x128xbf16>
    %c0_8 = arith.constant 0 : index
    %c0_9 = arith.constant 0 : index
    %9 = vector.load %arg7[%c0_8, %c0_9] : memref<32x128xbf16, #tpu.memory_space<vmem>>, vector<32x128xbf16>
    %c0_10 = arith.constant 0 : index
    %c0_11 = arith.constant 0 : index
    %10 = vector.load %arg5[%c0_10, %c0_11] : memref<32x128xbf16, #tpu.memory_space<vmem>>, vector<32x128xbf16>
    %c0_12 = arith.constant 0 : index
    %c0_13 = arith.constant 0 : index
    %11 = vector.load %arg8[%c0_12, %c0_13] : memref<32x128xbf16, #tpu.memory_space<vmem>>, vector<32x128xbf16>
    %c0_14 = arith.constant 0 : index
    %c0_15 = arith.constant 0 : index
    %12 = vector.load %arg6[%c0_14, %c0_15] : memref<1x128xf32, #tpu.memory_space<vmem>>, vector<1x128xf32>
    %c0_16 = arith.constant 0 : index
    %c0_17 = arith.constant 0 : index
    %13 = vector.load %arg9[%c0_16, %c0_17] : memref<1x128xf32, #tpu.memory_space<vmem>>, vector<1x128xf32>
    %14 = arith.truncf %7 : vector<8x32xf32> to vector<8x32xbf16>
    %cst_18 = arith.constant dense<0.000000e+00> : vector<8x128xf32>
    %15 = tpu.matmul %14, %8, %cst_18 {dimension_numbers = #tpu.dot_dimension_numbers<[1], [0], [0], [1], [0, 0, 1, 1], [], []>} : vector<8x32xbf16>, vector<32x128xbf16>, vector<8x128xf32> -> vector<8x128xf32>
    %16 = vector.broadcast %12 : vector<1x128xf32> to vector<8x128xf32>
    %17 = arith.addf %15, %16 : vector<8x128xf32>
    %cst_19 = arith.constant 0.000000e+00 : f32
    %18 = vector.broadcast %cst_19 : f32 to vector<2x32xf32>
    %cst_20 = arith.constant 0.000000e+00 : f32
    %19 = vector.broadcast %cst_20 : f32 to vector<2x32xf32>
    %cst_21 = arith.constant 0.000000e+00 : f32
    %20 = vector.broadcast %cst_21 : f32 to vector<2x32xf32>
    %cst_22 = arith.constant 0.000000e+00 : f32
    %21 = vector.broadcast %cst_22 : f32 to vector<2x32xf32>
    %22 = vector.extract_strided_slice %17 {offsets = [0, 0], sizes = [2, 128], strides = [1, 1]} : vector<8x128xf32> to vector<2x128xf32>
    %23 = arith.truncf %18 : vector<2x32xf32> to vector<2x32xbf16>
    %cst_23 = arith.constant dense<0.000000e+00> : vector<2x128xf32>
    %24 = tpu.matmul %23, %10, %cst_23 {dimension_numbers = #tpu.dot_dimension_numbers<[1], [0], [0], [1], [0, 0, 1, 1], [], []>} : vector<2x32xbf16>, vector<32x128xbf16>, vector<2x128xf32> -> vector<2x128xf32>
    %25 = arith.addf %22, %24 : vector<2x128xf32>
    %26 = vector.extract_strided_slice %25 {offsets = [0, 0], sizes = [2, 32], strides = [1, 1]} : vector<2x128xf32> to vector<2x32xf32>
    %cst_24 = arith.constant 0.000000e+00 : f32
    %27 = vector.broadcast %cst_24 : f32 to vector<2x32xf32>
    %28 = arith.subf %27, %26 : vector<2x32xf32>
    %29 = math.exp %28 : vector<2x32xf32>
    %cst_25 = arith.constant 1.000000e+00 : f32
    %30 = vector.broadcast %cst_25 : f32 to vector<2x32xf32>
    %31 = arith.addf %30, %29 : vector<2x32xf32>
    %32 = tpu.reciprocal %31 {approx = true} : vector<2x32xf32> -> vector<2x32xf32>
    %33 = vector.extract_strided_slice %25 {offsets = [0, 32], sizes = [2, 32], strides = [1, 1]} : vector<2x128xf32> to vector<2x32xf32>
    %cst_26 = arith.constant 0.000000e+00 : f32
    %34 = vector.broadcast %cst_26 : f32 to vector<2x32xf32>
    %35 = arith.subf %34, %33 : vector<2x32xf32>
    %36 = math.exp %35 : vector<2x32xf32>
    %cst_27 = arith.constant 1.000000e+00 : f32
    %37 = vector.broadcast %cst_27 : f32 to vector<2x32xf32>
    %38 = arith.addf %37, %36 : vector<2x32xf32>
    %39 = tpu.reciprocal %38 {approx = true} : vector<2x32xf32> -> vector<2x32xf32>
    %40 = vector.extract_strided_slice %25 {offsets = [0, 64], sizes = [2, 32], strides = [1, 1]} : vector<2x128xf32> to vector<2x32xf32>
    %41 = math.tanh %40 : vector<2x32xf32>
    %42 = vector.extract_strided_slice %25 {offsets = [0, 96], sizes = [2, 32], strides = [1, 1]} : vector<2x128xf32> to vector<2x32xf32>
    %cst_28 = arith.constant 0.000000e+00 : f32
    %43 = vector.broadcast %cst_28 : f32 to vector<2x32xf32>
    %44 = arith.subf %43, %42 : vector<2x32xf32>
    %45 = math.exp %44 : vector<2x32xf32>
    %cst_29 = arith.constant 1.000000e+00 : f32
    %46 = vector.broadcast %cst_29 : f32 to vector<2x32xf32>
    %47 = arith.addf %46, %45 : vector<2x32xf32>
    %48 = tpu.reciprocal %47 {approx = true} : vector<2x32xf32> -> vector<2x32xf32>
    %49 = arith.mulf %39, %20 : vector<2x32xf32>
    %50 = arith.mulf %32, %41 : vector<2x32xf32>
    %51 = arith.addf %49, %50 : vector<2x32xf32>
    %52 = math.tanh %51 : vector<2x32xf32>
    %53 = arith.mulf %48, %52 : vector<2x32xf32>
    %54 = arith.truncf %53 : vector<2x32xf32> to vector<2x32xbf16>
    %cst_30 = arith.constant dense<0.000000e+00> : vector<2x128xf32>
    %55 = tpu.matmul %54, %9, %cst_30 {dimension_numbers = #tpu.dot_dimension_numbers<[1], [0], [0], [1], [0, 0, 1, 1], [], []>} : vector<2x32xbf16>, vector<32x128xbf16>, vector<2x128xf32> -> vector<2x128xf32>
    %56 = vector.broadcast %13 : vector<1x128xf32> to vector<2x128xf32>
    %57 = arith.addf %55, %56 : vector<2x128xf32>
    %58 = arith.truncf %19 : vector<2x32xf32> to vector<2x32xbf16>
    %cst_31 = arith.constant dense<0.000000e+00> : vector<2x128xf32>
    %59 = tpu.matmul %58, %11, %cst_31 {dimension_numbers = #tpu.dot_dimension_numbers<[1], [0], [0], [1], [0, 0, 1, 1], [], []>} : vector<2x32xbf16>, vector<32x128xbf16>, vector<2x128xf32> -> vector<2x128xf32>
    %60 = arith.addf %57, %59 : vector<2x128xf32>
    %61 = vector.extract_strided_slice %60 {offsets = [0, 0], sizes = [2, 32], strides = [1, 1]} : vector<2x128xf32> to vector<2x32xf32>
    %cst_32 = arith.constant 0.000000e+00 : f32
    %62 = vector.broadcast %cst_32 : f32 to vector<2x32xf32>
    %63 = arith.subf %62, %61 : vector<2x32xf32>
    %64 = math.exp %63 : vector<2x32xf32>
    %cst_33 = arith.constant 1.000000e+00 : f32
    %65 = vector.broadcast %cst_33 : f32 to vector<2x32xf32>
    %66 = arith.addf %65, %64 : vector<2x32xf32>
    %67 = tpu.reciprocal %66 {approx = true} : vector<2x32xf32> -> vector<2x32xf32>
    %68 = vector.extract_strided_slice %60 {offsets = [0, 32], sizes = [2, 32], strides = [1, 1]} : vector<2x128xf32> to vector<2x32xf32>
    %cst_34 = arith.constant 0.000000e+00 : f32
    %69 = vector.broadcast %cst_34 : f32 to vector<2x32xf32>
    %70 = arith.subf %69, %68 : vector<2x32xf32>
    %71 = math.exp %70 : vector<2x32xf32>
    %cst_35 = arith.constant 1.000000e+00 : f32
    %72 = vector.broadcast %cst_35 : f32 to vector<2x32xf32>
    %73 = arith.addf %72, %71 : vector<2x32xf32>
    %74 = tpu.reciprocal %73 {approx = true} : vector<2x32xf32> -> vector<2x32xf32>
    %75 = vector.extract_strided_slice %60 {offsets = [0, 64], sizes = [2, 32], strides = [1, 1]} : vector<2x128xf32> to vector<2x32xf32>
    %76 = math.tanh %75 : vector<2x32xf32>
    %77 = vector.extract_strided_slice %60 {offsets = [0, 96], sizes = [2, 32], strides = [1, 1]} : vector<2x128xf32> to vector<2x32xf32>
    %cst_36 = arith.constant 0.000000e+00 : f32
    %78 = vector.broadcast %cst_36 : f32 to vector<2x32xf32>
    %79 = arith.subf %78, %77 : vector<2x32xf32>
    %80 = math.exp %79 : vector<2x32xf32>
    %cst_37 = arith.constant 1.000000e+00 : f32
    %81 = vector.broadcast %cst_37 : f32 to vector<2x32xf32>
    %82 = arith.addf %81, %80 : vector<2x32xf32>
    %83 = tpu.reciprocal %82 {approx = true} : vector<2x32xf32> -> vector<2x32xf32>
    %84 = arith.mulf %74, %21 : vector<2x32xf32>
    %85 = arith.mulf %67, %76 : vector<2x32xf32>
    %86 = arith.addf %84, %85 : vector<2x32xf32>
    %87 = math.tanh %86 : vector<2x32xf32>
    %88 = arith.mulf %83, %87 : vector<2x32xf32>
    %89 = vector.extract_strided_slice %17 {offsets = [2, 0], sizes = [2, 128], strides = [1, 1]} : vector<8x128xf32> to vector<2x128xf32>
    %90 = arith.truncf %53 : vector<2x32xf32> to vector<2x32xbf16>
    %cst_38 = arith.constant dense<0.000000e+00> : vector<2x128xf32>
    %91 = tpu.matmul %90, %10, %cst_38 {dimension_numbers = #tpu.dot_dimension_numbers<[1], [0], [0], [1], [0, 0, 1, 1], [], []>} : vector<2x32xbf16>, vector<32x128xbf16>, vector<2x128xf32> -> vector<2x128xf32>
    %92 = arith.addf %89, %91 : vector<2x128xf32>
    %93 = vector.extract_strided_slice %92 {offsets = [0, 0], sizes = [2, 32], strides = [1, 1]} : vector<2x128xf32> to vector<2x32xf32>
    %cst_39 = arith.constant 0.000000e+00 : f32
    %94 = vector.broadcast %cst_39 : f32 to vector<2x32xf32>
    %95 = arith.subf %94, %93 : vector<2x32xf32>
    %96 = math.exp %95 : vector<2x32xf32>
    %cst_40 = arith.constant 1.000000e+00 : f32
    %97 = vector.broadcast %cst_40 : f32 to vector<2x32xf32>
    %98 = arith.addf %97, %96 : vector<2x32xf32>
    %99 = tpu.reciprocal %98 {approx = true} : vector<2x32xf32> -> vector<2x32xf32>
    %100 = vector.extract_strided_slice %92 {offsets = [0, 32], sizes = [2, 32], strides = [1, 1]} : vector<2x128xf32> to vector<2x32xf32>
    %cst_41 = arith.constant 0.000000e+00 : f32
    %101 = vector.broadcast %cst_41 : f32 to vector<2x32xf32>
    %102 = arith.subf %101, %100 : vector<2x32xf32>
    %103 = math.exp %102 : vector<2x32xf32>
    %cst_42 = arith.constant 1.000000e+00 : f32
    %104 = vector.broadcast %cst_42 : f32 to vector<2x32xf32>
    %105 = arith.addf %104, %103 : vector<2x32xf32>
    %106 = tpu.reciprocal %105 {approx = true} : vector<2x32xf32> -> vector<2x32xf32>
    %107 = vector.extract_strided_slice %92 {offsets = [0, 64], sizes = [2, 32], strides = [1, 1]} : vector<2x128xf32> to vector<2x32xf32>
    %108 = math.tanh %107 : vector<2x32xf32>
    %109 = vector.extract_strided_slice %92 {offsets = [0, 96], sizes = [2, 32], strides = [1, 1]} : vector<2x128xf32> to vector<2x32xf32>
    %cst_43 = arith.constant 0.000000e+00 : f32
    %110 = vector.broadcast %cst_43 : f32 to vector<2x32xf32>
    %111 = arith.subf %110, %109 : vector<2x32xf32>
    %112 = math.exp %111 : vector<2x32xf32>
    %cst_44 = arith.constant 1.000000e+00 : f32
    %113 = vector.broadcast %cst_44 : f32 to vector<2x32xf32>
    %114 = arith.addf %113, %112 : vector<2x32xf32>
    %115 = tpu.reciprocal %114 {approx = true} : vector<2x32xf32> -> vector<2x32xf32>
    %116 = arith.mulf %106, %51 : vector<2x32xf32>
    %117 = arith.mulf %99, %108 : vector<2x32xf32>
    %118 = arith.addf %116, %117 : vector<2x32xf32>
    %119 = math.tanh %118 : vector<2x32xf32>
    %120 = arith.mulf %115, %119 : vector<2x32xf32>
    %121 = arith.truncf %120 : vector<2x32xf32> to vector<2x32xbf16>
    %cst_45 = arith.constant dense<0.000000e+00> : vector<2x128xf32>
    %122 = tpu.matmul %121, %9, %cst_45 {dimension_numbers = #tpu.dot_dimension_numbers<[1], [0], [0], [1], [0, 0, 1, 1], [], []>} : vector<2x32xbf16>, vector<32x128xbf16>, vector<2x128xf32> -> vector<2x128xf32>
    %123 = vector.broadcast %13 : vector<1x128xf32> to vector<2x128xf32>
    %124 = arith.addf %122, %123 : vector<2x128xf32>
    %125 = arith.truncf %88 : vector<2x32xf32> to vector<2x32xbf16>
    %cst_46 = arith.constant dense<0.000000e+00> : vector<2x128xf32>
    %126 = tpu.matmul %125, %11, %cst_46 {dimension_numbers = #tpu.dot_dimension_numbers<[1], [0], [0], [1], [0, 0, 1, 1], [], []>} : vector<2x32xbf16>, vector<32x128xbf16>, vector<2x128xf32> -> vector<2x128xf32>
    %127 = arith.addf %124, %126 : vector<2x128xf32>
    %128 = vector.extract_strided_slice %127 {offsets = [0, 0], sizes = [2, 32], strides = [1, 1]} : vector<2x128xf32> to vector<2x32xf32>
    %cst_47 = arith.constant 0.000000e+00 : f32
    %129 = vector.broadcast %cst_47 : f32 to vector<2x32xf32>
    %130 = arith.subf %129, %128 : vector<2x32xf32>
    %131 = math.exp %130 : vector<2x32xf32>
    %cst_48 = arith.constant 1.000000e+00 : f32
    %132 = vector.broadcast %cst_48 : f32 to vector<2x32xf32>
    %133 = arith.addf %132, %131 : vector<2x32xf32>
    %134 = tpu.reciprocal %133 {approx = true} : vector<2x32xf32> -> vector<2x32xf32>
    %135 = vector.extract_strided_slice %127 {offsets = [0, 32], sizes = [2, 32], strides = [1, 1]} : vector<2x128xf32> to vector<2x32xf32>
    %cst_49 = arith.constant 0.000000e+00 : f32
    %136 = vector.broadcast %cst_49 : f32 to vector<2x32xf32>
    %137 = arith.subf %136, %135 : vector<2x32xf32>
    %138 = math.exp %137 : vector<2x32xf32>
    %cst_50 = arith.constant 1.000000e+00 : f32
    %139 = vector.broadcast %cst_50 : f32 to vector<2x32xf32>
    %140 = arith.addf %139, %138 : vector<2x32xf32>
    %141 = tpu.reciprocal %140 {approx = true} : vector<2x32xf32> -> vector<2x32xf32>
    %142 = vector.extract_strided_slice %127 {offsets = [0, 64], sizes = [2, 32], strides = [1, 1]} : vector<2x128xf32> to vector<2x32xf32>
    %143 = math.tanh %142 : vector<2x32xf32>
    %144 = vector.extract_strided_slice %127 {offsets = [0, 96], sizes = [2, 32], strides = [1, 1]} : vector<2x128xf32> to vector<2x32xf32>
    %cst_51 = arith.constant 0.000000e+00 : f32
    %145 = vector.broadcast %cst_51 : f32 to vector<2x32xf32>
    %146 = arith.subf %145, %144 : vector<2x32xf32>
    %147 = math.exp %146 : vector<2x32xf32>
    %cst_52 = arith.constant 1.000000e+00 : f32
    %148 = vector.broadcast %cst_52 : f32 to vector<2x32xf32>
    %149 = arith.addf %148, %147 : vector<2x32xf32>
    %150 = tpu.reciprocal %149 {approx = true} : vector<2x32xf32> -> vector<2x32xf32>
    %151 = arith.mulf %141, %86 : vector<2x32xf32>
    %152 = arith.mulf %134, %143 : vector<2x32xf32>
    %153 = arith.addf %151, %152 : vector<2x32xf32>
    %154 = math.tanh %153 : vector<2x32xf32>
    %155 = arith.mulf %150, %154 : vector<2x32xf32>
    %156 = vector.extract_strided_slice %17 {offsets = [4, 0], sizes = [2, 128], strides = [1, 1]} : vector<8x128xf32> to vector<2x128xf32>
    %157 = arith.truncf %120 : vector<2x32xf32> to vector<2x32xbf16>
    %cst_53 = arith.constant dense<0.000000e+00> : vector<2x128xf32>
    %158 = tpu.matmul %157, %10, %cst_53 {dimension_numbers = #tpu.dot_dimension_numbers<[1], [0], [0], [1], [0, 0, 1, 1], [], []>} : vector<2x32xbf16>, vector<32x128xbf16>, vector<2x128xf32> -> vector<2x128xf32>
    %159 = arith.addf %156, %158 : vector<2x128xf32>
    %160 = vector.extract_strided_slice %159 {offsets = [0, 0], sizes = [2, 32], strides = [1, 1]} : vector<2x128xf32> to vector<2x32xf32>
    %cst_54 = arith.constant 0.000000e+00 : f32
    %161 = vector.broadcast %cst_54 : f32 to vector<2x32xf32>
    %162 = arith.subf %161, %160 : vector<2x32xf32>
    %163 = math.exp %162 : vector<2x32xf32>
    %cst_55 = arith.constant 1.000000e+00 : f32
    %164 = vector.broadcast %cst_55 : f32 to vector<2x32xf32>
    %165 = arith.addf %164, %163 : vector<2x32xf32>
    %166 = tpu.reciprocal %165 {approx = true} : vector<2x32xf32> -> vector<2x32xf32>
    %167 = vector.extract_strided_slice %159 {offsets = [0, 32], sizes = [2, 32], strides = [1, 1]} : vector<2x128xf32> to vector<2x32xf32>
    %cst_56 = arith.constant 0.000000e+00 : f32
    %168 = vector.broadcast %cst_56 : f32 to vector<2x32xf32>
    %169 = arith.subf %168, %167 : vector<2x32xf32>
    %170 = math.exp %169 : vector<2x32xf32>
    %cst_57 = arith.constant 1.000000e+00 : f32
    %171 = vector.broadcast %cst_57 : f32 to vector<2x32xf32>
    %172 = arith.addf %171, %170 : vector<2x32xf32>
    %173 = tpu.reciprocal %172 {approx = true} : vector<2x32xf32> -> vector<2x32xf32>
    %174 = vector.extract_strided_slice %159 {offsets = [0, 64], sizes = [2, 32], strides = [1, 1]} : vector<2x128xf32> to vector<2x32xf32>
    %175 = math.tanh %174 : vector<2x32xf32>
    %176 = vector.extract_strided_slice %159 {offsets = [0, 96], sizes = [2, 32], strides = [1, 1]} : vector<2x128xf32> to vector<2x32xf32>
    %cst_58 = arith.constant 0.000000e+00 : f32
    %177 = vector.broadcast %cst_58 : f32 to vector<2x32xf32>
    %178 = arith.subf %177, %176 : vector<2x32xf32>
    %179 = math.exp %178 : vector<2x32xf32>
    %cst_59 = arith.constant 1.000000e+00 : f32
    %180 = vector.broadcast %cst_59 : f32 to vector<2x32xf32>
    %181 = arith.addf %180, %179 : vector<2x32xf32>
    %182 = tpu.reciprocal %181 {approx = true} : vector<2x32xf32> -> vector<2x32xf32>
    %183 = arith.mulf %173, %118 : vector<2x32xf32>
    %184 = arith.mulf %166, %175 : vector<2x32xf32>
    %185 = arith.addf %183, %184 : vector<2x32xf32>
    %186 = math.tanh %185 : vector<2x32xf32>
    %187 = arith.mulf %182, %186 : vector<2x32xf32>
    %188 = arith.truncf %187 : vector<2x32xf32> to vector<2x32xbf16>
    %cst_60 = arith.constant dense<0.000000e+00> : vector<2x128xf32>
    %189 = tpu.matmul %188, %9, %cst_60 {dimension_numbers = #tpu.dot_dimension_numbers<[1], [0], [0], [1], [0, 0, 1, 1], [], []>} : vector<2x32xbf16>, vector<32x128xbf16>, vector<2x128xf32> -> vector<2x128xf32>
    %190 = vector.broadcast %13 : vector<1x128xf32> to vector<2x128xf32>
    %191 = arith.addf %189, %190 : vector<2x128xf32>
    %192 = arith.truncf %155 : vector<2x32xf32> to vector<2x32xbf16>
    %cst_61 = arith.constant dense<0.000000e+00> : vector<2x128xf32>
    %193 = tpu.matmul %192, %11, %cst_61 {dimension_numbers = #tpu.dot_dimension_numbers<[1], [0], [0], [1], [0, 0, 1, 1], [], []>} : vector<2x32xbf16>, vector<32x128xbf16>, vector<2x128xf32> -> vector<2x128xf32>
    %194 = arith.addf %191, %193 : vector<2x128xf32>
    %195 = vector.extract_strided_slice %194 {offsets = [0, 0], sizes = [2, 32], strides = [1, 1]} : vector<2x128xf32> to vector<2x32xf32>
    %cst_62 = arith.constant 0.000000e+00 : f32
    %196 = vector.broadcast %cst_62 : f32 to vector<2x32xf32>
    %197 = arith.subf %196, %195 : vector<2x32xf32>
    %198 = math.exp %197 : vector<2x32xf32>
    %cst_63 = arith.constant 1.000000e+00 : f32
    %199 = vector.broadcast %cst_63 : f32 to vector<2x32xf32>
    %200 = arith.addf %199, %198 : vector<2x32xf32>
    %201 = tpu.reciprocal %200 {approx = true} : vector<2x32xf32> -> vector<2x32xf32>
    %202 = vector.extract_strided_slice %194 {offsets = [0, 32], sizes = [2, 32], strides = [1, 1]} : vector<2x128xf32> to vector<2x32xf32>
    %cst_64 = arith.constant 0.000000e+00 : f32
    %203 = vector.broadcast %cst_64 : f32 to vector<2x32xf32>
    %204 = arith.subf %203, %202 : vector<2x32xf32>
    %205 = math.exp %204 : vector<2x32xf32>
    %cst_65 = arith.constant 1.000000e+00 : f32
    %206 = vector.broadcast %cst_65 : f32 to vector<2x32xf32>
    %207 = arith.addf %206, %205 : vector<2x32xf32>
    %208 = tpu.reciprocal %207 {approx = true} : vector<2x32xf32> -> vector<2x32xf32>
    %209 = vector.extract_strided_slice %194 {offsets = [0, 64], sizes = [2, 32], strides = [1, 1]} : vector<2x128xf32> to vector<2x32xf32>
    %210 = math.tanh %209 : vector<2x32xf32>
    %211 = vector.extract_strided_slice %194 {offsets = [0, 96], sizes = [2, 32], strides = [1, 1]} : vector<2x128xf32> to vector<2x32xf32>
    %cst_66 = arith.constant 0.000000e+00 : f32
    %212 = vector.broadcast %cst_66 : f32 to vector<2x32xf32>
    %213 = arith.subf %212, %211 : vector<2x32xf32>
    %214 = math.exp %213 : vector<2x32xf32>
    %cst_67 = arith.constant 1.000000e+00 : f32
    %215 = vector.broadcast %cst_67 : f32 to vector<2x32xf32>
    %216 = arith.addf %215, %214 : vector<2x32xf32>
    %217 = tpu.reciprocal %216 {approx = true} : vector<2x32xf32> -> vector<2x32xf32>
    %218 = arith.mulf %208, %153 : vector<2x32xf32>
    %219 = arith.mulf %201, %210 : vector<2x32xf32>
    %220 = arith.addf %218, %219 : vector<2x32xf32>
    %221 = math.tanh %220 : vector<2x32xf32>
    %222 = arith.mulf %217, %221 : vector<2x32xf32>
    %223 = vector.extract_strided_slice %17 {offsets = [6, 0], sizes = [2, 128], strides = [1, 1]} : vector<8x128xf32> to vector<2x128xf32>
    %224 = arith.truncf %187 : vector<2x32xf32> to vector<2x32xbf16>
    %cst_68 = arith.constant dense<0.000000e+00> : vector<2x128xf32>
    %225 = tpu.matmul %224, %10, %cst_68 {dimension_numbers = #tpu.dot_dimension_numbers<[1], [0], [0], [1], [0, 0, 1, 1], [], []>} : vector<2x32xbf16>, vector<32x128xbf16>, vector<2x128xf32> -> vector<2x128xf32>
    %226 = arith.addf %223, %225 : vector<2x128xf32>
    %227 = vector.extract_strided_slice %226 {offsets = [0, 0], sizes = [2, 32], strides = [1, 1]} : vector<2x128xf32> to vector<2x32xf32>
    %cst_69 = arith.constant 0.000000e+00 : f32
    %228 = vector.broadcast %cst_69 : f32 to vector<2x32xf32>
    %229 = arith.subf %228, %227 : vector<2x32xf32>
    %230 = math.exp %229 : vector<2x32xf32>
    %cst_70 = arith.constant 1.000000e+00 : f32
    %231 = vector.broadcast %cst_70 : f32 to vector<2x32xf32>
    %232 = arith.addf %231, %230 : vector<2x32xf32>
    %233 = tpu.reciprocal %232 {approx = true} : vector<2x32xf32> -> vector<2x32xf32>
    %234 = vector.extract_strided_slice %226 {offsets = [0, 32], sizes = [2, 32], strides = [1, 1]} : vector<2x128xf32> to vector<2x32xf32>
    %cst_71 = arith.constant 0.000000e+00 : f32
    %235 = vector.broadcast %cst_71 : f32 to vector<2x32xf32>
    %236 = arith.subf %235, %234 : vector<2x32xf32>
    %237 = math.exp %236 : vector<2x32xf32>
    %cst_72 = arith.constant 1.000000e+00 : f32
    %238 = vector.broadcast %cst_72 : f32 to vector<2x32xf32>
    %239 = arith.addf %238, %237 : vector<2x32xf32>
    %240 = tpu.reciprocal %239 {approx = true} : vector<2x32xf32> -> vector<2x32xf32>
    %241 = vector.extract_strided_slice %226 {offsets = [0, 64], sizes = [2, 32], strides = [1, 1]} : vector<2x128xf32> to vector<2x32xf32>
    %242 = math.tanh %241 : vector<2x32xf32>
    %243 = vector.extract_strided_slice %226 {offsets = [0, 96], sizes = [2, 32], strides = [1, 1]} : vector<2x128xf32> to vector<2x32xf32>
    %cst_73 = arith.constant 0.000000e+00 : f32
    %244 = vector.broadcast %cst_73 : f32 to vector<2x32xf32>
    %245 = arith.subf %244, %243 : vector<2x32xf32>
    %246 = math.exp %245 : vector<2x32xf32>
    %cst_74 = arith.constant 1.000000e+00 : f32
    %247 = vector.broadcast %cst_74 : f32 to vector<2x32xf32>
    %248 = arith.addf %247, %246 : vector<2x32xf32>
    %249 = tpu.reciprocal %248 {approx = true} : vector<2x32xf32> -> vector<2x32xf32>
    %250 = arith.mulf %240, %185 : vector<2x32xf32>
    %251 = arith.mulf %233, %242 : vector<2x32xf32>
    %252 = arith.addf %250, %251 : vector<2x32xf32>
    %253 = math.tanh %252 : vector<2x32xf32>
    %254 = arith.mulf %249, %253 : vector<2x32xf32>
    %255 = arith.truncf %254 : vector<2x32xf32> to vector<2x32xbf16>
    %cst_75 = arith.constant dense<0.000000e+00> : vector<2x128xf32>
    %256 = tpu.matmul %255, %9, %cst_75 {dimension_numbers = #tpu.dot_dimension_numbers<[1], [0], [0], [1], [0, 0, 1, 1], [], []>} : vector<2x32xbf16>, vector<32x128xbf16>, vector<2x128xf32> -> vector<2x128xf32>
    %257 = vector.broadcast %13 : vector<1x128xf32> to vector<2x128xf32>
    %258 = arith.addf %256, %257 : vector<2x128xf32>
    %259 = arith.truncf %222 : vector<2x32xf32> to vector<2x32xbf16>
    %cst_76 = arith.constant dense<0.000000e+00> : vector<2x128xf32>
    %260 = tpu.matmul %259, %11, %cst_76 {dimension_numbers = #tpu.dot_dimension_numbers<[1], [0], [0], [1], [0, 0, 1, 1], [], []>} : vector<2x32xbf16>, vector<32x128xbf16>, vector<2x128xf32> -> vector<2x128xf32>
    %261 = arith.addf %258, %260 : vector<2x128xf32>
    %262 = vector.extract_strided_slice %261 {offsets = [0, 0], sizes = [2, 32], strides = [1, 1]} : vector<2x128xf32> to vector<2x32xf32>
    %cst_77 = arith.constant 0.000000e+00 : f32
    %263 = vector.broadcast %cst_77 : f32 to vector<2x32xf32>
    %264 = arith.subf %263, %262 : vector<2x32xf32>
    %265 = math.exp %264 : vector<2x32xf32>
    %cst_78 = arith.constant 1.000000e+00 : f32
    %266 = vector.broadcast %cst_78 : f32 to vector<2x32xf32>
    %267 = arith.addf %266, %265 : vector<2x32xf32>
    %268 = tpu.reciprocal %267 {approx = true} : vector<2x32xf32> -> vector<2x32xf32>
    %269 = vector.extract_strided_slice %261 {offsets = [0, 32], sizes = [2, 32], strides = [1, 1]} : vector<2x128xf32> to vector<2x32xf32>
    %cst_79 = arith.constant 0.000000e+00 : f32
    %270 = vector.broadcast %cst_79 : f32 to vector<2x32xf32>
    %271 = arith.subf %270, %269 : vector<2x32xf32>
    %272 = math.exp %271 : vector<2x32xf32>
    %cst_80 = arith.constant 1.000000e+00 : f32
    %273 = vector.broadcast %cst_80 : f32 to vector<2x32xf32>
    %274 = arith.addf %273, %272 : vector<2x32xf32>
    %275 = tpu.reciprocal %274 {approx = true} : vector<2x32xf32> -> vector<2x32xf32>
    %276 = vector.extract_strided_slice %261 {offsets = [0, 64], sizes = [2, 32], strides = [1, 1]} : vector<2x128xf32> to vector<2x32xf32>
    %277 = math.tanh %276 : vector<2x32xf32>
    %278 = vector.extract_strided_slice %261 {offsets = [0, 96], sizes = [2, 32], strides = [1, 1]} : vector<2x128xf32> to vector<2x32xf32>
    %cst_81 = arith.constant 0.000000e+00 : f32
    %279 = vector.broadcast %cst_81 : f32 to vector<2x32xf32>
    %280 = arith.subf %279, %278 : vector<2x32xf32>
    %281 = math.exp %280 : vector<2x32xf32>
    %cst_82 = arith.constant 1.000000e+00 : f32
    %282 = vector.broadcast %cst_82 : f32 to vector<2x32xf32>
    %283 = arith.addf %282, %281 : vector<2x32xf32>
    %284 = tpu.reciprocal %283 {approx = true} : vector<2x32xf32> -> vector<2x32xf32>
    %285 = arith.mulf %275, %220 : vector<2x32xf32>
    %286 = arith.mulf %268, %277 : vector<2x32xf32>
    %287 = arith.addf %285, %286 : vector<2x32xf32>
    %288 = math.tanh %287 : vector<2x32xf32>
    %289 = arith.mulf %284, %288 : vector<2x32xf32>
    %290 = arith.truncf %289 : vector<2x32xf32> to vector<2x32xbf16>
    %c0_83 = arith.constant 0 : index
    %c0_84 = arith.constant 0 : index
    %291 = vector.load %arg10[%c0_83, %c0_84] : memref<32x32xbf16, #tpu.memory_space<vmem>>, vector<32x32xbf16>
    %cst_85 = arith.constant dense<0.000000e+00> : vector<2x32xf32>
    %292 = tpu.matmul %290, %291, %cst_85 {dimension_numbers = #tpu.dot_dimension_numbers<[1], [0], [0], [1], [0, 0, 1, 1], [], []>} : vector<2x32xbf16>, vector<32x32xbf16>, vector<2x32xf32> -> vector<2x32xf32>
    %c0_86 = arith.constant 0 : index
    %c0_87 = arith.constant 0 : index
    %293 = vector.load %arg11[%c0_86, %c0_87] : memref<1x32xf32, #tpu.memory_space<vmem>>, vector<1x32xf32>
    %294 = vector.broadcast %293 : vector<1x32xf32> to vector<2x32xf32>
    %295 = arith.addf %292, %294 : vector<2x32xf32>
    %cst_88 = arith.constant 0.000000e+00 : f32
    %296 = vector.broadcast %cst_88 : f32 to vector<2x32xf32>
    %297 = arith.maximumf %295, %296 : vector<2x32xf32>
    %298 = arith.truncf %297 : vector<2x32xf32> to vector<2x32xbf16>
    %c0_89 = arith.constant 0 : index
    %c0_90 = arith.constant 0 : index
    %299 = vector.load %arg12[%c0_89, %c0_90] : memref<32x10xbf16, #tpu.memory_space<vmem>>, vector<32x10xbf16>
    %cst_91 = arith.constant dense<0.000000e+00> : vector<2x10xf32>
    %300 = tpu.matmul %298, %299, %cst_91 {dimension_numbers = #tpu.dot_dimension_numbers<[1], [0], [0], [1], [0, 0, 1, 1], [], []>} : vector<2x32xbf16>, vector<32x10xbf16>, vector<2x10xf32> -> vector<2x10xf32>
    %c0_92 = arith.constant 0 : index
    %c0_93 = arith.constant 0 : index
    %301 = vector.load %arg13[%c0_92, %c0_93] : memref<1x10xf32, #tpu.memory_space<vmem>>, vector<1x10xf32>
    %302 = vector.broadcast %301 : vector<1x10xf32> to vector<2x10xf32>
    %303 = arith.addf %300, %302 : vector<2x10xf32>
    %c0_94 = arith.constant 0 : index
    %c0_95 = arith.constant 0 : index
    %304 = vector.load %arg14[%c0_94, %c0_95] : memref<2x32xf32, #tpu.memory_space<vmem>>, vector<2x32xf32>
    tpu.vector_store %arg14[%c0_94, %c0_95], %297 {strides = array<i32>} : memref<2x32xf32, #tpu.memory_space<vmem>>, vector<2x32xf32>,
    %c0_96 = arith.constant 0 : index
    %c0_97 = arith.constant 0 : index
    %305 = vector.load %arg15[%c0_96, %c0_97] : memref<2x10xf32, #tpu.memory_space<vmem>>, vector<2x10xf32>
    tpu.vector_store %arg15[%c0_96, %c0_97], %303 {strides = array<i32>} : memref<2x10xf32, #tpu.memory_space<vmem>>, vector<2x10xf32>,
    return
  }
  func.func @transform_0(%arg0: i32) -> (i32, i32) {
    %c0_i32 = arith.constant 0 : i32
    %c0_i32_0 = arith.constant 0 : i32
    %c0_i32_1 = arith.constant 0 : i32
    return %c0_i32, %c0_i32_0 : i32, i32
  }
  func.func @transform_1(%arg0: i32) -> (i32, i32) {
    %c0_i32 = arith.constant 0 : i32
    %c0_i32_0 = arith.constant 0 : i32
    %c0_i32_1 = arith.constant 0 : i32
    return %c0_i32, %c0_i32_0 : i32, i32
  }
  func.func @transform_2(%arg0: i32) -> (i32, i32) {
    %c0_i32 = arith.constant 0 : i32
    %c0_i32_0 = arith.constant 0 : i32
    %c0_i32_1 = arith.constant 0 : i32
    return %c0_i32, %c0_i32_0 : i32, i32
  }
  func.func @transform_3(%arg0: i32) -> (i32, i32) {
    %c0_i32 = arith.constant 0 : i32
    %c0_i32_0 = arith.constant 0 : i32
    %c0_i32_1 = arith.constant 0 : i32
    return %c0_i32, %c0_i32_0 : i32, i32
  }
  func.func @transform_4(%arg0: i32) -> (i32, i32) {
    %c0_i32 = arith.constant 0 : i32
    %c0_i32_0 = arith.constant 0 : i32
    %c0_i32_1 = arith.constant 0 : i32
    return %c0_i32, %c0_i32_0 : i32, i32
  }
  func.func @transform_5(%arg0: i32) -> (i32, i32) {
    %c0_i32 = arith.constant 0 : i32
    %c0_i32_0 = arith.constant 0 : i32
    %c0_i32_1 = arith.constant 0 : i32
    return %c0_i32, %c0_i32_0 : i32, i32
  }
  func.func @transform_6(%arg0: i32) -> (i32, i32) {
    %c0_i32 = arith.constant 0 : i32
    %c0_i32_0 = arith.constant 0 : i32
    %c0_i32_1 = arith.constant 0 : i32
    return %c0_i32, %c0_i32_0 : i32, i32
  }
  func.func @transform_7(%arg0: i32) -> (i32, i32) {
    %c0_i32 = arith.constant 0 : i32
    %c0_i32_0 = arith.constant 0 : i32
    %c0_i32_1 = arith.constant 0 : i32
    return %c0_i32, %c0_i32_0 : i32, i32
  }
  func.func @transform_8(%arg0: i32) -> (i32, i32) {
    %c0_i32 = arith.constant 0 : i32
    %c0_i32_0 = arith.constant 0 : i32
    %c0_i32_1 = arith.constant 0 : i32
    return %c0_i32, %c0_i32_0 : i32, i32
  }
  func.func @transform_9(%arg0: i32) -> (i32, i32) {
    %c0_i32 = arith.constant 0 : i32
    %c0_i32_0 = arith.constant 0 : i32
    %c0_i32_1 = arith.constant 0 : i32
    return %c0_i32, %c0_i32_0 : i32, i32
  }
  func.func @transform_10(%arg0: i32) -> (i32, i32) {
    %c0_i32 = arith.constant 0 : i32
    %c0_i32_0 = arith.constant 0 : i32
    %c0_i32_1 = arith.constant 0 : i32
    return %c0_i32, %c0_i32_0 : i32, i32
  }
  func.func @transform_11(%arg0: i32) -> (i32, i32) {
    %c0_i32 = arith.constant 0 : i32
    %c0_i32_0 = arith.constant 0 : i32
    %c0_i32_1 = arith.constant 0 : i32
    return %c0_i32, %c0_i32_0 : i32, i32
  }
  func.func @transform_12(%arg0: i32) -> (i32, i32) {
    %c0_i32 = arith.constant 0 : i32
    %c0_i32_0 = arith.constant 0 : i32
    %c0_i32_1 = arith.constant 0 : i32
    return %c0_i32, %c0_i32_0 : i32, i32
  }
  func.func @transform_13(%arg0: i32) -> (i32, i32) {
    %c0_i32 = arith.constant 0 : i32
    %c0_i32_0 = arith.constant 0 : i32
    %c0_i32_1 = arith.constant 0 : i32
    return %c0_i32, %c0_i32_0 : i32, i32
  }
  func.func @transform_14(%arg0: i32) -> (i32, i32) {
    %c0_i32 = arith.constant 0 : i32
    %c0_i32_0 = arith.constant 0 : i32
    %c0_i32_1 = arith.constant 0 : i32
    return %c0_i32, %c0_i32_0 : i32, i32
  }
}

</mosaic_0001>

<llo_original>
// kernel: _lambda_.11
$region0: #{_lambda_.11}
  #allocation0 [shape = 'u32[]', space=smem, size = 0x4, offset = 0x4, fixed_abs, tag = 'smem constant byte address 0x4 - core index']
  #allocation1 [shape = 'u32[72,128]{1,0:T(1,128)}', space=vmem, size = 0x9000, scoped, tag = 'internal scratch']
  %s0 = inlined_call_operand.vmem [shape: bf16[9,7936], index: 0, kind: input, shape index: {}]
  %s1 = inlined_call_operand.vmem [shape: bf16[8,9], index: 1, kind: input, shape index: {}]
  %s2 = inlined_call_operand.vmem [shape: f32[8,1], index: 2, kind: input, shape index: {}]
  %s3 = inlined_call_operand.vmem [shape: f32[8,1], index: 3, kind: input, shape index: {}]
  %s4 = inlined_call_operand.vmem [shape: f32[8,7936], index: 4, kind: output, shape index: {}]
  %s5 = sld [smem:[#allocation0]]
  $region75: #{_lambda_.11} parent=0
    _
  %s7 = ssub.s32 1, %s5
  %s8 = scalar_select 0, %s7, %s5
  $region1: #{_lambda_.11} parent=0
    #allocation2 [shape = 'u8[253952]{0}', space=vmem, size = 0x3e000, scoped, tag = 'input window, operand 0']
    loop: start=0, step=1, limit=4
    $region2: #{_lambda_.11} parent=1 // loop_pre_header
      _
    $region3: #{_lambda_.11} parent=1 // loop_header
      %s10 = sphi 0, %s14
      %p11 = scmp.ge.s32.totalorder %s10, 4
      %s20 = sphi 0, %s22
      %s23 = sphi 0, %s20
      %s24 = sphi 0, %s23
      %s40 = sphi 0, %s24
      %s44 = sphi 0, %s44
      %s46 = sphi 0, %s44
      %s47 = sphi 0, %s46
      %s61 = sphi 0, %s47
      %s65 = sphi 0, %s65
      %s67 = sphi 0, %s65
      %s68 = sphi 0, %s67
      %s82 = sphi 0, %s68
      %s86 = sphi 0, %s86
      %s88 = sphi 0, %s86
      %s89 = sphi 0, %s88
      %s103 = sphi 0, %s89
      %s109 = sphi 0, %s111
      %s112 = sphi 0, %s109
      %s113 = sphi 0, %s112
      %s129 = sphi 0, %s113
    $region4: #{_lambda_.11} parent=1 // loop_header_branch
      %13 = sbr.rel (%p11) target = $region8
    $region5: #{_lambda_.11} parent=1 // loop_body
      %s15 = ssub.s32 %s10, 1
      %s16 = ssub.s32 %s10, 2
      %s17 = sadd.s32 %s10, 1
      %s18 = ssub.s32 %s10, %s17
      %p19 = scmp.eq.s32.totalorder %s18, 0
      %s21 = sadd.s32 %s20, 1
      %s22 = scalar_select %p19, %s20, %s21
      %p25 = pneg %p19
      %p26 = scmp.eq.s32.totalorder %s10, 1
      %p27 = por %p25, %p26
      %p28 = scmp.ne.s32.totalorder %s20, %s23
      %p29 = scmp.eq.s32.totalorder %s10, 0
      %p30 = por %p28, %p29
      %p31 = scmp.ne.s32.totalorder %s20, %s23
      %p32 = scmp.eq.s32.totalorder %s15, 1
      %p33 = por %p31, %p32
      %p34 = scmp.ne.s32.totalorder %s23, %s24
      %p35 = scmp.eq.s32.totalorder %s15, 0
      %p36 = por %p34, %p35
      %p37 = scmp.ne.s32.totalorder %s23, %s24
      %p38 = scmp.eq.s32.totalorder %s16, 1
      %p39 = por %p37, %p38
      %p41 = scmp.ne.s32.totalorder %s24, %s40
      %p42 = scmp.eq.s32.totalorder %s16, 0
      %p43 = por %p41, %p42
      %s45 = sadd.s32 %s44, 1
      %p48 = scmp.eq.s32.totalorder %s10, 1
      %p49 = scmp.ne.s32.totalorder %s44, %s46
      %p50 = scmp.eq.s32.totalorder %s10, 0
      %p51 = por %p49, %p50
      %p52 = scmp.ne.s32.totalorder %s44, %s46
      %p53 = scmp.eq.s32.totalorder %s15, 1
      %p54 = por %p52, %p53
      %p55 = scmp.ne.s32.totalorder %s46, %s47
      %p56 = scmp.eq.s32.totalorder %s15, 0
      %p57 = por %p55, %p56
      %p58 = scmp.ne.s32.totalorder %s46, %s47
      %p59 = scmp.eq.s32.totalorder %s16, 1
      %p60 = por %p58, %p59
      %p62 = scmp.ne.s32.totalorder %s47, %s61
      %p63 = scmp.eq.s32.totalorder %s16, 0
      %p64 = por %p62, %p63
      %s66 = sadd.s32 %s65, 1
      %p69 = scmp.eq.s32.totalorder %s10, 1
      %p70 = scmp.ne.s32.totalorder %s65, %s67
      %p71 = scmp.eq.s32.totalorder %s10, 0
      %p72 = por %p70, %p71
      %p73 = scmp.ne.s32.totalorder %s65, %s67
      %p74 = scmp.eq.s32.totalorder %s15, 1
      %p75 = por %p73, %p74
      %p76 = scmp.ne.s32.totalorder %s67, %s68
      %p77 = scmp.eq.s32.totalorder %s15, 0
      %p78 = por %p76, %p77
      %p79 = scmp.ne.s32.totalorder %s67, %s68
      %p80 = scmp.eq.s32.totalorder %s16, 1
      %p81 = por %p79, %p80
      %p83 = scmp.ne.s32.totalorder %s68, %s82
      %p84 = scmp.eq.s32.totalorder %s16, 0
      %p85 = por %p83, %p84
      %s87 = sadd.s32 %s86, 1
      %p90 = scmp.eq.s32.totalorder %s10, 1
      %p91 = scmp.ne.s32.totalorder %s86, %s88
      %p92 = scmp.eq.s32.totalorder %s10, 0
      %p93 = por %p91, %p92
      %p94 = scmp.ne.s32.totalorder %s86, %s88
      %p95 = scmp.eq.s32.totalorder %s15, 1
      %p96 = por %p94, %p95
      %p97 = scmp.ne.s32.totalorder %s88, %s89
      %p98 = scmp.eq.s32.totalorder %s15, 0
      %p99 = por %p97, %p98
      %p100 = scmp.ne.s32.totalorder %s88, %s89
      %p101 = scmp.eq.s32.totalorder %s16, 1
      %p102 = por %p100, %p101
      %p104 = scmp.ne.s32.totalorder %s89, %s103
      %p105 = scmp.eq.s32.totalorder %s16, 0
      %p106 = por %p104, %p105
      %s107 = ssub.s32 %s10, %s17
      %p108 = scmp.eq.s32.totalorder %s107, 0
      %s110 = sadd.s32 %s109, 1
      %s111 = scalar_select %p108, %s109, %s110
      %p114 = pneg %p108
      %p115 = scmp.eq.s32.totalorder %s10, 1
      %p116 = por %p114, %p115
      %p117 = scmp.ne.s32.totalorder %s109, %s112
      %p118 = scmp.eq.s32.totalorder %s10, 0
      %p119 = por %p117, %p118
      %p120 = scmp.ne.s32.totalorder %s109, %s112
      %p121 = scmp.eq.s32.totalorder %s15, 1
      %p122 = por %p120, %p121
      %p123 = scmp.ne.s32.totalorder %s112, %s113
      %p124 = scmp.eq.s32.totalorder %s15, 0
      %p125 = por %p123, %p124
      %p126 = scmp.ne.s32.totalorder %s112, %s113
      %p127 = scmp.eq.s32.totalorder %s16, 1
      %p128 = por %p126, %p127
      %p130 = scmp.ne.s32.totalorder %s113, %s129
      %p131 = scmp.eq.s32.totalorder %s16, 0
      %p132 = por %p130, %p131
      %p133 = scmp.le.s32.totalorder 1, %s10
      %p134 = scmp.lt.s32.totalorder %s10, 3
      %p135 = pnand %p133, %p134
      %p136 = pneg %p135
      // Predicated region
      $region9: #{_lambda_.11} parent=5 // pred_check
        _
      $region10: #{_lambda_.11} parent=5 // pred_check_branch
        %138 = sbr.rel (%p135) target = $region12
      $region11: #{_lambda_.11} parent=5 // pred_region
        %s139 = ssub.s32 %s10, 1
        // Predicated region
        $region13: #{_lambda_.11} parent=11 // pred_check
          %p140 = pneg %p57
        $region14: #{_lambda_.11} parent=11 // pred_check_branch
          %142 = sbr.rel (%p140) target = $region16
        $region15: #{_lambda_.11} parent=11 // pred_region
          _
        $region16: #{_lambda_.11} parent=11 // pred_fallthru
          _
        // Predicated region
        $region17: #{_lambda_.11} parent=11 // pred_check
          %p143 = pneg %p78
        $region18: #{_lambda_.11} parent=11 // pred_check_branch
          %145 = sbr.rel (%p143) target = $region20
        $region19: #{_lambda_.11} parent=11 // pred_region
          _
        $region20: #{_lambda_.11} parent=11 // pred_fallthru
          _
        // Predicated region
        $region21: #{_lambda_.11} parent=11 // pred_check
          %p146 = pneg %p99
        $region22: #{_lambda_.11} parent=11 // pred_check_branch
          %148 = sbr.rel (%p146) target = $region24
        $region23: #{_lambda_.11} parent=11 // pred_region
          _
        $region24: #{_lambda_.11} parent=11 // pred_fallthru
          _
      $region12: #{_lambda_.11} parent=5 // pred_fallthru
        _
      %p149 = scmp.lt.s32.totalorder %s10, 2
      // Predicated region
      $region25: #{_lambda_.11} parent=5 // pred_check
        %p150 = pneg %p149
      $region26: #{_lambda_.11} parent=5 // pred_check_branch
        %152 = sbr.rel (%p150) target = $region28
      $region27: #{_lambda_.11} parent=5 // pred_region
        // Predicated region
        $region29: #{_lambda_.11} parent=27 // pred_check
          %p153 = pneg %p30
        $region30: #{_lambda_.11} parent=27 // pred_check_branch
          %155 = sbr.rel (%p153) target = $region32
        $region31: #{_lambda_.11} parent=27 // pred_region
          %s156 = sand.u32 %s20, 1
          %s157 = sand.u32 %s20, 1
          %s158 = smul.addr %s157, 248
          %s159 = scalar_lea.vmem [#allocation2], %s158
          %s160 = smul.u32 31, %s10
          %s161 = smul.addr %s160, 4
          %s162 = scalar_lea.vmem %s0, %s161
          // Predicated region
          $region33: #{_lambda_.11} parent=31 // pred_check
            _
          $region34: #{_lambda_.11} parent=31 // pred_check_branch
            %164 = sbr.rel (0) target = $region36
          $region35: #{_lambda_.11} parent=31 // pred_region
            // Predicated region
            $region37: #{_lambda_.11} parent=35 // pred_check
              _
            $region38: #{_lambda_.11} parent=35 // pred_check_branch
              %166 = sbr.rel (0) target = $region40
            $region39: #{_lambda_.11} parent=35 // pred_region
              %s167 = scalar_lea.vmem %s162, 120
              %s168 = scalar_lea.vmem %s159, 120 [#allocation2]
              loop: start=0, step=1, limit=1
              $region41: #{_lambda_.11} parent=39 // loop_pre_header
                _
              $region42: #{_lambda_.11} parent=39 // loop_header
                %s170 = sphi 0, %s174
                %p171 = scmp.ge.s32.totalorder %s170, 1
                %s175 = sphi %s162, %s162
                %s176 = sphi %s159, %s159
              $region43: #{_lambda_.11} parent=39 // loop_header_branch
                %173 = sbr.rel (%p171) target = $region47
              $region44: #{_lambda_.11} parent=39 // loop_body
                %v177 = vld [vmem:[%s175] sm:$0xff]
                %178 = vst [vmem:[%s176] sm:$0xff] %v177
                %v179 = vld [vmem:[%s175 + $0x8] sm:$0xff]
                %180 = vst [vmem:[%s176 + $0x8] sm:$0xff] %v179
                %v181 = vld [vmem:[%s175 + $0x10] sm:$0xff]
                %182 = vst [vmem:[%s176 + $0x10] sm:$0xff] %v181
                %v183 = vld [vmem:[%s175 + $0x18] sm:$0xff]
                %184 = vst [vmem:[%s176 + $0x18] sm:$0xff] %v183
                %v185 = vld [vmem:[%s175 + $0x20] sm:$0xff]
                %186 = vst [vmem:[%s176 + $0x20] sm:$0xff] %v185
                %v187 = vld [vmem:[%s175 + $0x28] sm:$0xff]
                %188 = vst [vmem:[%s176 + $0x28] sm:$0xff] %v187
                %v189 = vld [vmem:[%s175 + $0x30] sm:$0xff]
                %190 = vst [vmem:[%s176 + $0x30] sm:$0xff] %v189
                %v191 = vld [vmem:[%s175 + $0x38] sm:$0xff]
                %192 = vst [vmem:[%s176 + $0x38] sm:$0xff] %v191
                %v193 = vld [vmem:[%s175 + $0x40] sm:$0xff]
                %194 = vst [vmem:[%s176 + $0x40] sm:$0xff] %v193
                %v195 = vld [vmem:[%s175 + $0x48] sm:$0xff]
                %196 = vst [vmem:[%s176 + $0x48] sm:$0xff] %v195
                %v197 = vld [vmem:[%s175 + $0x50] sm:$0xff]
                %198 = vst [vmem:[%s176 + $0x50] sm:$0xff] %v197
                %v199 = vld [vmem:[%s175 + $0x58] sm:$0xff]
                %200 = vst [vmem:[%s176 + $0x58] sm:$0xff] %v199
                %v201 = vld [vmem:[%s175 + $0x60] sm:$0xff]
                %202 = vst [vmem:[%s176 + $0x60] sm:$0xff] %v201
                %v203 = vld [vmem:[%s175 + $0x68] sm:$0xff]
                %204 = vst [vmem:[%s176 + $0x68] sm:$0xff] %v203
                %v205 = vld [vmem:[%s175 + $0x70] sm:$0xff]
                %206 = vst [vmem:[%s176 + $0x70] sm:$0xff] %v205
                %v207 = vld [vmem:[%s175 + $0xf8] sm:$0xff]
                %208 = vst [vmem:[%s176 + $0x7c] sm:$0xff] %v207
                %v209 = vld [vmem:[%s175 + $0x100] sm:$0xff]
                %210 = vst [vmem:[%s176 + $0x84] sm:$0xff] %v209
                %v211 = vld [vmem:[%s175 + $0x108] sm:$0xff]
                %212 = vst [vmem:[%s176 + $0x8c] sm:$0xff] %v211
                %v213 = vld [vmem:[%s175 + $0x110] sm:$0xff]
                %214 = vst [vmem:[%s176 + $0x94] sm:$0xff] %v213
                %v215 = vld [vmem:[%s175 + $0x118] sm:$0xff]
                %216 = vst [vmem:[%s176 + $0x9c] sm:$0xff] %v215
                %v217 = vld [vmem:[%s175 + $0x120] sm:$0xff]
                %218 = vst [vmem:[%s176 + $0xa4] sm:$0xff] %v217
                %v219 = vld [vmem:[%s175 + $0x128] sm:$0xff]
                %220 = vst [vmem:[%s176 + $0xac] sm:$0xff] %v219
                %v221 = vld [vmem:[%s175 + $0x130] sm:$0xff]
                %222 = vst [vmem:[%s176 + $0xb4] sm:$0xff] %v221
                %v223 = vld [vmem:[%s175 + $0x138] sm:$0xff]
                %224 = vst [vmem:[%s176 + $0xbc] sm:$0xff] %v223
                %v225 = vld [vmem:[%s175 + $0x140] sm:$0xff]
                %226 = vst [vmem:[%s176 + $0xc4] sm:$0xff] %v225
                %v227 = vld [vmem:[%s175 + $0x148] sm:$0xff]
                %228 = vst [vmem:[%s176 + $0xcc] sm:$0xff] %v227
                %v229 = vld [vmem:[%s175 + $0x150] sm:$0xff]
                %230 = vst [vmem:[%s176 + $0xd4] sm:$0xff] %v229
                %v231 = vld [vmem:[%s175 + $0x158] sm:$0xff]
                %232 = vst [vmem:[%s176 + $0xdc] sm:$0xff] %v231
                %v233 = vld [vmem:[%s175 + $0x160] sm:$0xff]
                %234 = vst [vmem:[%s176 + $0xe4] sm:$0xff] %v233
                %v235 = vld [vmem:[%s175 + $0x168] sm:$0xff]
                %236 = vst [vmem:[%s176 + $0xec] sm:$0xff] %v235
              $region45: #{_lambda_.11} parent=39 // loop_footer
                %s174 = sadd.s32 1, %s170
              $region46: #{_lambda_.11} parent=39 // loop_footer_branch
                %169 = sbr.rel target = $region42
              $region47: #{_lambda_.11} parent=39 // loop_exit
                _
              %s238 = ssub.s32 16, 1
              loop: start=0, step=1, limit=1
              $region48: #{_lambda_.11} parent=39 // loop_pre_header
                _
              $region49: #{_lambda_.11} parent=39 // loop_header
                %s240 = sphi 0, %s244
                %p241 = scmp.ge.s32.totalorder %s240, 1
                %s245 = sphi %s167, %s167
                %s246 = sphi %s168, %s168
              $region50: #{_lambda_.11} parent=39 // loop_header_branch
                %243 = sbr.rel (%p241) target = $region54
              $region51: #{_lambda_.11} parent=39 // loop_body
                %v247 = vld [vmem:[%s245] sm:%s238]
                %248 = vst [vmem:[%s246] sm:%s238] %v247
                %v249 = vld [vmem:[%s245 + $0xf8] sm:%s238]
                %250 = vst [vmem:[%s246 + $0x7c] sm:%s238] %v249
              $region52: #{_lambda_.11} parent=39 // loop_footer
                %s244 = sadd.s32 1, %s240
              $region53: #{_lambda_.11} parent=39 // loop_footer_branch
                %239 = sbr.rel target = $region49
              $region54: #{_lambda_.11} parent=39 // loop_exit
                _
            $region40: #{_lambda_.11} parent=35 // pred_fallthru
              _
          $region36: #{_lambda_.11} parent=31 // pred_fallthru
            _
          %251 = vnop
        $region32: #{_lambda_.11} parent=27 // pred_fallthru
          _
      $region28: #{_lambda_.11} parent=5 // pred_fallthru
        _
      %p252 = scmp.le.s32.totalorder 1, %s10
      %p253 = scmp.lt.s32.totalorder %s10, 3
      %p254 = pnand %p252, %p253
      %p255 = pneg %p254
      // Predicated region
      $region55: #{_lambda_.11} parent=5 // pred_check
        _
      $region56: #{_lambda_.11} parent=5 // pred_check_branch
        %257 = sbr.rel (%p254) target = $region58
      $region57: #{_lambda_.11} parent=5 // pred_region
        %s258 = ssub.s32 %s10, 1
        %s259 = sand.u32 %s23, 1
        %s260 = sand.u32 %s23, 1
        %s261 = smul.addr %s260, 248
        %s262 = scalar_lea.vmem [#allocation2], %s261
        // Predicated region
        $region59: #{_lambda_.11} parent=57 // pred_check
          %p263 = pneg %p36
        $region60: #{_lambda_.11} parent=57 // pred_check_branch
          %265 = sbr.rel (%p263) target = $region62
        $region61: #{_lambda_.11} parent=57 // pred_region
          _
        $region62: #{_lambda_.11} parent=57 // pred_fallthru
          _
        %s266 = sand.u32 %s23, 1
        %s267 = sand.u32 %s23, 1
        %s268 = smul.addr %s267, 248
        %s269 = scalar_lea.vmem [#allocation2], %s268
        %p270 = pneg %p36
        %p271 = pneg %p33
        %p272 = pneg %p57
        %p273 = pneg %p54
        %p274 = pneg %p78
        %p275 = pneg %p75
        %p276 = pneg %p99
        %p277 = pneg %p96
        %p278 = pneg %p125
        %p279 = pneg %p122
        %s280 = smul.u32 31, %s15
        %p281 = scmp.lt.s32.totalorder %s280, 61
        %s282 = scalar_select %p281, %s280, 61
        %s283 = smul.addr %s282, 8
        %s284 = scalar_lea.vmem %s4, %s283
        %s285 = smul.u32 31, %s15
        %s286 = smul.u32 31, %s15
        %p287 = scmp.lt.s32.totalorder %s286, 61
        %s288 = scalar_select %p287, %s286, 61
        %s289 = smul.addr %s288, 8
        %s290 = scalar_lea.vmem %s4, %s289
        %s291 = smul.u32 31, %s15
        %v293 = vld [vmem:[%s1] sm:$0xf]
        %v294 = vld [vmem:[%s262] sm:$0xff]
        %v295 = vld [vmem:[%s262 + $0x8] sm:$0xff]
        %v296 = vld [vmem:[%s262 + $0x10] sm:$0xff]
        %v297 = vld [vmem:[%s262 + $0x18] sm:$0xff]
        %v298 = vld [vmem:[%s262 + $0x20] sm:$0xff]
        %v299 = vld [vmem:[%s262 + $0x28] sm:$0xff]
        %v300 = vld [vmem:[%s262 + $0x30] sm:$0xff]
        %v301 = vld [vmem:[%s262 + $0x38] sm:$0xff]
        %v302 = vld [vmem:[%s262 + $0x40] sm:$0xff]
        %v303 = vld [vmem:[%s262 + $0x48] sm:$0xff]
        %v304 = vld [vmem:[%s262 + $0x50] sm:$0xff]
        %v305 = vld [vmem:[%s262 + $0x58] sm:$0xff]
        %v306 = vld [vmem:[%s262 + $0x60] sm:$0xff]
        %v307 = vld [vmem:[%s262 + $0x68] sm:$0xff]
        %v308 = vld [vmem:[%s262 + $0x70] sm:$0xff]
        %v309 = vld [vmem:[%s262 + $0x78] sm:$0xf]
        %v310 = vld [vmem:[%s262 + $0x7c] sm:$0x11]
        %v311 = vld [vmem:[%s262 + $0x84] sm:$0x11]
        %v312 = vld [vmem:[%s262 + $0x8c] sm:$0x11]
        %v313 = vld [vmem:[%s262 + $0x94] sm:$0x11]
        %v314 = vld [vmem:[%s262 + $0x9c] sm:$0x11]
        %v315 = vld [vmem:[%s262 + $0xa4] sm:$0x11]
        %v316 = vld [vmem:[%s262 + $0xac] sm:$0x11]
        %v317 = vld [vmem:[%s262 + $0xb4] sm:$0x11]
        %v318 = vld [vmem:[%s262 + $0xbc] sm:$0x11]
        %v319 = vld [vmem:[%s262 + $0xc4] sm:$0x11]
        %v320 = vld [vmem:[%s262 + $0xcc] sm:$0x11]
        %v321 = vld [vmem:[%s262 + $0xd4] sm:$0x11]
        %v322 = vld [vmem:[%s262 + $0xdc] sm:$0x11]
        %v323 = vld [vmem:[%s262 + $0xe4] sm:$0x11]
        %v324 = vld [vmem:[%s262 + $0xec] sm:$0x11]
        %v325 = vld [vmem:[%s262 + $0xf4] sm:$0x1]
        %v358 = vunpack.c.l.b16 %v294
        %v359 = vunpack.c.h.b16 %v294
        %v360 = vunpack.c.l.b16 %v295
        %v361 = vunpack.c.h.b16 %v295
        %v362 = vunpack.c.l.b16 %v296
        %v363 = vunpack.c.h.b16 %v296
        %v364 = vunpack.c.l.b16 %v297
        %v365 = vunpack.c.h.b16 %v297
        %v366 = vunpack.c.l.b16 %v298
        %v367 = vunpack.c.h.b16 %v298
        %v368 = vunpack.c.l.b16 %v299
        %v369 = vunpack.c.h.b16 %v299
        %v370 = vunpack.c.l.b16 %v300
        %v371 = vunpack.c.h.b16 %v300
        %v372 = vunpack.c.l.b16 %v301
        %v373 = vunpack.c.h.b16 %v301
        %v374 = vunpack.c.l.b16 %v302
        %v375 = vunpack.c.h.b16 %v302
        %v376 = vunpack.c.l.b16 %v303
        %v377 = vunpack.c.h.b16 %v303
        %v378 = vunpack.c.l.b16 %v304
        %v379 = vunpack.c.h.b16 %v304
        %v380 = vunpack.c.l.b16 %v305
        %v381 = vunpack.c.h.b16 %v305
        %v382 = vunpack.c.l.b16 %v306
        %v383 = vunpack.c.h.b16 %v306
        %v384 = vunpack.c.l.b16 %v307
        %v385 = vunpack.c.h.b16 %v307
        %v386 = vunpack.c.l.b16 %v308
        %v387 = vunpack.c.h.b16 %v308
        %v388 = vunpack.c.l.b16 %v309
        %v389 = vunpack.c.l.b16 %v310
        %v390 = vunpack.c.h.b16 %v310
        %v391 = vunpack.c.l.b16 %v311
        %v392 = vunpack.c.h.b16 %v311
        %v393 = vunpack.c.l.b16 %v312
        %v394 = vunpack.c.h.b16 %v312
        %v395 = vunpack.c.l.b16 %v313
        %v396 = vunpack.c.h.b16 %v313
        %v397 = vunpack.c.l.b16 %v314
        %v398 = vunpack.c.h.b16 %v314
        %v399 = vunpack.c.l.b16 %v315
        %v400 = vunpack.c.h.b16 %v315
        %v401 = vunpack.c.l.b16 %v316
        %v402 = vunpack.c.h.b16 %v316
        %v403 = vunpack.c.l.b16 %v317
        %v404 = vunpack.c.h.b16 %v317
        %v405 = vunpack.c.l.b16 %v318
        %v406 = vunpack.c.h.b16 %v318
        %v407 = vunpack.c.l.b16 %v319
        %v408 = vunpack.c.h.b16 %v319
        %v409 = vunpack.c.l.b16 %v320
        %v410 = vunpack.c.h.b16 %v320
        %v411 = vunpack.c.l.b16 %v321
        %v412 = vunpack.c.h.b16 %v321
        %v413 = vunpack.c.l.b16 %v322
        %v414 = vunpack.c.h.b16 %v322
        %v415 = vunpack.c.l.b16 %v323
        %v416 = vunpack.c.h.b16 %v323
        %v417 = vunpack.c.l.b16 %v324
        %v418 = vunpack.c.h.b16 %v324
        %v419 = vunpack.c.l.b16 %v325
        %v420 = vpack.c.b16 %v389, %v358
        %v421 = vpack.c.b16 %v390, %v359
        %v422 = vpack.c.b16 %v391, %v360
        %v423 = vpack.c.b16 %v392, %v361
        %v424 = vpack.c.b16 %v393, %v362
        %v425 = vpack.c.b16 %v394, %v363
        %v426 = vpack.c.b16 %v395, %v364
        %v427 = vpack.c.b16 %v396, %v365
        %v428 = vpack.c.b16 %v397, %v366
        %v429 = vpack.c.b16 %v398, %v367
        %v430 = vpack.c.b16 %v399, %v368
        %v431 = vpack.c.b16 %v400, %v369
        %v432 = vpack.c.b16 %v401, %v370
        %v433 = vpack.c.b16 %v402, %v371
        %v434 = vpack.c.b16 %v403, %v372
        %v435 = vpack.c.b16 %v404, %v373
        %v436 = vpack.c.b16 %v405, %v374
        %v437 = vpack.c.b16 %v406, %v375
        %v438 = vpack.c.b16 %v407, %v376
        %v439 = vpack.c.b16 %v408, %v377
        %v440 = vpack.c.b16 %v409, %v378
        %v441 = vpack.c.b16 %v410, %v379
        %v442 = vpack.c.b16 %v411, %v380
        %v443 = vpack.c.b16 %v412, %v381
        %v444 = vpack.c.b16 %v413, %v382
        %v445 = vpack.c.b16 %v414, %v383
        %v446 = vpack.c.b16 %v415, %v384
        %v447 = vpack.c.b16 %v416, %v385
        %v448 = vpack.c.b16 %v417, %v386
        %v449 = vpack.c.b16 %v418, %v387
        %v450 = vpack.c.b16 %v419, %v388
        %vm451 = vcmask 72704
        %v453 = vsel %vm451, %v293, 0
        %vm455 = vcmask 1043456
        %vm456 = vcmask 1044480
        %v457 = vsel %vm455, 4294967295, 65535
        %v458 = vsel %vm456, %v457, 0
        %v460 = vand.u32 %v420, %v458
        %v463 = vand.u32 %v421, %v458
        %v466 = vand.u32 %v422, %v458
        %v469 = vand.u32 %v423, %v458
        %v472 = vand.u32 %v424, %v458
        %v475 = vand.u32 %v425, %v458
        %v478 = vand.u32 %v426, %v458
        %v481 = vand.u32 %v427, %v458
        %v484 = vand.u32 %v428, %v458
        %v487 = vand.u32 %v429, %v458
        %v490 = vand.u32 %v430, %v458
        %v493 = vand.u32 %v431, %v458
        %v496 = vand.u32 %v432, %v458
        %v499 = vand.u32 %v433, %v458
        %v502 = vand.u32 %v434, %v458
        %v505 = vand.u32 %v435, %v458
        %v508 = vand.u32 %v436, %v458
        %v511 = vand.u32 %v437, %v458
        %v514 = vand.u32 %v438, %v458
        %v517 = vand.u32 %v439, %v458
        %v520 = vand.u32 %v440, %v458
        %v523 = vand.u32 %v441, %v458
        %v526 = vand.u32 %v442, %v458
        %v529 = vand.u32 %v443, %v458
        %v532 = vand.u32 %v444, %v458
        %v535 = vand.u32 %v445, %v458
        %v538 = vand.u32 %v446, %v458
        %v541 = vand.u32 %v447, %v458
        %v544 = vand.u32 %v448, %v458
        %v547 = vand.u32 %v449, %v458
        %v550 = vand.u32 %v450, %v458
        %552 = vmatpush.bf16.msra.mxu0 0
        %553 = vmatpush.bf16.msra.mxu0 0
        %554 = vmatpush.bf16.msra.mxu0 0
        %555 = vmatpush.bf16.msra.mxu0 0
        %556 = vmatpush.bf16.msra.mxu0 0
        %557 = vmatpush.bf16.msra.mxu0 0
        %558 = vmatpush.bf16.msra.mxu0 0
        %559 = vmatpush.bf16.msra.mxu0 %v460
        %560 = vmatmul.bf16.gmra.mxu0 %v453
        %v561 = vpop.f32.mrf.mxu0
        %v562 = vadd.f32 0.0, %v561
        %v563 = vpop.f32.mrf.mxu0
        %564 = vdwg.mxu0
        %565 = vmatpush.bf16.msra.mxu0 0
        %566 = vmatpush.bf16.msra.mxu0 0
        %567 = vmatpush.bf16.msra.mxu0 0
        %568 = vmatpush.bf16.msra.mxu0 0
        %569 = vmatpush.bf16.msra.mxu0 0
        %570 = vmatpush.bf16.msra.mxu0 0
        %571 = vmatpush.bf16.msra.mxu0 0
        %572 = vmatpush.bf16.msra.mxu0 %v463
        %573 = vmatmul.bf16.gmra.mxu0 %v453
        %v574 = vpop.f32.mrf.mxu0
        %v575 = vadd.f32 0.0, %v574
        %v576 = vpop.f32.mrf.mxu0
        %577 = vdwg.mxu0
        %578 = vmatpush.bf16.msra.mxu0 0
        %579 = vmatpush.bf16.msra.mxu0 0
        %580 = vmatpush.bf16.msra.mxu0 0
        %581 = vmatpush.bf16.msra.mxu0 0
        %582 = vmatpush.bf16.msra.mxu0 0
        %583 = vmatpush.bf16.msra.mxu0 0
        %584 = vmatpush.bf16.msra.mxu0 0
        %585 = vmatpush.bf16.msra.mxu0 %v466
        %586 = vmatmul.bf16.gmra.mxu0 %v453
        %v587 = vpop.f32.mrf.mxu0
        %v588 = vadd.f32 0.0, %v587
        %v589 = vpop.f32.mrf.mxu0
        %590 = vdwg.mxu0
        %591 = vmatpush.bf16.msra.mxu0 0
        %592 = vmatpush.bf16.msra.mxu0 0
        %593 = vmatpush.bf16.msra.mxu0 0
        %594 = vmatpush.bf16.msra.mxu0 0
        %595 = vmatpush.bf16.msra.mxu0 0
        %596 = vmatpush.bf16.msra.mxu0 0
        %597 = vmatpush.bf16.msra.mxu0 0
        %598 = vmatpush.bf16.msra.mxu0 %v469
        %599 = vmatmul.bf16.gmra.mxu0 %v453
        %v600 = vpop.f32.mrf.mxu0
        %v601 = vadd.f32 0.0, %v600
        %v602 = vpop.f32.mrf.mxu0
        %603 = vdwg.mxu0
        %604 = vmatpush.bf16.msra.mxu0 0
        %605 = vmatpush.bf16.msra.mxu0 0
        %606 = vmatpush.bf16.msra.mxu0 0
        %607 = vmatpush.bf16.msra.mxu0 0
        %608 = vmatpush.bf16.msra.mxu0 0
        %609 = vmatpush.bf16.msra.mxu0 0
        %610 = vmatpush.bf16.msra.mxu0 0
        %611 = vmatpush.bf16.msra.mxu0 %v472
        %612 = vmatmul.bf16.gmra.mxu0 %v453
        %v613 = vpop.f32.mrf.mxu0
        %v614 = vadd.f32 0.0, %v613
        %v615 = vpop.f32.mrf.mxu0
        %616 = vdwg.mxu0
        %617 = vmatpush.bf16.msra.mxu0 0
        %618 = vmatpush.bf16.msra.mxu0 0
        %619 = vmatpush.bf16.msra.mxu0 0
        %620 = vmatpush.bf16.msra.mxu0 0
        %621 = vmatpush.bf16.msra.mxu0 0
        %622 = vmatpush.bf16.msra.mxu0 0
        %623 = vmatpush.bf16.msra.mxu0 0
        %624 = vmatpush.bf16.msra.mxu0 %v475
        %625 = vmatmul.bf16.gmra.mxu0 %v453
        %v626 = vpop.f32.mrf.mxu0
        %v627 = vadd.f32 0.0, %v626
        %v628 = vpop.f32.mrf.mxu0
        %629 = vdwg.mxu0
        %630 = vmatpush.bf16.msra.mxu0 0
        %631 = vmatpush.bf16.msra.mxu0 0
        %632 = vmatpush.bf16.msra.mxu0 0
        %633 = vmatpush.bf16.msra.mxu0 0
        %634 = vmatpush.bf16.msra.mxu0 0
        %635 = vmatpush.bf16.msra.mxu0 0
        %636 = vmatpush.bf16.msra.mxu0 0
        %637 = vmatpush.bf16.msra.mxu0 %v478
        %638 = vmatmul.bf16.gmra.mxu0 %v453
        %v639 = vpop.f32.mrf.mxu0
        %v640 = vadd.f32 0.0, %v639
        %v641 = vpop.f32.mrf.mxu0
        %642 = vdwg.mxu0
        %643 = vmatpush.bf16.msra.mxu0 0
        %644 = vmatpush.bf16.msra.mxu0 0
        %645 = vmatpush.bf16.msra.mxu0 0
        %646 = vmatpush.bf16.msra.mxu0 0
        %647 = vmatpush.bf16.msra.mxu0 0
        %648 = vmatpush.bf16.msra.mxu0 0
        %649 = vmatpush.bf16.msra.mxu0 0
        %650 = vmatpush.bf16.msra.mxu0 %v481
        %651 = vmatmul.bf16.gmra.mxu0 %v453
        %v652 = vpop.f32.mrf.mxu0
        %v653 = vadd.f32 0.0, %v652
        %v654 = vpop.f32.mrf.mxu0
        %655 = vdwg.mxu0
        %656 = vmatpush.bf16.msra.mxu0 0
        %657 = vmatpush.bf16.msra.mxu0 0
        %658 = vmatpush.bf16.msra.mxu0 0
        %659 = vmatpush.bf16.msra.mxu0 0
        %660 = vmatpush.bf16.msra.mxu0 0
        %661 = vmatpush.bf16.msra.mxu0 0
        %662 = vmatpush.bf16.msra.mxu0 0
        %663 = vmatpush.bf16.msra.mxu0 %v484
        %664 = vmatmul.bf16.gmra.mxu0 %v453
        %v665 = vpop.f32.mrf.mxu0
        %v666 = vadd.f32 0.0, %v665
        %v667 = vpop.f32.mrf.mxu0
        %668 = vdwg.mxu0
        %669 = vmatpush.bf16.msra.mxu0 0
        %670 = vmatpush.bf16.msra.mxu0 0
        %671 = vmatpush.bf16.msra.mxu0 0
        %672 = vmatpush.bf16.msra.mxu0 0
        %673 = vmatpush.bf16.msra.mxu0 0
        %674 = vmatpush.bf16.msra.mxu0 0
        %675 = vmatpush.bf16.msra.mxu0 0
        %676 = vmatpush.bf16.msra.mxu0 %v487
        %677 = vmatmul.bf16.gmra.mxu0 %v453
        %v678 = vpop.f32.mrf.mxu0
        %v679 = vadd.f32 0.0, %v678
        %v680 = vpop.f32.mrf.mxu0
        %681 = vdwg.mxu0
        %682 = vmatpush.bf16.msra.mxu0 0
        %683 = vmatpush.bf16.msra.mxu0 0
        %684 = vmatpush.bf16.msra.mxu0 0
        %685 = vmatpush.bf16.msra.mxu0 0
        %686 = vmatpush.bf16.msra.mxu0 0
        %687 = vmatpush.bf16.msra.mxu0 0
        %688 = vmatpush.bf16.msra.mxu0 0
        %689 = vmatpush.bf16.msra.mxu0 %v490
        %690 = vmatmul.bf16.gmra.mxu0 %v453
        %v691 = vpop.f32.mrf.mxu0
        %v692 = vadd.f32 0.0, %v691
        %v693 = vpop.f32.mrf.mxu0
        %694 = vdwg.mxu0
        %695 = vmatpush.bf16.msra.mxu0 0
        %696 = vmatpush.bf16.msra.mxu0 0
        %697 = vmatpush.bf16.msra.mxu0 0
        %698 = vmatpush.bf16.msra.mxu0 0
        %699 = vmatpush.bf16.msra.mxu0 0
        %700 = vmatpush.bf16.msra.mxu0 0
        %701 = vmatpush.bf16.msra.mxu0 0
        %702 = vmatpush.bf16.msra.mxu0 %v493
        %703 = vmatmul.bf16.gmra.mxu0 %v453
        %v704 = vpop.f32.mrf.mxu0
        %v705 = vadd.f32 0.0, %v704
        %v706 = vpop.f32.mrf.mxu0
        %707 = vdwg.mxu0
        %708 = vmatpush.bf16.msra.mxu0 0
        %709 = vmatpush.bf16.msra.mxu0 0
        %710 = vmatpush.bf16.msra.mxu0 0
        %711 = vmatpush.bf16.msra.mxu0 0
        %712 = vmatpush.bf16.msra.mxu0 0
        %713 = vmatpush.bf16.msra.mxu0 0
        %714 = vmatpush.bf16.msra.mxu0 0
        %715 = vmatpush.bf16.msra.mxu0 %v496
        %716 = vmatmul.bf16.gmra.mxu0 %v453
        %v717 = vpop.f32.mrf.mxu0
        %v718 = vadd.f32 0.0, %v717
        %v719 = vpop.f32.mrf.mxu0
        %720 = vdwg.mxu0
        %721 = vmatpush.bf16.msra.mxu0 0
        %722 = vmatpush.bf16.msra.mxu0 0
        %723 = vmatpush.bf16.msra.mxu0 0
        %724 = vmatpush.bf16.msra.mxu0 0
        %725 = vmatpush.bf16.msra.mxu0 0
        %726 = vmatpush.bf16.msra.mxu0 0
        %727 = vmatpush.bf16.msra.mxu0 0
        %728 = vmatpush.bf16.msra.mxu0 %v499
        %729 = vmatmul.bf16.gmra.mxu0 %v453
        %v730 = vpop.f32.mrf.mxu0
        %v731 = vadd.f32 0.0, %v730
        %v732 = vpop.f32.mrf.mxu0
        %733 = vdwg.mxu0
        %734 = vmatpush.bf16.msra.mxu0 0
        %735 = vmatpush.bf16.msra.mxu0 0
        %736 = vmatpush.bf16.msra.mxu0 0
        %737 = vmatpush.bf16.msra.mxu0 0
        %738 = vmatpush.bf16.msra.mxu0 0
        %739 = vmatpush.bf16.msra.mxu0 0
        %740 = vmatpush.bf16.msra.mxu0 0
        %741 = vmatpush.bf16.msra.mxu0 %v502
        %742 = vmatmul.bf16.gmra.mxu0 %v453
        %v743 = vpop.f32.mrf.mxu0
        %v744 = vadd.f32 0.0, %v743
        %v745 = vpop.f32.mrf.mxu0
        %746 = vdwg.mxu0
        %747 = vmatpush.bf16.msra.mxu0 0
        %748 = vmatpush.bf16.msra.mxu0 0
        %749 = vmatpush.bf16.msra.mxu0 0
        %750 = vmatpush.bf16.msra.mxu0 0
        %751 = vmatpush.bf16.msra.mxu0 0
        %752 = vmatpush.bf16.msra.mxu0 0
        %753 = vmatpush.bf16.msra.mxu0 0
        %754 = vmatpush.bf16.msra.mxu0 %v505
        %755 = vmatmul.bf16.gmra.mxu0 %v453
        %v756 = vpop.f32.mrf.mxu0
        %v757 = vadd.f32 0.0, %v756
        %v758 = vpop.f32.mrf.mxu0
        %759 = vdwg.mxu0
        %760 = vmatpush.bf16.msra.mxu0 0
        %761 = vmatpush.bf16.msra.mxu0 0
        %762 = vmatpush.bf16.msra.mxu0 0
        %763 = vmatpush.bf16.msra.mxu0 0
        %764 = vmatpush.bf16.msra.mxu0 0
        %765 = vmatpush.bf16.msra.mxu0 0
        %766 = vmatpush.bf16.msra.mxu0 0
        %767 = vmatpush.bf16.msra.mxu0 %v508
        %768 = vmatmul.bf16.gmra.mxu0 %v453
        %v769 = vpop.f32.mrf.mxu0
        %v770 = vadd.f32 0.0, %v769
        %v771 = vpop.f32.mrf.mxu0
        %772 = vdwg.mxu0
        %773 = vmatpush.bf16.msra.mxu0 0
        %774 = vmatpush.bf16.msra.mxu0 0
        %775 = vmatpush.bf16.msra.mxu0 0
        %776 = vmatpush.bf16.msra.mxu0 0
        %777 = vmatpush.bf16.msra.mxu0 0
        %778 = vmatpush.bf16.msra.mxu0 0
        %779 = vmatpush.bf16.msra.mxu0 0
        %780 = vmatpush.bf16.msra.mxu0 %v511
        %781 = vmatmul.bf16.gmra.mxu0 %v453
        %v782 = vpop.f32.mrf.mxu0
        %v783 = vadd.f32 0.0, %v782
        %v784 = vpop.f32.mrf.mxu0
        %785 = vdwg.mxu0
        %786 = vmatpush.bf16.msra.mxu0 0
        %787 = vmatpush.bf16.msra.mxu0 0
        %788 = vmatpush.bf16.msra.mxu0 0
        %789 = vmatpush.bf16.msra.mxu0 0
        %790 = vmatpush.bf16.msra.mxu0 0
        %791 = vmatpush.bf16.msra.mxu0 0
        %792 = vmatpush.bf16.msra.mxu0 0
        %793 = vmatpush.bf16.msra.mxu0 %v514
        %794 = vmatmul.bf16.gmra.mxu0 %v453
        %v795 = vpop.f32.mrf.mxu0
        %v796 = vadd.f32 0.0, %v795
        %v797 = vpop.f32.mrf.mxu0
        %798 = vdwg.mxu0
        %799 = vmatpush.bf16.msra.mxu0 0
        %800 = vmatpush.bf16.msra.mxu0 0
        %801 = vmatpush.bf16.msra.mxu0 0
        %802 = vmatpush.bf16.msra.mxu0 0
        %803 = vmatpush.bf16.msra.mxu0 0
        %804 = vmatpush.bf16.msra.mxu0 0
        %805 = vmatpush.bf16.msra.mxu0 0
        %806 = vmatpush.bf16.msra.mxu0 %v517
        %807 = vmatmul.bf16.gmra.mxu0 %v453
        %v808 = vpop.f32.mrf.mxu0
        %v809 = vadd.f32 0.0, %v808
        %v810 = vpop.f32.mrf.mxu0
        %811 = vdwg.mxu0
        %812 = vmatpush.bf16.msra.mxu0 0
        %813 = vmatpush.bf16.msra.mxu0 0
        %814 = vmatpush.bf16.msra.mxu0 0
        %815 = vmatpush.bf16.msra.mxu0 0
        %816 = vmatpush.bf16.msra.mxu0 0
        %817 = vmatpush.bf16.msra.mxu0 0
        %818 = vmatpush.bf16.msra.mxu0 0
        %819 = vmatpush.bf16.msra.mxu0 %v520
        %820 = vmatmul.bf16.gmra.mxu0 %v453
        %v821 = vpop.f32.mrf.mxu0
        %v822 = vadd.f32 0.0, %v821
        %v823 = vpop.f32.mrf.mxu0
        %824 = vdwg.mxu0
        %825 = vmatpush.bf16.msra.mxu0 0
        %826 = vmatpush.bf16.msra.mxu0 0
        %827 = vmatpush.bf16.msra.mxu0 0
        %828 = vmatpush.bf16.msra.mxu0 0
        %829 = vmatpush.bf16.msra.mxu0 0
        %830 = vmatpush.bf16.msra.mxu0 0
        %831 = vmatpush.bf16.msra.mxu0 0
        %832 = vmatpush.bf16.msra.mxu0 %v523
        %833 = vmatmul.bf16.gmra.mxu0 %v453
        %v834 = vpop.f32.mrf.mxu0
        %v835 = vadd.f32 0.0, %v834
        %v836 = vpop.f32.mrf.mxu0
        %837 = vdwg.mxu0
        %838 = vmatpush.bf16.msra.mxu0 0
        %839 = vmatpush.bf16.msra.mxu0 0
        %840 = vmatpush.bf16.msra.mxu0 0
        %841 = vmatpush.bf16.msra.mxu0 0
        %842 = vmatpush.bf16.msra.mxu0 0
        %843 = vmatpush.bf16.msra.mxu0 0
        %844 = vmatpush.bf16.msra.mxu0 0
        %845 = vmatpush.bf16.msra.mxu0 %v526
        %846 = vmatmul.bf16.gmra.mxu0 %v453
        %v847 = vpop.f32.mrf.mxu0
        %v848 = vadd.f32 0.0, %v847
        %v849 = vpop.f32.mrf.mxu0
        %850 = vdwg.mxu0
        %851 = vmatpush.bf16.msra.mxu0 0
        %852 = vmatpush.bf16.msra.mxu0 0
        %853 = vmatpush.bf16.msra.mxu0 0
        %854 = vmatpush.bf16.msra.mxu0 0
        %855 = vmatpush.bf16.msra.mxu0 0
        %856 = vmatpush.bf16.msra.mxu0 0
        %857 = vmatpush.bf16.msra.mxu0 0
        %858 = vmatpush.bf16.msra.mxu0 %v529
        %859 = vmatmul.bf16.gmra.mxu0 %v453
        %v860 = vpop.f32.mrf.mxu0
        %v861 = vadd.f32 0.0, %v860
        %v862 = vpop.f32.mrf.mxu0
        %863 = vdwg.mxu0
        %864 = vmatpush.bf16.msra.mxu0 0
        %865 = vmatpush.bf16.msra.mxu0 0
        %866 = vmatpush.bf16.msra.mxu0 0
        %867 = vmatpush.bf16.msra.mxu0 0
        %868 = vmatpush.bf16.msra.mxu0 0
        %869 = vmatpush.bf16.msra.mxu0 0
        %870 = vmatpush.bf16.msra.mxu0 0
        %871 = vmatpush.bf16.msra.mxu0 %v532
        %872 = vmatmul.bf16.gmra.mxu0 %v453
        %v873 = vpop.f32.mrf.mxu0
        %v874 = vadd.f32 0.0, %v873
        %v875 = vpop.f32.mrf.mxu0
        %876 = vdwg.mxu0
        %877 = vmatpush.bf16.msra.mxu0 0
        %878 = vmatpush.bf16.msra.mxu0 0
        %879 = vmatpush.bf16.msra.mxu0 0
        %880 = vmatpush.bf16.msra.mxu0 0
        %881 = vmatpush.bf16.msra.mxu0 0
        %882 = vmatpush.bf16.msra.mxu0 0
        %883 = vmatpush.bf16.msra.mxu0 0
        %884 = vmatpush.bf16.msra.mxu0 %v535
        %885 = vmatmul.bf16.gmra.mxu0 %v453
        %v886 = vpop.f32.mrf.mxu0
        %v887 = vadd.f32 0.0, %v886
        %v888 = vpop.f32.mrf.mxu0
        %889 = vdwg.mxu0
        %890 = vmatpush.bf16.msra.mxu0 0
        %891 = vmatpush.bf16.msra.mxu0 0
        %892 = vmatpush.bf16.msra.mxu0 0
        %893 = vmatpush.bf16.msra.mxu0 0
        %894 = vmatpush.bf16.msra.mxu0 0
        %895 = vmatpush.bf16.msra.mxu0 0
        %896 = vmatpush.bf16.msra.mxu0 0
        %897 = vmatpush.bf16.msra.mxu0 %v538
        %898 = vmatmul.bf16.gmra.mxu0 %v453
        %v899 = vpop.f32.mrf.mxu0
        %v900 = vadd.f32 0.0, %v899
        %v901 = vpop.f32.mrf.mxu0
        %902 = vdwg.mxu0
        %903 = vmatpush.bf16.msra.mxu0 0
        %904 = vmatpush.bf16.msra.mxu0 0
        %905 = vmatpush.bf16.msra.mxu0 0
        %906 = vmatpush.bf16.msra.mxu0 0
        %907 = vmatpush.bf16.msra.mxu0 0
        %908 = vmatpush.bf16.msra.mxu0 0
        %909 = vmatpush.bf16.msra.mxu0 0
        %910 = vmatpush.bf16.msra.mxu0 %v541
        %911 = vmatmul.bf16.gmra.mxu0 %v453
        %v912 = vpop.f32.mrf.mxu0
        %v913 = vadd.f32 0.0, %v912
        %v914 = vpop.f32.mrf.mxu0
        %915 = vdwg.mxu0
        %916 = vmatpush.bf16.msra.mxu0 0
        %917 = vmatpush.bf16.msra.mxu0 0
        %918 = vmatpush.bf16.msra.mxu0 0
        %919 = vmatpush.bf16.msra.mxu0 0
        %920 = vmatpush.bf16.msra.mxu0 0
        %921 = vmatpush.bf16.msra.mxu0 0
        %922 = vmatpush.bf16.msra.mxu0 0
        %923 = vmatpush.bf16.msra.mxu0 %v544
        %924 = vmatmul.bf16.gmra.mxu0 %v453
        %v925 = vpop.f32.mrf.mxu0
        %v926 = vadd.f32 0.0, %v925
        %v927 = vpop.f32.mrf.mxu0
        %928 = vdwg.mxu0
        %929 = vmatpush.bf16.msra.mxu0 0
        %930 = vmatpush.bf16.msra.mxu0 0
        %931 = vmatpush.bf16.msra.mxu0 0
        %932 = vmatpush.bf16.msra.mxu0 0
        %933 = vmatpush.bf16.msra.mxu0 0
        %934 = vmatpush.bf16.msra.mxu0 0
        %935 = vmatpush.bf16.msra.mxu0 0
        %936 = vmatpush.bf16.msra.mxu0 %v547
        %937 = vmatmul.bf16.gmra.mxu0 %v453
        %v938 = vpop.f32.mrf.mxu0
        %v939 = vadd.f32 0.0, %v938
        %v940 = vpop.f32.mrf.mxu0
        %941 = vdwg.mxu0
        %942 = vmatpush.bf16.msra.mxu0 0
        %943 = vmatpush.bf16.msra.mxu0 0
        %944 = vmatpush.bf16.msra.mxu0 0
        %945 = vmatpush.bf16.msra.mxu0 0
        %946 = vmatpush.bf16.msra.mxu0 0
        %947 = vmatpush.bf16.msra.mxu0 0
        %948 = vmatpush.bf16.msra.mxu0 0
        %949 = vmatpush.bf16.msra.mxu0 %v550
        %950 = vmatmul.bf16.gmra.mxu0 %v453
        %v951 = vpop.f32.mrf.mxu0
        %v952 = vadd.f32 0.0, %v951
        %v953 = vpop.f32.mrf.mxu0
        %954 = vdwg.mxu0
        %v955 = vld [vmem:[%s2] sm:$0xff]
        %957 = vset.pattern.permute.xlu0 0
        %958 = vperm.xlu0 %957, %v955
        %v959 = vpop.permute.xlu0 %958
        %v961 = vmul.f32 %v562, %v959
        %v962 = vmul.f32 %v575, %v959
        %v963 = vmul.f32 %v588, %v959
        %v964 = vmul.f32 %v601, %v959
        %v965 = vmul.f32 %v614, %v959
        %v966 = vmul.f32 %v627, %v959
        %v967 = vmul.f32 %v640, %v959
        %v968 = vmul.f32 %v653, %v959
        %v969 = vmul.f32 %v666, %v959
        %v970 = vmul.f32 %v679, %v959
        %v971 = vmul.f32 %v692, %v959
        %v972 = vmul.f32 %v705, %v959
        %v973 = vmul.f32 %v718, %v959
        %v974 = vmul.f32 %v731, %v959
        %v975 = vmul.f32 %v744, %v959
        %v976 = vmul.f32 %v757, %v959
        %v977 = vmul.f32 %v770, %v959
        %v978 = vmul.f32 %v783, %v959
        %v979 = vmul.f32 %v796, %v959
        %v980 = vmul.f32 %v809, %v959
        %v981 = vmul.f32 %v822, %v959
        %v982 = vmul.f32 %v835, %v959
        %v983 = vmul.f32 %v848, %v959
        %v984 = vmul.f32 %v861, %v959
        %v985 = vmul.f32 %v874, %v959
        %v986 = vmul.f32 %v887, %v959
        %v987 = vmul.f32 %v900, %v959
        %v988 = vmul.f32 %v913, %v959
        %v989 = vmul.f32 %v926, %v959
        %v990 = vmul.f32 %v939, %v959
        %v991 = vmul.f32 %v952, %v959
        %v992 = vld [vmem:[%s3] sm:$0xff]
        %994 = vset.pattern.permute.xlu0 0
        %995 = vperm.xlu0 %994, %v992
        %v996 = vpop.permute.xlu0 %995
        %v998 = vadd.f32 %v961, %v996
        %v999 = vadd.f32 %v962, %v996
        %v1000 = vadd.f32 %v963, %v996
        %v1001 = vadd.f32 %v964, %v996
        %v1002 = vadd.f32 %v965, %v996
        %v1003 = vadd.f32 %v966, %v996
        %v1004 = vadd.f32 %v967, %v996
        %v1005 = vadd.f32 %v968, %v996
        %v1006 = vadd.f32 %v969, %v996
        %v1007 = vadd.f32 %v970, %v996
        %v1008 = vadd.f32 %v971, %v996
        %v1009 = vadd.f32 %v972, %v996
        %v1010 = vadd.f32 %v973, %v996
        %v1011 = vadd.f32 %v974, %v996
        %v1012 = vadd.f32 %v975, %v996
        %v1013 = vadd.f32 %v976, %v996
        %v1014 = vadd.f32 %v977, %v996
        %v1015 = vadd.f32 %v978, %v996
        %v1016 = vadd.f32 %v979, %v996
        %v1017 = vadd.f32 %v980, %v996
        %v1018 = vadd.f32 %v981, %v996
        %v1019 = vadd.f32 %v982, %v996
        %v1020 = vadd.f32 %v983, %v996
        %v1021 = vadd.f32 %v984, %v996
        %v1022 = vadd.f32 %v985, %v996
        %v1023 = vadd.f32 %v986, %v996
        %v1024 = vadd.f32 %v987, %v996
        %v1025 = vadd.f32 %v988, %v996
        %v1026 = vadd.f32 %v989, %v996
        %v1027 = vadd.f32 %v990, %v996
        %v1028 = vadd.f32 %v991, %v996
        %v1029 = vmax.f32 %v998, 0.0
        %v1030 = vmax.f32 %v999, 0.0
        %v1031 = vmax.f32 %v1000, 0.0
        %v1032 = vmax.f32 %v1001, 0.0
        %v1033 = vmax.f32 %v1002, 0.0
        %v1034 = vmax.f32 %v1003, 0.0
        %v1035 = vmax.f32 %v1004, 0.0
        %v1036 = vmax.f32 %v1005, 0.0
        %v1037 = vmax.f32 %v1006, 0.0
        %v1038 = vmax.f32 %v1007, 0.0
        %v1039 = vmax.f32 %v1008, 0.0
        %v1040 = vmax.f32 %v1009, 0.0
        %v1041 = vmax.f32 %v1010, 0.0
        %v1042 = vmax.f32 %v1011, 0.0
        %v1043 = vmax.f32 %v1012, 0.0
        %v1044 = vmax.f32 %v1013, 0.0
        %v1045 = vmax.f32 %v1014, 0.0
        %v1046 = vmax.f32 %v1015, 0.0
        %v1047 = vmax.f32 %v1016, 0.0
        %v1048 = vmax.f32 %v1017, 0.0
        %v1049 = vmax.f32 %v1018, 0.0
        %v1050 = vmax.f32 %v1019, 0.0
        %v1051 = vmax.f32 %v1020, 0.0
        %v1052 = vmax.f32 %v1021, 0.0
        %v1053 = vmax.f32 %v1022, 0.0
        %v1054 = vmax.f32 %v1023, 0.0
        %v1055 = vmax.f32 %v1024, 0.0
        %v1056 = vmax.f32 %v1025, 0.0
        %v1057 = vmax.f32 %v1026, 0.0
        %v1058 = vmax.f32 %v1027, 0.0
        %v1059 = vmax.f32 %v1028, 0.0
        %1060 = vst [vmem:[%s290] sm:$0xff] %v1029
        %1061 = vst [vmem:[%s290 + $0x8] sm:$0xff] %v1030
        %1062 = vst [vmem:[%s290 + $0x10] sm:$0xff] %v1031
        %1063 = vst [vmem:[%s290 + $0x18] sm:$0xff] %v1032
        %1064 = vst [vmem:[%s290 + $0x20] sm:$0xff] %v1033
        %1065 = vst [vmem:[%s290 + $0x28] sm:$0xff] %v1034
        %1066 = vst [vmem:[%s290 + $0x30] sm:$0xff] %v1035
        %1067 = vst [vmem:[%s290 + $0x38] sm:$0xff] %v1036
        %1068 = vst [vmem:[%s290 + $0x40] sm:$0xff] %v1037
        %1069 = vst [vmem:[%s290 + $0x48] sm:$0xff] %v1038
        %1070 = vst [vmem:[%s290 + $0x50] sm:$0xff] %v1039
        %1071 = vst [vmem:[%s290 + $0x58] sm:$0xff] %v1040
        %1072 = vst [vmem:[%s290 + $0x60] sm:$0xff] %v1041
        %1073 = vst [vmem:[%s290 + $0x68] sm:$0xff] %v1042
        %1074 = vst [vmem:[%s290 + $0x70] sm:$0xff] %v1043
        %1075 = vst [vmem:[%s290 + $0x78] sm:$0xff] %v1044
        %1076 = vst [vmem:[%s290 + $0x80] sm:$0xff] %v1045
        %1077 = vst [vmem:[%s290 + $0x88] sm:$0xff] %v1046
        %1078 = vst [vmem:[%s290 + $0x90] sm:$0xff] %v1047
        %1079 = vst [vmem:[%s290 + $0x98] sm:$0xff] %v1048
        %1080 = vst [vmem:[%s290 + $0xa0] sm:$0xff] %v1049
        %1081 = vst [vmem:[%s290 + $0xa8] sm:$0xff] %v1050
        %1082 = vst [vmem:[%s290 + $0xb0] sm:$0xff] %v1051
        %1083 = vst [vmem:[%s290 + $0xb8] sm:$0xff] %v1052
        %1084 = vst [vmem:[%s290 + $0xc0] sm:$0xff] %v1053
        %1085 = vst [vmem:[%s290 + $0xc8] sm:$0xff] %v1054
        %1086 = vst [vmem:[%s290 + $0xd0] sm:$0xff] %v1055
        %1087 = vst [vmem:[%s290 + $0xd8] sm:$0xff] %v1056
        %1088 = vst [vmem:[%s290 + $0xe0] sm:$0xff] %v1057
        %1089 = vst [vmem:[%s290 + $0xe8] sm:$0xff] %v1058
        %1090 = vst [vmem:[%s290 + $0xf0] sm:$0xff] %v1059
        %s1091 = smul.u32 31, %s15
        %p1092 = scmp.lt.s32.totalorder %s1091, 61
        %s1093 = scalar_select %p1092, %s1091, 61
        %s1094 = smul.addr %s1093, 8
        %s1095 = scalar_lea.vmem %s4, %s1094
        // Predicated region
        $region63: #{_lambda_.11} parent=57 // pred_check
          %p1096 = pneg %p122
        $region64: #{_lambda_.11} parent=57 // pred_check_branch
          %1098 = sbr.rel (%p1096) target = $region66
        $region65: #{_lambda_.11} parent=57 // pred_region
          %s1099 = smul.u32 31, %s15
        $region66: #{_lambda_.11} parent=57 // pred_fallthru
          _
      $region58: #{_lambda_.11} parent=5 // pred_fallthru
        _
      %p1100 = scmp.le.s32.totalorder 2, %s10
      // Predicated region
      $region67: #{_lambda_.11} parent=5 // pred_check
        %p1101 = pneg %p1100
      $region68: #{_lambda_.11} parent=5 // pred_check_branch
        %1103 = sbr.rel (%p1101) target = $region70
      $region69: #{_lambda_.11} parent=5 // pred_region
        %s1104 = ssub.s32 %s10, 2
        // Predicated region
        $region71: #{_lambda_.11} parent=69 // pred_check
          %p1105 = pneg %p128
        $region72: #{_lambda_.11} parent=69 // pred_check_branch
          %1107 = sbr.rel (%p1105) target = $region74
        $region73: #{_lambda_.11} parent=69 // pred_region
          %s1108 = smul.u32 31, %s16
          %p1109 = scmp.lt.s32.totalorder %s1108, 61
          %s1110 = scalar_select %p1109, %s1108, 61
          %s1111 = smul.addr %s1110, 8
          %s1112 = scalar_lea.vmem %s4, %s1111
        $region74: #{_lambda_.11} parent=69 // pred_fallthru
          _
      $region70: #{_lambda_.11} parent=5 // pred_fallthru
        _
    $region6: #{_lambda_.11} parent=1 // loop_footer
      %s14 = sadd.s32 1, %s10
    $region7: #{_lambda_.11} parent=1 // loop_footer_branch
      %9 = sbr.rel target = $region3
    $region8: #{_lambda_.11} parent=1 // loop_exit
      _

// kernel: _lambda_.12
$region0: #{_lambda_.12}
  #allocation0 [shape = 'u32[]', space=smem, size = 0x4, offset = 0x4, fixed_abs, tag = 'smem constant byte address 0x4 - core index']
  #allocation1 [shape = 'u32[72,128]{1,0:T(1,128)}', space=vmem, size = 0x9000, scoped, tag = 'internal scratch']
  %s0 = inlined_call_operand.vmem [shape: bf16[72,2048], index: 0, kind: input, shape index: {}]
  %s1 = inlined_call_operand.vmem [shape: bf16[8,72], index: 1, kind: input, shape index: {}]
  %s2 = inlined_call_operand.vmem [shape: f32[8,1], index: 2, kind: input, shape index: {}]
  %s3 = inlined_call_operand.vmem [shape: f32[8,1], index: 3, kind: input, shape index: {}]
  %s4 = inlined_call_operand.vmem [shape: f32[8,2048], index: 4, kind: output, shape index: {}]
  %s5 = sld [smem:[#allocation0]]
  $region72: #{_lambda_.12} parent=0
    _
  %s7 = ssub.s32 1, %s5
  %s8 = scalar_select 0, %s7, %s5
  $region1: #{_lambda_.12} parent=0
    #allocation2 [shape = 'u8[294912]{0}', space=vmem, size = 0x48000, scoped, tag = 'input window, operand 0']
    loop: start=0, step=1, limit=4
    $region2: #{_lambda_.12} parent=1 // loop_pre_header
      _
    $region3: #{_lambda_.12} parent=1 // loop_header
      %s10 = sphi 0, %s14
      %p11 = scmp.ge.s32.totalorder %s10, 4
      %s20 = sphi 0, %s22
      %s23 = sphi 0, %s20
      %s24 = sphi 0, %s23
      %s40 = sphi 0, %s24
      %s44 = sphi 0, %s44
      %s46 = sphi 0, %s44
      %s47 = sphi 0, %s46
      %s61 = sphi 0, %s47
      %s65 = sphi 0, %s65
      %s67 = sphi 0, %s65
      %s68 = sphi 0, %s67
      %s82 = sphi 0, %s68
      %s86 = sphi 0, %s86
      %s88 = sphi 0, %s86
      %s89 = sphi 0, %s88
      %s103 = sphi 0, %s89
      %s109 = sphi 0, %s111
      %s112 = sphi 0, %s109
      %s113 = sphi 0, %s112
      %s129 = sphi 0, %s113
    $region4: #{_lambda_.12} parent=1 // loop_header_branch
      %13 = sbr.rel (%p11) target = $region8
    $region5: #{_lambda_.12} parent=1 // loop_body
      %s15 = ssub.s32 %s10, 1
      %s16 = ssub.s32 %s10, 2
      %s17 = sadd.s32 %s10, 1
      %s18 = ssub.s32 %s10, %s17
      %p19 = scmp.eq.s32.totalorder %s18, 0
      %s21 = sadd.s32 %s20, 1
      %s22 = scalar_select %p19, %s20, %s21
      %p25 = pneg %p19
      %p26 = scmp.eq.s32.totalorder %s10, 1
      %p27 = por %p25, %p26
      %p28 = scmp.ne.s32.totalorder %s20, %s23
      %p29 = scmp.eq.s32.totalorder %s10, 0
      %p30 = por %p28, %p29
      %p31 = scmp.ne.s32.totalorder %s20, %s23
      %p32 = scmp.eq.s32.totalorder %s15, 1
      %p33 = por %p31, %p32
      %p34 = scmp.ne.s32.totalorder %s23, %s24
      %p35 = scmp.eq.s32.totalorder %s15, 0
      %p36 = por %p34, %p35
      %p37 = scmp.ne.s32.totalorder %s23, %s24
      %p38 = scmp.eq.s32.totalorder %s16, 1
      %p39 = por %p37, %p38
      %p41 = scmp.ne.s32.totalorder %s24, %s40
      %p42 = scmp.eq.s32.totalorder %s16, 0
      %p43 = por %p41, %p42
      %s45 = sadd.s32 %s44, 1
      %p48 = scmp.eq.s32.totalorder %s10, 1
      %p49 = scmp.ne.s32.totalorder %s44, %s46
      %p50 = scmp.eq.s32.totalorder %s10, 0
      %p51 = por %p49, %p50
      %p52 = scmp.ne.s32.totalorder %s44, %s46
      %p53 = scmp.eq.s32.totalorder %s15, 1
      %p54 = por %p52, %p53
      %p55 = scmp.ne.s32.totalorder %s46, %s47
      %p56 = scmp.eq.s32.totalorder %s15, 0
      %p57 = por %p55, %p56
      %p58 = scmp.ne.s32.totalorder %s46, %s47
      %p59 = scmp.eq.s32.totalorder %s16, 1
      %p60 = por %p58, %p59
      %p62 = scmp.ne.s32.totalorder %s47, %s61
      %p63 = scmp.eq.s32.totalorder %s16, 0
      %p64 = por %p62, %p63
      %s66 = sadd.s32 %s65, 1
      %p69 = scmp.eq.s32.totalorder %s10, 1
      %p70 = scmp.ne.s32.totalorder %s65, %s67
      %p71 = scmp.eq.s32.totalorder %s10, 0
      %p72 = por %p70, %p71
      %p73 = scmp.ne.s32.totalorder %s65, %s67
      %p74 = scmp.eq.s32.totalorder %s15, 1
      %p75 = por %p73, %p74
      %p76 = scmp.ne.s32.totalorder %s67, %s68
      %p77 = scmp.eq.s32.totalorder %s15, 0
      %p78 = por %p76, %p77
      %p79 = scmp.ne.s32.totalorder %s67, %s68
      %p80 = scmp.eq.s32.totalorder %s16, 1
      %p81 = por %p79, %p80
      %p83 = scmp.ne.s32.totalorder %s68, %s82
      %p84 = scmp.eq.s32.totalorder %s16, 0
      %p85 = por %p83, %p84
      %s87 = sadd.s32 %s86, 1
      %p90 = scmp.eq.s32.totalorder %s10, 1
      %p91 = scmp.ne.s32.totalorder %s86, %s88
      %p92 = scmp.eq.s32.totalorder %s10, 0
      %p93 = por %p91, %p92
      %p94 = scmp.ne.s32.totalorder %s86, %s88
      %p95 = scmp.eq.s32.totalorder %s15, 1
      %p96 = por %p94, %p95
      %p97 = scmp.ne.s32.totalorder %s88, %s89
      %p98 = scmp.eq.s32.totalorder %s15, 0
      %p99 = por %p97, %p98
      %p100 = scmp.ne.s32.totalorder %s88, %s89
      %p101 = scmp.eq.s32.totalorder %s16, 1
      %p102 = por %p100, %p101
      %p104 = scmp.ne.s32.totalorder %s89, %s103
      %p105 = scmp.eq.s32.totalorder %s16, 0
      %p106 = por %p104, %p105
      %s107 = ssub.s32 %s10, %s17
      %p108 = scmp.eq.s32.totalorder %s107, 0
      %s110 = sadd.s32 %s109, 1
      %s111 = scalar_select %p108, %s109, %s110
      %p114 = pneg %p108
      %p115 = scmp.eq.s32.totalorder %s10, 1
      %p116 = por %p114, %p115
      %p117 = scmp.ne.s32.totalorder %s109, %s112
      %p118 = scmp.eq.s32.totalorder %s10, 0
      %p119 = por %p117, %p118
      %p120 = scmp.ne.s32.totalorder %s109, %s112
      %p121 = scmp.eq.s32.totalorder %s15, 1
      %p122 = por %p120, %p121
      %p123 = scmp.ne.s32.totalorder %s112, %s113
      %p124 = scmp.eq.s32.totalorder %s15, 0
      %p125 = por %p123, %p124
      %p126 = scmp.ne.s32.totalorder %s112, %s113
      %p127 = scmp.eq.s32.totalorder %s16, 1
      %p128 = por %p126, %p127
      %p130 = scmp.ne.s32.totalorder %s113, %s129
      %p131 = scmp.eq.s32.totalorder %s16, 0
      %p132 = por %p130, %p131
      %p133 = scmp.le.s32.totalorder 1, %s10
      %p134 = scmp.lt.s32.totalorder %s10, 3
      %p135 = pnand %p133, %p134
      %p136 = pneg %p135
      // Predicated region
      $region9: #{_lambda_.12} parent=5 // pred_check
        _
      $region10: #{_lambda_.12} parent=5 // pred_check_branch
        %138 = sbr.rel (%p135) target = $region12
      $region11: #{_lambda_.12} parent=5 // pred_region
        %s139 = ssub.s32 %s10, 1
        // Predicated region
        $region13: #{_lambda_.12} parent=11 // pred_check
          %p140 = pneg %p57
        $region14: #{_lambda_.12} parent=11 // pred_check_branch
          %142 = sbr.rel (%p140) target = $region16
        $region15: #{_lambda_.12} parent=11 // pred_region
          _
        $region16: #{_lambda_.12} parent=11 // pred_fallthru
          _
        // Predicated region
        $region17: #{_lambda_.12} parent=11 // pred_check
          %p143 = pneg %p78
        $region18: #{_lambda_.12} parent=11 // pred_check_branch
          %145 = sbr.rel (%p143) target = $region20
        $region19: #{_lambda_.12} parent=11 // pred_region
          _
        $region20: #{_lambda_.12} parent=11 // pred_fallthru
          _
        // Predicated region
        $region21: #{_lambda_.12} parent=11 // pred_check
          %p146 = pneg %p99
        $region22: #{_lambda_.12} parent=11 // pred_check_branch
          %148 = sbr.rel (%p146) target = $region24
        $region23: #{_lambda_.12} parent=11 // pred_region
          _
        $region24: #{_lambda_.12} parent=11 // pred_fallthru
          _
      $region12: #{_lambda_.12} parent=5 // pred_fallthru
        _
      %p149 = scmp.lt.s32.totalorder %s10, 2
      // Predicated region
      $region25: #{_lambda_.12} parent=5 // pred_check
        %p150 = pneg %p149
      $region26: #{_lambda_.12} parent=5 // pred_check_branch
        %152 = sbr.rel (%p150) target = $region28
      $region27: #{_lambda_.12} parent=5 // pred_region
        // Predicated region
        $region29: #{_lambda_.12} parent=27 // pred_check
          %p153 = pneg %p30
        $region30: #{_lambda_.12} parent=27 // pred_check_branch
          %155 = sbr.rel (%p153) target = $region32
        $region31: #{_lambda_.12} parent=27 // pred_region
          %s156 = sand.u32 %s20, 1
          %s157 = sand.u32 %s20, 1
          %s158 = smul.addr %s157, 288
          %s159 = scalar_lea.vmem [#allocation2], %s158
          %s160 = smul.u32 8, %s10
          %s161 = smul.addr %s160, 4
          %s162 = scalar_lea.vmem %s0, %s161
          // Predicated region
          $region33: #{_lambda_.12} parent=31 // pred_check
            _
          $region34: #{_lambda_.12} parent=31 // pred_check_branch
            %164 = sbr.rel (0) target = $region36
          $region35: #{_lambda_.12} parent=31 // pred_region
            // Predicated region
            $region37: #{_lambda_.12} parent=35 // pred_check
              _
            $region38: #{_lambda_.12} parent=35 // pred_check_branch
              %166 = sbr.rel (0) target = $region40
            $region39: #{_lambda_.12} parent=35 // pred_region
              loop: start=0, step=1, limit=1
              $region41: #{_lambda_.12} parent=39 // loop_pre_header
                _
              $region42: #{_lambda_.12} parent=39 // loop_header
                %s168 = sphi 0, %s172
                %p169 = scmp.ge.s32.totalorder %s168, 1
                %s173 = sphi %s162, %s162
                %s174 = sphi %s159, %s159
              $region43: #{_lambda_.12} parent=39 // loop_header_branch
                %171 = sbr.rel (%p169) target = $region47
              $region44: #{_lambda_.12} parent=39 // loop_body
                %v175 = vld [vmem:[%s173] sm:$0xff]
                %176 = vst [vmem:[%s174] sm:$0xff] %v175
                %v177 = vld [vmem:[%s173 + $0x8] sm:$0xff]
                %178 = vst [vmem:[%s174 + $0x8] sm:$0xff] %v177
                %v179 = vld [vmem:[%s173 + $0x10] sm:$0xff]
                %180 = vst [vmem:[%s174 + $0x10] sm:$0xff] %v179
                %v181 = vld [vmem:[%s173 + $0x18] sm:$0xff]
                %182 = vst [vmem:[%s174 + $0x18] sm:$0xff] %v181
                %v183 = vld [vmem:[%s173 + $0x40] sm:$0xff]
                %184 = vst [vmem:[%s174 + $0x20] sm:$0xff] %v183
                %v185 = vld [vmem:[%s173 + $0x48] sm:$0xff]
                %186 = vst [vmem:[%s174 + $0x28] sm:$0xff] %v185
                %v187 = vld [vmem:[%s173 + $0x50] sm:$0xff]
                %188 = vst [vmem:[%s174 + $0x30] sm:$0xff] %v187
                %v189 = vld [vmem:[%s173 + $0x58] sm:$0xff]
                %190 = vst [vmem:[%s174 + $0x38] sm:$0xff] %v189
                %v191 = vld [vmem:[%s173 + $0x80] sm:$0xff]
                %192 = vst [vmem:[%s174 + $0x40] sm:$0xff] %v191
                %v193 = vld [vmem:[%s173 + $0x88] sm:$0xff]
                %194 = vst [vmem:[%s174 + $0x48] sm:$0xff] %v193
                %v195 = vld [vmem:[%s173 + $0x90] sm:$0xff]
                %196 = vst [vmem:[%s174 + $0x50] sm:$0xff] %v195
                %v197 = vld [vmem:[%s173 + $0x98] sm:$0xff]
                %198 = vst [vmem:[%s174 + $0x58] sm:$0xff] %v197
                %v199 = vld [vmem:[%s173 + $0xc0] sm:$0xff]
                %200 = vst [vmem:[%s174 + $0x60] sm:$0xff] %v199
                %v201 = vld [vmem:[%s173 + $0xc8] sm:$0xff]
                %202 = vst [vmem:[%s174 + $0x68] sm:$0xff] %v201
                %v203 = vld [vmem:[%s173 + $0xd0] sm:$0xff]
                %204 = vst [vmem:[%s174 + $0x70] sm:$0xff] %v203
                %v205 = vld [vmem:[%s173 + $0xd8] sm:$0xff]
                %206 = vst [vmem:[%s174 + $0x78] sm:$0xff] %v205
                %v207 = vld [vmem:[%s173 + $0x100] sm:$0xff]
                %208 = vst [vmem:[%s174 + $0x80] sm:$0xff] %v207
                %v209 = vld [vmem:[%s173 + $0x108] sm:$0xff]
                %210 = vst [vmem:[%s174 + $0x88] sm:$0xff] %v209
                %v211 = vld [vmem:[%s173 + $0x110] sm:$0xff]
                %212 = vst [vmem:[%s174 + $0x90] sm:$0xff] %v211
                %v213 = vld [vmem:[%s173 + $0x118] sm:$0xff]
                %214 = vst [vmem:[%s174 + $0x98] sm:$0xff] %v213
                %v215 = vld [vmem:[%s173 + $0x140] sm:$0xff]
                %216 = vst [vmem:[%s174 + $0xa0] sm:$0xff] %v215
                %v217 = vld [vmem:[%s173 + $0x148] sm:$0xff]
                %218 = vst [vmem:[%s174 + $0xa8] sm:$0xff] %v217
                %v219 = vld [vmem:[%s173 + $0x150] sm:$0xff]
                %220 = vst [vmem:[%s174 + $0xb0] sm:$0xff] %v219
                %v221 = vld [vmem:[%s173 + $0x158] sm:$0xff]
                %222 = vst [vmem:[%s174 + $0xb8] sm:$0xff] %v221
                %v223 = vld [vmem:[%s173 + $0x180] sm:$0xff]
                %224 = vst [vmem:[%s174 + $0xc0] sm:$0xff] %v223
                %v225 = vld [vmem:[%s173 + $0x188] sm:$0xff]
                %226 = vst [vmem:[%s174 + $0xc8] sm:$0xff] %v225
                %v227 = vld [vmem:[%s173 + $0x190] sm:$0xff]
                %228 = vst [vmem:[%s174 + $0xd0] sm:$0xff] %v227
                %v229 = vld [vmem:[%s173 + $0x198] sm:$0xff]
                %230 = vst [vmem:[%s174 + $0xd8] sm:$0xff] %v229
                %v231 = vld [vmem:[%s173 + $0x1c0] sm:$0xff]
                %232 = vst [vmem:[%s174 + $0xe0] sm:$0xff] %v231
                %v233 = vld [vmem:[%s173 + $0x1c8] sm:$0xff]
                %234 = vst [vmem:[%s174 + $0xe8] sm:$0xff] %v233
                %v235 = vld [vmem:[%s173 + $0x1d0] sm:$0xff]
                %236 = vst [vmem:[%s174 + $0xf0] sm:$0xff] %v235
                %v237 = vld [vmem:[%s173 + $0x1d8] sm:$0xff]
                %238 = vst [vmem:[%s174 + $0xf8] sm:$0xff] %v237
                %v239 = vld [vmem:[%s173 + $0x200] sm:$0xff]
                %240 = vst [vmem:[%s174 + $0x100] sm:$0xff] %v239
                %v241 = vld [vmem:[%s173 + $0x208] sm:$0xff]
                %242 = vst [vmem:[%s174 + $0x108] sm:$0xff] %v241
                %v243 = vld [vmem:[%s173 + $0x210] sm:$0xff]
                %244 = vst [vmem:[%s174 + $0x110] sm:$0xff] %v243
                %v245 = vld [vmem:[%s173 + $0x218] sm:$0xff]
                %246 = vst [vmem:[%s174 + $0x118] sm:$0xff] %v245
              $region45: #{_lambda_.12} parent=39 // loop_footer
                %s172 = sadd.s32 1, %s168
              $region46: #{_lambda_.12} parent=39 // loop_footer_branch
                %167 = sbr.rel target = $region42
              $region47: #{_lambda_.12} parent=39 // loop_exit
                _
            $region40: #{_lambda_.12} parent=35 // pred_fallthru
              _
            // Predicated region
            $region48: #{_lambda_.12} parent=35 // pred_check
              _
            $region49: #{_lambda_.12} parent=35 // pred_check_branch
              %248 = sbr.rel target = $region51
            $region50: #{_lambda_.12} parent=35 // pred_region
              _
            $region51: #{_lambda_.12} parent=35 // pred_fallthru
              _
          $region36: #{_lambda_.12} parent=31 // pred_fallthru
            _
          %249 = vnop
        $region32: #{_lambda_.12} parent=27 // pred_fallthru
          _
      $region28: #{_lambda_.12} parent=5 // pred_fallthru
        _
      %p250 = scmp.le.s32.totalorder 1, %s10
      %p251 = scmp.lt.s32.totalorder %s10, 3
      %p252 = pnand %p250, %p251
      %p253 = pneg %p252
      // Predicated region
      $region52: #{_lambda_.12} parent=5 // pred_check
        _
      $region53: #{_lambda_.12} parent=5 // pred_check_branch
        %255 = sbr.rel (%p252) target = $region55
      $region54: #{_lambda_.12} parent=5 // pred_region
        %s256 = ssub.s32 %s10, 1
        %s257 = sand.u32 %s23, 1
        %s258 = sand.u32 %s23, 1
        %s259 = smul.addr %s258, 288
        %s260 = scalar_lea.vmem [#allocation2], %s259
        // Predicated region
        $region56: #{_lambda_.12} parent=54 // pred_check
          %p261 = pneg %p36
        $region57: #{_lambda_.12} parent=54 // pred_check_branch
          %263 = sbr.rel (%p261) target = $region59
        $region58: #{_lambda_.12} parent=54 // pred_region
          _
        $region59: #{_lambda_.12} parent=54 // pred_fallthru
          _
        %s264 = sand.u32 %s23, 1
        %s265 = sand.u32 %s23, 1
        %s266 = smul.addr %s265, 288
        %s267 = scalar_lea.vmem [#allocation2], %s266
        %p268 = pneg %p36
        %p269 = pneg %p33
        %p270 = pneg %p57
        %p271 = pneg %p54
        %p272 = pneg %p78
        %p273 = pneg %p75
        %p274 = pneg %p99
        %p275 = pneg %p96
        %p276 = pneg %p125
        %p277 = pneg %p122
        %s278 = smul.u32 8, %s15
        %p279 = scmp.lt.s32.totalorder %s278, 15
        %s280 = scalar_select %p279, %s278, 15
        %s281 = smul.addr %s280, 8
        %s282 = scalar_lea.vmem %s4, %s281
        %s283 = smul.u32 8, %s15
        %s284 = smul.u32 8, %s15
        %p285 = scmp.lt.s32.totalorder %s284, 15
        %s286 = scalar_select %p285, %s284, 15
        %s287 = smul.addr %s286, 8
        %s288 = scalar_lea.vmem %s4, %s287
        %s289 = smul.u32 8, %s15
        %v291 = vld [vmem:[%s1] sm:$0xf]
        %v292 = vld [vmem:[%s260] sm:$0xff]
        %v293 = vld [vmem:[%s260 + $0x8] sm:$0xff]
        %v294 = vld [vmem:[%s260 + $0x10] sm:$0xff]
        %v295 = vld [vmem:[%s260 + $0x18] sm:$0xff]
        %v296 = vld [vmem:[%s260 + $0x20] sm:$0xff]
        %v297 = vld [vmem:[%s260 + $0x28] sm:$0xff]
        %v298 = vld [vmem:[%s260 + $0x30] sm:$0xff]
        %v299 = vld [vmem:[%s260 + $0x38] sm:$0xff]
        %v300 = vld [vmem:[%s260 + $0x40] sm:$0xff]
        %v301 = vld [vmem:[%s260 + $0x48] sm:$0xff]
        %v302 = vld [vmem:[%s260 + $0x50] sm:$0xff]
        %v303 = vld [vmem:[%s260 + $0x58] sm:$0xff]
        %v304 = vld [vmem:[%s260 + $0x60] sm:$0xff]
        %v305 = vld [vmem:[%s260 + $0x68] sm:$0xff]
        %v306 = vld [vmem:[%s260 + $0x70] sm:$0xff]
        %v307 = vld [vmem:[%s260 + $0x78] sm:$0xff]
        %v308 = vld [vmem:[%s260 + $0x80] sm:$0xff]
        %v309 = vld [vmem:[%s260 + $0x88] sm:$0xff]
        %v310 = vld [vmem:[%s260 + $0x90] sm:$0xff]
        %v311 = vld [vmem:[%s260 + $0x98] sm:$0xff]
        %v312 = vld [vmem:[%s260 + $0xa0] sm:$0xff]
        %v313 = vld [vmem:[%s260 + $0xa8] sm:$0xff]
        %v314 = vld [vmem:[%s260 + $0xb0] sm:$0xff]
        %v315 = vld [vmem:[%s260 + $0xb8] sm:$0xff]
        %v316 = vld [vmem:[%s260 + $0xc0] sm:$0xff]
        %v317 = vld [vmem:[%s260 + $0xc8] sm:$0xff]
        %v318 = vld [vmem:[%s260 + $0xd0] sm:$0xff]
        %v319 = vld [vmem:[%s260 + $0xd8] sm:$0xff]
        %v320 = vld [vmem:[%s260 + $0xe0] sm:$0xff]
        %v321 = vld [vmem:[%s260 + $0xe8] sm:$0xff]
        %v322 = vld [vmem:[%s260 + $0xf0] sm:$0xff]
        %v323 = vld [vmem:[%s260 + $0xf8] sm:$0xff]
        %v324 = vld [vmem:[%s260 + $0x100] sm:$0xff]
        %v325 = vld [vmem:[%s260 + $0x108] sm:$0xff]
        %v326 = vld [vmem:[%s260 + $0x110] sm:$0xff]
        %v327 = vld [vmem:[%s260 + $0x118] sm:$0xff]
        %v364 = vunpack.c.l.b16 %v292
        %v365 = vunpack.c.h.b16 %v292
        %v366 = vunpack.c.l.b16 %v293
        %v367 = vunpack.c.h.b16 %v293
        %v368 = vunpack.c.l.b16 %v294
        %v369 = vunpack.c.h.b16 %v294
        %v370 = vunpack.c.l.b16 %v295
        %v371 = vunpack.c.h.b16 %v295
        %v372 = vunpack.c.l.b16 %v296
        %v373 = vunpack.c.h.b16 %v296
        %v374 = vunpack.c.l.b16 %v297
        %v375 = vunpack.c.h.b16 %v297
        %v376 = vunpack.c.l.b16 %v298
        %v377 = vunpack.c.h.b16 %v298
        %v378 = vunpack.c.l.b16 %v299
        %v379 = vunpack.c.h.b16 %v299
        %v380 = vunpack.c.l.b16 %v300
        %v381 = vunpack.c.h.b16 %v300
        %v382 = vunpack.c.l.b16 %v301
        %v383 = vunpack.c.h.b16 %v301
        %v384 = vunpack.c.l.b16 %v302
        %v385 = vunpack.c.h.b16 %v302
        %v386 = vunpack.c.l.b16 %v303
        %v387 = vunpack.c.h.b16 %v303
        %v388 = vunpack.c.l.b16 %v304
        %v389 = vunpack.c.h.b16 %v304
        %v390 = vunpack.c.l.b16 %v305
        %v391 = vunpack.c.h.b16 %v305
        %v392 = vunpack.c.l.b16 %v306
        %v393 = vunpack.c.h.b16 %v306
        %v394 = vunpack.c.l.b16 %v307
        %v395 = vunpack.c.h.b16 %v307
        %v396 = vunpack.c.l.b16 %v308
        %v397 = vunpack.c.h.b16 %v308
        %v398 = vunpack.c.l.b16 %v309
        %v399 = vunpack.c.h.b16 %v309
        %v400 = vunpack.c.l.b16 %v310
        %v401 = vunpack.c.h.b16 %v310
        %v402 = vunpack.c.l.b16 %v311
        %v403 = vunpack.c.h.b16 %v311
        %v404 = vunpack.c.l.b16 %v312
        %v405 = vunpack.c.h.b16 %v312
        %v406 = vunpack.c.l.b16 %v313
        %v407 = vunpack.c.h.b16 %v313
        %v408 = vunpack.c.l.b16 %v314
        %v409 = vunpack.c.h.b16 %v314
        %v410 = vunpack.c.l.b16 %v315
        %v411 = vunpack.c.h.b16 %v315
        %v412 = vunpack.c.l.b16 %v316
        %v413 = vunpack.c.h.b16 %v316
        %v414 = vunpack.c.l.b16 %v317
        %v415 = vunpack.c.h.b16 %v317
        %v416 = vunpack.c.l.b16 %v318
        %v417 = vunpack.c.h.b16 %v318
        %v418 = vunpack.c.l.b16 %v319
        %v419 = vunpack.c.h.b16 %v319
        %v420 = vunpack.c.l.b16 %v320
        %v421 = vunpack.c.h.b16 %v320
        %v422 = vunpack.c.l.b16 %v321
        %v423 = vunpack.c.h.b16 %v321
        %v424 = vunpack.c.l.b16 %v322
        %v425 = vunpack.c.h.b16 %v322
        %v426 = vunpack.c.l.b16 %v323
        %v427 = vunpack.c.h.b16 %v323
        %v428 = vunpack.c.l.b16 %v324
        %v429 = vunpack.c.h.b16 %v324
        %v430 = vunpack.c.l.b16 %v325
        %v431 = vunpack.c.h.b16 %v325
        %v432 = vunpack.c.l.b16 %v326
        %v433 = vunpack.c.h.b16 %v326
        %v434 = vunpack.c.l.b16 %v327
        %v435 = vunpack.c.h.b16 %v327
        %v436 = vpack.c.b16 %v372, %v364
        %v437 = vpack.c.b16 %v373, %v365
        %v438 = vpack.c.b16 %v374, %v366
        %v439 = vpack.c.b16 %v375, %v367
        %v440 = vpack.c.b16 %v376, %v368
        %v441 = vpack.c.b16 %v377, %v369
        %v442 = vpack.c.b16 %v378, %v370
        %v443 = vpack.c.b16 %v379, %v371
        %v444 = vpack.c.b16 %v388, %v380
        %v445 = vpack.c.b16 %v389, %v381
        %v446 = vpack.c.b16 %v390, %v382
        %v447 = vpack.c.b16 %v391, %v383
        %v448 = vpack.c.b16 %v392, %v384
        %v449 = vpack.c.b16 %v393, %v385
        %v450 = vpack.c.b16 %v394, %v386
        %v451 = vpack.c.b16 %v395, %v387
        %v452 = vpack.c.b16 %v404, %v396
        %v453 = vpack.c.b16 %v405, %v397
        %v454 = vpack.c.b16 %v406, %v398
        %v455 = vpack.c.b16 %v407, %v399
        %v456 = vpack.c.b16 %v408, %v400
        %v457 = vpack.c.b16 %v409, %v401
        %v458 = vpack.c.b16 %v410, %v402
        %v459 = vpack.c.b16 %v411, %v403
        %v460 = vpack.c.b16 %v420, %v412
        %v461 = vpack.c.b16 %v421, %v413
        %v462 = vpack.c.b16 %v422, %v414
        %v463 = vpack.c.b16 %v423, %v415
        %v464 = vpack.c.b16 %v424, %v416
        %v465 = vpack.c.b16 %v425, %v417
        %v466 = vpack.c.b16 %v426, %v418
        %v467 = vpack.c.b16 %v427, %v419
        %v468 = vpack.c.b16 %v428, %v428
        %v469 = vpack.c.b16 %v429, %v429
        %v470 = vpack.c.b16 %v430, %v430
        %v471 = vpack.c.b16 %v431, %v431
        %v472 = vpack.c.b16 %v432, %v432
        %v473 = vpack.c.b16 %v433, %v433
        %v474 = vpack.c.b16 %v434, %v434
        %v475 = vpack.c.b16 %v435, %v435
        %vm508 = vcmask 588800
        %v510 = vsel %vm508, %v291, 0
        %vm512 = vcmask 1043456
        %v514 = vsel %vm512, %v468, 0
        %v517 = vsel %vm512, %v469, 0
        %v520 = vsel %vm512, %v470, 0
        %v523 = vsel %vm512, %v471, 0
        %v526 = vsel %vm512, %v472, 0
        %v529 = vsel %vm512, %v473, 0
        %v532 = vsel %vm512, %v474, 0
        %v535 = vsel %vm512, %v475, 0
        %537 = vmatpush.bf16.msra.mxu0 0
        %538 = vmatpush.bf16.msra.mxu0 0
        %539 = vmatpush.bf16.msra.mxu0 0
        %540 = vmatpush.bf16.msra.mxu0 %v514
        %541 = vmatpush.bf16.msra.mxu0 %v460
        %542 = vmatpush.bf16.msra.mxu0 %v452
        %543 = vmatpush.bf16.msra.mxu0 %v444
        %544 = vmatpush.bf16.msra.mxu0 %v436
        %545 = vmatmul.bf16.gmra.mxu0 %v510
        %v546 = vpop.f32.mrf.mxu0
        %v547 = vadd.f32 0.0, %v546
        %v548 = vpop.f32.mrf.mxu0
        %549 = vdwg.mxu0
        %550 = vmatpush.bf16.msra.mxu0 0
        %551 = vmatpush.bf16.msra.mxu0 0
        %552 = vmatpush.bf16.msra.mxu0 0
        %553 = vmatpush.bf16.msra.mxu0 %v517
        %554 = vmatpush.bf16.msra.mxu0 %v461
        %555 = vmatpush.bf16.msra.mxu0 %v453
        %556 = vmatpush.bf16.msra.mxu0 %v445
        %557 = vmatpush.bf16.msra.mxu0 %v437
        %558 = vmatmul.bf16.gmra.mxu0 %v510
        %v559 = vpop.f32.mrf.mxu0
        %v560 = vadd.f32 0.0, %v559
        %v561 = vpop.f32.mrf.mxu0
        %562 = vdwg.mxu0
        %563 = vmatpush.bf16.msra.mxu0 0
        %564 = vmatpush.bf16.msra.mxu0 0
        %565 = vmatpush.bf16.msra.mxu0 0
        %566 = vmatpush.bf16.msra.mxu0 %v520
        %567 = vmatpush.bf16.msra.mxu0 %v462
        %568 = vmatpush.bf16.msra.mxu0 %v454
        %569 = vmatpush.bf16.msra.mxu0 %v446
        %570 = vmatpush.bf16.msra.mxu0 %v438
        %571 = vmatmul.bf16.gmra.mxu0 %v510
        %v572 = vpop.f32.mrf.mxu0
        %v573 = vadd.f32 0.0, %v572
        %v574 = vpop.f32.mrf.mxu0
        %575 = vdwg.mxu0
        %576 = vmatpush.bf16.msra.mxu0 0
        %577 = vmatpush.bf16.msra.mxu0 0
        %578 = vmatpush.bf16.msra.mxu0 0
        %579 = vmatpush.bf16.msra.mxu0 %v523
        %580 = vmatpush.bf16.msra.mxu0 %v463
        %581 = vmatpush.bf16.msra.mxu0 %v455
        %582 = vmatpush.bf16.msra.mxu0 %v447
        %583 = vmatpush.bf16.msra.mxu0 %v439
        %584 = vmatmul.bf16.gmra.mxu0 %v510
        %v585 = vpop.f32.mrf.mxu0
        %v586 = vadd.f32 0.0, %v585
        %v587 = vpop.f32.mrf.mxu0
        %588 = vdwg.mxu0
        %589 = vmatpush.bf16.msra.mxu0 0
        %590 = vmatpush.bf16.msra.mxu0 0
        %591 = vmatpush.bf16.msra.mxu0 0
        %592 = vmatpush.bf16.msra.mxu0 %v526
        %593 = vmatpush.bf16.msra.mxu0 %v464
        %594 = vmatpush.bf16.msra.mxu0 %v456
        %595 = vmatpush.bf16.msra.mxu0 %v448
        %596 = vmatpush.bf16.msra.mxu0 %v440
        %597 = vmatmul.bf16.gmra.mxu0 %v510
        %v598 = vpop.f32.mrf.mxu0
        %v599 = vadd.f32 0.0, %v598
        %v600 = vpop.f32.mrf.mxu0
        %601 = vdwg.mxu0
        %602 = vmatpush.bf16.msra.mxu0 0
        %603 = vmatpush.bf16.msra.mxu0 0
        %604 = vmatpush.bf16.msra.mxu0 0
        %605 = vmatpush.bf16.msra.mxu0 %v529
        %606 = vmatpush.bf16.msra.mxu0 %v465
        %607 = vmatpush.bf16.msra.mxu0 %v457
        %608 = vmatpush.bf16.msra.mxu0 %v449
        %609 = vmatpush.bf16.msra.mxu0 %v441
        %610 = vmatmul.bf16.gmra.mxu0 %v510
        %v611 = vpop.f32.mrf.mxu0
        %v612 = vadd.f32 0.0, %v611
        %v613 = vpop.f32.mrf.mxu0
        %614 = vdwg.mxu0
        %615 = vmatpush.bf16.msra.mxu0 0
        %616 = vmatpush.bf16.msra.mxu0 0
        %617 = vmatpush.bf16.msra.mxu0 0
        %618 = vmatpush.bf16.msra.mxu0 %v532
        %619 = vmatpush.bf16.msra.mxu0 %v466
        %620 = vmatpush.bf16.msra.mxu0 %v458
        %621 = vmatpush.bf16.msra.mxu0 %v450
        %622 = vmatpush.bf16.msra.mxu0 %v442
        %623 = vmatmul.bf16.gmra.mxu0 %v510
        %v624 = vpop.f32.mrf.mxu0
        %v625 = vadd.f32 0.0, %v624
        %v626 = vpop.f32.mrf.mxu0
        %627 = vdwg.mxu0
        %628 = vmatpush.bf16.msra.mxu0 0
        %629 = vmatpush.bf16.msra.mxu0 0
        %630 = vmatpush.bf16.msra.mxu0 0
        %631 = vmatpush.bf16.msra.mxu0 %v535
        %632 = vmatpush.bf16.msra.mxu0 %v467
        %633 = vmatpush.bf16.msra.mxu0 %v459
        %634 = vmatpush.bf16.msra.mxu0 %v451
        %635 = vmatpush.bf16.msra.mxu0 %v443
        %636 = vmatmul.bf16.gmra.mxu0 %v510
        %v637 = vpop.f32.mrf.mxu0
        %v638 = vadd.f32 0.0, %v637
        %v639 = vpop.f32.mrf.mxu0
        %640 = vdwg.mxu0
        %v641 = vld [vmem:[%s2] sm:$0xff]
        %643 = vset.pattern.permute.xlu0 0
        %644 = vperm.xlu0 %643, %v641
        %v645 = vpop.permute.xlu0 %644
        %v647 = vmul.f32 %v547, %v645
        %v648 = vmul.f32 %v560, %v645
        %v649 = vmul.f32 %v573, %v645
        %v650 = vmul.f32 %v586, %v645
        %v651 = vmul.f32 %v599, %v645
        %v652 = vmul.f32 %v612, %v645
        %v653 = vmul.f32 %v625, %v645
        %v654 = vmul.f32 %v638, %v645
        %v655 = vld [vmem:[%s3] sm:$0xff]
        %657 = vset.pattern.permute.xlu0 0
        %658 = vperm.xlu0 %657, %v655
        %v659 = vpop.permute.xlu0 %658
        %v661 = vadd.f32 %v647, %v659
        %v662 = vadd.f32 %v648, %v659
        %v663 = vadd.f32 %v649, %v659
        %v664 = vadd.f32 %v650, %v659
        %v665 = vadd.f32 %v651, %v659
        %v666 = vadd.f32 %v652, %v659
        %v667 = vadd.f32 %v653, %v659
        %v668 = vadd.f32 %v654, %v659
        %v669 = vmax.f32 %v661, 0.0
        %v670 = vmax.f32 %v662, 0.0
        %v671 = vmax.f32 %v663, 0.0
        %v672 = vmax.f32 %v664, 0.0
        %v673 = vmax.f32 %v665, 0.0
        %v674 = vmax.f32 %v666, 0.0
        %v675 = vmax.f32 %v667, 0.0
        %v676 = vmax.f32 %v668, 0.0
        %677 = vst [vmem:[%s288] sm:$0xff] %v669
        %678 = vst [vmem:[%s288 + $0x8] sm:$0xff] %v670
        %679 = vst [vmem:[%s288 + $0x10] sm:$0xff] %v671
        %680 = vst [vmem:[%s288 + $0x18] sm:$0xff] %v672
        %681 = vst [vmem:[%s288 + $0x20] sm:$0xff] %v673
        %682 = vst [vmem:[%s288 + $0x28] sm:$0xff] %v674
        %683 = vst [vmem:[%s288 + $0x30] sm:$0xff] %v675
        %684 = vst [vmem:[%s288 + $0x38] sm:$0xff] %v676
        %s685 = smul.u32 8, %s15
        %p686 = scmp.lt.s32.totalorder %s685, 15
        %s687 = scalar_select %p686, %s685, 15
        %s688 = smul.addr %s687, 8
        %s689 = scalar_lea.vmem %s4, %s688
        // Predicated region
        $region60: #{_lambda_.12} parent=54 // pred_check
          %p690 = pneg %p122
        $region61: #{_lambda_.12} parent=54 // pred_check_branch
          %692 = sbr.rel (%p690) target = $region63
        $region62: #{_lambda_.12} parent=54 // pred_region
          %s693 = smul.u32 8, %s15
        $region63: #{_lambda_.12} parent=54 // pred_fallthru
          _
      $region55: #{_lambda_.12} parent=5 // pred_fallthru
        _
      %p694 = scmp.le.s32.totalorder 2, %s10
      // Predicated region
      $region64: #{_lambda_.12} parent=5 // pred_check
        %p695 = pneg %p694
      $region65: #{_lambda_.12} parent=5 // pred_check_branch
        %697 = sbr.rel (%p695) target = $region67
      $region66: #{_lambda_.12} parent=5 // pred_region
        %s698 = ssub.s32 %s10, 2
        // Predicated region
        $region68: #{_lambda_.12} parent=66 // pred_check
          %p699 = pneg %p128
        $region69: #{_lambda_.12} parent=66 // pred_check_branch
          %701 = sbr.rel (%p699) target = $region71
        $region70: #{_lambda_.12} parent=66 // pred_region
          %s702 = smul.u32 8, %s16
          %p703 = scmp.lt.s32.totalorder %s702, 15
          %s704 = scalar_select %p703, %s702, 15
          %s705 = smul.addr %s704, 8
          %s706 = scalar_lea.vmem %s4, %s705
        $region71: #{_lambda_.12} parent=66 // pred_fallthru
          _
      $region67: #{_lambda_.12} parent=5 // pred_fallthru
        _
    $region6: #{_lambda_.12} parent=1 // loop_footer
      %s14 = sadd.s32 1, %s10
    $region7: #{_lambda_.12} parent=1 // loop_footer_branch
      %9 = sbr.rel target = $region3
    $region8: #{_lambda_.12} parent=1 // loop_exit
      _

// kernel: _lambda_.15
$region0: #{_lambda_.15}
  #allocation0 [shape = 'u32[]', space=smem, size = 0x4, offset = 0x4, fixed_abs, tag = 'smem constant byte address 0x4 - core index']
  #allocation1 [shape = 'u32[72,128]{1,0:T(1,128)}', space=vmem, size = 0x9000, scoped, tag = 'internal scratch']
  %s0 = inlined_call_operand.vmem [shape: bf16[72,2048], index: 0, kind: input, shape index: {}]
  %s1 = inlined_call_operand.vmem [shape: bf16[8,72], index: 1, kind: input, shape index: {}]
  %s2 = inlined_call_operand.vmem [shape: f32[8,1], index: 2, kind: input, shape index: {}]
  %s3 = inlined_call_operand.vmem [shape: f32[8,1], index: 3, kind: input, shape index: {}]
  %s4 = inlined_call_operand.vmem [shape: f32[8,2048], index: 4, kind: input, shape index: {}]
  %s5 = inlined_call_operand.vmem [shape: f32[8,2048], index: 5, kind: output, shape index: {}]
  %s6 = sld [smem:[#allocation0]]
  $region76: #{_lambda_.15} parent=0
    _
  %s8 = ssub.s32 1, %s6
  %s9 = scalar_select 0, %s8, %s6
  $region1: #{_lambda_.15} parent=0
    #allocation2 [shape = 'u8[294912]{0}', space=vmem, size = 0x48000, scoped, tag = 'input window, operand 0']
    loop: start=0, step=1, limit=4
    $region2: #{_lambda_.15} parent=1 // loop_pre_header
      _
    $region3: #{_lambda_.15} parent=1 // loop_header
      %s11 = sphi 0, %s15
      %p12 = scmp.ge.s32.totalorder %s11, 4
      %s21 = sphi 0, %s23
      %s24 = sphi 0, %s21
      %s25 = sphi 0, %s24
      %s41 = sphi 0, %s25
      %s45 = sphi 0, %s45
      %s47 = sphi 0, %s45
      %s48 = sphi 0, %s47
      %s62 = sphi 0, %s48
      %s66 = sphi 0, %s66
      %s68 = sphi 0, %s66
      %s69 = sphi 0, %s68
      %s83 = sphi 0, %s69
      %s87 = sphi 0, %s87
      %s89 = sphi 0, %s87
      %s90 = sphi 0, %s89
      %s104 = sphi 0, %s90
      %s110 = sphi 0, %s112
      %s113 = sphi 0, %s110
      %s114 = sphi 0, %s113
      %s130 = sphi 0, %s114
      %s136 = sphi 0, %s138
      %s139 = sphi 0, %s136
      %s140 = sphi 0, %s139
      %s156 = sphi 0, %s140
    $region4: #{_lambda_.15} parent=1 // loop_header_branch
      %14 = sbr.rel (%p12) target = $region8
    $region5: #{_lambda_.15} parent=1 // loop_body
      %s16 = ssub.s32 %s11, 1
      %s17 = ssub.s32 %s11, 2
      %s18 = sadd.s32 %s11, 1
      %s19 = ssub.s32 %s11, %s18
      %p20 = scmp.eq.s32.totalorder %s19, 0
      %s22 = sadd.s32 %s21, 1
      %s23 = scalar_select %p20, %s21, %s22
      %p26 = pneg %p20
      %p27 = scmp.eq.s32.totalorder %s11, 1
      %p28 = por %p26, %p27
      %p29 = scmp.ne.s32.totalorder %s21, %s24
      %p30 = scmp.eq.s32.totalorder %s11, 0
      %p31 = por %p29, %p30
      %p32 = scmp.ne.s32.totalorder %s21, %s24
      %p33 = scmp.eq.s32.totalorder %s16, 1
      %p34 = por %p32, %p33
      %p35 = scmp.ne.s32.totalorder %s24, %s25
      %p36 = scmp.eq.s32.totalorder %s16, 0
      %p37 = por %p35, %p36
      %p38 = scmp.ne.s32.totalorder %s24, %s25
      %p39 = scmp.eq.s32.totalorder %s17, 1
      %p40 = por %p38, %p39
      %p42 = scmp.ne.s32.totalorder %s25, %s41
      %p43 = scmp.eq.s32.totalorder %s17, 0
      %p44 = por %p42, %p43
      %s46 = sadd.s32 %s45, 1
      %p49 = scmp.eq.s32.totalorder %s11, 1
      %p50 = scmp.ne.s32.totalorder %s45, %s47
      %p51 = scmp.eq.s32.totalorder %s11, 0
      %p52 = por %p50, %p51
      %p53 = scmp.ne.s32.totalorder %s45, %s47
      %p54 = scmp.eq.s32.totalorder %s16, 1
      %p55 = por %p53, %p54
      %p56 = scmp.ne.s32.totalorder %s47, %s48
      %p57 = scmp.eq.s32.totalorder %s16, 0
      %p58 = por %p56, %p57
      %p59 = scmp.ne.s32.totalorder %s47, %s48
      %p60 = scmp.eq.s32.totalorder %s17, 1
      %p61 = por %p59, %p60
      %p63 = scmp.ne.s32.totalorder %s48, %s62
      %p64 = scmp.eq.s32.totalorder %s17, 0
      %p65 = por %p63, %p64
      %s67 = sadd.s32 %s66, 1
      %p70 = scmp.eq.s32.totalorder %s11, 1
      %p71 = scmp.ne.s32.totalorder %s66, %s68
      %p72 = scmp.eq.s32.totalorder %s11, 0
      %p73 = por %p71, %p72
      %p74 = scmp.ne.s32.totalorder %s66, %s68
      %p75 = scmp.eq.s32.totalorder %s16, 1
      %p76 = por %p74, %p75
      %p77 = scmp.ne.s32.totalorder %s68, %s69
      %p78 = scmp.eq.s32.totalorder %s16, 0
      %p79 = por %p77, %p78
      %p80 = scmp.ne.s32.totalorder %s68, %s69
      %p81 = scmp.eq.s32.totalorder %s17, 1
      %p82 = por %p80, %p81
      %p84 = scmp.ne.s32.totalorder %s69, %s83
      %p85 = scmp.eq.s32.totalorder %s17, 0
      %p86 = por %p84, %p85
      %s88 = sadd.s32 %s87, 1
      %p91 = scmp.eq.s32.totalorder %s11, 1
      %p92 = scmp.ne.s32.totalorder %s87, %s89
      %p93 = scmp.eq.s32.totalorder %s11, 0
      %p94 = por %p92, %p93
      %p95 = scmp.ne.s32.totalorder %s87, %s89
      %p96 = scmp.eq.s32.totalorder %s16, 1
      %p97 = por %p95, %p96
      %p98 = scmp.ne.s32.totalorder %s89, %s90
      %p99 = scmp.eq.s32.totalorder %s16, 0
      %p100 = por %p98, %p99
      %p101 = scmp.ne.s32.totalorder %s89, %s90
      %p102 = scmp.eq.s32.totalorder %s17, 1
      %p103 = por %p101, %p102
      %p105 = scmp.ne.s32.totalorder %s90, %s104
      %p106 = scmp.eq.s32.totalorder %s17, 0
      %p107 = por %p105, %p106
      %s108 = ssub.s32 %s11, %s18
      %p109 = scmp.eq.s32.totalorder %s108, 0
      %s111 = sadd.s32 %s110, 1
      %s112 = scalar_select %p109, %s110, %s111
      %p115 = pneg %p109
      %p116 = scmp.eq.s32.totalorder %s11, 1
      %p117 = por %p115, %p116
      %p118 = scmp.ne.s32.totalorder %s110, %s113
      %p119 = scmp.eq.s32.totalorder %s11, 0
      %p120 = por %p118, %p119
      %p121 = scmp.ne.s32.totalorder %s110, %s113
      %p122 = scmp.eq.s32.totalorder %s16, 1
      %p123 = por %p121, %p122
      %p124 = scmp.ne.s32.totalorder %s113, %s114
      %p125 = scmp.eq.s32.totalorder %s16, 0
      %p126 = por %p124, %p125
      %p127 = scmp.ne.s32.totalorder %s113, %s114
      %p128 = scmp.eq.s32.totalorder %s17, 1
      %p129 = por %p127, %p128
      %p131 = scmp.ne.s32.totalorder %s114, %s130
      %p132 = scmp.eq.s32.totalorder %s17, 0
      %p133 = por %p131, %p132
      %s134 = ssub.s32 %s11, %s18
      %p135 = scmp.eq.s32.totalorder %s134, 0
      %s137 = sadd.s32 %s136, 1
      %s138 = scalar_select %p135, %s136, %s137
      %p141 = pneg %p135
      %p142 = scmp.eq.s32.totalorder %s11, 1
      %p143 = por %p141, %p142
      %p144 = scmp.ne.s32.totalorder %s136, %s139
      %p145 = scmp.eq.s32.totalorder %s11, 0
      %p146 = por %p144, %p145
      %p147 = scmp.ne.s32.totalorder %s136, %s139
      %p148 = scmp.eq.s32.totalorder %s16, 1
      %p149 = por %p147, %p148
      %p150 = scmp.ne.s32.totalorder %s139, %s140
      %p151 = scmp.eq.s32.totalorder %s16, 0
      %p152 = por %p150, %p151
      %p153 = scmp.ne.s32.totalorder %s139, %s140
      %p154 = scmp.eq.s32.totalorder %s17, 1
      %p155 = por %p153, %p154
      %p157 = scmp.ne.s32.totalorder %s140, %s156
      %p158 = scmp.eq.s32.totalorder %s17, 0
      %p159 = por %p157, %p158
      %p160 = scmp.le.s32.totalorder 1, %s11
      %p161 = scmp.lt.s32.totalorder %s11, 3
      %p162 = pnand %p160, %p161
      %p163 = pneg %p162
      // Predicated region
      $region9: #{_lambda_.15} parent=5 // pred_check
        _
      $region10: #{_lambda_.15} parent=5 // pred_check_branch
        %165 = sbr.rel (%p162) target = $region12
      $region11: #{_lambda_.15} parent=5 // pred_region
        %s166 = ssub.s32 %s11, 1
        // Predicated region
        $region13: #{_lambda_.15} parent=11 // pred_check
          %p167 = pneg %p58
        $region14: #{_lambda_.15} parent=11 // pred_check_branch
          %169 = sbr.rel (%p167) target = $region16
        $region15: #{_lambda_.15} parent=11 // pred_region
          _
        $region16: #{_lambda_.15} parent=11 // pred_fallthru
          _
        // Predicated region
        $region17: #{_lambda_.15} parent=11 // pred_check
          %p170 = pneg %p79
        $region18: #{_lambda_.15} parent=11 // pred_check_branch
          %172 = sbr.rel (%p170) target = $region20
        $region19: #{_lambda_.15} parent=11 // pred_region
          _
        $region20: #{_lambda_.15} parent=11 // pred_fallthru
          _
        // Predicated region
        $region21: #{_lambda_.15} parent=11 // pred_check
          %p173 = pneg %p100
        $region22: #{_lambda_.15} parent=11 // pred_check_branch
          %175 = sbr.rel (%p173) target = $region24
        $region23: #{_lambda_.15} parent=11 // pred_region
          _
        $region24: #{_lambda_.15} parent=11 // pred_fallthru
          _
      $region12: #{_lambda_.15} parent=5 // pred_fallthru
        _
      %p176 = scmp.lt.s32.totalorder %s11, 2
      // Predicated region
      $region25: #{_lambda_.15} parent=5 // pred_check
        %p177 = pneg %p176
      $region26: #{_lambda_.15} parent=5 // pred_check_branch
        %179 = sbr.rel (%p177) target = $region28
      $region27: #{_lambda_.15} parent=5 // pred_region
        // Predicated region
        $region29: #{_lambda_.15} parent=27 // pred_check
          %p180 = pneg %p31
        $region30: #{_lambda_.15} parent=27 // pred_check_branch
          %182 = sbr.rel (%p180) target = $region32
        $region31: #{_lambda_.15} parent=27 // pred_region
          %s183 = sand.u32 %s21, 1
          %s184 = sand.u32 %s21, 1
          %s185 = smul.addr %s184, 288
          %s186 = scalar_lea.vmem [#allocation2], %s185
          %s187 = smul.u32 8, %s11
          %s188 = smul.addr %s187, 4
          %s189 = scalar_lea.vmem %s0, %s188
          // Predicated region
          $region33: #{_lambda_.15} parent=31 // pred_check
            _
          $region34: #{_lambda_.15} parent=31 // pred_check_branch
            %191 = sbr.rel (0) target = $region36
          $region35: #{_lambda_.15} parent=31 // pred_region
            // Predicated region
            $region37: #{_lambda_.15} parent=35 // pred_check
              _
            $region38: #{_lambda_.15} parent=35 // pred_check_branch
              %193 = sbr.rel (0) target = $region40
            $region39: #{_lambda_.15} parent=35 // pred_region
              loop: start=0, step=1, limit=1
              $region41: #{_lambda_.15} parent=39 // loop_pre_header
                _
              $region42: #{_lambda_.15} parent=39 // loop_header
                %s195 = sphi 0, %s199
                %p196 = scmp.ge.s32.totalorder %s195, 1
                %s200 = sphi %s189, %s189
                %s201 = sphi %s186, %s186
              $region43: #{_lambda_.15} parent=39 // loop_header_branch
                %198 = sbr.rel (%p196) target = $region47
              $region44: #{_lambda_.15} parent=39 // loop_body
                %v202 = vld [vmem:[%s200] sm:$0xff]
                %203 = vst [vmem:[%s201] sm:$0xff] %v202
                %v204 = vld [vmem:[%s200 + $0x8] sm:$0xff]
                %205 = vst [vmem:[%s201 + $0x8] sm:$0xff] %v204
                %v206 = vld [vmem:[%s200 + $0x10] sm:$0xff]
                %207 = vst [vmem:[%s201 + $0x10] sm:$0xff] %v206
                %v208 = vld [vmem:[%s200 + $0x18] sm:$0xff]
                %209 = vst [vmem:[%s201 + $0x18] sm:$0xff] %v208
                %v210 = vld [vmem:[%s200 + $0x40] sm:$0xff]
                %211 = vst [vmem:[%s201 + $0x20] sm:$0xff] %v210
                %v212 = vld [vmem:[%s200 + $0x48] sm:$0xff]
                %213 = vst [vmem:[%s201 + $0x28] sm:$0xff] %v212
                %v214 = vld [vmem:[%s200 + $0x50] sm:$0xff]
                %215 = vst [vmem:[%s201 + $0x30] sm:$0xff] %v214
                %v216 = vld [vmem:[%s200 + $0x58] sm:$0xff]
                %217 = vst [vmem:[%s201 + $0x38] sm:$0xff] %v216
                %v218 = vld [vmem:[%s200 + $0x80] sm:$0xff]
                %219 = vst [vmem:[%s201 + $0x40] sm:$0xff] %v218
                %v220 = vld [vmem:[%s200 + $0x88] sm:$0xff]
                %221 = vst [vmem:[%s201 + $0x48] sm:$0xff] %v220
                %v222 = vld [vmem:[%s200 + $0x90] sm:$0xff]
                %223 = vst [vmem:[%s201 + $0x50] sm:$0xff] %v222
                %v224 = vld [vmem:[%s200 + $0x98] sm:$0xff]
                %225 = vst [vmem:[%s201 + $0x58] sm:$0xff] %v224
                %v226 = vld [vmem:[%s200 + $0xc0] sm:$0xff]
                %227 = vst [vmem:[%s201 + $0x60] sm:$0xff] %v226
                %v228 = vld [vmem:[%s200 + $0xc8] sm:$0xff]
                %229 = vst [vmem:[%s201 + $0x68] sm:$0xff] %v228
                %v230 = vld [vmem:[%s200 + $0xd0] sm:$0xff]
                %231 = vst [vmem:[%s201 + $0x70] sm:$0xff] %v230
                %v232 = vld [vmem:[%s200 + $0xd8] sm:$0xff]
                %233 = vst [vmem:[%s201 + $0x78] sm:$0xff] %v232
                %v234 = vld [vmem:[%s200 + $0x100] sm:$0xff]
                %235 = vst [vmem:[%s201 + $0x80] sm:$0xff] %v234
                %v236 = vld [vmem:[%s200 + $0x108] sm:$0xff]
                %237 = vst [vmem:[%s201 + $0x88] sm:$0xff] %v236
                %v238 = vld [vmem:[%s200 + $0x110] sm:$0xff]
                %239 = vst [vmem:[%s201 + $0x90] sm:$0xff] %v238
                %v240 = vld [vmem:[%s200 + $0x118] sm:$0xff]
                %241 = vst [vmem:[%s201 + $0x98] sm:$0xff] %v240
                %v242 = vld [vmem:[%s200 + $0x140] sm:$0xff]
                %243 = vst [vmem:[%s201 + $0xa0] sm:$0xff] %v242
                %v244 = vld [vmem:[%s200 + $0x148] sm:$0xff]
                %245 = vst [vmem:[%s201 + $0xa8] sm:$0xff] %v244
                %v246 = vld [vmem:[%s200 + $0x150] sm:$0xff]
                %247 = vst [vmem:[%s201 + $0xb0] sm:$0xff] %v246
                %v248 = vld [vmem:[%s200 + $0x158] sm:$0xff]
                %249 = vst [vmem:[%s201 + $0xb8] sm:$0xff] %v248
                %v250 = vld [vmem:[%s200 + $0x180] sm:$0xff]
                %251 = vst [vmem:[%s201 + $0xc0] sm:$0xff] %v250
                %v252 = vld [vmem:[%s200 + $0x188] sm:$0xff]
                %253 = vst [vmem:[%s201 + $0xc8] sm:$0xff] %v252
                %v254 = vld [vmem:[%s200 + $0x190] sm:$0xff]
                %255 = vst [vmem:[%s201 + $0xd0] sm:$0xff] %v254
                %v256 = vld [vmem:[%s200 + $0x198] sm:$0xff]
                %257 = vst [vmem:[%s201 + $0xd8] sm:$0xff] %v256
                %v258 = vld [vmem:[%s200 + $0x1c0] sm:$0xff]
                %259 = vst [vmem:[%s201 + $0xe0] sm:$0xff] %v258
                %v260 = vld [vmem:[%s200 + $0x1c8] sm:$0xff]
                %261 = vst [vmem:[%s201 + $0xe8] sm:$0xff] %v260
                %v262 = vld [vmem:[%s200 + $0x1d0] sm:$0xff]
                %263 = vst [vmem:[%s201 + $0xf0] sm:$0xff] %v262
                %v264 = vld [vmem:[%s200 + $0x1d8] sm:$0xff]
                %265 = vst [vmem:[%s201 + $0xf8] sm:$0xff] %v264
                %v266 = vld [vmem:[%s200 + $0x200] sm:$0xff]
                %267 = vst [vmem:[%s201 + $0x100] sm:$0xff] %v266
                %v268 = vld [vmem:[%s200 + $0x208] sm:$0xff]
                %269 = vst [vmem:[%s201 + $0x108] sm:$0xff] %v268
                %v270 = vld [vmem:[%s200 + $0x210] sm:$0xff]
                %271 = vst [vmem:[%s201 + $0x110] sm:$0xff] %v270
                %v272 = vld [vmem:[%s200 + $0x218] sm:$0xff]
                %273 = vst [vmem:[%s201 + $0x118] sm:$0xff] %v272
              $region45: #{_lambda_.15} parent=39 // loop_footer
                %s199 = sadd.s32 1, %s195
              $region46: #{_lambda_.15} parent=39 // loop_footer_branch
                %194 = sbr.rel target = $region42
              $region47: #{_lambda_.15} parent=39 // loop_exit
                _
            $region40: #{_lambda_.15} parent=35 // pred_fallthru
              _
            // Predicated region
            $region48: #{_lambda_.15} parent=35 // pred_check
              _
            $region49: #{_lambda_.15} parent=35 // pred_check_branch
              %275 = sbr.rel target = $region51
            $region50: #{_lambda_.15} parent=35 // pred_region
              _
            $region51: #{_lambda_.15} parent=35 // pred_fallthru
              _
          $region36: #{_lambda_.15} parent=31 // pred_fallthru
            _
          %276 = vnop
        $region32: #{_lambda_.15} parent=27 // pred_fallthru
          _
        // Predicated region
        $region52: #{_lambda_.15} parent=27 // pred_check
          %p277 = pneg %p120
        $region53: #{_lambda_.15} parent=27 // pred_check_branch
          %279 = sbr.rel (%p277) target = $region55
        $region54: #{_lambda_.15} parent=27 // pred_region
          %s280 = smul.u32 8, %s11
          %p281 = scmp.lt.s32.totalorder %s280, 15
          %s282 = scalar_select %p281, %s280, 15
          %s283 = smul.addr %s282, 8
          %s284 = scalar_lea.vmem %s4, %s283
          %s285 = smul.u32 8, %s11
        $region55: #{_lambda_.15} parent=27 // pred_fallthru
          _
      $region28: #{_lambda_.15} parent=5 // pred_fallthru
        _
      %p286 = scmp.le.s32.totalorder 1, %s11
      %p287 = scmp.lt.s32.totalorder %s11, 3
      %p288 = pnand %p286, %p287
      %p289 = pneg %p288
      // Predicated region
      $region56: #{_lambda_.15} parent=5 // pred_check
        _
      $region57: #{_lambda_.15} parent=5 // pred_check_branch
        %291 = sbr.rel (%p288) target = $region59
      $region58: #{_lambda_.15} parent=5 // pred_region
        %s292 = ssub.s32 %s11, 1
        %s293 = sand.u32 %s24, 1
        %s294 = sand.u32 %s24, 1
        %s295 = smul.addr %s294, 288
        %s296 = scalar_lea.vmem [#allocation2], %s295
        // Predicated region
        $region60: #{_lambda_.15} parent=58 // pred_check
          %p297 = pneg %p37
        $region61: #{_lambda_.15} parent=58 // pred_check_branch
          %299 = sbr.rel (%p297) target = $region63
        $region62: #{_lambda_.15} parent=58 // pred_region
          _
        $region63: #{_lambda_.15} parent=58 // pred_fallthru
          _
        %s300 = sand.u32 %s24, 1
        %s301 = sand.u32 %s24, 1
        %s302 = smul.addr %s301, 288
        %s303 = scalar_lea.vmem [#allocation2], %s302
        %p304 = pneg %p37
        %p305 = pneg %p34
        %p306 = pneg %p58
        %p307 = pneg %p55
        %p308 = pneg %p79
        %p309 = pneg %p76
        %p310 = pneg %p100
        %p311 = pneg %p97
        %s312 = smul.u32 8, %s16
        %p313 = scmp.lt.s32.totalorder %s312, 15
        %s314 = scalar_select %p313, %s312, 15
        %s315 = smul.addr %s314, 8
        %s316 = scalar_lea.vmem %s4, %s315
        %p317 = pneg %p126
        %p318 = pneg %p123
        %p319 = pneg %p152
        %p320 = pneg %p149
        %s321 = smul.u32 8, %s16
        %p322 = scmp.lt.s32.totalorder %s321, 15
        %s323 = scalar_select %p322, %s321, 15
        %s324 = smul.addr %s323, 8
        %s325 = scalar_lea.vmem %s5, %s324
        %s326 = smul.u32 8, %s16
        %s327 = smul.u32 8, %s16
        %p328 = scmp.lt.s32.totalorder %s327, 15
        %s329 = scalar_select %p328, %s327, 15
        %s330 = smul.addr %s329, 8
        %s331 = scalar_lea.vmem %s4, %s330
        %s332 = smul.u32 8, %s16
        %s333 = smul.u32 8, %s16
        %p334 = scmp.lt.s32.totalorder %s333, 15
        %s335 = scalar_select %p334, %s333, 15
        %s336 = smul.addr %s335, 8
        %s337 = scalar_lea.vmem %s5, %s336
        %s338 = smul.u32 8, %s16
        %v340 = vld [vmem:[%s1] sm:$0xf]
        %v341 = vld [vmem:[%s296] sm:$0xff]
        %v342 = vld [vmem:[%s296 + $0x8] sm:$0xff]
        %v343 = vld [vmem:[%s296 + $0x10] sm:$0xff]
        %v344 = vld [vmem:[%s296 + $0x18] sm:$0xff]
        %v345 = vld [vmem:[%s296 + $0x20] sm:$0xff]
        %v346 = vld [vmem:[%s296 + $0x28] sm:$0xff]
        %v347 = vld [vmem:[%s296 + $0x30] sm:$0xff]
        %v348 = vld [vmem:[%s296 + $0x38] sm:$0xff]
        %v349 = vld [vmem:[%s296 + $0x40] sm:$0xff]
        %v350 = vld [vmem:[%s296 + $0x48] sm:$0xff]
        %v351 = vld [vmem:[%s296 + $0x50] sm:$0xff]
        %v352 = vld [vmem:[%s296 + $0x58] sm:$0xff]
        %v353 = vld [vmem:[%s296 + $0x60] sm:$0xff]
        %v354 = vld [vmem:[%s296 + $0x68] sm:$0xff]
        %v355 = vld [vmem:[%s296 + $0x70] sm:$0xff]
        %v356 = vld [vmem:[%s296 + $0x78] sm:$0xff]
        %v357 = vld [vmem:[%s296 + $0x80] sm:$0xff]
        %v358 = vld [vmem:[%s296 + $0x88] sm:$0xff]
        %v359 = vld [vmem:[%s296 + $0x90] sm:$0xff]
        %v360 = vld [vmem:[%s296 + $0x98] sm:$0xff]
        %v361 = vld [vmem:[%s296 + $0xa0] sm:$0xff]
        %v362 = vld [vmem:[%s296 + $0xa8] sm:$0xff]
        %v363 = vld [vmem:[%s296 + $0xb0] sm:$0xff]
        %v364 = vld [vmem:[%s296 + $0xb8] sm:$0xff]
        %v365 = vld [vmem:[%s296 + $0xc0] sm:$0xff]
        %v366 = vld [vmem:[%s296 + $0xc8] sm:$0xff]
        %v367 = vld [vmem:[%s296 + $0xd0] sm:$0xff]
        %v368 = vld [vmem:[%s296 + $0xd8] sm:$0xff]
        %v369 = vld [vmem:[%s296 + $0xe0] sm:$0xff]
        %v370 = vld [vmem:[%s296 + $0xe8] sm:$0xff]
        %v371 = vld [vmem:[%s296 + $0xf0] sm:$0xff]
        %v372 = vld [vmem:[%s296 + $0xf8] sm:$0xff]
        %v373 = vld [vmem:[%s296 + $0x100] sm:$0xff]
        %v374 = vld [vmem:[%s296 + $0x108] sm:$0xff]
        %v375 = vld [vmem:[%s296 + $0x110] sm:$0xff]
        %v376 = vld [vmem:[%s296 + $0x118] sm:$0xff]
        %v413 = vunpack.c.l.b16 %v341
        %v414 = vunpack.c.h.b16 %v341
        %v415 = vunpack.c.l.b16 %v342
        %v416 = vunpack.c.h.b16 %v342
        %v417 = vunpack.c.l.b16 %v343
        %v418 = vunpack.c.h.b16 %v343
        %v419 = vunpack.c.l.b16 %v344
        %v420 = vunpack.c.h.b16 %v344
        %v421 = vunpack.c.l.b16 %v345
        %v422 = vunpack.c.h.b16 %v345
        %v423 = vunpack.c.l.b16 %v346
        %v424 = vunpack.c.h.b16 %v346
        %v425 = vunpack.c.l.b16 %v347
        %v426 = vunpack.c.h.b16 %v347
        %v427 = vunpack.c.l.b16 %v348
        %v428 = vunpack.c.h.b16 %v348
        %v429 = vunpack.c.l.b16 %v349
        %v430 = vunpack.c.h.b16 %v349
        %v431 = vunpack.c.l.b16 %v350
        %v432 = vunpack.c.h.b16 %v350
        %v433 = vunpack.c.l.b16 %v351
        %v434 = vunpack.c.h.b16 %v351
        %v435 = vunpack.c.l.b16 %v352
        %v436 = vunpack.c.h.b16 %v352
        %v437 = vunpack.c.l.b16 %v353
        %v438 = vunpack.c.h.b16 %v353
        %v439 = vunpack.c.l.b16 %v354
        %v440 = vunpack.c.h.b16 %v354
        %v441 = vunpack.c.l.b16 %v355
        %v442 = vunpack.c.h.b16 %v355
        %v443 = vunpack.c.l.b16 %v356
        %v444 = vunpack.c.h.b16 %v356
        %v445 = vunpack.c.l.b16 %v357
        %v446 = vunpack.c.h.b16 %v357
        %v447 = vunpack.c.l.b16 %v358
        %v448 = vunpack.c.h.b16 %v358
        %v449 = vunpack.c.l.b16 %v359
        %v450 = vunpack.c.h.b16 %v359
        %v451 = vunpack.c.l.b16 %v360
        %v452 = vunpack.c.h.b16 %v360
        %v453 = vunpack.c.l.b16 %v361
        %v454 = vunpack.c.h.b16 %v361
        %v455 = vunpack.c.l.b16 %v362
        %v456 = vunpack.c.h.b16 %v362
        %v457 = vunpack.c.l.b16 %v363
        %v458 = vunpack.c.h.b16 %v363
        %v459 = vunpack.c.l.b16 %v364
        %v460 = vunpack.c.h.b16 %v364
        %v461 = vunpack.c.l.b16 %v365
        %v462 = vunpack.c.h.b16 %v365
        %v463 = vunpack.c.l.b16 %v366
        %v464 = vunpack.c.h.b16 %v366
        %v465 = vunpack.c.l.b16 %v367
        %v466 = vunpack.c.h.b16 %v367
        %v467 = vunpack.c.l.b16 %v368
        %v468 = vunpack.c.h.b16 %v368
        %v469 = vunpack.c.l.b16 %v369
        %v470 = vunpack.c.h.b16 %v369
        %v471 = vunpack.c.l.b16 %v370
        %v472 = vunpack.c.h.b16 %v370
        %v473 = vunpack.c.l.b16 %v371
        %v474 = vunpack.c.h.b16 %v371
        %v475 = vunpack.c.l.b16 %v372
        %v476 = vunpack.c.h.b16 %v372
        %v477 = vunpack.c.l.b16 %v373
        %v478 = vunpack.c.h.b16 %v373
        %v479 = vunpack.c.l.b16 %v374
        %v480 = vunpack.c.h.b16 %v374
        %v481 = vunpack.c.l.b16 %v375
        %v482 = vunpack.c.h.b16 %v375
        %v483 = vunpack.c.l.b16 %v376
        %v484 = vunpack.c.h.b16 %v376
        %v485 = vpack.c.b16 %v421, %v413
        %v486 = vpack.c.b16 %v422, %v414
        %v487 = vpack.c.b16 %v423, %v415
        %v488 = vpack.c.b16 %v424, %v416
        %v489 = vpack.c.b16 %v425, %v417
        %v490 = vpack.c.b16 %v426, %v418
        %v491 = vpack.c.b16 %v427, %v419
        %v492 = vpack.c.b16 %v428, %v420
        %v493 = vpack.c.b16 %v437, %v429
        %v494 = vpack.c.b16 %v438, %v430
        %v495 = vpack.c.b16 %v439, %v431
        %v496 = vpack.c.b16 %v440, %v432
        %v497 = vpack.c.b16 %v441, %v433
        %v498 = vpack.c.b16 %v442, %v434
        %v499 = vpack.c.b16 %v443, %v435
        %v500 = vpack.c.b16 %v444, %v436
        %v501 = vpack.c.b16 %v453, %v445
        %v502 = vpack.c.b16 %v454, %v446
        %v503 = vpack.c.b16 %v455, %v447
        %v504 = vpack.c.b16 %v456, %v448
        %v505 = vpack.c.b16 %v457, %v449
        %v506 = vpack.c.b16 %v458, %v450
        %v507 = vpack.c.b16 %v459, %v451
        %v508 = vpack.c.b16 %v460, %v452
        %v509 = vpack.c.b16 %v469, %v461
        %v510 = vpack.c.b16 %v470, %v462
        %v511 = vpack.c.b16 %v471, %v463
        %v512 = vpack.c.b16 %v472, %v464
        %v513 = vpack.c.b16 %v473, %v465
        %v514 = vpack.c.b16 %v474, %v466
        %v515 = vpack.c.b16 %v475, %v467
        %v516 = vpack.c.b16 %v476, %v468
        %v517 = vpack.c.b16 %v477, %v477
        %v518 = vpack.c.b16 %v478, %v478
        %v519 = vpack.c.b16 %v479, %v479
        %v520 = vpack.c.b16 %v480, %v480
        %v521 = vpack.c.b16 %v481, %v481
        %v522 = vpack.c.b16 %v482, %v482
        %v523 = vpack.c.b16 %v483, %v483
        %v524 = vpack.c.b16 %v484, %v484
        %vm557 = vcmask 588800
        %v559 = vsel %vm557, %v340, 0
        %vm561 = vcmask 1043456
        %v563 = vsel %vm561, %v517, 0
        %v566 = vsel %vm561, %v518, 0
        %v569 = vsel %vm561, %v519, 0
        %v572 = vsel %vm561, %v520, 0
        %v575 = vsel %vm561, %v521, 0
        %v578 = vsel %vm561, %v522, 0
        %v581 = vsel %vm561, %v523, 0
        %v584 = vsel %vm561, %v524, 0
        %586 = vmatpush.bf16.msra.mxu0 0
        %587 = vmatpush.bf16.msra.mxu0 0
        %588 = vmatpush.bf16.msra.mxu0 0
        %589 = vmatpush.bf16.msra.mxu0 %v563
        %590 = vmatpush.bf16.msra.mxu0 %v509
        %591 = vmatpush.bf16.msra.mxu0 %v501
        %592 = vmatpush.bf16.msra.mxu0 %v493
        %593 = vmatpush.bf16.msra.mxu0 %v485
        %594 = vmatmul.bf16.gmra.mxu0 %v559
        %v595 = vpop.f32.mrf.mxu0
        %v596 = vadd.f32 0.0, %v595
        %v597 = vpop.f32.mrf.mxu0
        %598 = vdwg.mxu0
        %599 = vmatpush.bf16.msra.mxu0 0
        %600 = vmatpush.bf16.msra.mxu0 0
        %601 = vmatpush.bf16.msra.mxu0 0
        %602 = vmatpush.bf16.msra.mxu0 %v566
        %603 = vmatpush.bf16.msra.mxu0 %v510
        %604 = vmatpush.bf16.msra.mxu0 %v502
        %605 = vmatpush.bf16.msra.mxu0 %v494
        %606 = vmatpush.bf16.msra.mxu0 %v486
        %607 = vmatmul.bf16.gmra.mxu0 %v559
        %v608 = vpop.f32.mrf.mxu0
        %v609 = vadd.f32 0.0, %v608
        %v610 = vpop.f32.mrf.mxu0
        %611 = vdwg.mxu0
        %612 = vmatpush.bf16.msra.mxu0 0
        %613 = vmatpush.bf16.msra.mxu0 0
        %614 = vmatpush.bf16.msra.mxu0 0
        %615 = vmatpush.bf16.msra.mxu0 %v569
        %616 = vmatpush.bf16.msra.mxu0 %v511
        %617 = vmatpush.bf16.msra.mxu0 %v503
        %618 = vmatpush.bf16.msra.mxu0 %v495
        %619 = vmatpush.bf16.msra.mxu0 %v487
        %620 = vmatmul.bf16.gmra.mxu0 %v559
        %v621 = vpop.f32.mrf.mxu0
        %v622 = vadd.f32 0.0, %v621
        %v623 = vpop.f32.mrf.mxu0
        %624 = vdwg.mxu0
        %625 = vmatpush.bf16.msra.mxu0 0
        %626 = vmatpush.bf16.msra.mxu0 0
        %627 = vmatpush.bf16.msra.mxu0 0
        %628 = vmatpush.bf16.msra.mxu0 %v572
        %629 = vmatpush.bf16.msra.mxu0 %v512
        %630 = vmatpush.bf16.msra.mxu0 %v504
        %631 = vmatpush.bf16.msra.mxu0 %v496
        %632 = vmatpush.bf16.msra.mxu0 %v488
        %633 = vmatmul.bf16.gmra.mxu0 %v559
        %v634 = vpop.f32.mrf.mxu0
        %v635 = vadd.f32 0.0, %v634
        %v636 = vpop.f32.mrf.mxu0
        %637 = vdwg.mxu0
        %638 = vmatpush.bf16.msra.mxu0 0
        %639 = vmatpush.bf16.msra.mxu0 0
        %640 = vmatpush.bf16.msra.mxu0 0
        %641 = vmatpush.bf16.msra.mxu0 %v575
        %642 = vmatpush.bf16.msra.mxu0 %v513
        %643 = vmatpush.bf16.msra.mxu0 %v505
        %644 = vmatpush.bf16.msra.mxu0 %v497
        %645 = vmatpush.bf16.msra.mxu0 %v489
        %646 = vmatmul.bf16.gmra.mxu0 %v559
        %v647 = vpop.f32.mrf.mxu0
        %v648 = vadd.f32 0.0, %v647
        %v649 = vpop.f32.mrf.mxu0
        %650 = vdwg.mxu0
        %651 = vmatpush.bf16.msra.mxu0 0
        %652 = vmatpush.bf16.msra.mxu0 0
        %653 = vmatpush.bf16.msra.mxu0 0
        %654 = vmatpush.bf16.msra.mxu0 %v578
        %655 = vmatpush.bf16.msra.mxu0 %v514
        %656 = vmatpush.bf16.msra.mxu0 %v506
        %657 = vmatpush.bf16.msra.mxu0 %v498
        %658 = vmatpush.bf16.msra.mxu0 %v490
        %659 = vmatmul.bf16.gmra.mxu0 %v559
        %v660 = vpop.f32.mrf.mxu0
        %v661 = vadd.f32 0.0, %v660
        %v662 = vpop.f32.mrf.mxu0
        %663 = vdwg.mxu0
        %664 = vmatpush.bf16.msra.mxu0 0
        %665 = vmatpush.bf16.msra.mxu0 0
        %666 = vmatpush.bf16.msra.mxu0 0
        %667 = vmatpush.bf16.msra.mxu0 %v581
        %668 = vmatpush.bf16.msra.mxu0 %v515
        %669 = vmatpush.bf16.msra.mxu0 %v507
        %670 = vmatpush.bf16.msra.mxu0 %v499
        %671 = vmatpush.bf16.msra.mxu0 %v491
        %672 = vmatmul.bf16.gmra.mxu0 %v559
        %v673 = vpop.f32.mrf.mxu0
        %v674 = vadd.f32 0.0, %v673
        %v675 = vpop.f32.mrf.mxu0
        %676 = vdwg.mxu0
        %677 = vmatpush.bf16.msra.mxu0 0
        %678 = vmatpush.bf16.msra.mxu0 0
        %679 = vmatpush.bf16.msra.mxu0 0
        %680 = vmatpush.bf16.msra.mxu0 %v584
        %681 = vmatpush.bf16.msra.mxu0 %v516
        %682 = vmatpush.bf16.msra.mxu0 %v508
        %683 = vmatpush.bf16.msra.mxu0 %v500
        %684 = vmatpush.bf16.msra.mxu0 %v492
        %685 = vmatmul.bf16.gmra.mxu0 %v559
        %v686 = vpop.f32.mrf.mxu0
        %v687 = vadd.f32 0.0, %v686
        %v688 = vpop.f32.mrf.mxu0
        %689 = vdwg.mxu0
        %v690 = vld [vmem:[%s2] sm:$0xff]
        %692 = vset.pattern.permute.xlu0 0
        %693 = vperm.xlu0 %692, %v690
        %v694 = vpop.permute.xlu0 %693
        %v696 = vmul.f32 %v596, %v694
        %v697 = vmul.f32 %v609, %v694
        %v698 = vmul.f32 %v622, %v694
        %v699 = vmul.f32 %v635, %v694
        %v700 = vmul.f32 %v648, %v694
        %v701 = vmul.f32 %v661, %v694
        %v702 = vmul.f32 %v674, %v694
        %v703 = vmul.f32 %v687, %v694
        %v704 = vld [vmem:[%s3] sm:$0xff]
        %706 = vset.pattern.permute.xlu0 0
        %707 = vperm.xlu0 %706, %v704
        %v708 = vpop.permute.xlu0 %707
        %v710 = vadd.f32 %v696, %v708
        %v711 = vadd.f32 %v697, %v708
        %v712 = vadd.f32 %v698, %v708
        %v713 = vadd.f32 %v699, %v708
        %v714 = vadd.f32 %v700, %v708
        %v715 = vadd.f32 %v701, %v708
        %v716 = vadd.f32 %v702, %v708
        %v717 = vadd.f32 %v703, %v708
        %v718 = vld [vmem:[%s331] sm:$0xff]
        %v719 = vld [vmem:[%s331 + $0x8] sm:$0xff]
        %v720 = vld [vmem:[%s331 + $0x10] sm:$0xff]
        %v721 = vld [vmem:[%s331 + $0x18] sm:$0xff]
        %v722 = vld [vmem:[%s331 + $0x20] sm:$0xff]
        %v723 = vld [vmem:[%s331 + $0x28] sm:$0xff]
        %v724 = vld [vmem:[%s331 + $0x30] sm:$0xff]
        %v725 = vld [vmem:[%s331 + $0x38] sm:$0xff]
        %v726 = vadd.f32 %v710, %v718
        %v727 = vadd.f32 %v711, %v719
        %v728 = vadd.f32 %v712, %v720
        %v729 = vadd.f32 %v713, %v721
        %v730 = vadd.f32 %v714, %v722
        %v731 = vadd.f32 %v715, %v723
        %v732 = vadd.f32 %v716, %v724
        %v733 = vadd.f32 %v717, %v725
        %v734 = vmax.f32 %v726, 0.0
        %v735 = vmax.f32 %v727, 0.0
        %v736 = vmax.f32 %v728, 0.0
        %v737 = vmax.f32 %v729, 0.0
        %v738 = vmax.f32 %v730, 0.0
        %v739 = vmax.f32 %v731, 0.0
        %v740 = vmax.f32 %v732, 0.0
        %v741 = vmax.f32 %v733, 0.0
        %742 = vst [vmem:[%s337] sm:$0xff] %v734
        %743 = vst [vmem:[%s337 + $0x8] sm:$0xff] %v735
        %744 = vst [vmem:[%s337 + $0x10] sm:$0xff] %v736
        %745 = vst [vmem:[%s337 + $0x18] sm:$0xff] %v737
        %746 = vst [vmem:[%s337 + $0x20] sm:$0xff] %v738
        %747 = vst [vmem:[%s337 + $0x28] sm:$0xff] %v739
        %748 = vst [vmem:[%s337 + $0x30] sm:$0xff] %v740
        %749 = vst [vmem:[%s337 + $0x38] sm:$0xff] %v741
        %s750 = smul.u32 8, %s16
        %p751 = scmp.lt.s32.totalorder %s750, 15
        %s752 = scalar_select %p751, %s750, 15
        %s753 = smul.addr %s752, 8
        %s754 = scalar_lea.vmem %s5, %s753
        // Predicated region
        $region64: #{_lambda_.15} parent=58 // pred_check
          %p755 = pneg %p149
        $region65: #{_lambda_.15} parent=58 // pred_check_branch
          %757 = sbr.rel (%p755) target = $region67
        $region66: #{_lambda_.15} parent=58 // pred_region
          %s758 = smul.u32 8, %s16
        $region67: #{_lambda_.15} parent=58 // pred_fallthru
          _
      $region59: #{_lambda_.15} parent=5 // pred_fallthru
        _
      %p759 = scmp.le.s32.totalorder 2, %s11
      // Predicated region
      $region68: #{_lambda_.15} parent=5 // pred_check
        %p760 = pneg %p759
      $region69: #{_lambda_.15} parent=5 // pred_check_branch
        %762 = sbr.rel (%p760) target = $region71
      $region70: #{_lambda_.15} parent=5 // pred_region
        %s763 = ssub.s32 %s11, 2
        // Predicated region
        $region72: #{_lambda_.15} parent=70 // pred_check
          %p764 = pneg %p155
        $region73: #{_lambda_.15} parent=70 // pred_check_branch
          %766 = sbr.rel (%p764) target = $region75
        $region74: #{_lambda_.15} parent=70 // pred_region
          %s767 = smul.u32 8, %s17
          %p768 = scmp.lt.s32.totalorder %s767, 15
          %s769 = scalar_select %p768, %s767, 15
          %s770 = smul.addr %s769, 8
          %s771 = scalar_lea.vmem %s5, %s770
        $region75: #{_lambda_.15} parent=70 // pred_fallthru
          _
      $region71: #{_lambda_.15} parent=5 // pred_fallthru
        _
    $region6: #{_lambda_.15} parent=1 // loop_footer
      %s15 = sadd.s32 1, %s11
    $region7: #{_lambda_.15} parent=1 // loop_footer_branch
      %10 = sbr.rel target = $region3
    $region8: #{_lambda_.15} parent=1 // loop_exit
      _

// kernel: _lambda_.13
$region0: #{_lambda_.13}
  #allocation0 [shape = 'u32[]', space=smem, size = 0x4, offset = 0x4, fixed_abs, tag = 'smem constant byte address 0x4 - core index']
  #allocation1 [shape = 'u32[72,128]{1,0:T(1,128)}', space=vmem, size = 0x9000, scoped, tag = 'internal scratch']
  %s0 = inlined_call_operand.vmem [shape: bf16[72,2048], index: 0, kind: input, shape index: {}]
  %s1 = inlined_call_operand.vmem [shape: bf16[8,72], index: 1, kind: input, shape index: {}]
  %s2 = inlined_call_operand.vmem [shape: f32[8,1], index: 2, kind: input, shape index: {}]
  %s3 = inlined_call_operand.vmem [shape: f32[8,1], index: 3, kind: input, shape index: {}]
  %s4 = inlined_call_operand.vmem [shape: bf16[8,2048], index: 4, kind: input, shape index: {}]
  %s5 = inlined_call_operand.vmem [shape: bf16[8,8], index: 5, kind: input, shape index: {}]
  %s6 = inlined_call_operand.vmem [shape: f32[8,1], index: 6, kind: input, shape index: {}]
  %s7 = inlined_call_operand.vmem [shape: f32[8,1], index: 7, kind: input, shape index: {}]
  %s8 = inlined_call_operand.vmem [shape: f32[8,2048], index: 8, kind: output, shape index: {}]
  %s9 = sld [smem:[#allocation0]]
  $region88: #{_lambda_.13} parent=0
    _
  %s11 = ssub.s32 1, %s9
  %s12 = scalar_select 0, %s11, %s9
  $region1: #{_lambda_.13} parent=0
    #allocation2 [shape = 'u8[294912]{0}', space=vmem, size = 0x48000, scoped, tag = 'input window, operand 0']
    loop: start=0, step=1, limit=4
    $region2: #{_lambda_.13} parent=1 // loop_pre_header
      _
    $region3: #{_lambda_.13} parent=1 // loop_header
      %s14 = sphi 0, %s18
      %p15 = scmp.ge.s32.totalorder %s14, 4
      %s24 = sphi 0, %s26
      %s27 = sphi 0, %s24
      %s28 = sphi 0, %s27
      %s44 = sphi 0, %s28
      %s48 = sphi 0, %s48
      %s50 = sphi 0, %s48
      %s51 = sphi 0, %s50
      %s65 = sphi 0, %s51
      %s69 = sphi 0, %s69
      %s71 = sphi 0, %s69
      %s72 = sphi 0, %s71
      %s86 = sphi 0, %s72
      %s90 = sphi 0, %s90
      %s92 = sphi 0, %s90
      %s93 = sphi 0, %s92
      %s107 = sphi 0, %s93
      %s113 = sphi 0, %s115
      %s116 = sphi 0, %s113
      %s117 = sphi 0, %s116
      %s133 = sphi 0, %s117
      %s137 = sphi 0, %s137
      %s139 = sphi 0, %s137
      %s140 = sphi 0, %s139
      %s154 = sphi 0, %s140
      %s158 = sphi 0, %s158
      %s160 = sphi 0, %s158
      %s161 = sphi 0, %s160
      %s175 = sphi 0, %s161
      %s179 = sphi 0, %s179
      %s181 = sphi 0, %s179
      %s182 = sphi 0, %s181
      %s196 = sphi 0, %s182
      %s202 = sphi 0, %s204
      %s205 = sphi 0, %s202
      %s206 = sphi 0, %s205
      %s222 = sphi 0, %s206
    $region4: #{_lambda_.13} parent=1 // loop_header_branch
      %17 = sbr.rel (%p15) target = $region8
    $region5: #{_lambda_.13} parent=1 // loop_body
      %s19 = ssub.s32 %s14, 1
      %s20 = ssub.s32 %s14, 2
      %s21 = sadd.s32 %s14, 1
      %s22 = ssub.s32 %s14, %s21
      %p23 = scmp.eq.s32.totalorder %s22, 0
      %s25 = sadd.s32 %s24, 1
      %s26 = scalar_select %p23, %s24, %s25
      %p29 = pneg %p23
      %p30 = scmp.eq.s32.totalorder %s14, 1
      %p31 = por %p29, %p30
      %p32 = scmp.ne.s32.totalorder %s24, %s27
      %p33 = scmp.eq.s32.totalorder %s14, 0
      %p34 = por %p32, %p33
      %p35 = scmp.ne.s32.totalorder %s24, %s27
      %p36 = scmp.eq.s32.totalorder %s19, 1
      %p37 = por %p35, %p36
      %p38 = scmp.ne.s32.totalorder %s27, %s28
      %p39 = scmp.eq.s32.totalorder %s19, 0
      %p40 = por %p38, %p39
      %p41 = scmp.ne.s32.totalorder %s27, %s28
      %p42 = scmp.eq.s32.totalorder %s20, 1
      %p43 = por %p41, %p42
      %p45 = scmp.ne.s32.totalorder %s28, %s44
      %p46 = scmp.eq.s32.totalorder %s20, 0
      %p47 = por %p45, %p46
      %s49 = sadd.s32 %s48, 1
      %p52 = scmp.eq.s32.totalorder %s14, 1
      %p53 = scmp.ne.s32.totalorder %s48, %s50
      %p54 = scmp.eq.s32.totalorder %s14, 0
      %p55 = por %p53, %p54
      %p56 = scmp.ne.s32.totalorder %s48, %s50
      %p57 = scmp.eq.s32.totalorder %s19, 1
      %p58 = por %p56, %p57
      %p59 = scmp.ne.s32.totalorder %s50, %s51
      %p60 = scmp.eq.s32.totalorder %s19, 0
      %p61 = por %p59, %p60
      %p62 = scmp.ne.s32.totalorder %s50, %s51
      %p63 = scmp.eq.s32.totalorder %s20, 1
      %p64 = por %p62, %p63
      %p66 = scmp.ne.s32.totalorder %s51, %s65
      %p67 = scmp.eq.s32.totalorder %s20, 0
      %p68 = por %p66, %p67
      %s70 = sadd.s32 %s69, 1
      %p73 = scmp.eq.s32.totalorder %s14, 1
      %p74 = scmp.ne.s32.totalorder %s69, %s71
      %p75 = scmp.eq.s32.totalorder %s14, 0
      %p76 = por %p74, %p75
      %p77 = scmp.ne.s32.totalorder %s69, %s71
      %p78 = scmp.eq.s32.totalorder %s19, 1
      %p79 = por %p77, %p78
      %p80 = scmp.ne.s32.totalorder %s71, %s72
      %p81 = scmp.eq.s32.totalorder %s19, 0
      %p82 = por %p80, %p81
      %p83 = scmp.ne.s32.totalorder %s71, %s72
      %p84 = scmp.eq.s32.totalorder %s20, 1
      %p85 = por %p83, %p84
      %p87 = scmp.ne.s32.totalorder %s72, %s86
      %p88 = scmp.eq.s32.totalorder %s20, 0
      %p89 = por %p87, %p88
      %s91 = sadd.s32 %s90, 1
      %p94 = scmp.eq.s32.totalorder %s14, 1
      %p95 = scmp.ne.s32.totalorder %s90, %s92
      %p96 = scmp.eq.s32.totalorder %s14, 0
      %p97 = por %p95, %p96
      %p98 = scmp.ne.s32.totalorder %s90, %s92
      %p99 = scmp.eq.s32.totalorder %s19, 1
      %p100 = por %p98, %p99
      %p101 = scmp.ne.s32.totalorder %s92, %s93
      %p102 = scmp.eq.s32.totalorder %s19, 0
      %p103 = por %p101, %p102
      %p104 = scmp.ne.s32.totalorder %s92, %s93
      %p105 = scmp.eq.s32.totalorder %s20, 1
      %p106 = por %p104, %p105
      %p108 = scmp.ne.s32.totalorder %s93, %s107
      %p109 = scmp.eq.s32.totalorder %s20, 0
      %p110 = por %p108, %p109
      %s111 = ssub.s32 %s14, %s21
      %p112 = scmp.eq.s32.totalorder %s111, 0
      %s114 = sadd.s32 %s113, 1
      %s115 = scalar_select %p112, %s113, %s114
      %p118 = pneg %p112
      %p119 = scmp.eq.s32.totalorder %s14, 1
      %p120 = por %p118, %p119
      %p121 = scmp.ne.s32.totalorder %s113, %s116
      %p122 = scmp.eq.s32.totalorder %s14, 0
      %p123 = por %p121, %p122
      %p124 = scmp.ne.s32.totalorder %s113, %s116
      %p125 = scmp.eq.s32.totalorder %s19, 1
      %p126 = por %p124, %p125
      %p127 = scmp.ne.s32.totalorder %s116, %s117
      %p128 = scmp.eq.s32.totalorder %s19, 0
      %p129 = por %p127, %p128
      %p130 = scmp.ne.s32.totalorder %s116, %s117
      %p131 = scmp.eq.s32.totalorder %s20, 1
      %p132 = por %p130, %p131
      %p134 = scmp.ne.s32.totalorder %s117, %s133
      %p135 = scmp.eq.s32.totalorder %s20, 0
      %p136 = por %p134, %p135
      %s138 = sadd.s32 %s137, 1
      %p141 = scmp.eq.s32.totalorder %s14, 1
      %p142 = scmp.ne.s32.totalorder %s137, %s139
      %p143 = scmp.eq.s32.totalorder %s14, 0
      %p144 = por %p142, %p143
      %p145 = scmp.ne.s32.totalorder %s137, %s139
      %p146 = scmp.eq.s32.totalorder %s19, 1
      %p147 = por %p145, %p146
      %p148 = scmp.ne.s32.totalorder %s139, %s140
      %p149 = scmp.eq.s32.totalorder %s19, 0
      %p150 = por %p148, %p149
      %p151 = scmp.ne.s32.totalorder %s139, %s140
      %p152 = scmp.eq.s32.totalorder %s20, 1
      %p153 = por %p151, %p152
      %p155 = scmp.ne.s32.totalorder %s140, %s154
      %p156 = scmp.eq.s32.totalorder %s20, 0
      %p157 = por %p155, %p156
      %s159 = sadd.s32 %s158, 1
      %p162 = scmp.eq.s32.totalorder %s14, 1
      %p163 = scmp.ne.s32.totalorder %s158, %s160
      %p164 = scmp.eq.s32.totalorder %s14, 0
      %p165 = por %p163, %p164
      %p166 = scmp.ne.s32.totalorder %s158, %s160
      %p167 = scmp.eq.s32.totalorder %s19, 1
      %p168 = por %p166, %p167
      %p169 = scmp.ne.s32.totalorder %s160, %s161
      %p170 = scmp.eq.s32.totalorder %s19, 0
      %p171 = por %p169, %p170
      %p172 = scmp.ne.s32.totalorder %s160, %s161
      %p173 = scmp.eq.s32.totalorder %s20, 1
      %p174 = por %p172, %p173
      %p176 = scmp.ne.s32.totalorder %s161, %s175
      %p177 = scmp.eq.s32.totalorder %s20, 0
      %p178 = por %p176, %p177
      %s180 = sadd.s32 %s179, 1
      %p183 = scmp.eq.s32.totalorder %s14, 1
      %p184 = scmp.ne.s32.totalorder %s179, %s181
      %p185 = scmp.eq.s32.totalorder %s14, 0
      %p186 = por %p184, %p185
      %p187 = scmp.ne.s32.totalorder %s179, %s181
      %p188 = scmp.eq.s32.totalorder %s19, 1
      %p189 = por %p187, %p188
      %p190 = scmp.ne.s32.totalorder %s181, %s182
      %p191 = scmp.eq.s32.totalorder %s19, 0
      %p192 = por %p190, %p191
      %p193 = scmp.ne.s32.totalorder %s181, %s182
      %p194 = scmp.eq.s32.totalorder %s20, 1
      %p195 = por %p193, %p194
      %p197 = scmp.ne.s32.totalorder %s182, %s196
      %p198 = scmp.eq.s32.totalorder %s20, 0
      %p199 = por %p197, %p198
      %s200 = ssub.s32 %s14, %s21
      %p201 = scmp.eq.s32.totalorder %s200, 0
      %s203 = sadd.s32 %s202, 1
      %s204 = scalar_select %p201, %s202, %s203
      %p207 = pneg %p201
      %p208 = scmp.eq.s32.totalorder %s14, 1
      %p209 = por %p207, %p208
      %p210 = scmp.ne.s32.totalorder %s202, %s205
      %p211 = scmp.eq.s32.totalorder %s14, 0
      %p212 = por %p210, %p211
      %p213 = scmp.ne.s32.totalorder %s202, %s205
      %p214 = scmp.eq.s32.totalorder %s19, 1
      %p215 = por %p213, %p214
      %p216 = scmp.ne.s32.totalorder %s205, %s206
      %p217 = scmp.eq.s32.totalorder %s19, 0
      %p218 = por %p216, %p217
      %p219 = scmp.ne.s32.totalorder %s205, %s206
      %p220 = scmp.eq.s32.totalorder %s20, 1
      %p221 = por %p219, %p220
      %p223 = scmp.ne.s32.totalorder %s206, %s222
      %p224 = scmp.eq.s32.totalorder %s20, 0
      %p225 = por %p223, %p224
      %p226 = scmp.le.s32.totalorder 1, %s14
      %p227 = scmp.lt.s32.totalorder %s14, 3
      %p228 = pnand %p226, %p227
      %p229 = pneg %p228
      // Predicated region
      $region9: #{_lambda_.13} parent=5 // pred_check
        _
      $region10: #{_lambda_.13} parent=5 // pred_check_branch
        %231 = sbr.rel (%p228) target = $region12
      $region11: #{_lambda_.13} parent=5 // pred_region
        %s232 = ssub.s32 %s14, 1
        // Predicated region
        $region13: #{_lambda_.13} parent=11 // pred_check
          %p233 = pneg %p61
        $region14: #{_lambda_.13} parent=11 // pred_check_branch
          %235 = sbr.rel (%p233) target = $region16
        $region15: #{_lambda_.13} parent=11 // pred_region
          _
        $region16: #{_lambda_.13} parent=11 // pred_fallthru
          _
        // Predicated region
        $region17: #{_lambda_.13} parent=11 // pred_check
          %p236 = pneg %p82
        $region18: #{_lambda_.13} parent=11 // pred_check_branch
          %238 = sbr.rel (%p236) target = $region20
        $region19: #{_lambda_.13} parent=11 // pred_region
          _
        $region20: #{_lambda_.13} parent=11 // pred_fallthru
          _
        // Predicated region
        $region21: #{_lambda_.13} parent=11 // pred_check
          %p239 = pneg %p103
        $region22: #{_lambda_.13} parent=11 // pred_check_branch
          %241 = sbr.rel (%p239) target = $region24
        $region23: #{_lambda_.13} parent=11 // pred_region
          _
        $region24: #{_lambda_.13} parent=11 // pred_fallthru
          _
        // Predicated region
        $region25: #{_lambda_.13} parent=11 // pred_check
          %p242 = pneg %p150
        $region26: #{_lambda_.13} parent=11 // pred_check_branch
          %244 = sbr.rel (%p242) target = $region28
        $region27: #{_lambda_.13} parent=11 // pred_region
          _
        $region28: #{_lambda_.13} parent=11 // pred_fallthru
          _
        // Predicated region
        $region29: #{_lambda_.13} parent=11 // pred_check
          %p245 = pneg %p171
        $region30: #{_lambda_.13} parent=11 // pred_check_branch
          %247 = sbr.rel (%p245) target = $region32
        $region31: #{_lambda_.13} parent=11 // pred_region
          _
        $region32: #{_lambda_.13} parent=11 // pred_fallthru
          _
        // Predicated region
        $region33: #{_lambda_.13} parent=11 // pred_check
          %p248 = pneg %p192
        $region34: #{_lambda_.13} parent=11 // pred_check_branch
          %250 = sbr.rel (%p248) target = $region36
        $region35: #{_lambda_.13} parent=11 // pred_region
          _
        $region36: #{_lambda_.13} parent=11 // pred_fallthru
          _
      $region12: #{_lambda_.13} parent=5 // pred_fallthru
        _
      %p251 = scmp.lt.s32.totalorder %s14, 2
      // Predicated region
      $region37: #{_lambda_.13} parent=5 // pred_check
        %p252 = pneg %p251
      $region38: #{_lambda_.13} parent=5 // pred_check_branch
        %254 = sbr.rel (%p252) target = $region40
      $region39: #{_lambda_.13} parent=5 // pred_region
        // Predicated region
        $region41: #{_lambda_.13} parent=39 // pred_check
          %p255 = pneg %p34
        $region42: #{_lambda_.13} parent=39 // pred_check_branch
          %257 = sbr.rel (%p255) target = $region44
        $region43: #{_lambda_.13} parent=39 // pred_region
          %s258 = sand.u32 %s24, 1
          %s259 = sand.u32 %s24, 1
          %s260 = smul.addr %s259, 288
          %s261 = scalar_lea.vmem [#allocation2], %s260
          %s262 = smul.u32 8, %s14
          %s263 = smul.addr %s262, 4
          %s264 = scalar_lea.vmem %s0, %s263
          // Predicated region
          $region45: #{_lambda_.13} parent=43 // pred_check
            _
          $region46: #{_lambda_.13} parent=43 // pred_check_branch
            %266 = sbr.rel (0) target = $region48
          $region47: #{_lambda_.13} parent=43 // pred_region
            // Predicated region
            $region49: #{_lambda_.13} parent=47 // pred_check
              _
            $region50: #{_lambda_.13} parent=47 // pred_check_branch
              %268 = sbr.rel (0) target = $region52
            $region51: #{_lambda_.13} parent=47 // pred_region
              loop: start=0, step=1, limit=1
              $region53: #{_lambda_.13} parent=51 // loop_pre_header
                _
              $region54: #{_lambda_.13} parent=51 // loop_header
                %s270 = sphi 0, %s274
                %p271 = scmp.ge.s32.totalorder %s270, 1
                %s275 = sphi %s264, %s264
                %s276 = sphi %s261, %s261
              $region55: #{_lambda_.13} parent=51 // loop_header_branch
                %273 = sbr.rel (%p271) target = $region59
              $region56: #{_lambda_.13} parent=51 // loop_body
                %v277 = vld [vmem:[%s275] sm:$0xff]
                %278 = vst [vmem:[%s276] sm:$0xff] %v277
                %v279 = vld [vmem:[%s275 + $0x8] sm:$0xff]
                %280 = vst [vmem:[%s276 + $0x8] sm:$0xff] %v279
                %v281 = vld [vmem:[%s275 + $0x10] sm:$0xff]
                %282 = vst [vmem:[%s276 + $0x10] sm:$0xff] %v281
                %v283 = vld [vmem:[%s275 + $0x18] sm:$0xff]
                %284 = vst [vmem:[%s276 + $0x18] sm:$0xff] %v283
                %v285 = vld [vmem:[%s275 + $0x40] sm:$0xff]
                %286 = vst [vmem:[%s276 + $0x20] sm:$0xff] %v285
                %v287 = vld [vmem:[%s275 + $0x48] sm:$0xff]
                %288 = vst [vmem:[%s276 + $0x28] sm:$0xff] %v287
                %v289 = vld [vmem:[%s275 + $0x50] sm:$0xff]
                %290 = vst [vmem:[%s276 + $0x30] sm:$0xff] %v289
                %v291 = vld [vmem:[%s275 + $0x58] sm:$0xff]
                %292 = vst [vmem:[%s276 + $0x38] sm:$0xff] %v291
                %v293 = vld [vmem:[%s275 + $0x80] sm:$0xff]
                %294 = vst [vmem:[%s276 + $0x40] sm:$0xff] %v293
                %v295 = vld [vmem:[%s275 + $0x88] sm:$0xff]
                %296 = vst [vmem:[%s276 + $0x48] sm:$0xff] %v295
                %v297 = vld [vmem:[%s275 + $0x90] sm:$0xff]
                %298 = vst [vmem:[%s276 + $0x50] sm:$0xff] %v297
                %v299 = vld [vmem:[%s275 + $0x98] sm:$0xff]
                %300 = vst [vmem:[%s276 + $0x58] sm:$0xff] %v299
                %v301 = vld [vmem:[%s275 + $0xc0] sm:$0xff]
                %302 = vst [vmem:[%s276 + $0x60] sm:$0xff] %v301
                %v303 = vld [vmem:[%s275 + $0xc8] sm:$0xff]
                %304 = vst [vmem:[%s276 + $0x68] sm:$0xff] %v303
                %v305 = vld [vmem:[%s275 + $0xd0] sm:$0xff]
                %306 = vst [vmem:[%s276 + $0x70] sm:$0xff] %v305
                %v307 = vld [vmem:[%s275 + $0xd8] sm:$0xff]
                %308 = vst [vmem:[%s276 + $0x78] sm:$0xff] %v307
                %v309 = vld [vmem:[%s275 + $0x100] sm:$0xff]
                %310 = vst [vmem:[%s276 + $0x80] sm:$0xff] %v309
                %v311 = vld [vmem:[%s275 + $0x108] sm:$0xff]
                %312 = vst [vmem:[%s276 + $0x88] sm:$0xff] %v311
                %v313 = vld [vmem:[%s275 + $0x110] sm:$0xff]
                %314 = vst [vmem:[%s276 + $0x90] sm:$0xff] %v313
                %v315 = vld [vmem:[%s275 + $0x118] sm:$0xff]
                %316 = vst [vmem:[%s276 + $0x98] sm:$0xff] %v315
                %v317 = vld [vmem:[%s275 + $0x140] sm:$0xff]
                %318 = vst [vmem:[%s276 + $0xa0] sm:$0xff] %v317
                %v319 = vld [vmem:[%s275 + $0x148] sm:$0xff]
                %320 = vst [vmem:[%s276 + $0xa8] sm:$0xff] %v319
                %v321 = vld [vmem:[%s275 + $0x150] sm:$0xff]
                %322 = vst [vmem:[%s276 + $0xb0] sm:$0xff] %v321
                %v323 = vld [vmem:[%s275 + $0x158] sm:$0xff]
                %324 = vst [vmem:[%s276 + $0xb8] sm:$0xff] %v323
                %v325 = vld [vmem:[%s275 + $0x180] sm:$0xff]
                %326 = vst [vmem:[%s276 + $0xc0] sm:$0xff] %v325
                %v327 = vld [vmem:[%s275 + $0x188] sm:$0xff]
                %328 = vst [vmem:[%s276 + $0xc8] sm:$0xff] %v327
                %v329 = vld [vmem:[%s275 + $0x190] sm:$0xff]
                %330 = vst [vmem:[%s276 + $0xd0] sm:$0xff] %v329
                %v331 = vld [vmem:[%s275 + $0x198] sm:$0xff]
                %332 = vst [vmem:[%s276 + $0xd8] sm:$0xff] %v331
                %v333 = vld [vmem:[%s275 + $0x1c0] sm:$0xff]
                %334 = vst [vmem:[%s276 + $0xe0] sm:$0xff] %v333
                %v335 = vld [vmem:[%s275 + $0x1c8] sm:$0xff]
                %336 = vst [vmem:[%s276 + $0xe8] sm:$0xff] %v335
                %v337 = vld [vmem:[%s275 + $0x1d0] sm:$0xff]
                %338 = vst [vmem:[%s276 + $0xf0] sm:$0xff] %v337
                %v339 = vld [vmem:[%s275 + $0x1d8] sm:$0xff]
                %340 = vst [vmem:[%s276 + $0xf8] sm:$0xff] %v339
                %v341 = vld [vmem:[%s275 + $0x200] sm:$0xff]
                %342 = vst [vmem:[%s276 + $0x100] sm:$0xff] %v341
                %v343 = vld [vmem:[%s275 + $0x208] sm:$0xff]
                %344 = vst [vmem:[%s276 + $0x108] sm:$0xff] %v343
                %v345 = vld [vmem:[%s275 + $0x210] sm:$0xff]
                %346 = vst [vmem:[%s276 + $0x110] sm:$0xff] %v345
                %v347 = vld [vmem:[%s275 + $0x218] sm:$0xff]
                %348 = vst [vmem:[%s276 + $0x118] sm:$0xff] %v347
              $region57: #{_lambda_.13} parent=51 // loop_footer
                %s274 = sadd.s32 1, %s270
              $region58: #{_lambda_.13} parent=51 // loop_footer_branch
                %269 = sbr.rel target = $region54
              $region59: #{_lambda_.13} parent=51 // loop_exit
                _
            $region52: #{_lambda_.13} parent=47 // pred_fallthru
              _
            // Predicated region
            $region60: #{_lambda_.13} parent=47 // pred_check
              _
            $region61: #{_lambda_.13} parent=47 // pred_check_branch
              %350 = sbr.rel target = $region63
            $region62: #{_lambda_.13} parent=47 // pred_region
              _
            $region63: #{_lambda_.13} parent=47 // pred_fallthru
              _
          $region48: #{_lambda_.13} parent=43 // pred_fallthru
            _
          %351 = vnop
        $region44: #{_lambda_.13} parent=39 // pred_fallthru
          _
        // Predicated region
        $region64: #{_lambda_.13} parent=39 // pred_check
          %p352 = pneg %p123
        $region65: #{_lambda_.13} parent=39 // pred_check_branch
          %354 = sbr.rel (%p352) target = $region67
        $region66: #{_lambda_.13} parent=39 // pred_region
          %s355 = smul.u32 8, %s14
          %p356 = scmp.lt.s32.totalorder %s355, 15
          %s357 = scalar_select %p356, %s355, 15
          %s358 = smul.addr %s357, 4
          %s359 = scalar_lea.vmem %s4, %s358
          %s360 = smul.u32 8, %s14
        $region67: #{_lambda_.13} parent=39 // pred_fallthru
          _
      $region40: #{_lambda_.13} parent=5 // pred_fallthru
        _
      %p361 = scmp.le.s32.totalorder 1, %s14
      %p362 = scmp.lt.s32.totalorder %s14, 3
      %p363 = pnand %p361, %p362
      %p364 = pneg %p363
      // Predicated region
      $region68: #{_lambda_.13} parent=5 // pred_check
        _
      $region69: #{_lambda_.13} parent=5 // pred_check_branch
        %366 = sbr.rel (%p363) target = $region71
      $region70: #{_lambda_.13} parent=5 // pred_region
        %s367 = ssub.s32 %s14, 1
        %s368 = sand.u32 %s27, 1
        %s369 = sand.u32 %s27, 1
        %s370 = smul.addr %s369, 288
        %s371 = scalar_lea.vmem [#allocation2], %s370
        // Predicated region
        $region72: #{_lambda_.13} parent=70 // pred_check
          %p372 = pneg %p40
        $region73: #{_lambda_.13} parent=70 // pred_check_branch
          %374 = sbr.rel (%p372) target = $region75
        $region74: #{_lambda_.13} parent=70 // pred_region
          _
        $region75: #{_lambda_.13} parent=70 // pred_fallthru
          _
        %s375 = sand.u32 %s27, 1
        %s376 = sand.u32 %s27, 1
        %s377 = smul.addr %s376, 288
        %s378 = scalar_lea.vmem [#allocation2], %s377
        %p379 = pneg %p40
        %p380 = pneg %p37
        %p381 = pneg %p61
        %p382 = pneg %p58
        %p383 = pneg %p82
        %p384 = pneg %p79
        %p385 = pneg %p103
        %p386 = pneg %p100
        %s387 = smul.u32 8, %s19
        %p388 = scmp.lt.s32.totalorder %s387, 15
        %s389 = scalar_select %p388, %s387, 15
        %s390 = smul.addr %s389, 4
        %s391 = scalar_lea.vmem %s4, %s390
        %p392 = pneg %p129
        %p393 = pneg %p126
        %p394 = pneg %p150
        %p395 = pneg %p147
        %p396 = pneg %p171
        %p397 = pneg %p168
        %p398 = pneg %p192
        %p399 = pneg %p189
        %p400 = pneg %p218
        %p401 = pneg %p215
        %s402 = smul.u32 8, %s19
        %p403 = scmp.lt.s32.totalorder %s402, 15
        %s404 = scalar_select %p403, %s402, 15
        %s405 = smul.addr %s404, 8
        %s406 = scalar_lea.vmem %s8, %s405
        %s407 = smul.u32 8, %s19
        %s408 = smul.u32 8, %s19
        %p409 = scmp.lt.s32.totalorder %s408, 15
        %s410 = scalar_select %p409, %s408, 15
        %s411 = smul.addr %s410, 4
        %s412 = scalar_lea.vmem %s4, %s411
        %s413 = smul.u32 8, %s19
        %s414 = smul.u32 8, %s19
        %p415 = scmp.lt.s32.totalorder %s414, 15
        %s416 = scalar_select %p415, %s414, 15
        %s417 = smul.addr %s416, 8
        %s418 = scalar_lea.vmem %s8, %s417
        %s419 = smul.u32 8, %s19
        %v421 = vld [vmem:[%s1] sm:$0xf]
        %v422 = vld [vmem:[%s371] sm:$0xff]
        %v423 = vld [vmem:[%s371 + $0x8] sm:$0xff]
        %v424 = vld [vmem:[%s371 + $0x10] sm:$0xff]
        %v425 = vld [vmem:[%s371 + $0x18] sm:$0xff]
        %v426 = vld [vmem:[%s371 + $0x20] sm:$0xff]
        %v427 = vld [vmem:[%s371 + $0x28] sm:$0xff]
        %v428 = vld [vmem:[%s371 + $0x30] sm:$0xff]
        %v429 = vld [vmem:[%s371 + $0x38] sm:$0xff]
        %v430 = vld [vmem:[%s371 + $0x40] sm:$0xff]
        %v431 = vld [vmem:[%s371 + $0x48] sm:$0xff]
        %v432 = vld [vmem:[%s371 + $0x50] sm:$0xff]
        %v433 = vld [vmem:[%s371 + $0x58] sm:$0xff]
        %v434 = vld [vmem:[%s371 + $0x60] sm:$0xff]
        %v435 = vld [vmem:[%s371 + $0x68] sm:$0xff]
        %v436 = vld [vmem:[%s371 + $0x70] sm:$0xff]
        %v437 = vld [vmem:[%s371 + $0x78] sm:$0xff]
        %v438 = vld [vmem:[%s371 + $0x80] sm:$0xff]
        %v439 = vld [vmem:[%s371 + $0x88] sm:$0xff]
        %v440 = vld [vmem:[%s371 + $0x90] sm:$0xff]
        %v441 = vld [vmem:[%s371 + $0x98] sm:$0xff]
        %v442 = vld [vmem:[%s371 + $0xa0] sm:$0xff]
        %v443 = vld [vmem:[%s371 + $0xa8] sm:$0xff]
        %v444 = vld [vmem:[%s371 + $0xb0] sm:$0xff]
        %v445 = vld [vmem:[%s371 + $0xb8] sm:$0xff]
        %v446 = vld [vmem:[%s371 + $0xc0] sm:$0xff]
        %v447 = vld [vmem:[%s371 + $0xc8] sm:$0xff]
        %v448 = vld [vmem:[%s371 + $0xd0] sm:$0xff]
        %v449 = vld [vmem:[%s371 + $0xd8] sm:$0xff]
        %v450 = vld [vmem:[%s371 + $0xe0] sm:$0xff]
        %v451 = vld [vmem:[%s371 + $0xe8] sm:$0xff]
        %v452 = vld [vmem:[%s371 + $0xf0] sm:$0xff]
        %v453 = vld [vmem:[%s371 + $0xf8] sm:$0xff]
        %v454 = vld [vmem:[%s371 + $0x100] sm:$0xff]
        %v455 = vld [vmem:[%s371 + $0x108] sm:$0xff]
        %v456 = vld [vmem:[%s371 + $0x110] sm:$0xff]
        %v457 = vld [vmem:[%s371 + $0x118] sm:$0xff]
        %v494 = vunpack.c.l.b16 %v422
        %v495 = vunpack.c.h.b16 %v422
        %v496 = vunpack.c.l.b16 %v423
        %v497 = vunpack.c.h.b16 %v423
        %v498 = vunpack.c.l.b16 %v424
        %v499 = vunpack.c.h.b16 %v424
        %v500 = vunpack.c.l.b16 %v425
        %v501 = vunpack.c.h.b16 %v425
        %v502 = vunpack.c.l.b16 %v426
        %v503 = vunpack.c.h.b16 %v426
        %v504 = vunpack.c.l.b16 %v427
        %v505 = vunpack.c.h.b16 %v427
        %v506 = vunpack.c.l.b16 %v428
        %v507 = vunpack.c.h.b16 %v428
        %v508 = vunpack.c.l.b16 %v429
        %v509 = vunpack.c.h.b16 %v429
        %v510 = vunpack.c.l.b16 %v430
        %v511 = vunpack.c.h.b16 %v430
        %v512 = vunpack.c.l.b16 %v431
        %v513 = vunpack.c.h.b16 %v431
        %v514 = vunpack.c.l.b16 %v432
        %v515 = vunpack.c.h.b16 %v432
        %v516 = vunpack.c.l.b16 %v433
        %v517 = vunpack.c.h.b16 %v433
        %v518 = vunpack.c.l.b16 %v434
        %v519 = vunpack.c.h.b16 %v434
        %v520 = vunpack.c.l.b16 %v435
        %v521 = vunpack.c.h.b16 %v435
        %v522 = vunpack.c.l.b16 %v436
        %v523 = vunpack.c.h.b16 %v436
        %v524 = vunpack.c.l.b16 %v437
        %v525 = vunpack.c.h.b16 %v437
        %v526 = vunpack.c.l.b16 %v438
        %v527 = vunpack.c.h.b16 %v438
        %v528 = vunpack.c.l.b16 %v439
        %v529 = vunpack.c.h.b16 %v439
        %v530 = vunpack.c.l.b16 %v440
        %v531 = vunpack.c.h.b16 %v440
        %v532 = vunpack.c.l.b16 %v441
        %v533 = vunpack.c.h.b16 %v441
        %v534 = vunpack.c.l.b16 %v442
        %v535 = vunpack.c.h.b16 %v442
        %v536 = vunpack.c.l.b16 %v443
        %v537 = vunpack.c.h.b16 %v443
        %v538 = vunpack.c.l.b16 %v444
        %v539 = vunpack.c.h.b16 %v444
        %v540 = vunpack.c.l.b16 %v445
        %v541 = vunpack.c.h.b16 %v445
        %v542 = vunpack.c.l.b16 %v446
        %v543 = vunpack.c.h.b16 %v446
        %v544 = vunpack.c.l.b16 %v447
        %v545 = vunpack.c.h.b16 %v447
        %v546 = vunpack.c.l.b16 %v448
        %v547 = vunpack.c.h.b16 %v448
        %v548 = vunpack.c.l.b16 %v449
        %v549 = vunpack.c.h.b16 %v449
        %v550 = vunpack.c.l.b16 %v450
        %v551 = vunpack.c.h.b16 %v450
        %v552 = vunpack.c.l.b16 %v451
        %v553 = vunpack.c.h.b16 %v451
        %v554 = vunpack.c.l.b16 %v452
        %v555 = vunpack.c.h.b16 %v452
        %v556 = vunpack.c.l.b16 %v453
        %v557 = vunpack.c.h.b16 %v453
        %v558 = vunpack.c.l.b16 %v454
        %v559 = vunpack.c.h.b16 %v454
        %v560 = vunpack.c.l.b16 %v455
        %v561 = vunpack.c.h.b16 %v455
        %v562 = vunpack.c.l.b16 %v456
        %v563 = vunpack.c.h.b16 %v456
        %v564 = vunpack.c.l.b16 %v457
        %v565 = vunpack.c.h.b16 %v457
        %v566 = vpack.c.b16 %v502, %v494
        %v567 = vpack.c.b16 %v503, %v495
        %v568 = vpack.c.b16 %v504, %v496
        %v569 = vpack.c.b16 %v505, %v497
        %v570 = vpack.c.b16 %v506, %v498
        %v571 = vpack.c.b16 %v507, %v499
        %v572 = vpack.c.b16 %v508, %v500
        %v573 = vpack.c.b16 %v509, %v501
        %v574 = vpack.c.b16 %v518, %v510
        %v575 = vpack.c.b16 %v519, %v511
        %v576 = vpack.c.b16 %v520, %v512
        %v577 = vpack.c.b16 %v521, %v513
        %v578 = vpack.c.b16 %v522, %v514
        %v579 = vpack.c.b16 %v523, %v515
        %v580 = vpack.c.b16 %v524, %v516
        %v581 = vpack.c.b16 %v525, %v517
        %v582 = vpack.c.b16 %v534, %v526
        %v583 = vpack.c.b16 %v535, %v527
        %v584 = vpack.c.b16 %v536, %v528
        %v585 = vpack.c.b16 %v537, %v529
        %v586 = vpack.c.b16 %v538, %v530
        %v587 = vpack.c.b16 %v539, %v531
        %v588 = vpack.c.b16 %v540, %v532
        %v589 = vpack.c.b16 %v541, %v533
        %v590 = vpack.c.b16 %v550, %v542
        %v591 = vpack.c.b16 %v551, %v543
        %v592 = vpack.c.b16 %v552, %v544
        %v593 = vpack.c.b16 %v553, %v545
        %v594 = vpack.c.b16 %v554, %v546
        %v595 = vpack.c.b16 %v555, %v547
        %v596 = vpack.c.b16 %v556, %v548
        %v597 = vpack.c.b16 %v557, %v549
        %v598 = vpack.c.b16 %v558, %v558
        %v599 = vpack.c.b16 %v559, %v559
        %v600 = vpack.c.b16 %v560, %v560
        %v601 = vpack.c.b16 %v561, %v561
        %v602 = vpack.c.b16 %v562, %v562
        %v603 = vpack.c.b16 %v563, %v563
        %v604 = vpack.c.b16 %v564, %v564
        %v605 = vpack.c.b16 %v565, %v565
        %vm638 = vcmask 588800
        %v640 = vsel %vm638, %v421, 0
        %vm642 = vcmask 1043456
        %v644 = vsel %vm642, %v598, 0
        %v647 = vsel %vm642, %v599, 0
        %v650 = vsel %vm642, %v600, 0
        %v653 = vsel %vm642, %v601, 0
        %v656 = vsel %vm642, %v602, 0
        %v659 = vsel %vm642, %v603, 0
        %v662 = vsel %vm642, %v604, 0
        %v665 = vsel %vm642, %v605, 0
        %667 = vmatpush.bf16.msra.mxu0 0
        %668 = vmatpush.bf16.msra.mxu0 0
        %669 = vmatpush.bf16.msra.mxu0 0
        %670 = vmatpush.bf16.msra.mxu0 %v644
        %671 = vmatpush.bf16.msra.mxu0 %v590
        %672 = vmatpush.bf16.msra.mxu0 %v582
        %673 = vmatpush.bf16.msra.mxu0 %v574
        %674 = vmatpush.bf16.msra.mxu0 %v566
        %675 = vmatmul.bf16.gmra.mxu0 %v640
        %v676 = vpop.f32.mrf.mxu0
        %v677 = vadd.f32 0.0, %v676
        %v678 = vpop.f32.mrf.mxu0
        %679 = vdwg.mxu0
        %680 = vmatpush.bf16.msra.mxu0 0
        %681 = vmatpush.bf16.msra.mxu0 0
        %682 = vmatpush.bf16.msra.mxu0 0
        %683 = vmatpush.bf16.msra.mxu0 %v647
        %684 = vmatpush.bf16.msra.mxu0 %v591
        %685 = vmatpush.bf16.msra.mxu0 %v583
        %686 = vmatpush.bf16.msra.mxu0 %v575
        %687 = vmatpush.bf16.msra.mxu0 %v567
        %688 = vmatmul.bf16.gmra.mxu0 %v640
        %v689 = vpop.f32.mrf.mxu0
        %v690 = vadd.f32 0.0, %v689
        %v691 = vpop.f32.mrf.mxu0
        %692 = vdwg.mxu0
        %693 = vmatpush.bf16.msra.mxu0 0
        %694 = vmatpush.bf16.msra.mxu0 0
        %695 = vmatpush.bf16.msra.mxu0 0
        %696 = vmatpush.bf16.msra.mxu0 %v650
        %697 = vmatpush.bf16.msra.mxu0 %v592
        %698 = vmatpush.bf16.msra.mxu0 %v584
        %699 = vmatpush.bf16.msra.mxu0 %v576
        %700 = vmatpush.bf16.msra.mxu0 %v568
        %701 = vmatmul.bf16.gmra.mxu0 %v640
        %v702 = vpop.f32.mrf.mxu0
        %v703 = vadd.f32 0.0, %v702
        %v704 = vpop.f32.mrf.mxu0
        %705 = vdwg.mxu0
        %706 = vmatpush.bf16.msra.mxu0 0
        %707 = vmatpush.bf16.msra.mxu0 0
        %708 = vmatpush.bf16.msra.mxu0 0
        %709 = vmatpush.bf16.msra.mxu0 %v653
        %710 = vmatpush.bf16.msra.mxu0 %v593
        %711 = vmatpush.bf16.msra.mxu0 %v585
        %712 = vmatpush.bf16.msra.mxu0 %v577
        %713 = vmatpush.bf16.msra.mxu0 %v569
        %714 = vmatmul.bf16.gmra.mxu0 %v640
        %v715 = vpop.f32.mrf.mxu0
        %v716 = vadd.f32 0.0, %v715
        %v717 = vpop.f32.mrf.mxu0
        %718 = vdwg.mxu0
        %719 = vmatpush.bf16.msra.mxu0 0
        %720 = vmatpush.bf16.msra.mxu0 0
        %721 = vmatpush.bf16.msra.mxu0 0
        %722 = vmatpush.bf16.msra.mxu0 %v656
        %723 = vmatpush.bf16.msra.mxu0 %v594
        %724 = vmatpush.bf16.msra.mxu0 %v586
        %725 = vmatpush.bf16.msra.mxu0 %v578
        %726 = vmatpush.bf16.msra.mxu0 %v570
        %727 = vmatmul.bf16.gmra.mxu0 %v640
        %v728 = vpop.f32.mrf.mxu0
        %v729 = vadd.f32 0.0, %v728
        %v730 = vpop.f32.mrf.mxu0
        %731 = vdwg.mxu0
        %732 = vmatpush.bf16.msra.mxu0 0
        %733 = vmatpush.bf16.msra.mxu0 0
        %734 = vmatpush.bf16.msra.mxu0 0
        %735 = vmatpush.bf16.msra.mxu0 %v659
        %736 = vmatpush.bf16.msra.mxu0 %v595
        %737 = vmatpush.bf16.msra.mxu0 %v587
        %738 = vmatpush.bf16.msra.mxu0 %v579
        %739 = vmatpush.bf16.msra.mxu0 %v571
        %740 = vmatmul.bf16.gmra.mxu0 %v640
        %v741 = vpop.f32.mrf.mxu0
        %v742 = vadd.f32 0.0, %v741
        %v743 = vpop.f32.mrf.mxu0
        %744 = vdwg.mxu0
        %745 = vmatpush.bf16.msra.mxu0 0
        %746 = vmatpush.bf16.msra.mxu0 0
        %747 = vmatpush.bf16.msra.mxu0 0
        %748 = vmatpush.bf16.msra.mxu0 %v662
        %749 = vmatpush.bf16.msra.mxu0 %v596
        %750 = vmatpush.bf16.msra.mxu0 %v588
        %751 = vmatpush.bf16.msra.mxu0 %v580
        %752 = vmatpush.bf16.msra.mxu0 %v572
        %753 = vmatmul.bf16.gmra.mxu0 %v640
        %v754 = vpop.f32.mrf.mxu0
        %v755 = vadd.f32 0.0, %v754
        %v756 = vpop.f32.mrf.mxu0
        %757 = vdwg.mxu0
        %758 = vmatpush.bf16.msra.mxu0 0
        %759 = vmatpush.bf16.msra.mxu0 0
        %760 = vmatpush.bf16.msra.mxu0 0
        %761 = vmatpush.bf16.msra.mxu0 %v665
        %762 = vmatpush.bf16.msra.mxu0 %v597
        %763 = vmatpush.bf16.msra.mxu0 %v589
        %764 = vmatpush.bf16.msra.mxu0 %v581
        %765 = vmatpush.bf16.msra.mxu0 %v573
        %766 = vmatmul.bf16.gmra.mxu0 %v640
        %v767 = vpop.f32.mrf.mxu0
        %v768 = vadd.f32 0.0, %v767
        %v769 = vpop.f32.mrf.mxu0
        %770 = vdwg.mxu0
        %v771 = vld [vmem:[%s2] sm:$0xff]
        %773 = vset.pattern.permute.xlu0 0
        %774 = vperm.xlu0 %773, %v771
        %v775 = vpop.permute.xlu0 %774
        %v777 = vmul.f32 %v677, %v775
        %v778 = vmul.f32 %v690, %v775
        %v779 = vmul.f32 %v703, %v775
        %v780 = vmul.f32 %v716, %v775
        %v781 = vmul.f32 %v729, %v775
        %v782 = vmul.f32 %v742, %v775
        %v783 = vmul.f32 %v755, %v775
        %v784 = vmul.f32 %v768, %v775
        %v785 = vld [vmem:[%s3] sm:$0xff]
        %787 = vset.pattern.permute.xlu0 0
        %788 = vperm.xlu0 %787, %v785
        %v789 = vpop.permute.xlu0 %788
        %v791 = vadd.f32 %v777, %v789
        %v792 = vadd.f32 %v778, %v789
        %v793 = vadd.f32 %v779, %v789
        %v794 = vadd.f32 %v780, %v789
        %v795 = vadd.f32 %v781, %v789
        %v796 = vadd.f32 %v782, %v789
        %v797 = vadd.f32 %v783, %v789
        %v798 = vadd.f32 %v784, %v789
        %v799 = vld [vmem:[%s5] sm:$0xf]
        %v800 = vld [vmem:[%s412] sm:$0xff]
        %v801 = vld [vmem:[%s412 + $0x8] sm:$0xff]
        %v802 = vld [vmem:[%s412 + $0x10] sm:$0xff]
        %v803 = vld [vmem:[%s412 + $0x18] sm:$0xff]
        %v808 = vunpack.c.l.b16 %v800
        %v809 = vunpack.c.h.b16 %v800
        %v810 = vunpack.c.l.b16 %v801
        %v811 = vunpack.c.h.b16 %v801
        %v812 = vunpack.c.l.b16 %v802
        %v813 = vunpack.c.h.b16 %v802
        %v814 = vunpack.c.l.b16 %v803
        %v815 = vunpack.c.h.b16 %v803
        %v816 = vpack.c.b16 %v808, %v808
        %v817 = vpack.c.b16 %v809, %v809
        %v818 = vpack.c.b16 %v810, %v810
        %v819 = vpack.c.b16 %v811, %v811
        %v820 = vpack.c.b16 %v812, %v812
        %v821 = vpack.c.b16 %v813, %v813
        %v822 = vpack.c.b16 %v814, %v814
        %v823 = vpack.c.b16 %v815, %v815
        %vm824 = vcmask 64512
        %v826 = vsel %vm824, %v799, 0
        %v829 = vsel %vm642, %v816, 0
        %v832 = vsel %vm642, %v817, 0
        %v835 = vsel %vm642, %v818, 0
        %v838 = vsel %vm642, %v819, 0
        %v841 = vsel %vm642, %v820, 0
        %v844 = vsel %vm642, %v821, 0
        %v847 = vsel %vm642, %v822, 0
        %v850 = vsel %vm642, %v823, 0
        %852 = vmatpush.bf16.msra.mxu0 0
        %853 = vmatpush.bf16.msra.mxu0 0
        %854 = vmatpush.bf16.msra.mxu0 0
        %855 = vmatpush.bf16.msra.mxu0 0
        %856 = vmatpush.bf16.msra.mxu0 0
        %857 = vmatpush.bf16.msra.mxu0 0
        %858 = vmatpush.bf16.msra.mxu0 0
        %859 = vmatpush.bf16.msra.mxu0 %v829
        %860 = vmatmul.bf16.gmra.mxu0 %v826
        %v861 = vpop.f32.mrf.mxu0
        %v862 = vadd.f32 0.0, %v861
        %v863 = vpop.f32.mrf.mxu0
        %864 = vdwg.mxu0
        %865 = vmatpush.bf16.msra.mxu0 0
        %866 = vmatpush.bf16.msra.mxu0 0
        %867 = vmatpush.bf16.msra.mxu0 0
        %868 = vmatpush.bf16.msra.mxu0 0
        %869 = vmatpush.bf16.msra.mxu0 0
        %870 = vmatpush.bf16.msra.mxu0 0
        %871 = vmatpush.bf16.msra.mxu0 0
        %872 = vmatpush.bf16.msra.mxu0 %v832
        %873 = vmatmul.bf16.gmra.mxu0 %v826
        %v874 = vpop.f32.mrf.mxu0
        %v875 = vadd.f32 0.0, %v874
        %v876 = vpop.f32.mrf.mxu0
        %877 = vdwg.mxu0
        %878 = vmatpush.bf16.msra.mxu0 0
        %879 = vmatpush.bf16.msra.mxu0 0
        %880 = vmatpush.bf16.msra.mxu0 0
        %881 = vmatpush.bf16.msra.mxu0 0
        %882 = vmatpush.bf16.msra.mxu0 0
        %883 = vmatpush.bf16.msra.mxu0 0
        %884 = vmatpush.bf16.msra.mxu0 0
        %885 = vmatpush.bf16.msra.mxu0 %v835
        %886 = vmatmul.bf16.gmra.mxu0 %v826
        %v887 = vpop.f32.mrf.mxu0
        %v888 = vadd.f32 0.0, %v887
        %v889 = vpop.f32.mrf.mxu0
        %890 = vdwg.mxu0
        %891 = vmatpush.bf16.msra.mxu0 0
        %892 = vmatpush.bf16.msra.mxu0 0
        %893 = vmatpush.bf16.msra.mxu0 0
        %894 = vmatpush.bf16.msra.mxu0 0
        %895 = vmatpush.bf16.msra.mxu0 0
        %896 = vmatpush.bf16.msra.mxu0 0
        %897 = vmatpush.bf16.msra.mxu0 0
        %898 = vmatpush.bf16.msra.mxu0 %v838
        %899 = vmatmul.bf16.gmra.mxu0 %v826
        %v900 = vpop.f32.mrf.mxu0
        %v901 = vadd.f32 0.0, %v900
        %v902 = vpop.f32.mrf.mxu0
        %903 = vdwg.mxu0
        %904 = vmatpush.bf16.msra.mxu0 0
        %905 = vmatpush.bf16.msra.mxu0 0
        %906 = vmatpush.bf16.msra.mxu0 0
        %907 = vmatpush.bf16.msra.mxu0 0
        %908 = vmatpush.bf16.msra.mxu0 0
        %909 = vmatpush.bf16.msra.mxu0 0
        %910 = vmatpush.bf16.msra.mxu0 0
        %911 = vmatpush.bf16.msra.mxu0 %v841
        %912 = vmatmul.bf16.gmra.mxu0 %v826
        %v913 = vpop.f32.mrf.mxu0
        %v914 = vadd.f32 0.0, %v913
        %v915 = vpop.f32.mrf.mxu0
        %916 = vdwg.mxu0
        %917 = vmatpush.bf16.msra.mxu0 0
        %918 = vmatpush.bf16.msra.mxu0 0
        %919 = vmatpush.bf16.msra.mxu0 0
        %920 = vmatpush.bf16.msra.mxu0 0
        %921 = vmatpush.bf16.msra.mxu0 0
        %922 = vmatpush.bf16.msra.mxu0 0
        %923 = vmatpush.bf16.msra.mxu0 0
        %924 = vmatpush.bf16.msra.mxu0 %v844
        %925 = vmatmul.bf16.gmra.mxu0 %v826
        %v926 = vpop.f32.mrf.mxu0
        %v927 = vadd.f32 0.0, %v926
        %v928 = vpop.f32.mrf.mxu0
        %929 = vdwg.mxu0
        %930 = vmatpush.bf16.msra.mxu0 0
        %931 = vmatpush.bf16.msra.mxu0 0
        %932 = vmatpush.bf16.msra.mxu0 0
        %933 = vmatpush.bf16.msra.mxu0 0
        %934 = vmatpush.bf16.msra.mxu0 0
        %935 = vmatpush.bf16.msra.mxu0 0
        %936 = vmatpush.bf16.msra.mxu0 0
        %937 = vmatpush.bf16.msra.mxu0 %v847
        %938 = vmatmul.bf16.gmra.mxu0 %v826
        %v939 = vpop.f32.mrf.mxu0
        %v940 = vadd.f32 0.0, %v939
        %v941 = vpop.f32.mrf.mxu0
        %942 = vdwg.mxu0
        %943 = vmatpush.bf16.msra.mxu0 0
        %944 = vmatpush.bf16.msra.mxu0 0
        %945 = vmatpush.bf16.msra.mxu0 0
        %946 = vmatpush.bf16.msra.mxu0 0
        %947 = vmatpush.bf16.msra.mxu0 0
        %948 = vmatpush.bf16.msra.mxu0 0
        %949 = vmatpush.bf16.msra.mxu0 0
        %950 = vmatpush.bf16.msra.mxu0 %v850
        %951 = vmatmul.bf16.gmra.mxu0 %v826
        %v952 = vpop.f32.mrf.mxu0
        %v953 = vadd.f32 0.0, %v952
        %v954 = vpop.f32.mrf.mxu0
        %955 = vdwg.mxu0
        %v956 = vld [vmem:[%s6] sm:$0xff]
        %958 = vset.pattern.permute.xlu0 0
        %959 = vperm.xlu0 %958, %v956
        %v960 = vpop.permute.xlu0 %959
        %v962 = vmul.f32 %v862, %v960
        %v963 = vmul.f32 %v875, %v960
        %v964 = vmul.f32 %v888, %v960
        %v965 = vmul.f32 %v901, %v960
        %v966 = vmul.f32 %v914, %v960
        %v967 = vmul.f32 %v927, %v960
        %v968 = vmul.f32 %v940, %v960
        %v969 = vmul.f32 %v953, %v960
        %v970 = vld [vmem:[%s7] sm:$0xff]
        %972 = vset.pattern.permute.xlu0 0
        %973 = vperm.xlu0 %972, %v970
        %v974 = vpop.permute.xlu0 %973
        %v976 = vadd.f32 %v962, %v974
        %v977 = vadd.f32 %v963, %v974
        %v978 = vadd.f32 %v964, %v974
        %v979 = vadd.f32 %v965, %v974
        %v980 = vadd.f32 %v966, %v974
        %v981 = vadd.f32 %v967, %v974
        %v982 = vadd.f32 %v968, %v974
        %v983 = vadd.f32 %v969, %v974
        %v984 = vadd.f32 %v791, %v976
        %v985 = vadd.f32 %v792, %v977
        %v986 = vadd.f32 %v793, %v978
        %v987 = vadd.f32 %v794, %v979
        %v988 = vadd.f32 %v795, %v980
        %v989 = vadd.f32 %v796, %v981
        %v990 = vadd.f32 %v797, %v982
        %v991 = vadd.f32 %v798, %v983
        %v992 = vmax.f32 %v984, 0.0
        %v993 = vmax.f32 %v985, 0.0
        %v994 = vmax.f32 %v986, 0.0
        %v995 = vmax.f32 %v987, 0.0
        %v996 = vmax.f32 %v988, 0.0
        %v997 = vmax.f32 %v989, 0.0
        %v998 = vmax.f32 %v990, 0.0
        %v999 = vmax.f32 %v991, 0.0
        %1000 = vst [vmem:[%s418] sm:$0xff] %v992
        %1001 = vst [vmem:[%s418 + $0x8] sm:$0xff] %v993
        %1002 = vst [vmem:[%s418 + $0x10] sm:$0xff] %v994
        %1003 = vst [vmem:[%s418 + $0x18] sm:$0xff] %v995
        %1004 = vst [vmem:[%s418 + $0x20] sm:$0xff] %v996
        %1005 = vst [vmem:[%s418 + $0x28] sm:$0xff] %v997
        %1006 = vst [vmem:[%s418 + $0x30] sm:$0xff] %v998
        %1007 = vst [vmem:[%s418 + $0x38] sm:$0xff] %v999
        %s1008 = smul.u32 8, %s19
        %p1009 = scmp.lt.s32.totalorder %s1008, 15
        %s1010 = scalar_select %p1009, %s1008, 15
        %s1011 = smul.addr %s1010, 8
        %s1012 = scalar_lea.vmem %s8, %s1011
        // Predicated region
        $region76: #{_lambda_.13} parent=70 // pred_check
          %p1013 = pneg %p215
        $region77: #{_lambda_.13} parent=70 // pred_check_branch
          %1015 = sbr.rel (%p1013) target = $region79
        $region78: #{_lambda_.13} parent=70 // pred_region
          %s1016 = smul.u32 8, %s19
        $region79: #{_lambda_.13} parent=70 // pred_fallthru
          _
      $region71: #{_lambda_.13} parent=5 // pred_fallthru
        _
      %p1017 = scmp.le.s32.totalorder 2, %s14
      // Predicated region
      $region80: #{_lambda_.13} parent=5 // pred_check
        %p1018 = pneg %p1017
      $region81: #{_lambda_.13} parent=5 // pred_check_branch
        %1020 = sbr.rel (%p1018) target = $region83
      $region82: #{_lambda_.13} parent=5 // pred_region
        %s1021 = ssub.s32 %s14, 2
        // Predicated region
        $region84: #{_lambda_.13} parent=82 // pred_check
          %p1022 = pneg %p221
        $region85: #{_lambda_.13} parent=82 // pred_check_branch
          %1024 = sbr.rel (%p1022) target = $region87
        $region86: #{_lambda_.13} parent=82 // pred_region
          %s1025 = smul.u32 8, %s20
          %p1026 = scmp.lt.s32.totalorder %s1025, 15
          %s1027 = scalar_select %p1026, %s1025, 15
          %s1028 = smul.addr %s1027, 8
          %s1029 = scalar_lea.vmem %s8, %s1028
        $region87: #{_lambda_.13} parent=82 // pred_fallthru
          _
      $region83: #{_lambda_.13} parent=5 // pred_fallthru
        _
    $region6: #{_lambda_.13} parent=1 // loop_footer
      %s18 = sadd.s32 1, %s14
    $region7: #{_lambda_.13} parent=1 // loop_footer_branch
      %13 = sbr.rel target = $region3
    $region8: #{_lambda_.13} parent=1 // loop_exit
      _

// kernel: _lambda_.16
$region0: #{_lambda_.16}
  #allocation0 [shape = 'u32[]', space=smem, size = 0x4, offset = 0x4, fixed_abs, tag = 'smem constant byte address 0x4 - core index']
  #allocation1 [shape = 'u32[72,128]{1,0:T(1,128)}', space=vmem, size = 0x9000, scoped, tag = 'internal scratch']
  %s0 = inlined_call_operand.vmem [shape: bf16[72,512], index: 0, kind: input, shape index: {}]
  %s1 = inlined_call_operand.vmem [shape: bf16[16,72], index: 1, kind: input, shape index: {}]
  %s2 = inlined_call_operand.vmem [shape: f32[16,1], index: 2, kind: input, shape index: {}]
  %s3 = inlined_call_operand.vmem [shape: f32[16,1], index: 3, kind: input, shape index: {}]
  %s4 = inlined_call_operand.vmem [shape: f32[16,512], index: 4, kind: output, shape index: {}]
  %s5 = sld [smem:[#allocation0]]
  $region106: #{_lambda_.16} parent=0
    _
  %s7 = ssub.s32 1, %s5
  %s8 = scalar_select 0, %s7, %s5
  $region1: #{_lambda_.16} parent=0
    #allocation2 [shape = 'u8[73728]{0}', space=vmem, size = 0x12000, scoped, tag = 'input window, operand 0']
    #allocation3 [shape = 'u8[32768]{0}', space=vmem, size = 0x8000, scoped, tag = 'output window, operand 0']
    loop: start=0, step=1, limit=4
    $region2: #{_lambda_.16} parent=1 // loop_pre_header
      _
    $region3: #{_lambda_.16} parent=1 // loop_header
      %s10 = sphi 0, %s14
      %p11 = scmp.ge.s32.totalorder %s10, 4
      %s20 = sphi 0, %s22
      %s23 = sphi 0, %s20
      %s24 = sphi 0, %s23
      %s40 = sphi 0, %s24
      %s44 = sphi 0, %s44
      %s46 = sphi 0, %s44
      %s47 = sphi 0, %s46
      %s61 = sphi 0, %s47
      %s65 = sphi 0, %s65
      %s67 = sphi 0, %s65
      %s68 = sphi 0, %s67
      %s82 = sphi 0, %s68
      %s86 = sphi 0, %s86
      %s88 = sphi 0, %s86
      %s89 = sphi 0, %s88
      %s103 = sphi 0, %s89
      %s109 = sphi 0, %s111
      %s112 = sphi 0, %s109
      %s113 = sphi 0, %s112
      %s129 = sphi 0, %s113
    $region4: #{_lambda_.16} parent=1 // loop_header_branch
      %13 = sbr.rel (%p11) target = $region8
    $region5: #{_lambda_.16} parent=1 // loop_body
      %s15 = ssub.s32 %s10, 1
      %s16 = ssub.s32 %s10, 2
      %s17 = sadd.s32 %s10, 1
      %s18 = ssub.s32 %s10, %s17
      %p19 = scmp.eq.s32.totalorder %s18, 0
      %s21 = sadd.s32 %s20, 1
      %s22 = scalar_select %p19, %s20, %s21
      %p25 = pneg %p19
      %p26 = scmp.eq.s32.totalorder %s10, 1
      %p27 = por %p25, %p26
      %p28 = scmp.ne.s32.totalorder %s20, %s23
      %p29 = scmp.eq.s32.totalorder %s10, 0
      %p30 = por %p28, %p29
      %p31 = scmp.ne.s32.totalorder %s20, %s23
      %p32 = scmp.eq.s32.totalorder %s15, 1
      %p33 = por %p31, %p32
      %p34 = scmp.ne.s32.totalorder %s23, %s24
      %p35 = scmp.eq.s32.totalorder %s15, 0
      %p36 = por %p34, %p35
      %p37 = scmp.ne.s32.totalorder %s23, %s24
      %p38 = scmp.eq.s32.totalorder %s16, 1
      %p39 = por %p37, %p38
      %p41 = scmp.ne.s32.totalorder %s24, %s40
      %p42 = scmp.eq.s32.totalorder %s16, 0
      %p43 = por %p41, %p42
      %s45 = sadd.s32 %s44, 1
      %p48 = scmp.eq.s32.totalorder %s10, 1
      %p49 = scmp.ne.s32.totalorder %s44, %s46
      %p50 = scmp.eq.s32.totalorder %s10, 0
      %p51 = por %p49, %p50
      %p52 = scmp.ne.s32.totalorder %s44, %s46
      %p53 = scmp.eq.s32.totalorder %s15, 1
      %p54 = por %p52, %p53
      %p55 = scmp.ne.s32.totalorder %s46, %s47
      %p56 = scmp.eq.s32.totalorder %s15, 0
      %p57 = por %p55, %p56
      %p58 = scmp.ne.s32.totalorder %s46, %s47
      %p59 = scmp.eq.s32.totalorder %s16, 1
      %p60 = por %p58, %p59
      %p62 = scmp.ne.s32.totalorder %s47, %s61
      %p63 = scmp.eq.s32.totalorder %s16, 0
      %p64 = por %p62, %p63
      %s66 = sadd.s32 %s65, 1
      %p69 = scmp.eq.s32.totalorder %s10, 1
      %p70 = scmp.ne.s32.totalorder %s65, %s67
      %p71 = scmp.eq.s32.totalorder %s10, 0
      %p72 = por %p70, %p71
      %p73 = scmp.ne.s32.totalorder %s65, %s67
      %p74 = scmp.eq.s32.totalorder %s15, 1
      %p75 = por %p73, %p74
      %p76 = scmp.ne.s32.totalorder %s67, %s68
      %p77 = scmp.eq.s32.totalorder %s15, 0
      %p78 = por %p76, %p77
      %p79 = scmp.ne.s32.totalorder %s67, %s68
      %p80 = scmp.eq.s32.totalorder %s16, 1
      %p81 = por %p79, %p80
      %p83 = scmp.ne.s32.totalorder %s68, %s82
      %p84 = scmp.eq.s32.totalorder %s16, 0
      %p85 = por %p83, %p84
      %s87 = sadd.s32 %s86, 1
      %p90 = scmp.eq.s32.totalorder %s10, 1
      %p91 = scmp.ne.s32.totalorder %s86, %s88
      %p92 = scmp.eq.s32.totalorder %s10, 0
      %p93 = por %p91, %p92
      %p94 = scmp.ne.s32.totalorder %s86, %s88
      %p95 = scmp.eq.s32.totalorder %s15, 1
      %p96 = por %p94, %p95
      %p97 = scmp.ne.s32.totalorder %s88, %s89
      %p98 = scmp.eq.s32.totalorder %s15, 0
      %p99 = por %p97, %p98
      %p100 = scmp.ne.s32.totalorder %s88, %s89
      %p101 = scmp.eq.s32.totalorder %s16, 1
      %p102 = por %p100, %p101
      %p104 = scmp.ne.s32.totalorder %s89, %s103
      %p105 = scmp.eq.s32.totalorder %s16, 0
      %p106 = por %p104, %p105
      %s107 = ssub.s32 %s10, %s17
      %p108 = scmp.eq.s32.totalorder %s107, 0
      %s110 = sadd.s32 %s109, 1
      %s111 = scalar_select %p108, %s109, %s110
      %p114 = pneg %p108
      %p115 = scmp.eq.s32.totalorder %s10, 1
      %p116 = por %p114, %p115
      %p117 = scmp.ne.s32.totalorder %s109, %s112
      %p118 = scmp.eq.s32.totalorder %s10, 0
      %p119 = por %p117, %p118
      %p120 = scmp.ne.s32.totalorder %s109, %s112
      %p121 = scmp.eq.s32.totalorder %s15, 1
      %p122 = por %p120, %p121
      %p123 = scmp.ne.s32.totalorder %s112, %s113
      %p124 = scmp.eq.s32.totalorder %s15, 0
      %p125 = por %p123, %p124
      %p126 = scmp.ne.s32.totalorder %s112, %s113
      %p127 = scmp.eq.s32.totalorder %s16, 1
      %p128 = por %p126, %p127
      %p130 = scmp.ne.s32.totalorder %s113, %s129
      %p131 = scmp.eq.s32.totalorder %s16, 0
      %p132 = por %p130, %p131
      %p133 = scmp.le.s32.totalorder 1, %s10
      %p134 = scmp.lt.s32.totalorder %s10, 3
      %p135 = pnand %p133, %p134
      %p136 = pneg %p135
      // Predicated region
      $region9: #{_lambda_.16} parent=5 // pred_check
        _
      $region10: #{_lambda_.16} parent=5 // pred_check_branch
        %138 = sbr.rel (%p135) target = $region12
      $region11: #{_lambda_.16} parent=5 // pred_region
        %s139 = ssub.s32 %s10, 1
        // Predicated region
        $region13: #{_lambda_.16} parent=11 // pred_check
          %p140 = pneg %p57
        $region14: #{_lambda_.16} parent=11 // pred_check_branch
          %142 = sbr.rel (%p140) target = $region16
        $region15: #{_lambda_.16} parent=11 // pred_region
          _
        $region16: #{_lambda_.16} parent=11 // pred_fallthru
          _
        // Predicated region
        $region17: #{_lambda_.16} parent=11 // pred_check
          %p143 = pneg %p78
        $region18: #{_lambda_.16} parent=11 // pred_check_branch
          %145 = sbr.rel (%p143) target = $region20
        $region19: #{_lambda_.16} parent=11 // pred_region
          _
        $region20: #{_lambda_.16} parent=11 // pred_fallthru
          _
        // Predicated region
        $region21: #{_lambda_.16} parent=11 // pred_check
          %p146 = pneg %p99
        $region22: #{_lambda_.16} parent=11 // pred_check_branch
          %148 = sbr.rel (%p146) target = $region24
        $region23: #{_lambda_.16} parent=11 // pred_region
          _
        $region24: #{_lambda_.16} parent=11 // pred_fallthru
          _
      $region12: #{_lambda_.16} parent=5 // pred_fallthru
        _
      %p149 = scmp.lt.s32.totalorder %s10, 2
      // Predicated region
      $region25: #{_lambda_.16} parent=5 // pred_check
        %p150 = pneg %p149
      $region26: #{_lambda_.16} parent=5 // pred_check_branch
        %152 = sbr.rel (%p150) target = $region28
      $region27: #{_lambda_.16} parent=5 // pred_region
        // Predicated region
        $region29: #{_lambda_.16} parent=27 // pred_check
          %p153 = pneg %p30
        $region30: #{_lambda_.16} parent=27 // pred_check_branch
          %155 = sbr.rel (%p153) target = $region32
        $region31: #{_lambda_.16} parent=27 // pred_region
          %s156 = sand.u32 %s20, 1
          %s157 = sand.u32 %s20, 1
          %s158 = smul.addr %s157, 72
          %s159 = scalar_lea.vmem [#allocation2], %s158
          %s160 = smul.u32 2, %s10
          %s161 = smul.addr %s160, 4
          %s162 = scalar_lea.vmem %s0, %s161
          // Predicated region
          $region33: #{_lambda_.16} parent=31 // pred_check
            _
          $region34: #{_lambda_.16} parent=31 // pred_check_branch
            %164 = sbr.rel (0) target = $region36
          $region35: #{_lambda_.16} parent=31 // pred_region
            // Predicated region
            $region37: #{_lambda_.16} parent=35 // pred_check
              _
            $region38: #{_lambda_.16} parent=35 // pred_check_branch
              %166 = sbr.rel (0) target = $region40
            $region39: #{_lambda_.16} parent=35 // pred_region
              // Predicated region
              $region52: #{_lambda_.16} parent=39 // pred_check
                _
              $region53: #{_lambda_.16} parent=39 // pred_check_branch
                %198 = sbr.rel (0) target = $region55
              $region54: #{_lambda_.16} parent=39 // pred_region
                loop: start=0, step=1, limit=1
                $region56: #{_lambda_.16} parent=54 // loop_pre_header
                  _
                $region57: #{_lambda_.16} parent=54 // loop_header
                  %s200 = sphi 0, %s204
                  %p201 = scmp.ge.s32.totalorder %s200, 1
                  %s205 = sphi %s162, %s162
                  %s206 = sphi %s159, %s159
                $region58: #{_lambda_.16} parent=54 // loop_header_branch
                  %203 = sbr.rel (%p201) target = $region62
                $region59: #{_lambda_.16} parent=54 // loop_body
                  %v207 = vld [vmem:[%s205] sm:$0xff]
                  %208 = vst [vmem:[%s206] sm:$0xff] %v207
                  %v209 = vld [vmem:[%s205 + $0x10] sm:$0xff]
                  %210 = vst [vmem:[%s206 + $0x8] sm:$0xff] %v209
                  %v211 = vld [vmem:[%s205 + $0x20] sm:$0xff]
                  %212 = vst [vmem:[%s206 + $0x10] sm:$0xff] %v211
                  %v213 = vld [vmem:[%s205 + $0x30] sm:$0xff]
                  %214 = vst [vmem:[%s206 + $0x18] sm:$0xff] %v213
                  %v215 = vld [vmem:[%s205 + $0x40] sm:$0xff]
                  %216 = vst [vmem:[%s206 + $0x20] sm:$0xff] %v215
                  %v217 = vld [vmem:[%s205 + $0x50] sm:$0xff]
                  %218 = vst [vmem:[%s206 + $0x28] sm:$0xff] %v217
                  %v219 = vld [vmem:[%s205 + $0x60] sm:$0xff]
                  %220 = vst [vmem:[%s206 + $0x30] sm:$0xff] %v219
                  %v221 = vld [vmem:[%s205 + $0x70] sm:$0xff]
                  %222 = vst [vmem:[%s206 + $0x38] sm:$0xff] %v221
                  %v223 = vld [vmem:[%s205 + $0x80] sm:$0xff]
                  %224 = vst [vmem:[%s206 + $0x40] sm:$0xff] %v223
                $region60: #{_lambda_.16} parent=54 // loop_footer
                  %s204 = sadd.s32 1, %s200
                $region61: #{_lambda_.16} parent=54 // loop_footer_branch
                  %199 = sbr.rel target = $region57
                $region62: #{_lambda_.16} parent=54 // loop_exit
                  _
              $region55: #{_lambda_.16} parent=39 // pred_fallthru
                _
              // Predicated region
              $region63: #{_lambda_.16} parent=39 // pred_check
                _
              $region64: #{_lambda_.16} parent=39 // pred_check_branch
                %226 = sbr.rel target = $region66
              $region65: #{_lambda_.16} parent=39 // pred_region
                _
              $region66: #{_lambda_.16} parent=39 // pred_fallthru
                _
            $region40: #{_lambda_.16} parent=35 // pred_fallthru
              _
            // Predicated region
            $region41: #{_lambda_.16} parent=35 // pred_check
              _
            $region42: #{_lambda_.16} parent=35 // pred_check_branch
              %168 = sbr.rel target = $region44
            $region43: #{_lambda_.16} parent=35 // pred_region
              %s170 = ssub.s32 256, 1
              loop: start=0, step=1, limit=1
              $region45: #{_lambda_.16} parent=43 // loop_pre_header
                _
              $region46: #{_lambda_.16} parent=43 // loop_header
                %s172 = sphi 0, %s176
                %p173 = scmp.ge.s32.totalorder %s172, 1
                %s177 = sphi %s162, %s162
                %s178 = sphi %s159, %s159
              $region47: #{_lambda_.16} parent=43 // loop_header_branch
                %175 = sbr.rel (%p173) target = $region51
              $region48: #{_lambda_.16} parent=43 // loop_body
                %v179 = vld [vmem:[%s177] sm:%s170]
                %180 = vst [vmem:[%s178] sm:%s170] %v179
                %v181 = vld [vmem:[%s177 + $0x10] sm:%s170]
                %182 = vst [vmem:[%s178 + $0x8] sm:%s170] %v181
                %v183 = vld [vmem:[%s177 + $0x20] sm:%s170]
                %184 = vst [vmem:[%s178 + $0x10] sm:%s170] %v183
                %v185 = vld [vmem:[%s177 + $0x30] sm:%s170]
                %186 = vst [vmem:[%s178 + $0x18] sm:%s170] %v185
                %v187 = vld [vmem:[%s177 + $0x40] sm:%s170]
                %188 = vst [vmem:[%s178 + $0x20] sm:%s170] %v187
                %v189 = vld [vmem:[%s177 + $0x50] sm:%s170]
                %190 = vst [vmem:[%s178 + $0x28] sm:%s170] %v189
                %v191 = vld [vmem:[%s177 + $0x60] sm:%s170]
                %192 = vst [vmem:[%s178 + $0x30] sm:%s170] %v191
                %v193 = vld [vmem:[%s177 + $0x70] sm:%s170]
                %194 = vst [vmem:[%s178 + $0x38] sm:%s170] %v193
                %v195 = vld [vmem:[%s177 + $0x80] sm:%s170]
                %196 = vst [vmem:[%s178 + $0x40] sm:%s170] %v195
              $region49: #{_lambda_.16} parent=43 // loop_footer
                %s176 = sadd.s32 1, %s172
              $region50: #{_lambda_.16} parent=43 // loop_footer_branch
                %171 = sbr.rel target = $region46
              $region51: #{_lambda_.16} parent=43 // loop_exit
                _
            $region44: #{_lambda_.16} parent=35 // pred_fallthru
              _
          $region36: #{_lambda_.16} parent=31 // pred_fallthru
            _
          %227 = vnop
        $region32: #{_lambda_.16} parent=27 // pred_fallthru
          _
      $region28: #{_lambda_.16} parent=5 // pred_fallthru
        _
      %p228 = scmp.le.s32.totalorder 1, %s10
      %p229 = scmp.lt.s32.totalorder %s10, 3
      %p230 = pnand %p228, %p229
      %p231 = pneg %p230
      // Predicated region
      $region67: #{_lambda_.16} parent=5 // pred_check
        _
      $region68: #{_lambda_.16} parent=5 // pred_check_branch
        %233 = sbr.rel (%p230) target = $region70
      $region69: #{_lambda_.16} parent=5 // pred_region
        %s234 = ssub.s32 %s10, 1
        %s235 = sand.u32 %s23, 1
        %s236 = sand.u32 %s23, 1
        %s237 = smul.addr %s236, 72
        %s238 = scalar_lea.vmem [#allocation2], %s237
        // Predicated region
        $region71: #{_lambda_.16} parent=69 // pred_check
          %p239 = pneg %p36
        $region72: #{_lambda_.16} parent=69 // pred_check_branch
          %241 = sbr.rel (%p239) target = $region74
        $region73: #{_lambda_.16} parent=69 // pred_region
          _
        $region74: #{_lambda_.16} parent=69 // pred_fallthru
          _
        %s242 = sand.u32 %s23, 1
        %s243 = sand.u32 %s23, 1
        %s244 = smul.addr %s243, 72
        %s245 = scalar_lea.vmem [#allocation2], %s244
        %p246 = pneg %p36
        %p247 = pneg %p33
        %p248 = pneg %p57
        %p249 = pneg %p54
        %p250 = pneg %p78
        %p251 = pneg %p75
        %p252 = pneg %p99
        %p253 = pneg %p96
        %p254 = pneg %p125
        %p255 = pneg %p122
        %s256 = sand.u32 %s112, 1
        %s257 = sand.u32 %s112, 1
        %s258 = smul.addr %s257, 32
        %s259 = scalar_lea.vmem [#allocation3], %s258
        %s260 = smul.u32 2, %s15
        %s261 = smul.u32 2, %s15
        %v263 = vld [vmem:[%s1] sm:$0xf]
        %v264 = vld [vmem:[%s1 + $0x4] sm:$0xf]
        %v265 = vld [vmem:[%s238] sm:$0xff]
        %v266 = vld [vmem:[%s238 + $0x8] sm:$0xff]
        %v267 = vld [vmem:[%s238 + $0x10] sm:$0xff]
        %v268 = vld [vmem:[%s238 + $0x18] sm:$0xff]
        %v269 = vld [vmem:[%s238 + $0x20] sm:$0xff]
        %v270 = vld [vmem:[%s238 + $0x28] sm:$0xff]
        %v271 = vld [vmem:[%s238 + $0x30] sm:$0xff]
        %v272 = vld [vmem:[%s238 + $0x38] sm:$0xff]
        %v273 = vld [vmem:[%s238 + $0x40] sm:$0xff]
        %v276 = vunpack.c.l.b16 %v263
        %v277 = vunpack.c.l.b16 %v264
        %v278 = vpack.c.b16 %v277, %v276
        %v288 = vunpack.c.l.b16 %v265
        %v289 = vunpack.c.h.b16 %v265
        %v290 = vunpack.c.l.b16 %v266
        %v291 = vunpack.c.h.b16 %v266
        %v292 = vunpack.c.l.b16 %v267
        %v293 = vunpack.c.h.b16 %v267
        %v294 = vunpack.c.l.b16 %v268
        %v295 = vunpack.c.h.b16 %v268
        %v296 = vunpack.c.l.b16 %v269
        %v297 = vunpack.c.h.b16 %v269
        %v298 = vunpack.c.l.b16 %v270
        %v299 = vunpack.c.h.b16 %v270
        %v300 = vunpack.c.l.b16 %v271
        %v301 = vunpack.c.h.b16 %v271
        %v302 = vunpack.c.l.b16 %v272
        %v303 = vunpack.c.h.b16 %v272
        %v304 = vunpack.c.l.b16 %v273
        %v305 = vunpack.c.h.b16 %v273
        %v306 = vpack.c.b16 %v290, %v288
        %v307 = vpack.c.b16 %v291, %v289
        %v308 = vpack.c.b16 %v294, %v292
        %v309 = vpack.c.b16 %v295, %v293
        %v310 = vpack.c.b16 %v298, %v296
        %v311 = vpack.c.b16 %v299, %v297
        %v312 = vpack.c.b16 %v302, %v300
        %v313 = vpack.c.b16 %v303, %v301
        %v314 = vpack.c.b16 %v304, %v304
        %v315 = vpack.c.b16 %v305, %v305
        %vm324 = vcmask 588800
        %v326 = vsel %vm324, %v278, 0
        %vm328 = vcmask 1043456
        %v330 = vsel %vm328, %v314, 0
        %v333 = vsel %vm328, %v315, 0
        %335 = vmatpush.bf16.msra.mxu0 0
        %336 = vmatpush.bf16.msra.mxu0 0
        %337 = vmatpush.bf16.msra.mxu0 0
        %338 = vmatpush.bf16.msra.mxu0 %v330
        %339 = vmatpush.bf16.msra.mxu0 %v312
        %340 = vmatpush.bf16.msra.mxu0 %v310
        %341 = vmatpush.bf16.msra.mxu0 %v308
        %342 = vmatpush.bf16.msra.mxu0 %v306
        %343 = vmatmul.bf16.gmra.mxu0 %v326
        %v344 = vpop.f32.mrf.mxu0
        %v345 = vadd.f32 0.0, %v344
        %v346 = vpop.f32.mrf.mxu0
        %v347 = vadd.f32 0.0, %v346
        %348 = vdwg.mxu0
        %349 = vmatpush.bf16.msra.mxu0 0
        %350 = vmatpush.bf16.msra.mxu0 0
        %351 = vmatpush.bf16.msra.mxu0 0
        %352 = vmatpush.bf16.msra.mxu0 %v333
        %353 = vmatpush.bf16.msra.mxu0 %v313
        %354 = vmatpush.bf16.msra.mxu0 %v311
        %355 = vmatpush.bf16.msra.mxu0 %v309
        %356 = vmatpush.bf16.msra.mxu0 %v307
        %357 = vmatmul.bf16.gmra.mxu0 %v326
        %v358 = vpop.f32.mrf.mxu0
        %v359 = vadd.f32 0.0, %v358
        %v360 = vpop.f32.mrf.mxu0
        %v361 = vadd.f32 0.0, %v360
        %362 = vdwg.mxu0
        %v363 = vld [vmem:[%s2] sm:$0xff]
        %v364 = vld [vmem:[%s2 + $0x8] sm:$0xff]
        %366 = vset.pattern.permute.xlu0 0
        %367 = vperm.xlu0 %366, %v363
        %v368 = vpop.permute.xlu0 %367
        %371 = vset.pattern.permute.xlu0 0
        %372 = vperm.xlu0 %371, %v364
        %v373 = vpop.permute.xlu0 %372
        %v375 = vmul.f32 %v345, %v368
        %v376 = vmul.f32 %v359, %v368
        %v377 = vmul.f32 %v347, %v373
        %v378 = vmul.f32 %v361, %v373
        %v379 = vld [vmem:[%s3] sm:$0xff]
        %v380 = vld [vmem:[%s3 + $0x8] sm:$0xff]
        %382 = vset.pattern.permute.xlu0 0
        %383 = vperm.xlu0 %382, %v379
        %v384 = vpop.permute.xlu0 %383
        %387 = vset.pattern.permute.xlu0 0
        %388 = vperm.xlu0 %387, %v380
        %v389 = vpop.permute.xlu0 %388
        %v391 = vadd.f32 %v375, %v384
        %v392 = vadd.f32 %v376, %v384
        %v393 = vadd.f32 %v377, %v389
        %v394 = vadd.f32 %v378, %v389
        %v395 = vmax.f32 %v391, 0.0
        %v396 = vmax.f32 %v392, 0.0
        %v397 = vmax.f32 %v393, 0.0
        %v398 = vmax.f32 %v394, 0.0
        %399 = vst [vmem:[%s259] sm:$0xff] %v395
        %400 = vst [vmem:[%s259 + $0x8] sm:$0xff] %v396
        %401 = vst [vmem:[%s259 + $0x10] sm:$0xff] %v397
        %402 = vst [vmem:[%s259 + $0x18] sm:$0xff] %v398
        %s403 = sand.u32 %s112, 1
        %s404 = sand.u32 %s112, 1
        %s405 = smul.addr %s404, 32
        %s406 = scalar_lea.vmem [#allocation3], %s405
        // Predicated region
        $region75: #{_lambda_.16} parent=69 // pred_check
          %p407 = pneg %p122
        $region76: #{_lambda_.16} parent=69 // pred_check_branch
          %409 = sbr.rel (%p407) target = $region78
        $region77: #{_lambda_.16} parent=69 // pred_region
          %s410 = smul.u32 2, %s15
          %s411 = smul.addr %s410, 8
          %s412 = scalar_lea.vmem %s4, %s411
          // Predicated region
          $region79: #{_lambda_.16} parent=77 // pred_check
            _
          $region80: #{_lambda_.16} parent=77 // pred_check_branch
            %414 = sbr.rel (0) target = $region82
          $region81: #{_lambda_.16} parent=77 // pred_region
            // Predicated region
            $region83: #{_lambda_.16} parent=81 // pred_check
              _
            $region84: #{_lambda_.16} parent=81 // pred_check_branch
              %416 = sbr.rel (0) target = $region86
            $region85: #{_lambda_.16} parent=81 // pred_region
              loop: start=0, step=1, limit=1
              $region87: #{_lambda_.16} parent=85 // loop_pre_header
                _
              $region88: #{_lambda_.16} parent=85 // loop_header
                %s418 = sphi 0, %s422
                %p419 = scmp.ge.s32.totalorder %s418, 1
                %s423 = sphi %s406, %s406
                %s424 = sphi %s412, %s412
              $region89: #{_lambda_.16} parent=85 // loop_header_branch
                %421 = sbr.rel (%p419) target = $region93
              $region90: #{_lambda_.16} parent=85 // loop_body
                %v425 = vld [vmem:[%s423] sm:$0xff]
                %426 = vst [vmem:[%s424] sm:$0xff] %v425
                %v427 = vld [vmem:[%s423 + $0x8] sm:$0xff]
                %428 = vst [vmem:[%s424 + $0x8] sm:$0xff] %v427
                %v429 = vld [vmem:[%s423 + $0x10] sm:$0xff]
                %430 = vst [vmem:[%s424 + $0x20] sm:$0xff] %v429
                %v431 = vld [vmem:[%s423 + $0x18] sm:$0xff]
                %432 = vst [vmem:[%s424 + $0x28] sm:$0xff] %v431
              $region91: #{_lambda_.16} parent=85 // loop_footer
                %s422 = sadd.s32 1, %s418
              $region92: #{_lambda_.16} parent=85 // loop_footer_branch
                %417 = sbr.rel target = $region88
              $region93: #{_lambda_.16} parent=85 // loop_exit
                _
            $region86: #{_lambda_.16} parent=81 // pred_fallthru
              _
            // Predicated region
            $region94: #{_lambda_.16} parent=81 // pred_check
              _
            $region95: #{_lambda_.16} parent=81 // pred_check_branch
              %434 = sbr.rel target = $region97
            $region96: #{_lambda_.16} parent=81 // pred_region
              _
            $region97: #{_lambda_.16} parent=81 // pred_fallthru
              _
          $region82: #{_lambda_.16} parent=77 // pred_fallthru
            _
          %435 = vnop
        $region78: #{_lambda_.16} parent=69 // pred_fallthru
          _
      $region70: #{_lambda_.16} parent=5 // pred_fallthru
        _
      %p436 = scmp.le.s32.totalorder 2, %s10
      // Predicated region
      $region98: #{_lambda_.16} parent=5 // pred_check
        %p437 = pneg %p436
      $region99: #{_lambda_.16} parent=5 // pred_check_branch
        %439 = sbr.rel (%p437) target = $region101
      $region100: #{_lambda_.16} parent=5 // pred_region
        %s440 = ssub.s32 %s10, 2
        // Predicated region
        $region102: #{_lambda_.16} parent=100 // pred_check
          %p441 = pneg %p128
        $region103: #{_lambda_.16} parent=100 // pred_check_branch
          %443 = sbr.rel (%p441) target = $region105
        $region104: #{_lambda_.16} parent=100 // pred_region
          %s444 = sand.u32 %s113, 1
          %s445 = sand.u32 %s113, 1
          %s446 = smul.addr %s445, 32
          %s447 = scalar_lea.vmem [#allocation3], %s446
        $region105: #{_lambda_.16} parent=100 // pred_fallthru
          _
      $region101: #{_lambda_.16} parent=5 // pred_fallthru
        _
    $region6: #{_lambda_.16} parent=1 // loop_footer
      %s14 = sadd.s32 1, %s10
    $region7: #{_lambda_.16} parent=1 // loop_footer_branch
      %9 = sbr.rel target = $region3
    $region8: #{_lambda_.16} parent=1 // loop_exit
      _

// kernel: _lambda_.17
$region0: #{_lambda_.17}
  #allocation0 [shape = 'u32[]', space=smem, size = 0x4, offset = 0x4, fixed_abs, tag = 'smem constant byte address 0x4 - core index']
  #allocation1 [shape = 'u32[72,128]{1,0:T(1,128)}', space=vmem, size = 0x9000, scoped, tag = 'internal scratch']
  %s0 = inlined_call_operand.vmem [shape: bf16[144,256], index: 0, kind: input, shape index: {}]
  %s1 = inlined_call_operand.vmem [shape: bf16[16,144], index: 1, kind: input, shape index: {}]
  %s2 = inlined_call_operand.vmem [shape: f32[16,1], index: 2, kind: input, shape index: {}]
  %s3 = inlined_call_operand.vmem [shape: f32[16,1], index: 3, kind: input, shape index: {}]
  %s4 = inlined_call_operand.vmem [shape: f32[16,256], index: 4, kind: output, shape index: {}]
  %s5 = sld [smem:[#allocation0]]
  $region124: #{_lambda_.17} parent=0
    _
  %s7 = ssub.s32 1, %s5
  %s8 = scalar_select 0, %s7, %s5
  $region1: #{_lambda_.17} parent=0
    #allocation2 [shape = 'u8[73728]{0}', space=vmem, size = 0x12000, scoped, tag = 'input window, operand 0']
    #allocation3 [shape = 'u8[16384]{0}', space=vmem, size = 0x4000, scoped, tag = 'output window, operand 0']
    loop: start=0, step=1, limit=4
    $region2: #{_lambda_.17} parent=1 // loop_pre_header
      _
    $region3: #{_lambda_.17} parent=1 // loop_header
      %s10 = sphi 0, %s14
      %p11 = scmp.ge.s32.totalorder %s10, 4
      %s20 = sphi 0, %s22
      %s23 = sphi 0, %s20
      %s24 = sphi 0, %s23
      %s40 = sphi 0, %s24
      %s44 = sphi 0, %s44
      %s46 = sphi 0, %s44
      %s47 = sphi 0, %s46
      %s61 = sphi 0, %s47
      %s65 = sphi 0, %s65
      %s67 = sphi 0, %s65
      %s68 = sphi 0, %s67
      %s82 = sphi 0, %s68
      %s86 = sphi 0, %s86
      %s88 = sphi 0, %s86
      %s89 = sphi 0, %s88
      %s103 = sphi 0, %s89
      %s109 = sphi 0, %s111
      %s112 = sphi 0, %s109
      %s113 = sphi 0, %s112
      %s129 = sphi 0, %s113
    $region4: #{_lambda_.17} parent=1 // loop_header_branch
      %13 = sbr.rel (%p11) target = $region8
    $region5: #{_lambda_.17} parent=1 // loop_body
      %s15 = ssub.s32 %s10, 1
      %s16 = ssub.s32 %s10, 2
      %s17 = sadd.s32 %s10, 1
      %s18 = ssub.s32 %s10, %s17
      %p19 = scmp.eq.s32.totalorder %s18, 0
      %s21 = sadd.s32 %s20, 1
      %s22 = scalar_select %p19, %s20, %s21
      %p25 = pneg %p19
      %p26 = scmp.eq.s32.totalorder %s10, 1
      %p27 = por %p25, %p26
      %p28 = scmp.ne.s32.totalorder %s20, %s23
      %p29 = scmp.eq.s32.totalorder %s10, 0
      %p30 = por %p28, %p29
      %p31 = scmp.ne.s32.totalorder %s20, %s23
      %p32 = scmp.eq.s32.totalorder %s15, 1
      %p33 = por %p31, %p32
      %p34 = scmp.ne.s32.totalorder %s23, %s24
      %p35 = scmp.eq.s32.totalorder %s15, 0
      %p36 = por %p34, %p35
      %p37 = scmp.ne.s32.totalorder %s23, %s24
      %p38 = scmp.eq.s32.totalorder %s16, 1
      %p39 = por %p37, %p38
      %p41 = scmp.ne.s32.totalorder %s24, %s40
      %p42 = scmp.eq.s32.totalorder %s16, 0
      %p43 = por %p41, %p42
      %s45 = sadd.s32 %s44, 1
      %p48 = scmp.eq.s32.totalorder %s10, 1
      %p49 = scmp.ne.s32.totalorder %s44, %s46
      %p50 = scmp.eq.s32.totalorder %s10, 0
      %p51 = por %p49, %p50
      %p52 = scmp.ne.s32.totalorder %s44, %s46
      %p53 = scmp.eq.s32.totalorder %s15, 1
      %p54 = por %p52, %p53
      %p55 = scmp.ne.s32.totalorder %s46, %s47
      %p56 = scmp.eq.s32.totalorder %s15, 0
      %p57 = por %p55, %p56
      %p58 = scmp.ne.s32.totalorder %s46, %s47
      %p59 = scmp.eq.s32.totalorder %s16, 1
      %p60 = por %p58, %p59
      %p62 = scmp.ne.s32.totalorder %s47, %s61
      %p63 = scmp.eq.s32.totalorder %s16, 0
      %p64 = por %p62, %p63
      %s66 = sadd.s32 %s65, 1
      %p69 = scmp.eq.s32.totalorder %s10, 1
      %p70 = scmp.ne.s32.totalorder %s65, %s67
      %p71 = scmp.eq.s32.totalorder %s10, 0
      %p72 = por %p70, %p71
      %p73 = scmp.ne.s32.totalorder %s65, %s67
      %p74 = scmp.eq.s32.totalorder %s15, 1
      %p75 = por %p73, %p74
      %p76 = scmp.ne.s32.totalorder %s67, %s68
      %p77 = scmp.eq.s32.totalorder %s15, 0
      %p78 = por %p76, %p77
      %p79 = scmp.ne.s32.totalorder %s67, %s68
      %p80 = scmp.eq.s32.totalorder %s16, 1
      %p81 = por %p79, %p80
      %p83 = scmp.ne.s32.totalorder %s68, %s82
      %p84 = scmp.eq.s32.totalorder %s16, 0
      %p85 = por %p83, %p84
      %s87 = sadd.s32 %s86, 1
      %p90 = scmp.eq.s32.totalorder %s10, 1
      %p91 = scmp.ne.s32.totalorder %s86, %s88
      %p92 = scmp.eq.s32.totalorder %s10, 0
      %p93 = por %p91, %p92
      %p94 = scmp.ne.s32.totalorder %s86, %s88
      %p95 = scmp.eq.s32.totalorder %s15, 1
      %p96 = por %p94, %p95
      %p97 = scmp.ne.s32.totalorder %s88, %s89
      %p98 = scmp.eq.s32.totalorder %s15, 0
      %p99 = por %p97, %p98
      %p100 = scmp.ne.s32.totalorder %s88, %s89
      %p101 = scmp.eq.s32.totalorder %s16, 1
      %p102 = por %p100, %p101
      %p104 = scmp.ne.s32.totalorder %s89, %s103
      %p105 = scmp.eq.s32.totalorder %s16, 0
      %p106 = por %p104, %p105
      %s107 = ssub.s32 %s10, %s17
      %p108 = scmp.eq.s32.totalorder %s107, 0
      %s110 = sadd.s32 %s109, 1
      %s111 = scalar_select %p108, %s109, %s110
      %p114 = pneg %p108
      %p115 = scmp.eq.s32.totalorder %s10, 1
      %p116 = por %p114, %p115
      %p117 = scmp.ne.s32.totalorder %s109, %s112
      %p118 = scmp.eq.s32.totalorder %s10, 0
      %p119 = por %p117, %p118
      %p120 = scmp.ne.s32.totalorder %s109, %s112
      %p121 = scmp.eq.s32.totalorder %s15, 1
      %p122 = por %p120, %p121
      %p123 = scmp.ne.s32.totalorder %s112, %s113
      %p124 = scmp.eq.s32.totalorder %s15, 0
      %p125 = por %p123, %p124
      %p126 = scmp.ne.s32.totalorder %s112, %s113
      %p127 = scmp.eq.s32.totalorder %s16, 1
      %p128 = por %p126, %p127
      %p130 = scmp.ne.s32.totalorder %s113, %s129
      %p131 = scmp.eq.s32.totalorder %s16, 0
      %p132 = por %p130, %p131
      %p133 = scmp.le.s32.totalorder 1, %s10
      %p134 = scmp.lt.s32.totalorder %s10, 3
      %p135 = pnand %p133, %p134
      %p136 = pneg %p135
      // Predicated region
      $region9: #{_lambda_.17} parent=5 // pred_check
        _
      $region10: #{_lambda_.17} parent=5 // pred_check_branch
        %138 = sbr.rel (%p135) target = $region12
      $region11: #{_lambda_.17} parent=5 // pred_region
        %s139 = ssub.s32 %s10, 1
        // Predicated region
        $region13: #{_lambda_.17} parent=11 // pred_check
          %p140 = pneg %p57
        $region14: #{_lambda_.17} parent=11 // pred_check_branch
          %142 = sbr.rel (%p140) target = $region16
        $region15: #{_lambda_.17} parent=11 // pred_region
          _
        $region16: #{_lambda_.17} parent=11 // pred_fallthru
          _
        // Predicated region
        $region17: #{_lambda_.17} parent=11 // pred_check
          %p143 = pneg %p78
        $region18: #{_lambda_.17} parent=11 // pred_check_branch
          %145 = sbr.rel (%p143) target = $region20
        $region19: #{_lambda_.17} parent=11 // pred_region
          _
        $region20: #{_lambda_.17} parent=11 // pred_fallthru
          _
        // Predicated region
        $region21: #{_lambda_.17} parent=11 // pred_check
          %p146 = pneg %p99
        $region22: #{_lambda_.17} parent=11 // pred_check_branch
          %148 = sbr.rel (%p146) target = $region24
        $region23: #{_lambda_.17} parent=11 // pred_region
          _
        $region24: #{_lambda_.17} parent=11 // pred_fallthru
          _
      $region12: #{_lambda_.17} parent=5 // pred_fallthru
        _
      %p149 = scmp.lt.s32.totalorder %s10, 2
      // Predicated region
      $region25: #{_lambda_.17} parent=5 // pred_check
        %p150 = pneg %p149
      $region26: #{_lambda_.17} parent=5 // pred_check_branch
        %152 = sbr.rel (%p150) target = $region28
      $region27: #{_lambda_.17} parent=5 // pred_region
        // Predicated region
        $region29: #{_lambda_.17} parent=27 // pred_check
          %p153 = pneg %p30
        $region30: #{_lambda_.17} parent=27 // pred_check_branch
          %155 = sbr.rel (%p153) target = $region32
        $region31: #{_lambda_.17} parent=27 // pred_region
          %s156 = sand.u32 %s20, 1
          %s157 = sand.u32 %s20, 1
          %s158 = smul.addr %s157, 72
          %s159 = scalar_lea.vmem [#allocation2], %s158
          %s160 = smul.addr %s10, 4
          %s161 = scalar_lea.vmem %s0, %s160
          // Predicated region
          $region33: #{_lambda_.17} parent=31 // pred_check
            _
          $region34: #{_lambda_.17} parent=31 // pred_check_branch
            %163 = sbr.rel (0) target = $region36
          $region35: #{_lambda_.17} parent=31 // pred_region
            // Predicated region
            $region37: #{_lambda_.17} parent=35 // pred_check
              _
            $region38: #{_lambda_.17} parent=35 // pred_check_branch
              %165 = sbr.rel target = $region40
            $region39: #{_lambda_.17} parent=35 // pred_region
              // Predicated region
              $region52: #{_lambda_.17} parent=39 // pred_check
                _
              $region53: #{_lambda_.17} parent=39 // pred_check_branch
                %215 = sbr.rel (0) target = $region55
              $region54: #{_lambda_.17} parent=39 // pred_region
                loop: start=0, step=1, limit=1
                $region56: #{_lambda_.17} parent=54 // loop_pre_header
                  _
                $region57: #{_lambda_.17} parent=54 // loop_header
                  %s217 = sphi 0, %s221
                  %p218 = scmp.ge.s32.totalorder %s217, 1
                  %s222 = sphi %s161, %s161
                  %s223 = sphi %s159, %s159
                $region58: #{_lambda_.17} parent=54 // loop_header_branch
                  %220 = sbr.rel (%p218) target = $region62
                $region59: #{_lambda_.17} parent=54 // loop_body
                  _
                $region60: #{_lambda_.17} parent=54 // loop_footer
                  %s221 = sadd.s32 1, %s217
                $region61: #{_lambda_.17} parent=54 // loop_footer_branch
                  %216 = sbr.rel target = $region57
                $region62: #{_lambda_.17} parent=54 // loop_exit
                  _
                %s225 = ssub.s32 16, 1
                loop: start=0, step=1, limit=1
                $region63: #{_lambda_.17} parent=54 // loop_pre_header
                  _
                $region64: #{_lambda_.17} parent=54 // loop_header
                  %s227 = sphi 0, %s231
                  %p228 = scmp.ge.s32.totalorder %s227, 1
                  %s232 = sphi %s161, %s161
                  %s233 = sphi %s159, %s159
                $region65: #{_lambda_.17} parent=54 // loop_header_branch
                  %230 = sbr.rel (%p228) target = $region69
                $region66: #{_lambda_.17} parent=54 // loop_body
                  %v234 = vld [vmem:[%s232] sm:%s225]
                  %235 = vst [vmem:[%s233] sm:%s225] %v234
                  %v236 = vld [vmem:[%s232 + $0x8] sm:%s225]
                  %237 = vst [vmem:[%s233 + $0x4] sm:%s225] %v236
                  %v238 = vld [vmem:[%s232 + $0x10] sm:%s225]
                  %239 = vst [vmem:[%s233 + $0x8] sm:%s225] %v238
                  %v240 = vld [vmem:[%s232 + $0x18] sm:%s225]
                  %241 = vst [vmem:[%s233 + $0xc] sm:%s225] %v240
                  %v242 = vld [vmem:[%s232 + $0x20] sm:%s225]
                  %243 = vst [vmem:[%s233 + $0x10] sm:%s225] %v242
                  %v244 = vld [vmem:[%s232 + $0x28] sm:%s225]
                  %245 = vst [vmem:[%s233 + $0x14] sm:%s225] %v244
                  %v246 = vld [vmem:[%s232 + $0x30] sm:%s225]
                  %247 = vst [vmem:[%s233 + $0x18] sm:%s225] %v246
                  %v248 = vld [vmem:[%s232 + $0x38] sm:%s225]
                  %249 = vst [vmem:[%s233 + $0x1c] sm:%s225] %v248
                  %v250 = vld [vmem:[%s232 + $0x40] sm:%s225]
                  %251 = vst [vmem:[%s233 + $0x20] sm:%s225] %v250
                  %v252 = vld [vmem:[%s232 + $0x48] sm:%s225]
                  %253 = vst [vmem:[%s233 + $0x24] sm:%s225] %v252
                  %v254 = vld [vmem:[%s232 + $0x50] sm:%s225]
                  %255 = vst [vmem:[%s233 + $0x28] sm:%s225] %v254
                  %v256 = vld [vmem:[%s232 + $0x58] sm:%s225]
                  %257 = vst [vmem:[%s233 + $0x2c] sm:%s225] %v256
                  %v258 = vld [vmem:[%s232 + $0x60] sm:%s225]
                  %259 = vst [vmem:[%s233 + $0x30] sm:%s225] %v258
                  %v260 = vld [vmem:[%s232 + $0x68] sm:%s225]
                  %261 = vst [vmem:[%s233 + $0x34] sm:%s225] %v260
                  %v262 = vld [vmem:[%s232 + $0x70] sm:%s225]
                  %263 = vst [vmem:[%s233 + $0x38] sm:%s225] %v262
                  %v264 = vld [vmem:[%s232 + $0x78] sm:%s225]
                  %265 = vst [vmem:[%s233 + $0x3c] sm:%s225] %v264
                  %v266 = vld [vmem:[%s232 + $0x80] sm:%s225]
                  %267 = vst [vmem:[%s233 + $0x40] sm:%s225] %v266
                  %v268 = vld [vmem:[%s232 + $0x88] sm:%s225]
                  %269 = vst [vmem:[%s233 + $0x44] sm:%s225] %v268
                $region67: #{_lambda_.17} parent=54 // loop_footer
                  %s231 = sadd.s32 1, %s227
                $region68: #{_lambda_.17} parent=54 // loop_footer_branch
                  %226 = sbr.rel target = $region64
                $region69: #{_lambda_.17} parent=54 // loop_exit
                  _
              $region55: #{_lambda_.17} parent=39 // pred_fallthru
                _
            $region40: #{_lambda_.17} parent=35 // pred_fallthru
              _
            // Predicated region
            $region41: #{_lambda_.17} parent=35 // pred_check
              _
            $region42: #{_lambda_.17} parent=35 // pred_check_branch
              %167 = sbr.rel (0) target = $region44
            $region43: #{_lambda_.17} parent=35 // pred_region
              %s169 = ssub.s32 16, 1
              loop: start=0, step=1, limit=1
              $region45: #{_lambda_.17} parent=43 // loop_pre_header
                _
              $region46: #{_lambda_.17} parent=43 // loop_header
                %s171 = sphi 0, %s175
                %p172 = scmp.ge.s32.totalorder %s171, 1
                %s176 = sphi %s161, %s161
                %s177 = sphi %s159, %s159
              $region47: #{_lambda_.17} parent=43 // loop_header_branch
                %174 = sbr.rel (%p172) target = $region51
              $region48: #{_lambda_.17} parent=43 // loop_body
                %v178 = vld [vmem:[%s176] sm:%s169]
                %179 = vst [vmem:[%s177] sm:%s169] %v178
                %v180 = vld [vmem:[%s176 + $0x8] sm:%s169]
                %181 = vst [vmem:[%s177 + $0x4] sm:%s169] %v180
                %v182 = vld [vmem:[%s176 + $0x10] sm:%s169]
                %183 = vst [vmem:[%s177 + $0x8] sm:%s169] %v182
                %v184 = vld [vmem:[%s176 + $0x18] sm:%s169]
                %185 = vst [vmem:[%s177 + $0xc] sm:%s169] %v184
                %v186 = vld [vmem:[%s176 + $0x20] sm:%s169]
                %187 = vst [vmem:[%s177 + $0x10] sm:%s169] %v186
                %v188 = vld [vmem:[%s176 + $0x28] sm:%s169]
                %189 = vst [vmem:[%s177 + $0x14] sm:%s169] %v188
                %v190 = vld [vmem:[%s176 + $0x30] sm:%s169]
                %191 = vst [vmem:[%s177 + $0x18] sm:%s169] %v190
                %v192 = vld [vmem:[%s176 + $0x38] sm:%s169]
                %193 = vst [vmem:[%s177 + $0x1c] sm:%s169] %v192
                %v194 = vld [vmem:[%s176 + $0x40] sm:%s169]
                %195 = vst [vmem:[%s177 + $0x20] sm:%s169] %v194
                %v196 = vld [vmem:[%s176 + $0x48] sm:%s169]
                %197 = vst [vmem:[%s177 + $0x24] sm:%s169] %v196
                %v198 = vld [vmem:[%s176 + $0x50] sm:%s169]
                %199 = vst [vmem:[%s177 + $0x28] sm:%s169] %v198
                %v200 = vld [vmem:[%s176 + $0x58] sm:%s169]
                %201 = vst [vmem:[%s177 + $0x2c] sm:%s169] %v200
                %v202 = vld [vmem:[%s176 + $0x60] sm:%s169]
                %203 = vst [vmem:[%s177 + $0x30] sm:%s169] %v202
                %v204 = vld [vmem:[%s176 + $0x68] sm:%s169]
                %205 = vst [vmem:[%s177 + $0x34] sm:%s169] %v204
                %v206 = vld [vmem:[%s176 + $0x70] sm:%s169]
                %207 = vst [vmem:[%s177 + $0x38] sm:%s169] %v206
                %v208 = vld [vmem:[%s176 + $0x78] sm:%s169]
                %209 = vst [vmem:[%s177 + $0x3c] sm:%s169] %v208
                %v210 = vld [vmem:[%s176 + $0x80] sm:%s169]
                %211 = vst [vmem:[%s177 + $0x40] sm:%s169] %v210
                %v212 = vld [vmem:[%s176 + $0x88] sm:%s169]
                %213 = vst [vmem:[%s177 + $0x44] sm:%s169] %v212
              $region49: #{_lambda_.17} parent=43 // loop_footer
                %s175 = sadd.s32 1, %s171
              $region50: #{_lambda_.17} parent=43 // loop_footer_branch
                %170 = sbr.rel target = $region46
              $region51: #{_lambda_.17} parent=43 // loop_exit
                _
            $region44: #{_lambda_.17} parent=35 // pred_fallthru
              _
          $region36: #{_lambda_.17} parent=31 // pred_fallthru
            _
          %270 = vnop
        $region32: #{_lambda_.17} parent=27 // pred_fallthru
          _
      $region28: #{_lambda_.17} parent=5 // pred_fallthru
        _
      %p271 = scmp.le.s32.totalorder 1, %s10
      %p272 = scmp.lt.s32.totalorder %s10, 3
      %p273 = pnand %p271, %p272
      %p274 = pneg %p273
      // Predicated region
      $region70: #{_lambda_.17} parent=5 // pred_check
        _
      $region71: #{_lambda_.17} parent=5 // pred_check_branch
        %276 = sbr.rel (%p273) target = $region73
      $region72: #{_lambda_.17} parent=5 // pred_region
        %s277 = ssub.s32 %s10, 1
        %s278 = sand.u32 %s23, 1
        %s279 = sand.u32 %s23, 1
        %s280 = smul.addr %s279, 72
        %s281 = scalar_lea.vmem [#allocation2], %s280
        // Predicated region
        $region74: #{_lambda_.17} parent=72 // pred_check
          %p282 = pneg %p36
        $region75: #{_lambda_.17} parent=72 // pred_check_branch
          %284 = sbr.rel (%p282) target = $region77
        $region76: #{_lambda_.17} parent=72 // pred_region
          _
        $region77: #{_lambda_.17} parent=72 // pred_fallthru
          _
        %s285 = sand.u32 %s23, 1
        %s286 = sand.u32 %s23, 1
        %s287 = smul.addr %s286, 72
        %s288 = scalar_lea.vmem [#allocation2], %s287
        %p289 = pneg %p36
        %p290 = pneg %p33
        %p291 = pneg %p57
        %p292 = pneg %p54
        %p293 = pneg %p78
        %p294 = pneg %p75
        %p295 = pneg %p99
        %p296 = pneg %p96
        %p297 = pneg %p125
        %p298 = pneg %p122
        %s299 = sand.u32 %s112, 1
        %s300 = sand.u32 %s112, 1
        %s301 = smul.addr %s300, 16
        %s302 = scalar_lea.vmem [#allocation3], %s301
        %v304 = vld [vmem:[%s1] sm:$0xff]
        %v305 = vld [vmem:[%s1 + $0x8] sm:$0xff]
        %v306 = vld [vmem:[%s281] sm:$0xf]
        %v307 = vld [vmem:[%s281 + $0x4] sm:$0xf]
        %v308 = vld [vmem:[%s281 + $0x8] sm:$0xf]
        %v309 = vld [vmem:[%s281 + $0xc] sm:$0xf]
        %v310 = vld [vmem:[%s281 + $0x10] sm:$0xf]
        %v311 = vld [vmem:[%s281 + $0x14] sm:$0xf]
        %v312 = vld [vmem:[%s281 + $0x18] sm:$0xf]
        %v313 = vld [vmem:[%s281 + $0x1c] sm:$0xf]
        %v314 = vld [vmem:[%s281 + $0x20] sm:$0xf]
        %v315 = vld [vmem:[%s281 + $0x24] sm:$0xf]
        %v316 = vld [vmem:[%s281 + $0x28] sm:$0xf]
        %v317 = vld [vmem:[%s281 + $0x2c] sm:$0xf]
        %v318 = vld [vmem:[%s281 + $0x30] sm:$0xf]
        %v319 = vld [vmem:[%s281 + $0x34] sm:$0xf]
        %v320 = vld [vmem:[%s281 + $0x38] sm:$0xf]
        %v321 = vld [vmem:[%s281 + $0x3c] sm:$0xf]
        %v322 = vld [vmem:[%s281 + $0x40] sm:$0xf]
        %v323 = vld [vmem:[%s281 + $0x44] sm:$0xf]
        %v326 = vunpack.c.l.b16 %v304
        %v327 = vunpack.c.h.b16 %v304
        %v328 = vunpack.c.l.b16 %v305
        %v329 = vunpack.c.h.b16 %v305
        %v330 = vpack.c.b16 %v328, %v326
        %v331 = vpack.c.b16 %v329, %v327
        %v351 = vunpack.c.l.b16 %v306
        %v352 = vunpack.c.l.b16 %v307
        %v353 = vunpack.c.l.b16 %v308
        %v354 = vunpack.c.l.b16 %v309
        %v355 = vunpack.c.l.b16 %v310
        %v356 = vunpack.c.l.b16 %v311
        %v357 = vunpack.c.l.b16 %v312
        %v358 = vunpack.c.l.b16 %v313
        %v359 = vunpack.c.l.b16 %v314
        %v360 = vunpack.c.l.b16 %v315
        %v361 = vunpack.c.l.b16 %v316
        %v362 = vunpack.c.l.b16 %v317
        %v363 = vunpack.c.l.b16 %v318
        %v364 = vunpack.c.l.b16 %v319
        %v365 = vunpack.c.l.b16 %v320
        %v366 = vunpack.c.l.b16 %v321
        %v367 = vunpack.c.l.b16 %v322
        %v368 = vunpack.c.l.b16 %v323
        %v369 = vpack.c.b16 %v352, %v351
        %v370 = vpack.c.b16 %v354, %v353
        %v371 = vpack.c.b16 %v356, %v355
        %v372 = vpack.c.b16 %v358, %v357
        %v373 = vpack.c.b16 %v360, %v359
        %v374 = vpack.c.b16 %v362, %v361
        %v375 = vpack.c.b16 %v364, %v363
        %v376 = vpack.c.b16 %v366, %v365
        %v377 = vpack.c.b16 %v368, %v367
        %vm387 = vcmask 130048
        %v389 = vsel %vm387, %v331, 0
        %391 = vmatpush.bf16.msra.mxu0 %v376
        %392 = vmatpush.bf16.msra.mxu0 %v375
        %393 = vmatpush.bf16.msra.mxu0 %v374
        %394 = vmatpush.bf16.msra.mxu0 %v373
        %395 = vmatpush.bf16.msra.mxu0 %v372
        %396 = vmatpush.bf16.msra.mxu0 %v371
        %397 = vmatpush.bf16.msra.mxu0 %v370
        %398 = vmatpush.bf16.msra.mxu0 %v369
        %399 = vmatmul.bf16.gmra.mxu0 %v330
        %v400 = vpop.f32.mrf.mxu0
        %v401 = vadd.f32 0.0, %v400
        %v402 = vpop.f32.mrf.mxu0
        %v403 = vadd.f32 0.0, %v402
        %404 = vdwg.mxu0
        %405 = vmatpush.bf16.msra.mxu0 0
        %406 = vmatpush.bf16.msra.mxu0 0
        %407 = vmatpush.bf16.msra.mxu0 0
        %408 = vmatpush.bf16.msra.mxu0 0
        %409 = vmatpush.bf16.msra.mxu0 0
        %410 = vmatpush.bf16.msra.mxu0 0
        %411 = vmatpush.bf16.msra.mxu0 0
        %412 = vmatpush.bf16.msra.mxu0 %v377
        %413 = vmatmul.bf16.gmra.mxu0 %v389
        %v414 = vpop.f32.mrf.mxu0
        %v415 = vadd.f32 %v401, %v414
        %v416 = vpop.f32.mrf.mxu0
        %v417 = vadd.f32 %v403, %v416
        %418 = vdwg.mxu0
        %v419 = vld [vmem:[%s2] sm:$0xff]
        %v420 = vld [vmem:[%s2 + $0x8] sm:$0xff]
        %422 = vset.pattern.permute.xlu0 0
        %423 = vperm.xlu0 %422, %v419
        %v424 = vpop.permute.xlu0 %423
        %427 = vset.pattern.permute.xlu0 0
        %428 = vperm.xlu0 %427, %v420
        %v429 = vpop.permute.xlu0 %428
        %v431 = vmul.f32 %v415, %v424
        %v432 = vmul.f32 %v417, %v429
        %v433 = vld [vmem:[%s3] sm:$0xff]
        %v434 = vld [vmem:[%s3 + $0x8] sm:$0xff]
        %436 = vset.pattern.permute.xlu0 0
        %437 = vperm.xlu0 %436, %v433
        %v438 = vpop.permute.xlu0 %437
        %441 = vset.pattern.permute.xlu0 0
        %442 = vperm.xlu0 %441, %v434
        %v443 = vpop.permute.xlu0 %442
        %v445 = vadd.f32 %v431, %v438
        %v446 = vadd.f32 %v432, %v443
        %v447 = vmax.f32 %v445, 0.0
        %v448 = vmax.f32 %v446, 0.0
        %449 = vst [vmem:[%s302] sm:$0xff] %v447
        %450 = vst [vmem:[%s302 + $0x8] sm:$0xff] %v448
        %s451 = sand.u32 %s112, 1
        %s452 = sand.u32 %s112, 1
        %s453 = smul.addr %s452, 16
        %s454 = scalar_lea.vmem [#allocation3], %s453
        // Predicated region
        $region78: #{_lambda_.17} parent=72 // pred_check
          %p455 = pneg %p122
        $region79: #{_lambda_.17} parent=72 // pred_check_branch
          %457 = sbr.rel (%p455) target = $region81
        $region80: #{_lambda_.17} parent=72 // pred_region
          %s458 = smul.addr %s15, 8
          %s459 = scalar_lea.vmem %s4, %s458
          // Predicated region
          $region82: #{_lambda_.17} parent=80 // pred_check
            _
          $region83: #{_lambda_.17} parent=80 // pred_check_branch
            %461 = sbr.rel (0) target = $region85
          $region84: #{_lambda_.17} parent=80 // pred_region
            // Predicated region
            $region86: #{_lambda_.17} parent=84 // pred_check
              _
            $region87: #{_lambda_.17} parent=84 // pred_check_branch
              %463 = sbr.rel (0) target = $region89
            $region88: #{_lambda_.17} parent=84 // pred_region
              // Predicated region
              $region101: #{_lambda_.17} parent=88 // pred_check
                _
              $region102: #{_lambda_.17} parent=88 // pred_check_branch
                %481 = sbr.rel (0) target = $region104
              $region103: #{_lambda_.17} parent=88 // pred_region
                loop: start=0, step=1, limit=1
                $region105: #{_lambda_.17} parent=103 // loop_pre_header
                  _
                $region106: #{_lambda_.17} parent=103 // loop_header
                  %s483 = sphi 0, %s487
                  %p484 = scmp.ge.s32.totalorder %s483, 1
                  %s488 = sphi %s454, %s454
                  %s489 = sphi %s459, %s459
                $region107: #{_lambda_.17} parent=103 // loop_header_branch
                  %486 = sbr.rel (%p484) target = $region111
                $region108: #{_lambda_.17} parent=103 // loop_body
                  %v490 = vld [vmem:[%s488] sm:$0xff]
                  %491 = vst [vmem:[%s489] sm:$0xff] %v490
                  %v492 = vld [vmem:[%s488 + $0x8] sm:$0xff]
                  %493 = vst [vmem:[%s489 + $0x10] sm:$0xff] %v492
                $region109: #{_lambda_.17} parent=103 // loop_footer
                  %s487 = sadd.s32 1, %s483
                $region110: #{_lambda_.17} parent=103 // loop_footer_branch
                  %482 = sbr.rel target = $region106
                $region111: #{_lambda_.17} parent=103 // loop_exit
                  _
              $region104: #{_lambda_.17} parent=88 // pred_fallthru
                _
              // Predicated region
              $region112: #{_lambda_.17} parent=88 // pred_check
                _
              $region113: #{_lambda_.17} parent=88 // pred_check_branch
                %495 = sbr.rel target = $region115
              $region114: #{_lambda_.17} parent=88 // pred_region
                _
              $region115: #{_lambda_.17} parent=88 // pred_fallthru
                _
            $region89: #{_lambda_.17} parent=84 // pred_fallthru
              _
            // Predicated region
            $region90: #{_lambda_.17} parent=84 // pred_check
              _
            $region91: #{_lambda_.17} parent=84 // pred_check_branch
              %465 = sbr.rel target = $region93
            $region92: #{_lambda_.17} parent=84 // pred_region
              %s467 = ssub.s32 256, 1
              loop: start=0, step=1, limit=1
              $region94: #{_lambda_.17} parent=92 // loop_pre_header
                _
              $region95: #{_lambda_.17} parent=92 // loop_header
                %s469 = sphi 0, %s473
                %p470 = scmp.ge.s32.totalorder %s469, 1
                %s474 = sphi %s454, %s454
                %s475 = sphi %s459, %s459
              $region96: #{_lambda_.17} parent=92 // loop_header_branch
                %472 = sbr.rel (%p470) target = $region100
              $region97: #{_lambda_.17} parent=92 // loop_body
                %v476 = vld [vmem:[%s474] sm:%s467]
                %477 = vst [vmem:[%s475] sm:%s467] %v476
                %v478 = vld [vmem:[%s474 + $0x8] sm:%s467]
                %479 = vst [vmem:[%s475 + $0x10] sm:%s467] %v478
              $region98: #{_lambda_.17} parent=92 // loop_footer
                %s473 = sadd.s32 1, %s469
              $region99: #{_lambda_.17} parent=92 // loop_footer_branch
                %468 = sbr.rel target = $region95
              $region100: #{_lambda_.17} parent=92 // loop_exit
                _
            $region93: #{_lambda_.17} parent=84 // pred_fallthru
              _
          $region85: #{_lambda_.17} parent=80 // pred_fallthru
            _
          %496 = vnop
        $region81: #{_lambda_.17} parent=72 // pred_fallthru
          _
      $region73: #{_lambda_.17} parent=5 // pred_fallthru
        _
      %p497 = scmp.le.s32.totalorder 2, %s10
      // Predicated region
      $region116: #{_lambda_.17} parent=5 // pred_check
        %p498 = pneg %p497
      $region117: #{_lambda_.17} parent=5 // pred_check_branch
        %500 = sbr.rel (%p498) target = $region119
      $region118: #{_lambda_.17} parent=5 // pred_region
        %s501 = ssub.s32 %s10, 2
        // Predicated region
        $region120: #{_lambda_.17} parent=118 // pred_check
          %p502 = pneg %p128
        $region121: #{_lambda_.17} parent=118 // pred_check_branch
          %504 = sbr.rel (%p502) target = $region123
        $region122: #{_lambda_.17} parent=118 // pred_region
          %s505 = sand.u32 %s113, 1
          %s506 = sand.u32 %s113, 1
          %s507 = smul.addr %s506, 16
          %s508 = scalar_lea.vmem [#allocation3], %s507
        $region123: #{_lambda_.17} parent=118 // pred_fallthru
          _
      $region119: #{_lambda_.17} parent=5 // pred_fallthru
        _
    $region6: #{_lambda_.17} parent=1 // loop_footer
      %s14 = sadd.s32 1, %s10
    $region7: #{_lambda_.17} parent=1 // loop_footer_branch
      %9 = sbr.rel target = $region3
    $region8: #{_lambda_.17} parent=1 // loop_exit
      _

// kernel: _lambda_.18
$region0: #{_lambda_.18}
  #allocation0 [shape = 'u32[]', space=smem, size = 0x4, offset = 0x4, fixed_abs, tag = 'smem constant byte address 0x4 - core index']
  #allocation1 [shape = 'u32[72,128]{1,0:T(1,128)}', space=vmem, size = 0x9000, scoped, tag = 'internal scratch']
  %s0 = inlined_call_operand.vmem [shape: bf16[144,256], index: 0, kind: input, shape index: {}]
  %s1 = inlined_call_operand.vmem [shape: bf16[16,144], index: 1, kind: input, shape index: {}]
  %s2 = inlined_call_operand.vmem [shape: f32[16,1], index: 2, kind: input, shape index: {}]
  %s3 = inlined_call_operand.vmem [shape: f32[16,1], index: 3, kind: input, shape index: {}]
  %s4 = inlined_call_operand.vmem [shape: bf16[16,256], index: 4, kind: input, shape index: {}]
  %s5 = inlined_call_operand.vmem [shape: bf16[16,16], index: 5, kind: input, shape index: {}]
  %s6 = inlined_call_operand.vmem [shape: f32[16,1], index: 6, kind: input, shape index: {}]
  %s7 = inlined_call_operand.vmem [shape: f32[16,1], index: 7, kind: input, shape index: {}]
  %s8 = inlined_call_operand.vmem [shape: f32[16,256], index: 8, kind: output, shape index: {}]
  %s9 = sld [smem:[#allocation0]]
  $region181: #{_lambda_.18} parent=0
    _
  %s11 = ssub.s32 1, %s9
  %s12 = scalar_select 0, %s11, %s9
  $region1: #{_lambda_.18} parent=0
    #allocation2 [shape = 'u8[73728]{0}', space=vmem, size = 0x12000, scoped, tag = 'input window, operand 0']
    #allocation3 [shape = 'u8[8192]{0}', space=vmem, size = 0x2000, scoped, tag = 'input window, operand 4']
    #allocation4 [shape = 'u8[16384]{0}', space=vmem, size = 0x4000, scoped, tag = 'output window, operand 0']
    loop: start=0, step=1, limit=4
    $region2: #{_lambda_.18} parent=1 // loop_pre_header
      _
    $region3: #{_lambda_.18} parent=1 // loop_header
      %s14 = sphi 0, %s18
      %p15 = scmp.ge.s32.totalorder %s14, 4
      %s24 = sphi 0, %s26
      %s27 = sphi 0, %s24
      %s28 = sphi 0, %s27
      %s44 = sphi 0, %s28
      %s48 = sphi 0, %s48
      %s50 = sphi 0, %s48
      %s51 = sphi 0, %s50
      %s65 = sphi 0, %s51
      %s69 = sphi 0, %s69
      %s71 = sphi 0, %s69
      %s72 = sphi 0, %s71
      %s86 = sphi 0, %s72
      %s90 = sphi 0, %s90
      %s92 = sphi 0, %s90
      %s93 = sphi 0, %s92
      %s107 = sphi 0, %s93
      %s113 = sphi 0, %s115
      %s116 = sphi 0, %s113
      %s117 = sphi 0, %s116
      %s133 = sphi 0, %s117
      %s137 = sphi 0, %s137
      %s139 = sphi 0, %s137
      %s140 = sphi 0, %s139
      %s154 = sphi 0, %s140
      %s158 = sphi 0, %s158
      %s160 = sphi 0, %s158
      %s161 = sphi 0, %s160
      %s175 = sphi 0, %s161
      %s179 = sphi 0, %s179
      %s181 = sphi 0, %s179
      %s182 = sphi 0, %s181
      %s196 = sphi 0, %s182
      %s202 = sphi 0, %s204
      %s205 = sphi 0, %s202
      %s206 = sphi 0, %s205
      %s222 = sphi 0, %s206
    $region4: #{_lambda_.18} parent=1 // loop_header_branch
      %17 = sbr.rel (%p15) target = $region8
    $region5: #{_lambda_.18} parent=1 // loop_body
      %s19 = ssub.s32 %s14, 1
      %s20 = ssub.s32 %s14, 2
      %s21 = sadd.s32 %s14, 1
      %s22 = ssub.s32 %s14, %s21
      %p23 = scmp.eq.s32.totalorder %s22, 0
      %s25 = sadd.s32 %s24, 1
      %s26 = scalar_select %p23, %s24, %s25
      %p29 = pneg %p23
      %p30 = scmp.eq.s32.totalorder %s14, 1
      %p31 = por %p29, %p30
      %p32 = scmp.ne.s32.totalorder %s24, %s27
      %p33 = scmp.eq.s32.totalorder %s14, 0
      %p34 = por %p32, %p33
      %p35 = scmp.ne.s32.totalorder %s24, %s27
      %p36 = scmp.eq.s32.totalorder %s19, 1
      %p37 = por %p35, %p36
      %p38 = scmp.ne.s32.totalorder %s27, %s28
      %p39 = scmp.eq.s32.totalorder %s19, 0
      %p40 = por %p38, %p39
      %p41 = scmp.ne.s32.totalorder %s27, %s28
      %p42 = scmp.eq.s32.totalorder %s20, 1
      %p43 = por %p41, %p42
      %p45 = scmp.ne.s32.totalorder %s28, %s44
      %p46 = scmp.eq.s32.totalorder %s20, 0
      %p47 = por %p45, %p46
      %s49 = sadd.s32 %s48, 1
      %p52 = scmp.eq.s32.totalorder %s14, 1
      %p53 = scmp.ne.s32.totalorder %s48, %s50
      %p54 = scmp.eq.s32.totalorder %s14, 0
      %p55 = por %p53, %p54
      %p56 = scmp.ne.s32.totalorder %s48, %s50
      %p57 = scmp.eq.s32.totalorder %s19, 1
      %p58 = por %p56, %p57
      %p59 = scmp.ne.s32.totalorder %s50, %s51
      %p60 = scmp.eq.s32.totalorder %s19, 0
      %p61 = por %p59, %p60
      %p62 = scmp.ne.s32.totalorder %s50, %s51
      %p63 = scmp.eq.s32.totalorder %s20, 1
      %p64 = por %p62, %p63
      %p66 = scmp.ne.s32.totalorder %s51, %s65
      %p67 = scmp.eq.s32.totalorder %s20, 0
      %p68 = por %p66, %p67
      %s70 = sadd.s32 %s69, 1
      %p73 = scmp.eq.s32.totalorder %s14, 1
      %p74 = scmp.ne.s32.totalorder %s69, %s71
      %p75 = scmp.eq.s32.totalorder %s14, 0
      %p76 = por %p74, %p75
      %p77 = scmp.ne.s32.totalorder %s69, %s71
      %p78 = scmp.eq.s32.totalorder %s19, 1
      %p79 = por %p77, %p78
      %p80 = scmp.ne.s32.totalorder %s71, %s72
      %p81 = scmp.eq.s32.totalorder %s19, 0
      %p82 = por %p80, %p81
      %p83 = scmp.ne.s32.totalorder %s71, %s72
      %p84 = scmp.eq.s32.totalorder %s20, 1
      %p85 = por %p83, %p84
      %p87 = scmp.ne.s32.totalorder %s72, %s86
      %p88 = scmp.eq.s32.totalorder %s20, 0
      %p89 = por %p87, %p88
      %s91 = sadd.s32 %s90, 1
      %p94 = scmp.eq.s32.totalorder %s14, 1
      %p95 = scmp.ne.s32.totalorder %s90, %s92
      %p96 = scmp.eq.s32.totalorder %s14, 0
      %p97 = por %p95, %p96
      %p98 = scmp.ne.s32.totalorder %s90, %s92
      %p99 = scmp.eq.s32.totalorder %s19, 1
      %p100 = por %p98, %p99
      %p101 = scmp.ne.s32.totalorder %s92, %s93
      %p102 = scmp.eq.s32.totalorder %s19, 0
      %p103 = por %p101, %p102
      %p104 = scmp.ne.s32.totalorder %s92, %s93
      %p105 = scmp.eq.s32.totalorder %s20, 1
      %p106 = por %p104, %p105
      %p108 = scmp.ne.s32.totalorder %s93, %s107
      %p109 = scmp.eq.s32.totalorder %s20, 0
      %p110 = por %p108, %p109
      %s111 = ssub.s32 %s14, %s21
      %p112 = scmp.eq.s32.totalorder %s111, 0
      %s114 = sadd.s32 %s113, 1
      %s115 = scalar_select %p112, %s113, %s114
      %p118 = pneg %p112
      %p119 = scmp.eq.s32.totalorder %s14, 1
      %p120 = por %p118, %p119
      %p121 = scmp.ne.s32.totalorder %s113, %s116
      %p122 = scmp.eq.s32.totalorder %s14, 0
      %p123 = por %p121, %p122
      %p124 = scmp.ne.s32.totalorder %s113, %s116
      %p125 = scmp.eq.s32.totalorder %s19, 1
      %p126 = por %p124, %p125
      %p127 = scmp.ne.s32.totalorder %s116, %s117
      %p128 = scmp.eq.s32.totalorder %s19, 0
      %p129 = por %p127, %p128
      %p130 = scmp.ne.s32.totalorder %s116, %s117
      %p131 = scmp.eq.s32.totalorder %s20, 1
      %p132 = por %p130, %p131
      %p134 = scmp.ne.s32.totalorder %s117, %s133
      %p135 = scmp.eq.s32.totalorder %s20, 0
      %p136 = por %p134, %p135
      %s138 = sadd.s32 %s137, 1
      %p141 = scmp.eq.s32.totalorder %s14, 1
      %p142 = scmp.ne.s32.totalorder %s137, %s139
      %p143 = scmp.eq.s32.totalorder %s14, 0
      %p144 = por %p142, %p143
      %p145 = scmp.ne.s32.totalorder %s137, %s139
      %p146 = scmp.eq.s32.totalorder %s19, 1
      %p147 = por %p145, %p146
      %p148 = scmp.ne.s32.totalorder %s139, %s140
      %p149 = scmp.eq.s32.totalorder %s19, 0
      %p150 = por %p148, %p149
      %p151 = scmp.ne.s32.totalorder %s139, %s140
      %p152 = scmp.eq.s32.totalorder %s20, 1
      %p153 = por %p151, %p152
      %p155 = scmp.ne.s32.totalorder %s140, %s154
      %p156 = scmp.eq.s32.totalorder %s20, 0
      %p157 = por %p155, %p156
      %s159 = sadd.s32 %s158, 1
      %p162 = scmp.eq.s32.totalorder %s14, 1
      %p163 = scmp.ne.s32.totalorder %s158, %s160
      %p164 = scmp.eq.s32.totalorder %s14, 0
      %p165 = por %p163, %p164
      %p166 = scmp.ne.s32.totalorder %s158, %s160
      %p167 = scmp.eq.s32.totalorder %s19, 1
      %p168 = por %p166, %p167
      %p169 = scmp.ne.s32.totalorder %s160, %s161
      %p170 = scmp.eq.s32.totalorder %s19, 0
      %p171 = por %p169, %p170
      %p172 = scmp.ne.s32.totalorder %s160, %s161
      %p173 = scmp.eq.s32.totalorder %s20, 1
      %p174 = por %p172, %p173
      %p176 = scmp.ne.s32.totalorder %s161, %s175
      %p177 = scmp.eq.s32.totalorder %s20, 0
      %p178 = por %p176, %p177
      %s180 = sadd.s32 %s179, 1
      %p183 = scmp.eq.s32.totalorder %s14, 1
      %p184 = scmp.ne.s32.totalorder %s179, %s181
      %p185 = scmp.eq.s32.totalorder %s14, 0
      %p186 = por %p184, %p185
      %p187 = scmp.ne.s32.totalorder %s179, %s181
      %p188 = scmp.eq.s32.totalorder %s19, 1
      %p189 = por %p187, %p188
      %p190 = scmp.ne.s32.totalorder %s181, %s182
      %p191 = scmp.eq.s32.totalorder %s19, 0
      %p192 = por %p190, %p191
      %p193 = scmp.ne.s32.totalorder %s181, %s182
      %p194 = scmp.eq.s32.totalorder %s20, 1
      %p195 = por %p193, %p194
      %p197 = scmp.ne.s32.totalorder %s182, %s196
      %p198 = scmp.eq.s32.totalorder %s20, 0
      %p199 = por %p197, %p198
      %s200 = ssub.s32 %s14, %s21
      %p201 = scmp.eq.s32.totalorder %s200, 0
      %s203 = sadd.s32 %s202, 1
      %s204 = scalar_select %p201, %s202, %s203
      %p207 = pneg %p201
      %p208 = scmp.eq.s32.totalorder %s14, 1
      %p209 = por %p207, %p208
      %p210 = scmp.ne.s32.totalorder %s202, %s205
      %p211 = scmp.eq.s32.totalorder %s14, 0
      %p212 = por %p210, %p211
      %p213 = scmp.ne.s32.totalorder %s202, %s205
      %p214 = scmp.eq.s32.totalorder %s19, 1
      %p215 = por %p213, %p214
      %p216 = scmp.ne.s32.totalorder %s205, %s206
      %p217 = scmp.eq.s32.totalorder %s19, 0
      %p218 = por %p216, %p217
      %p219 = scmp.ne.s32.totalorder %s205, %s206
      %p220 = scmp.eq.s32.totalorder %s20, 1
      %p221 = por %p219, %p220
      %p223 = scmp.ne.s32.totalorder %s206, %s222
      %p224 = scmp.eq.s32.totalorder %s20, 0
      %p225 = por %p223, %p224
      %p226 = scmp.le.s32.totalorder 1, %s14
      %p227 = scmp.lt.s32.totalorder %s14, 3
      %p228 = pnand %p226, %p227
      %p229 = pneg %p228
      // Predicated region
      $region9: #{_lambda_.18} parent=5 // pred_check
        _
      $region10: #{_lambda_.18} parent=5 // pred_check_branch
        %231 = sbr.rel (%p228) target = $region12
      $region11: #{_lambda_.18} parent=5 // pred_region
        %s232 = ssub.s32 %s14, 1
        // Predicated region
        $region13: #{_lambda_.18} parent=11 // pred_check
          %p233 = pneg %p61
        $region14: #{_lambda_.18} parent=11 // pred_check_branch
          %235 = sbr.rel (%p233) target = $region16
        $region15: #{_lambda_.18} parent=11 // pred_region
          _
        $region16: #{_lambda_.18} parent=11 // pred_fallthru
          _
        // Predicated region
        $region17: #{_lambda_.18} parent=11 // pred_check
          %p236 = pneg %p82
        $region18: #{_lambda_.18} parent=11 // pred_check_branch
          %238 = sbr.rel (%p236) target = $region20
        $region19: #{_lambda_.18} parent=11 // pred_region
          _
        $region20: #{_lambda_.18} parent=11 // pred_fallthru
          _
        // Predicated region
        $region21: #{_lambda_.18} parent=11 // pred_check
          %p239 = pneg %p103
        $region22: #{_lambda_.18} parent=11 // pred_check_branch
          %241 = sbr.rel (%p239) target = $region24
        $region23: #{_lambda_.18} parent=11 // pred_region
          _
        $region24: #{_lambda_.18} parent=11 // pred_fallthru
          _
        // Predicated region
        $region25: #{_lambda_.18} parent=11 // pred_check
          %p242 = pneg %p150
        $region26: #{_lambda_.18} parent=11 // pred_check_branch
          %244 = sbr.rel (%p242) target = $region28
        $region27: #{_lambda_.18} parent=11 // pred_region
          _
        $region28: #{_lambda_.18} parent=11 // pred_fallthru
          _
        // Predicated region
        $region29: #{_lambda_.18} parent=11 // pred_check
          %p245 = pneg %p171
        $region30: #{_lambda_.18} parent=11 // pred_check_branch
          %247 = sbr.rel (%p245) target = $region32
        $region31: #{_lambda_.18} parent=11 // pred_region
          _
        $region32: #{_lambda_.18} parent=11 // pred_fallthru
          _
        // Predicated region
        $region33: #{_lambda_.18} parent=11 // pred_check
          %p248 = pneg %p192
        $region34: #{_lambda_.18} parent=11 // pred_check_branch
          %250 = sbr.rel (%p248) target = $region36
        $region35: #{_lambda_.18} parent=11 // pred_region
          _
        $region36: #{_lambda_.18} parent=11 // pred_fallthru
          _
      $region12: #{_lambda_.18} parent=5 // pred_fallthru
        _
      %p251 = scmp.lt.s32.totalorder %s14, 2
      // Predicated region
      $region37: #{_lambda_.18} parent=5 // pred_check
        %p252 = pneg %p251
      $region38: #{_lambda_.18} parent=5 // pred_check_branch
        %254 = sbr.rel (%p252) target = $region40
      $region39: #{_lambda_.18} parent=5 // pred_region
        // Predicated region
        $region41: #{_lambda_.18} parent=39 // pred_check
          %p255 = pneg %p34
        $region42: #{_lambda_.18} parent=39 // pred_check_branch
          %257 = sbr.rel (%p255) target = $region44
        $region43: #{_lambda_.18} parent=39 // pred_region
          %s258 = sand.u32 %s24, 1
          %s259 = sand.u32 %s24, 1
          %s260 = smul.addr %s259, 72
          %s261 = scalar_lea.vmem [#allocation2], %s260
          %s262 = smul.addr %s14, 4
          %s263 = scalar_lea.vmem %s0, %s262
          // Predicated region
          $region45: #{_lambda_.18} parent=43 // pred_check
            _
          $region46: #{_lambda_.18} parent=43 // pred_check_branch
            %265 = sbr.rel (0) target = $region48
          $region47: #{_lambda_.18} parent=43 // pred_region
            // Predicated region
            $region49: #{_lambda_.18} parent=47 // pred_check
              _
            $region50: #{_lambda_.18} parent=47 // pred_check_branch
              %267 = sbr.rel target = $region52
            $region51: #{_lambda_.18} parent=47 // pred_region
              // Predicated region
              $region64: #{_lambda_.18} parent=51 // pred_check
                _
              $region65: #{_lambda_.18} parent=51 // pred_check_branch
                %317 = sbr.rel (0) target = $region67
              $region66: #{_lambda_.18} parent=51 // pred_region
                loop: start=0, step=1, limit=1
                $region68: #{_lambda_.18} parent=66 // loop_pre_header
                  _
                $region69: #{_lambda_.18} parent=66 // loop_header
                  %s319 = sphi 0, %s323
                  %p320 = scmp.ge.s32.totalorder %s319, 1
                  %s324 = sphi %s263, %s263
                  %s325 = sphi %s261, %s261
                $region70: #{_lambda_.18} parent=66 // loop_header_branch
                  %322 = sbr.rel (%p320) target = $region74
                $region71: #{_lambda_.18} parent=66 // loop_body
                  _
                $region72: #{_lambda_.18} parent=66 // loop_footer
                  %s323 = sadd.s32 1, %s319
                $region73: #{_lambda_.18} parent=66 // loop_footer_branch
                  %318 = sbr.rel target = $region69
                $region74: #{_lambda_.18} parent=66 // loop_exit
                  _
                %s327 = ssub.s32 16, 1
                loop: start=0, step=1, limit=1
                $region75: #{_lambda_.18} parent=66 // loop_pre_header
                  _
                $region76: #{_lambda_.18} parent=66 // loop_header
                  %s329 = sphi 0, %s333
                  %p330 = scmp.ge.s32.totalorder %s329, 1
                  %s334 = sphi %s263, %s263
                  %s335 = sphi %s261, %s261
                $region77: #{_lambda_.18} parent=66 // loop_header_branch
                  %332 = sbr.rel (%p330) target = $region81
                $region78: #{_lambda_.18} parent=66 // loop_body
                  %v336 = vld [vmem:[%s334] sm:%s327]
                  %337 = vst [vmem:[%s335] sm:%s327] %v336
                  %v338 = vld [vmem:[%s334 + $0x8] sm:%s327]
                  %339 = vst [vmem:[%s335 + $0x4] sm:%s327] %v338
                  %v340 = vld [vmem:[%s334 + $0x10] sm:%s327]
                  %341 = vst [vmem:[%s335 + $0x8] sm:%s327] %v340
                  %v342 = vld [vmem:[%s334 + $0x18] sm:%s327]
                  %343 = vst [vmem:[%s335 + $0xc] sm:%s327] %v342
                  %v344 = vld [vmem:[%s334 + $0x20] sm:%s327]
                  %345 = vst [vmem:[%s335 + $0x10] sm:%s327] %v344
                  %v346 = vld [vmem:[%s334 + $0x28] sm:%s327]
                  %347 = vst [vmem:[%s335 + $0x14] sm:%s327] %v346
                  %v348 = vld [vmem:[%s334 + $0x30] sm:%s327]
                  %349 = vst [vmem:[%s335 + $0x18] sm:%s327] %v348
                  %v350 = vld [vmem:[%s334 + $0x38] sm:%s327]
                  %351 = vst [vmem:[%s335 + $0x1c] sm:%s327] %v350
                  %v352 = vld [vmem:[%s334 + $0x40] sm:%s327]
                  %353 = vst [vmem:[%s335 + $0x20] sm:%s327] %v352
                  %v354 = vld [vmem:[%s334 + $0x48] sm:%s327]
                  %355 = vst [vmem:[%s335 + $0x24] sm:%s327] %v354
                  %v356 = vld [vmem:[%s334 + $0x50] sm:%s327]
                  %357 = vst [vmem:[%s335 + $0x28] sm:%s327] %v356
                  %v358 = vld [vmem:[%s334 + $0x58] sm:%s327]
                  %359 = vst [vmem:[%s335 + $0x2c] sm:%s327] %v358
                  %v360 = vld [vmem:[%s334 + $0x60] sm:%s327]
                  %361 = vst [vmem:[%s335 + $0x30] sm:%s327] %v360
                  %v362 = vld [vmem:[%s334 + $0x68] sm:%s327]
                  %363 = vst [vmem:[%s335 + $0x34] sm:%s327] %v362
                  %v364 = vld [vmem:[%s334 + $0x70] sm:%s327]
                  %365 = vst [vmem:[%s335 + $0x38] sm:%s327] %v364
                  %v366 = vld [vmem:[%s334 + $0x78] sm:%s327]
                  %367 = vst [vmem:[%s335 + $0x3c] sm:%s327] %v366
                  %v368 = vld [vmem:[%s334 + $0x80] sm:%s327]
                  %369 = vst [vmem:[%s335 + $0x40] sm:%s327] %v368
                  %v370 = vld [vmem:[%s334 + $0x88] sm:%s327]
                  %371 = vst [vmem:[%s335 + $0x44] sm:%s327] %v370
                $region79: #{_lambda_.18} parent=66 // loop_footer
                  %s333 = sadd.s32 1, %s329
                $region80: #{_lambda_.18} parent=66 // loop_footer_branch
                  %328 = sbr.rel target = $region76
                $region81: #{_lambda_.18} parent=66 // loop_exit
                  _
              $region67: #{_lambda_.18} parent=51 // pred_fallthru
                _
            $region52: #{_lambda_.18} parent=47 // pred_fallthru
              _
            // Predicated region
            $region53: #{_lambda_.18} parent=47 // pred_check
              _
            $region54: #{_lambda_.18} parent=47 // pred_check_branch
              %269 = sbr.rel (0) target = $region56
            $region55: #{_lambda_.18} parent=47 // pred_region
              %s271 = ssub.s32 16, 1
              loop: start=0, step=1, limit=1
              $region57: #{_lambda_.18} parent=55 // loop_pre_header
                _
              $region58: #{_lambda_.18} parent=55 // loop_header
                %s273 = sphi 0, %s277
                %p274 = scmp.ge.s32.totalorder %s273, 1
                %s278 = sphi %s263, %s263
                %s279 = sphi %s261, %s261
              $region59: #{_lambda_.18} parent=55 // loop_header_branch
                %276 = sbr.rel (%p274) target = $region63
              $region60: #{_lambda_.18} parent=55 // loop_body
                %v280 = vld [vmem:[%s278] sm:%s271]
                %281 = vst [vmem:[%s279] sm:%s271] %v280
                %v282 = vld [vmem:[%s278 + $0x8] sm:%s271]
                %283 = vst [vmem:[%s279 + $0x4] sm:%s271] %v282
                %v284 = vld [vmem:[%s278 + $0x10] sm:%s271]
                %285 = vst [vmem:[%s279 + $0x8] sm:%s271] %v284
                %v286 = vld [vmem:[%s278 + $0x18] sm:%s271]
                %287 = vst [vmem:[%s279 + $0xc] sm:%s271] %v286
                %v288 = vld [vmem:[%s278 + $0x20] sm:%s271]
                %289 = vst [vmem:[%s279 + $0x10] sm:%s271] %v288
                %v290 = vld [vmem:[%s278 + $0x28] sm:%s271]
                %291 = vst [vmem:[%s279 + $0x14] sm:%s271] %v290
                %v292 = vld [vmem:[%s278 + $0x30] sm:%s271]
                %293 = vst [vmem:[%s279 + $0x18] sm:%s271] %v292
                %v294 = vld [vmem:[%s278 + $0x38] sm:%s271]
                %295 = vst [vmem:[%s279 + $0x1c] sm:%s271] %v294
                %v296 = vld [vmem:[%s278 + $0x40] sm:%s271]
                %297 = vst [vmem:[%s279 + $0x20] sm:%s271] %v296
                %v298 = vld [vmem:[%s278 + $0x48] sm:%s271]
                %299 = vst [vmem:[%s279 + $0x24] sm:%s271] %v298
                %v300 = vld [vmem:[%s278 + $0x50] sm:%s271]
                %301 = vst [vmem:[%s279 + $0x28] sm:%s271] %v300
                %v302 = vld [vmem:[%s278 + $0x58] sm:%s271]
                %303 = vst [vmem:[%s279 + $0x2c] sm:%s271] %v302
                %v304 = vld [vmem:[%s278 + $0x60] sm:%s271]
                %305 = vst [vmem:[%s279 + $0x30] sm:%s271] %v304
                %v306 = vld [vmem:[%s278 + $0x68] sm:%s271]
                %307 = vst [vmem:[%s279 + $0x34] sm:%s271] %v306
                %v308 = vld [vmem:[%s278 + $0x70] sm:%s271]
                %309 = vst [vmem:[%s279 + $0x38] sm:%s271] %v308
                %v310 = vld [vmem:[%s278 + $0x78] sm:%s271]
                %311 = vst [vmem:[%s279 + $0x3c] sm:%s271] %v310
                %v312 = vld [vmem:[%s278 + $0x80] sm:%s271]
                %313 = vst [vmem:[%s279 + $0x40] sm:%s271] %v312
                %v314 = vld [vmem:[%s278 + $0x88] sm:%s271]
                %315 = vst [vmem:[%s279 + $0x44] sm:%s271] %v314
              $region61: #{_lambda_.18} parent=55 // loop_footer
                %s277 = sadd.s32 1, %s273
              $region62: #{_lambda_.18} parent=55 // loop_footer_branch
                %272 = sbr.rel target = $region58
              $region63: #{_lambda_.18} parent=55 // loop_exit
                _
            $region56: #{_lambda_.18} parent=47 // pred_fallthru
              _
          $region48: #{_lambda_.18} parent=43 // pred_fallthru
            _
          %372 = vnop
        $region44: #{_lambda_.18} parent=39 // pred_fallthru
          _
        // Predicated region
        $region82: #{_lambda_.18} parent=39 // pred_check
          %p373 = pneg %p123
        $region83: #{_lambda_.18} parent=39 // pred_check_branch
          %375 = sbr.rel (%p373) target = $region85
        $region84: #{_lambda_.18} parent=39 // pred_region
          %s376 = sand.u32 %s113, 1
          %s377 = sand.u32 %s113, 1
          %s378 = smul.addr %s377, 8
          %s379 = scalar_lea.vmem [#allocation3], %s378
          %s380 = smul.addr %s14, 4
          %s381 = scalar_lea.vmem %s4, %s380
          // Predicated region
          $region86: #{_lambda_.18} parent=84 // pred_check
            _
          $region87: #{_lambda_.18} parent=84 // pred_check_branch
            %383 = sbr.rel (0) target = $region89
          $region88: #{_lambda_.18} parent=84 // pred_region
            // Predicated region
            $region90: #{_lambda_.18} parent=88 // pred_check
              _
            $region91: #{_lambda_.18} parent=88 // pred_check_branch
              %385 = sbr.rel target = $region93
            $region92: #{_lambda_.18} parent=88 // pred_region
              // Predicated region
              $region105: #{_lambda_.18} parent=92 // pred_check
                _
              $region106: #{_lambda_.18} parent=92 // pred_check_branch
                %403 = sbr.rel (0) target = $region108
              $region107: #{_lambda_.18} parent=92 // pred_region
                loop: start=0, step=1, limit=1
                $region109: #{_lambda_.18} parent=107 // loop_pre_header
                  _
                $region110: #{_lambda_.18} parent=107 // loop_header
                  %s405 = sphi 0, %s409
                  %p406 = scmp.ge.s32.totalorder %s405, 1
                  %s410 = sphi %s381, %s381
                  %s411 = sphi %s379, %s379
                $region111: #{_lambda_.18} parent=107 // loop_header_branch
                  %408 = sbr.rel (%p406) target = $region115
                $region112: #{_lambda_.18} parent=107 // loop_body
                  _
                $region113: #{_lambda_.18} parent=107 // loop_footer
                  %s409 = sadd.s32 1, %s405
                $region114: #{_lambda_.18} parent=107 // loop_footer_branch
                  %404 = sbr.rel target = $region110
                $region115: #{_lambda_.18} parent=107 // loop_exit
                  _
                %s413 = ssub.s32 16, 1
                loop: start=0, step=1, limit=1
                $region116: #{_lambda_.18} parent=107 // loop_pre_header
                  _
                $region117: #{_lambda_.18} parent=107 // loop_header
                  %s415 = sphi 0, %s419
                  %p416 = scmp.ge.s32.totalorder %s415, 1
                  %s420 = sphi %s381, %s381
                  %s421 = sphi %s379, %s379
                $region118: #{_lambda_.18} parent=107 // loop_header_branch
                  %418 = sbr.rel (%p416) target = $region122
                $region119: #{_lambda_.18} parent=107 // loop_body
                  %v422 = vld [vmem:[%s420] sm:%s413]
                  %423 = vst [vmem:[%s421] sm:%s413] %v422
                  %v424 = vld [vmem:[%s420 + $0x8] sm:%s413]
                  %425 = vst [vmem:[%s421 + $0x4] sm:%s413] %v424
                $region120: #{_lambda_.18} parent=107 // loop_footer
                  %s419 = sadd.s32 1, %s415
                $region121: #{_lambda_.18} parent=107 // loop_footer_branch
                  %414 = sbr.rel target = $region117
                $region122: #{_lambda_.18} parent=107 // loop_exit
                  _
              $region108: #{_lambda_.18} parent=92 // pred_fallthru
                _
            $region93: #{_lambda_.18} parent=88 // pred_fallthru
              _
            // Predicated region
            $region94: #{_lambda_.18} parent=88 // pred_check
              _
            $region95: #{_lambda_.18} parent=88 // pred_check_branch
              %387 = sbr.rel (0) target = $region97
            $region96: #{_lambda_.18} parent=88 // pred_region
              %s389 = ssub.s32 16, 1
              loop: start=0, step=1, limit=1
              $region98: #{_lambda_.18} parent=96 // loop_pre_header
                _
              $region99: #{_lambda_.18} parent=96 // loop_header
                %s391 = sphi 0, %s395
                %p392 = scmp.ge.s32.totalorder %s391, 1
                %s396 = sphi %s381, %s381
                %s397 = sphi %s379, %s379
              $region100: #{_lambda_.18} parent=96 // loop_header_branch
                %394 = sbr.rel (%p392) target = $region104
              $region101: #{_lambda_.18} parent=96 // loop_body
                %v398 = vld [vmem:[%s396] sm:%s389]
                %399 = vst [vmem:[%s397] sm:%s389] %v398
                %v400 = vld [vmem:[%s396 + $0x8] sm:%s389]
                %401 = vst [vmem:[%s397 + $0x4] sm:%s389] %v400
              $region102: #{_lambda_.18} parent=96 // loop_footer
                %s395 = sadd.s32 1, %s391
              $region103: #{_lambda_.18} parent=96 // loop_footer_branch
                %390 = sbr.rel target = $region99
              $region104: #{_lambda_.18} parent=96 // loop_exit
                _
            $region97: #{_lambda_.18} parent=88 // pred_fallthru
              _
          $region89: #{_lambda_.18} parent=84 // pred_fallthru
            _
          %426 = vnop
        $region85: #{_lambda_.18} parent=39 // pred_fallthru
          _
      $region40: #{_lambda_.18} parent=5 // pred_fallthru
        _
      %p427 = scmp.le.s32.totalorder 1, %s14
      %p428 = scmp.lt.s32.totalorder %s14, 3
      %p429 = pnand %p427, %p428
      %p430 = pneg %p429
      // Predicated region
      $region123: #{_lambda_.18} parent=5 // pred_check
        _
      $region124: #{_lambda_.18} parent=5 // pred_check_branch
        %432 = sbr.rel (%p429) target = $region126
      $region125: #{_lambda_.18} parent=5 // pred_region
        %s433 = ssub.s32 %s14, 1
        %s434 = sand.u32 %s27, 1
        %s435 = sand.u32 %s27, 1
        %s436 = smul.addr %s435, 72
        %s437 = scalar_lea.vmem [#allocation2], %s436
        // Predicated region
        $region127: #{_lambda_.18} parent=125 // pred_check
          %p438 = pneg %p40
        $region128: #{_lambda_.18} parent=125 // pred_check_branch
          %440 = sbr.rel (%p438) target = $region130
        $region129: #{_lambda_.18} parent=125 // pred_region
          _
        $region130: #{_lambda_.18} parent=125 // pred_fallthru
          _
        %s441 = sand.u32 %s116, 1
        %s442 = sand.u32 %s116, 1
        %s443 = smul.addr %s442, 8
        %s444 = scalar_lea.vmem [#allocation3], %s443
        // Predicated region
        $region131: #{_lambda_.18} parent=125 // pred_check
          %p445 = pneg %p129
        $region132: #{_lambda_.18} parent=125 // pred_check_branch
          %447 = sbr.rel (%p445) target = $region134
        $region133: #{_lambda_.18} parent=125 // pred_region
          _
        $region134: #{_lambda_.18} parent=125 // pred_fallthru
          _
        %s448 = sand.u32 %s27, 1
        %s449 = sand.u32 %s27, 1
        %s450 = smul.addr %s449, 72
        %s451 = scalar_lea.vmem [#allocation2], %s450
        %p452 = pneg %p40
        %p453 = pneg %p37
        %p454 = pneg %p61
        %p455 = pneg %p58
        %p456 = pneg %p82
        %p457 = pneg %p79
        %p458 = pneg %p103
        %p459 = pneg %p100
        %s460 = sand.u32 %s116, 1
        %s461 = sand.u32 %s116, 1
        %s462 = smul.addr %s461, 8
        %s463 = scalar_lea.vmem [#allocation3], %s462
        %p464 = pneg %p129
        %p465 = pneg %p126
        %p466 = pneg %p150
        %p467 = pneg %p147
        %p468 = pneg %p171
        %p469 = pneg %p168
        %p470 = pneg %p192
        %p471 = pneg %p189
        %p472 = pneg %p218
        %p473 = pneg %p215
        %s474 = sand.u32 %s205, 1
        %s475 = sand.u32 %s205, 1
        %s476 = smul.addr %s475, 16
        %s477 = scalar_lea.vmem [#allocation4], %s476
        %v479 = vld [vmem:[%s1] sm:$0xff]
        %v480 = vld [vmem:[%s1 + $0x8] sm:$0xff]
        %v481 = vld [vmem:[%s437] sm:$0xf]
        %v482 = vld [vmem:[%s437 + $0x4] sm:$0xf]
        %v483 = vld [vmem:[%s437 + $0x8] sm:$0xf]
        %v484 = vld [vmem:[%s437 + $0xc] sm:$0xf]
        %v485 = vld [vmem:[%s437 + $0x10] sm:$0xf]
        %v486 = vld [vmem:[%s437 + $0x14] sm:$0xf]
        %v487 = vld [vmem:[%s437 + $0x18] sm:$0xf]
        %v488 = vld [vmem:[%s437 + $0x1c] sm:$0xf]
        %v489 = vld [vmem:[%s437 + $0x20] sm:$0xf]
        %v490 = vld [vmem:[%s437 + $0x24] sm:$0xf]
        %v491 = vld [vmem:[%s437 + $0x28] sm:$0xf]
        %v492 = vld [vmem:[%s437 + $0x2c] sm:$0xf]
        %v493 = vld [vmem:[%s437 + $0x30] sm:$0xf]
        %v494 = vld [vmem:[%s437 + $0x34] sm:$0xf]
        %v495 = vld [vmem:[%s437 + $0x38] sm:$0xf]
        %v496 = vld [vmem:[%s437 + $0x3c] sm:$0xf]
        %v497 = vld [vmem:[%s437 + $0x40] sm:$0xf]
        %v498 = vld [vmem:[%s437 + $0x44] sm:$0xf]
        %v501 = vunpack.c.l.b16 %v479
        %v502 = vunpack.c.h.b16 %v479
        %v503 = vunpack.c.l.b16 %v480
        %v504 = vunpack.c.h.b16 %v480
        %v505 = vpack.c.b16 %v503, %v501
        %v506 = vpack.c.b16 %v504, %v502
        %v526 = vunpack.c.l.b16 %v481
        %v527 = vunpack.c.l.b16 %v482
        %v528 = vunpack.c.l.b16 %v483
        %v529 = vunpack.c.l.b16 %v484
        %v530 = vunpack.c.l.b16 %v485
        %v531 = vunpack.c.l.b16 %v486
        %v532 = vunpack.c.l.b16 %v487
        %v533 = vunpack.c.l.b16 %v488
        %v534 = vunpack.c.l.b16 %v489
        %v535 = vunpack.c.l.b16 %v490
        %v536 = vunpack.c.l.b16 %v491
        %v537 = vunpack.c.l.b16 %v492
        %v538 = vunpack.c.l.b16 %v493
        %v539 = vunpack.c.l.b16 %v494
        %v540 = vunpack.c.l.b16 %v495
        %v541 = vunpack.c.l.b16 %v496
        %v542 = vunpack.c.l.b16 %v497
        %v543 = vunpack.c.l.b16 %v498
        %v544 = vpack.c.b16 %v527, %v526
        %v545 = vpack.c.b16 %v529, %v528
        %v546 = vpack.c.b16 %v531, %v530
        %v547 = vpack.c.b16 %v533, %v532
        %v548 = vpack.c.b16 %v535, %v534
        %v549 = vpack.c.b16 %v537, %v536
        %v550 = vpack.c.b16 %v539, %v538
        %v551 = vpack.c.b16 %v541, %v540
        %v552 = vpack.c.b16 %v543, %v542
        %vm562 = vcmask 130048
        %v564 = vsel %vm562, %v506, 0
        %566 = vmatpush.bf16.msra.mxu0 %v551
        %567 = vmatpush.bf16.msra.mxu0 %v550
        %568 = vmatpush.bf16.msra.mxu0 %v549
        %569 = vmatpush.bf16.msra.mxu0 %v548
        %570 = vmatpush.bf16.msra.mxu0 %v547
        %571 = vmatpush.bf16.msra.mxu0 %v546
        %572 = vmatpush.bf16.msra.mxu0 %v545
        %573 = vmatpush.bf16.msra.mxu0 %v544
        %574 = vmatmul.bf16.gmra.mxu0 %v505
        %v575 = vpop.f32.mrf.mxu0
        %v576 = vadd.f32 0.0, %v575
        %v577 = vpop.f32.mrf.mxu0
        %v578 = vadd.f32 0.0, %v577
        %579 = vdwg.mxu0
        %580 = vmatpush.bf16.msra.mxu0 0
        %581 = vmatpush.bf16.msra.mxu0 0
        %582 = vmatpush.bf16.msra.mxu0 0
        %583 = vmatpush.bf16.msra.mxu0 0
        %584 = vmatpush.bf16.msra.mxu0 0
        %585 = vmatpush.bf16.msra.mxu0 0
        %586 = vmatpush.bf16.msra.mxu0 0
        %587 = vmatpush.bf16.msra.mxu0 %v552
        %588 = vmatmul.bf16.gmra.mxu0 %v564
        %v589 = vpop.f32.mrf.mxu0
        %v590 = vadd.f32 %v576, %v589
        %v591 = vpop.f32.mrf.mxu0
        %v592 = vadd.f32 %v578, %v591
        %593 = vdwg.mxu0
        %v594 = vld [vmem:[%s2] sm:$0xff]
        %v595 = vld [vmem:[%s2 + $0x8] sm:$0xff]
        %597 = vset.pattern.permute.xlu0 0
        %598 = vperm.xlu0 %597, %v594
        %v599 = vpop.permute.xlu0 %598
        %602 = vset.pattern.permute.xlu0 0
        %603 = vperm.xlu0 %602, %v595
        %v604 = vpop.permute.xlu0 %603
        %v606 = vmul.f32 %v590, %v599
        %v607 = vmul.f32 %v592, %v604
        %v608 = vld [vmem:[%s3] sm:$0xff]
        %v609 = vld [vmem:[%s3 + $0x8] sm:$0xff]
        %611 = vset.pattern.permute.xlu0 0
        %612 = vperm.xlu0 %611, %v608
        %v613 = vpop.permute.xlu0 %612
        %616 = vset.pattern.permute.xlu0 0
        %617 = vperm.xlu0 %616, %v609
        %v618 = vpop.permute.xlu0 %617
        %v620 = vadd.f32 %v606, %v613
        %v621 = vadd.f32 %v607, %v618
        %v622 = vld [vmem:[%s5] sm:$0xf]
        %v623 = vld [vmem:[%s5 + $0x4] sm:$0xf]
        %v624 = vld [vmem:[%s444] sm:$0xf]
        %v625 = vld [vmem:[%s444 + $0x4] sm:$0xf]
        %v628 = vunpack.c.l.b16 %v622
        %v629 = vunpack.c.l.b16 %v623
        %v630 = vpack.c.b16 %v629, %v628
        %v633 = vunpack.c.l.b16 %v624
        %v634 = vunpack.c.l.b16 %v625
        %v635 = vpack.c.b16 %v634, %v633
        %v638 = vsel %vm562, %v630, 0
        %640 = vmatpush.bf16.msra.mxu0 0
        %641 = vmatpush.bf16.msra.mxu0 0
        %642 = vmatpush.bf16.msra.mxu0 0
        %643 = vmatpush.bf16.msra.mxu0 0
        %644 = vmatpush.bf16.msra.mxu0 0
        %645 = vmatpush.bf16.msra.mxu0 0
        %646 = vmatpush.bf16.msra.mxu0 0
        %647 = vmatpush.bf16.msra.mxu0 %v635
        %648 = vmatmul.bf16.gmra.mxu0 %v638
        %v649 = vpop.f32.mrf.mxu0
        %v650 = vadd.f32 0.0, %v649
        %v651 = vpop.f32.mrf.mxu0
        %v652 = vadd.f32 0.0, %v651
        %653 = vdwg.mxu0
        %v654 = vld [vmem:[%s6] sm:$0xff]
        %v655 = vld [vmem:[%s6 + $0x8] sm:$0xff]
        %657 = vset.pattern.permute.xlu0 0
        %658 = vperm.xlu0 %657, %v654
        %v659 = vpop.permute.xlu0 %658
        %662 = vset.pattern.permute.xlu0 0
        %663 = vperm.xlu0 %662, %v655
        %v664 = vpop.permute.xlu0 %663
        %v666 = vmul.f32 %v650, %v659
        %v667 = vmul.f32 %v652, %v664
        %v668 = vld [vmem:[%s7] sm:$0xff]
        %v669 = vld [vmem:[%s7 + $0x8] sm:$0xff]
        %671 = vset.pattern.permute.xlu0 0
        %672 = vperm.xlu0 %671, %v668
        %v673 = vpop.permute.xlu0 %672
        %676 = vset.pattern.permute.xlu0 0
        %677 = vperm.xlu0 %676, %v669
        %v678 = vpop.permute.xlu0 %677
        %v680 = vadd.f32 %v666, %v673
        %v681 = vadd.f32 %v667, %v678
        %v682 = vadd.f32 %v620, %v680
        %v683 = vadd.f32 %v621, %v681
        %v684 = vmax.f32 %v682, 0.0
        %v685 = vmax.f32 %v683, 0.0
        %686 = vst [vmem:[%s477] sm:$0xff] %v684
        %687 = vst [vmem:[%s477 + $0x8] sm:$0xff] %v685
        %s688 = sand.u32 %s205, 1
        %s689 = sand.u32 %s205, 1
        %s690 = smul.addr %s689, 16
        %s691 = scalar_lea.vmem [#allocation4], %s690
        // Predicated region
        $region135: #{_lambda_.18} parent=125 // pred_check
          %p692 = pneg %p215
        $region136: #{_lambda_.18} parent=125 // pred_check_branch
          %694 = sbr.rel (%p692) target = $region138
        $region137: #{_lambda_.18} parent=125 // pred_region
          %s695 = smul.addr %s19, 8
          %s696 = scalar_lea.vmem %s8, %s695
          // Predicated region
          $region139: #{_lambda_.18} parent=137 // pred_check
            _
          $region140: #{_lambda_.18} parent=137 // pred_check_branch
            %698 = sbr.rel (0) target = $region142
          $region141: #{_lambda_.18} parent=137 // pred_region
            // Predicated region
            $region143: #{_lambda_.18} parent=141 // pred_check
              _
            $region144: #{_lambda_.18} parent=141 // pred_check_branch
              %700 = sbr.rel (0) target = $region146
            $region145: #{_lambda_.18} parent=141 // pred_region
              // Predicated region
              $region158: #{_lambda_.18} parent=145 // pred_check
                _
              $region159: #{_lambda_.18} parent=145 // pred_check_branch
                %718 = sbr.rel (0) target = $region161
              $region160: #{_lambda_.18} parent=145 // pred_region
                loop: start=0, step=1, limit=1
                $region162: #{_lambda_.18} parent=160 // loop_pre_header
                  _
                $region163: #{_lambda_.18} parent=160 // loop_header
                  %s720 = sphi 0, %s724
                  %p721 = scmp.ge.s32.totalorder %s720, 1
                  %s725 = sphi %s691, %s691
                  %s726 = sphi %s696, %s696
                $region164: #{_lambda_.18} parent=160 // loop_header_branch
                  %723 = sbr.rel (%p721) target = $region168
                $region165: #{_lambda_.18} parent=160 // loop_body
                  %v727 = vld [vmem:[%s725] sm:$0xff]
                  %728 = vst [vmem:[%s726] sm:$0xff] %v727
                  %v729 = vld [vmem:[%s725 + $0x8] sm:$0xff]
                  %730 = vst [vmem:[%s726 + $0x10] sm:$0xff] %v729
                $region166: #{_lambda_.18} parent=160 // loop_footer
                  %s724 = sadd.s32 1, %s720
                $region167: #{_lambda_.18} parent=160 // loop_footer_branch
                  %719 = sbr.rel target = $region163
                $region168: #{_lambda_.18} parent=160 // loop_exit
                  _
              $region161: #{_lambda_.18} parent=145 // pred_fallthru
                _
              // Predicated region
              $region169: #{_lambda_.18} parent=145 // pred_check
                _
              $region170: #{_lambda_.18} parent=145 // pred_check_branch
                %732 = sbr.rel target = $region172
              $region171: #{_lambda_.18} parent=145 // pred_region
                _
              $region172: #{_lambda_.18} parent=145 // pred_fallthru
                _
            $region146: #{_lambda_.18} parent=141 // pred_fallthru
              _
            // Predicated region
            $region147: #{_lambda_.18} parent=141 // pred_check
              _
            $region148: #{_lambda_.18} parent=141 // pred_check_branch
              %702 = sbr.rel target = $region150
            $region149: #{_lambda_.18} parent=141 // pred_region
              %s704 = ssub.s32 256, 1
              loop: start=0, step=1, limit=1
              $region151: #{_lambda_.18} parent=149 // loop_pre_header
                _
              $region152: #{_lambda_.18} parent=149 // loop_header
                %s706 = sphi 0, %s710
                %p707 = scmp.ge.s32.totalorder %s706, 1
                %s711 = sphi %s691, %s691
                %s712 = sphi %s696, %s696
              $region153: #{_lambda_.18} parent=149 // loop_header_branch
                %709 = sbr.rel (%p707) target = $region157
              $region154: #{_lambda_.18} parent=149 // loop_body
                %v713 = vld [vmem:[%s711] sm:%s704]
                %714 = vst [vmem:[%s712] sm:%s704] %v713
                %v715 = vld [vmem:[%s711 + $0x8] sm:%s704]
                %716 = vst [vmem:[%s712 + $0x10] sm:%s704] %v715
              $region155: #{_lambda_.18} parent=149 // loop_footer
                %s710 = sadd.s32 1, %s706
              $region156: #{_lambda_.18} parent=149 // loop_footer_branch
                %705 = sbr.rel target = $region152
              $region157: #{_lambda_.18} parent=149 // loop_exit
                _
            $region150: #{_lambda_.18} parent=141 // pred_fallthru
              _
          $region142: #{_lambda_.18} parent=137 // pred_fallthru
            _
          %733 = vnop
        $region138: #{_lambda_.18} parent=125 // pred_fallthru
          _
      $region126: #{_lambda_.18} parent=5 // pred_fallthru
        _
      %p734 = scmp.le.s32.totalorder 2, %s14
      // Predicated region
      $region173: #{_lambda_.18} parent=5 // pred_check
        %p735 = pneg %p734
      $region174: #{_lambda_.18} parent=5 // pred_check_branch
        %737 = sbr.rel (%p735) target = $region176
      $region175: #{_lambda_.18} parent=5 // pred_region
        %s738 = ssub.s32 %s14, 2
        // Predicated region
        $region177: #{_lambda_.18} parent=175 // pred_check
          %p739 = pneg %p221
        $region178: #{_lambda_.18} parent=175 // pred_check_branch
          %741 = sbr.rel (%p739) target = $region180
        $region179: #{_lambda_.18} parent=175 // pred_region
          %s742 = sand.u32 %s206, 1
          %s743 = sand.u32 %s206, 1
          %s744 = smul.addr %s743, 16
          %s745 = scalar_lea.vmem [#allocation4], %s744
        $region180: #{_lambda_.18} parent=175 // pred_fallthru
          _
      $region176: #{_lambda_.18} parent=5 // pred_fallthru
        _
    $region6: #{_lambda_.18} parent=1 // loop_footer
      %s18 = sadd.s32 1, %s14
    $region7: #{_lambda_.18} parent=1 // loop_footer_branch
      %13 = sbr.rel target = $region3
    $region8: #{_lambda_.18} parent=1 // loop_exit
      _

// kernel: _lambda_.20
$region0: #{_lambda_.20}
  #allocation0 [shape = 'u32[]', space=smem, size = 0x4, offset = 0x4, fixed_abs, tag = 'smem constant byte address 0x4 - core index']
  #allocation1 [shape = 'u32[72,128]{1,0:T(1,128)}', space=vmem, size = 0x9000, scoped, tag = 'internal scratch']
  %s0 = inlined_call_operand.vmem [shape: bf16[144,256], index: 0, kind: input, shape index: {}]
  %s1 = inlined_call_operand.vmem [shape: bf16[16,144], index: 1, kind: input, shape index: {}]
  %s2 = inlined_call_operand.vmem [shape: f32[16,1], index: 2, kind: input, shape index: {}]
  %s3 = inlined_call_operand.vmem [shape: f32[16,1], index: 3, kind: input, shape index: {}]
  %s4 = inlined_call_operand.vmem [shape: f32[16,256], index: 4, kind: input, shape index: {}]
  %s5 = inlined_call_operand.vmem [shape: f32[16,256], index: 5, kind: output, shape index: {}]
  %s6 = sld [smem:[#allocation0]]
  $region166: #{_lambda_.20} parent=0
    _
  %s8 = ssub.s32 1, %s6
  %s9 = scalar_select 0, %s8, %s6
  $region1: #{_lambda_.20} parent=0
    #allocation2 [shape = 'u8[73728]{0}', space=vmem, size = 0x12000, scoped, tag = 'input window, operand 0']
    #allocation3 [shape = 'u8[16384]{0}', space=vmem, size = 0x4000, scoped, tag = 'input window, operand 4']
    #allocation4 [shape = 'u8[16384]{0}', space=vmem, size = 0x4000, scoped, tag = 'output window, operand 0']
    loop: start=0, step=1, limit=4
    $region2: #{_lambda_.20} parent=1 // loop_pre_header
      _
    $region3: #{_lambda_.20} parent=1 // loop_header
      %s11 = sphi 0, %s15
      %p12 = scmp.ge.s32.totalorder %s11, 4
      %s21 = sphi 0, %s23
      %s24 = sphi 0, %s21
      %s25 = sphi 0, %s24
      %s41 = sphi 0, %s25
      %s45 = sphi 0, %s45
      %s47 = sphi 0, %s45
      %s48 = sphi 0, %s47
      %s62 = sphi 0, %s48
      %s66 = sphi 0, %s66
      %s68 = sphi 0, %s66
      %s69 = sphi 0, %s68
      %s83 = sphi 0, %s69
      %s87 = sphi 0, %s87
      %s89 = sphi 0, %s87
      %s90 = sphi 0, %s89
      %s104 = sphi 0, %s90
      %s110 = sphi 0, %s112
      %s113 = sphi 0, %s110
      %s114 = sphi 0, %s113
      %s130 = sphi 0, %s114
      %s136 = sphi 0, %s138
      %s139 = sphi 0, %s136
      %s140 = sphi 0, %s139
      %s156 = sphi 0, %s140
    $region4: #{_lambda_.20} parent=1 // loop_header_branch
      %14 = sbr.rel (%p12) target = $region8
    $region5: #{_lambda_.20} parent=1 // loop_body
      %s16 = ssub.s32 %s11, 1
      %s17 = ssub.s32 %s11, 2
      %s18 = sadd.s32 %s11, 1
      %s19 = ssub.s32 %s11, %s18
      %p20 = scmp.eq.s32.totalorder %s19, 0
      %s22 = sadd.s32 %s21, 1
      %s23 = scalar_select %p20, %s21, %s22
      %p26 = pneg %p20
      %p27 = scmp.eq.s32.totalorder %s11, 1
      %p28 = por %p26, %p27
      %p29 = scmp.ne.s32.totalorder %s21, %s24
      %p30 = scmp.eq.s32.totalorder %s11, 0
      %p31 = por %p29, %p30
      %p32 = scmp.ne.s32.totalorder %s21, %s24
      %p33 = scmp.eq.s32.totalorder %s16, 1
      %p34 = por %p32, %p33
      %p35 = scmp.ne.s32.totalorder %s24, %s25
      %p36 = scmp.eq.s32.totalorder %s16, 0
      %p37 = por %p35, %p36
      %p38 = scmp.ne.s32.totalorder %s24, %s25
      %p39 = scmp.eq.s32.totalorder %s17, 1
      %p40 = por %p38, %p39
      %p42 = scmp.ne.s32.totalorder %s25, %s41
      %p43 = scmp.eq.s32.totalorder %s17, 0
      %p44 = por %p42, %p43
      %s46 = sadd.s32 %s45, 1
      %p49 = scmp.eq.s32.totalorder %s11, 1
      %p50 = scmp.ne.s32.totalorder %s45, %s47
      %p51 = scmp.eq.s32.totalorder %s11, 0
      %p52 = por %p50, %p51
      %p53 = scmp.ne.s32.totalorder %s45, %s47
      %p54 = scmp.eq.s32.totalorder %s16, 1
      %p55 = por %p53, %p54
      %p56 = scmp.ne.s32.totalorder %s47, %s48
      %p57 = scmp.eq.s32.totalorder %s16, 0
      %p58 = por %p56, %p57
      %p59 = scmp.ne.s32.totalorder %s47, %s48
      %p60 = scmp.eq.s32.totalorder %s17, 1
      %p61 = por %p59, %p60
      %p63 = scmp.ne.s32.totalorder %s48, %s62
      %p64 = scmp.eq.s32.totalorder %s17, 0
      %p65 = por %p63, %p64
      %s67 = sadd.s32 %s66, 1
      %p70 = scmp.eq.s32.totalorder %s11, 1
      %p71 = scmp.ne.s32.totalorder %s66, %s68
      %p72 = scmp.eq.s32.totalorder %s11, 0
      %p73 = por %p71, %p72
      %p74 = scmp.ne.s32.totalorder %s66, %s68
      %p75 = scmp.eq.s32.totalorder %s16, 1
      %p76 = por %p74, %p75
      %p77 = scmp.ne.s32.totalorder %s68, %s69
      %p78 = scmp.eq.s32.totalorder %s16, 0
      %p79 = por %p77, %p78
      %p80 = scmp.ne.s32.totalorder %s68, %s69
      %p81 = scmp.eq.s32.totalorder %s17, 1
      %p82 = por %p80, %p81
      %p84 = scmp.ne.s32.totalorder %s69, %s83
      %p85 = scmp.eq.s32.totalorder %s17, 0
      %p86 = por %p84, %p85
      %s88 = sadd.s32 %s87, 1
      %p91 = scmp.eq.s32.totalorder %s11, 1
      %p92 = scmp.ne.s32.totalorder %s87, %s89
      %p93 = scmp.eq.s32.totalorder %s11, 0
      %p94 = por %p92, %p93
      %p95 = scmp.ne.s32.totalorder %s87, %s89
      %p96 = scmp.eq.s32.totalorder %s16, 1
      %p97 = por %p95, %p96
      %p98 = scmp.ne.s32.totalorder %s89, %s90
      %p99 = scmp.eq.s32.totalorder %s16, 0
      %p100 = por %p98, %p99
      %p101 = scmp.ne.s32.totalorder %s89, %s90
      %p102 = scmp.eq.s32.totalorder %s17, 1
      %p103 = por %p101, %p102
      %p105 = scmp.ne.s32.totalorder %s90, %s104
      %p106 = scmp.eq.s32.totalorder %s17, 0
      %p107 = por %p105, %p106
      %s108 = ssub.s32 %s11, %s18
      %p109 = scmp.eq.s32.totalorder %s108, 0
      %s111 = sadd.s32 %s110, 1
      %s112 = scalar_select %p109, %s110, %s111
      %p115 = pneg %p109
      %p116 = scmp.eq.s32.totalorder %s11, 1
      %p117 = por %p115, %p116
      %p118 = scmp.ne.s32.totalorder %s110, %s113
      %p119 = scmp.eq.s32.totalorder %s11, 0
      %p120 = por %p118, %p119
      %p121 = scmp.ne.s32.totalorder %s110, %s113
      %p122 = scmp.eq.s32.totalorder %s16, 1
      %p123 = por %p121, %p122
      %p124 = scmp.ne.s32.totalorder %s113, %s114
      %p125 = scmp.eq.s32.totalorder %s16, 0
      %p126 = por %p124, %p125
      %p127 = scmp.ne.s32.totalorder %s113, %s114
      %p128 = scmp.eq.s32.totalorder %s17, 1
      %p129 = por %p127, %p128
      %p131 = scmp.ne.s32.totalorder %s114, %s130
      %p132 = scmp.eq.s32.totalorder %s17, 0
      %p133 = por %p131, %p132
      %s134 = ssub.s32 %s11, %s18
      %p135 = scmp.eq.s32.totalorder %s134, 0
      %s137 = sadd.s32 %s136, 1
      %s138 = scalar_select %p135, %s136, %s137
      %p141 = pneg %p135
      %p142 = scmp.eq.s32.totalorder %s11, 1
      %p143 = por %p141, %p142
      %p144 = scmp.ne.s32.totalorder %s136, %s139
      %p145 = scmp.eq.s32.totalorder %s11, 0
      %p146 = por %p144, %p145
      %p147 = scmp.ne.s32.totalorder %s136, %s139
      %p148 = scmp.eq.s32.totalorder %s16, 1
      %p149 = por %p147, %p148
      %p150 = scmp.ne.s32.totalorder %s139, %s140
      %p151 = scmp.eq.s32.totalorder %s16, 0
      %p152 = por %p150, %p151
      %p153 = scmp.ne.s32.totalorder %s139, %s140
      %p154 = scmp.eq.s32.totalorder %s17, 1
      %p155 = por %p153, %p154
      %p157 = scmp.ne.s32.totalorder %s140, %s156
      %p158 = scmp.eq.s32.totalorder %s17, 0
      %p159 = por %p157, %p158
      %p160 = scmp.le.s32.totalorder 1, %s11
      %p161 = scmp.lt.s32.totalorder %s11, 3
      %p162 = pnand %p160, %p161
      %p163 = pneg %p162
      // Predicated region
      $region9: #{_lambda_.20} parent=5 // pred_check
        _
      $region10: #{_lambda_.20} parent=5 // pred_check_branch
        %165 = sbr.rel (%p162) target = $region12
      $region11: #{_lambda_.20} parent=5 // pred_region
        %s166 = ssub.s32 %s11, 1
        // Predicated region
        $region13: #{_lambda_.20} parent=11 // pred_check
          %p167 = pneg %p58
        $region14: #{_lambda_.20} parent=11 // pred_check_branch
          %169 = sbr.rel (%p167) target = $region16
        $region15: #{_lambda_.20} parent=11 // pred_region
          _
        $region16: #{_lambda_.20} parent=11 // pred_fallthru
          _
        // Predicated region
        $region17: #{_lambda_.20} parent=11 // pred_check
          %p170 = pneg %p79
        $region18: #{_lambda_.20} parent=11 // pred_check_branch
          %172 = sbr.rel (%p170) target = $region20
        $region19: #{_lambda_.20} parent=11 // pred_region
          _
        $region20: #{_lambda_.20} parent=11 // pred_fallthru
          _
        // Predicated region
        $region21: #{_lambda_.20} parent=11 // pred_check
          %p173 = pneg %p100
        $region22: #{_lambda_.20} parent=11 // pred_check_branch
          %175 = sbr.rel (%p173) target = $region24
        $region23: #{_lambda_.20} parent=11 // pred_region
          _
        $region24: #{_lambda_.20} parent=11 // pred_fallthru
          _
      $region12: #{_lambda_.20} parent=5 // pred_fallthru
        _
      %p176 = scmp.lt.s32.totalorder %s11, 2
      // Predicated region
      $region25: #{_lambda_.20} parent=5 // pred_check
        %p177 = pneg %p176
      $region26: #{_lambda_.20} parent=5 // pred_check_branch
        %179 = sbr.rel (%p177) target = $region28
      $region27: #{_lambda_.20} parent=5 // pred_region
        // Predicated region
        $region29: #{_lambda_.20} parent=27 // pred_check
          %p180 = pneg %p31
        $region30: #{_lambda_.20} parent=27 // pred_check_branch
          %182 = sbr.rel (%p180) target = $region32
        $region31: #{_lambda_.20} parent=27 // pred_region
          %s183 = sand.u32 %s21, 1
          %s184 = sand.u32 %s21, 1
          %s185 = smul.addr %s184, 72
          %s186 = scalar_lea.vmem [#allocation2], %s185
          %s187 = smul.addr %s11, 4
          %s188 = scalar_lea.vmem %s0, %s187
          // Predicated region
          $region33: #{_lambda_.20} parent=31 // pred_check
            _
          $region34: #{_lambda_.20} parent=31 // pred_check_branch
            %190 = sbr.rel (0) target = $region36
          $region35: #{_lambda_.20} parent=31 // pred_region
            // Predicated region
            $region37: #{_lambda_.20} parent=35 // pred_check
              _
            $region38: #{_lambda_.20} parent=35 // pred_check_branch
              %192 = sbr.rel target = $region40
            $region39: #{_lambda_.20} parent=35 // pred_region
              // Predicated region
              $region52: #{_lambda_.20} parent=39 // pred_check
                _
              $region53: #{_lambda_.20} parent=39 // pred_check_branch
                %242 = sbr.rel (0) target = $region55
              $region54: #{_lambda_.20} parent=39 // pred_region
                loop: start=0, step=1, limit=1
                $region56: #{_lambda_.20} parent=54 // loop_pre_header
                  _
                $region57: #{_lambda_.20} parent=54 // loop_header
                  %s244 = sphi 0, %s248
                  %p245 = scmp.ge.s32.totalorder %s244, 1
                  %s249 = sphi %s188, %s188
                  %s250 = sphi %s186, %s186
                $region58: #{_lambda_.20} parent=54 // loop_header_branch
                  %247 = sbr.rel (%p245) target = $region62
                $region59: #{_lambda_.20} parent=54 // loop_body
                  _
                $region60: #{_lambda_.20} parent=54 // loop_footer
                  %s248 = sadd.s32 1, %s244
                $region61: #{_lambda_.20} parent=54 // loop_footer_branch
                  %243 = sbr.rel target = $region57
                $region62: #{_lambda_.20} parent=54 // loop_exit
                  _
                %s252 = ssub.s32 16, 1
                loop: start=0, step=1, limit=1
                $region63: #{_lambda_.20} parent=54 // loop_pre_header
                  _
                $region64: #{_lambda_.20} parent=54 // loop_header
                  %s254 = sphi 0, %s258
                  %p255 = scmp.ge.s32.totalorder %s254, 1
                  %s259 = sphi %s188, %s188
                  %s260 = sphi %s186, %s186
                $region65: #{_lambda_.20} parent=54 // loop_header_branch
                  %257 = sbr.rel (%p255) target = $region69
                $region66: #{_lambda_.20} parent=54 // loop_body
                  %v261 = vld [vmem:[%s259] sm:%s252]
                  %262 = vst [vmem:[%s260] sm:%s252] %v261
                  %v263 = vld [vmem:[%s259 + $0x8] sm:%s252]
                  %264 = vst [vmem:[%s260 + $0x4] sm:%s252] %v263
                  %v265 = vld [vmem:[%s259 + $0x10] sm:%s252]
                  %266 = vst [vmem:[%s260 + $0x8] sm:%s252] %v265
                  %v267 = vld [vmem:[%s259 + $0x18] sm:%s252]
                  %268 = vst [vmem:[%s260 + $0xc] sm:%s252] %v267
                  %v269 = vld [vmem:[%s259 + $0x20] sm:%s252]
                  %270 = vst [vmem:[%s260 + $0x10] sm:%s252] %v269
                  %v271 = vld [vmem:[%s259 + $0x28] sm:%s252]
                  %272 = vst [vmem:[%s260 + $0x14] sm:%s252] %v271
                  %v273 = vld [vmem:[%s259 + $0x30] sm:%s252]
                  %274 = vst [vmem:[%s260 + $0x18] sm:%s252] %v273
                  %v275 = vld [vmem:[%s259 + $0x38] sm:%s252]
                  %276 = vst [vmem:[%s260 + $0x1c] sm:%s252] %v275
                  %v277 = vld [vmem:[%s259 + $0x40] sm:%s252]
                  %278 = vst [vmem:[%s260 + $0x20] sm:%s252] %v277
                  %v279 = vld [vmem:[%s259 + $0x48] sm:%s252]
                  %280 = vst [vmem:[%s260 + $0x24] sm:%s252] %v279
                  %v281 = vld [vmem:[%s259 + $0x50] sm:%s252]
                  %282 = vst [vmem:[%s260 + $0x28] sm:%s252] %v281
                  %v283 = vld [vmem:[%s259 + $0x58] sm:%s252]
                  %284 = vst [vmem:[%s260 + $0x2c] sm:%s252] %v283
                  %v285 = vld [vmem:[%s259 + $0x60] sm:%s252]
                  %286 = vst [vmem:[%s260 + $0x30] sm:%s252] %v285
                  %v287 = vld [vmem:[%s259 + $0x68] sm:%s252]
                  %288 = vst [vmem:[%s260 + $0x34] sm:%s252] %v287
                  %v289 = vld [vmem:[%s259 + $0x70] sm:%s252]
                  %290 = vst [vmem:[%s260 + $0x38] sm:%s252] %v289
                  %v291 = vld [vmem:[%s259 + $0x78] sm:%s252]
                  %292 = vst [vmem:[%s260 + $0x3c] sm:%s252] %v291
                  %v293 = vld [vmem:[%s259 + $0x80] sm:%s252]
                  %294 = vst [vmem:[%s260 + $0x40] sm:%s252] %v293
                  %v295 = vld [vmem:[%s259 + $0x88] sm:%s252]
                  %296 = vst [vmem:[%s260 + $0x44] sm:%s252] %v295
                $region67: #{_lambda_.20} parent=54 // loop_footer
                  %s258 = sadd.s32 1, %s254
                $region68: #{_lambda_.20} parent=54 // loop_footer_branch
                  %253 = sbr.rel target = $region64
                $region69: #{_lambda_.20} parent=54 // loop_exit
                  _
              $region55: #{_lambda_.20} parent=39 // pred_fallthru
                _
            $region40: #{_lambda_.20} parent=35 // pred_fallthru
              _
            // Predicated region
            $region41: #{_lambda_.20} parent=35 // pred_check
              _
            $region42: #{_lambda_.20} parent=35 // pred_check_branch
              %194 = sbr.rel (0) target = $region44
            $region43: #{_lambda_.20} parent=35 // pred_region
              %s196 = ssub.s32 16, 1
              loop: start=0, step=1, limit=1
              $region45: #{_lambda_.20} parent=43 // loop_pre_header
                _
              $region46: #{_lambda_.20} parent=43 // loop_header
                %s198 = sphi 0, %s202
                %p199 = scmp.ge.s32.totalorder %s198, 1
                %s203 = sphi %s188, %s188
                %s204 = sphi %s186, %s186
              $region47: #{_lambda_.20} parent=43 // loop_header_branch
                %201 = sbr.rel (%p199) target = $region51
              $region48: #{_lambda_.20} parent=43 // loop_body
                %v205 = vld [vmem:[%s203] sm:%s196]
                %206 = vst [vmem:[%s204] sm:%s196] %v205
                %v207 = vld [vmem:[%s203 + $0x8] sm:%s196]
                %208 = vst [vmem:[%s204 + $0x4] sm:%s196] %v207
                %v209 = vld [vmem:[%s203 + $0x10] sm:%s196]
                %210 = vst [vmem:[%s204 + $0x8] sm:%s196] %v209
                %v211 = vld [vmem:[%s203 + $0x18] sm:%s196]
                %212 = vst [vmem:[%s204 + $0xc] sm:%s196] %v211
                %v213 = vld [vmem:[%s203 + $0x20] sm:%s196]
                %214 = vst [vmem:[%s204 + $0x10] sm:%s196] %v213
                %v215 = vld [vmem:[%s203 + $0x28] sm:%s196]
                %216 = vst [vmem:[%s204 + $0x14] sm:%s196] %v215
                %v217 = vld [vmem:[%s203 + $0x30] sm:%s196]
                %218 = vst [vmem:[%s204 + $0x18] sm:%s196] %v217
                %v219 = vld [vmem:[%s203 + $0x38] sm:%s196]
                %220 = vst [vmem:[%s204 + $0x1c] sm:%s196] %v219
                %v221 = vld [vmem:[%s203 + $0x40] sm:%s196]
                %222 = vst [vmem:[%s204 + $0x20] sm:%s196] %v221
                %v223 = vld [vmem:[%s203 + $0x48] sm:%s196]
                %224 = vst [vmem:[%s204 + $0x24] sm:%s196] %v223
                %v225 = vld [vmem:[%s203 + $0x50] sm:%s196]
                %226 = vst [vmem:[%s204 + $0x28] sm:%s196] %v225
                %v227 = vld [vmem:[%s203 + $0x58] sm:%s196]
                %228 = vst [vmem:[%s204 + $0x2c] sm:%s196] %v227
                %v229 = vld [vmem:[%s203 + $0x60] sm:%s196]
                %230 = vst [vmem:[%s204 + $0x30] sm:%s196] %v229
                %v231 = vld [vmem:[%s203 + $0x68] sm:%s196]
                %232 = vst [vmem:[%s204 + $0x34] sm:%s196] %v231
                %v233 = vld [vmem:[%s203 + $0x70] sm:%s196]
                %234 = vst [vmem:[%s204 + $0x38] sm:%s196] %v233
                %v235 = vld [vmem:[%s203 + $0x78] sm:%s196]
                %236 = vst [vmem:[%s204 + $0x3c] sm:%s196] %v235
                %v237 = vld [vmem:[%s203 + $0x80] sm:%s196]
                %238 = vst [vmem:[%s204 + $0x40] sm:%s196] %v237
                %v239 = vld [vmem:[%s203 + $0x88] sm:%s196]
                %240 = vst [vmem:[%s204 + $0x44] sm:%s196] %v239
              $region49: #{_lambda_.20} parent=43 // loop_footer
                %s202 = sadd.s32 1, %s198
              $region50: #{_lambda_.20} parent=43 // loop_footer_branch
                %197 = sbr.rel target = $region46
              $region51: #{_lambda_.20} parent=43 // loop_exit
                _
            $region44: #{_lambda_.20} parent=35 // pred_fallthru
              _
          $region36: #{_lambda_.20} parent=31 // pred_fallthru
            _
          %297 = vnop
        $region32: #{_lambda_.20} parent=27 // pred_fallthru
          _
        // Predicated region
        $region70: #{_lambda_.20} parent=27 // pred_check
          %p298 = pneg %p120
        $region71: #{_lambda_.20} parent=27 // pred_check_branch
          %300 = sbr.rel (%p298) target = $region73
        $region72: #{_lambda_.20} parent=27 // pred_region
          %s301 = sand.u32 %s110, 1
          %s302 = sand.u32 %s110, 1
          %s303 = smul.addr %s302, 16
          %s304 = scalar_lea.vmem [#allocation3], %s303
          %s305 = smul.addr %s11, 8
          %s306 = scalar_lea.vmem %s4, %s305
          // Predicated region
          $region74: #{_lambda_.20} parent=72 // pred_check
            _
          $region75: #{_lambda_.20} parent=72 // pred_check_branch
            %308 = sbr.rel (0) target = $region77
          $region76: #{_lambda_.20} parent=72 // pred_region
            // Predicated region
            $region78: #{_lambda_.20} parent=76 // pred_check
              _
            $region79: #{_lambda_.20} parent=76 // pred_check_branch
              %310 = sbr.rel (0) target = $region81
            $region80: #{_lambda_.20} parent=76 // pred_region
              // Predicated region
              $region93: #{_lambda_.20} parent=80 // pred_check
                _
              $region94: #{_lambda_.20} parent=80 // pred_check_branch
                %328 = sbr.rel (0) target = $region96
              $region95: #{_lambda_.20} parent=80 // pred_region
                loop: start=0, step=1, limit=1
                $region97: #{_lambda_.20} parent=95 // loop_pre_header
                  _
                $region98: #{_lambda_.20} parent=95 // loop_header
                  %s330 = sphi 0, %s334
                  %p331 = scmp.ge.s32.totalorder %s330, 1
                  %s335 = sphi %s306, %s306
                  %s336 = sphi %s304, %s304
                $region99: #{_lambda_.20} parent=95 // loop_header_branch
                  %333 = sbr.rel (%p331) target = $region103
                $region100: #{_lambda_.20} parent=95 // loop_body
                  %v337 = vld [vmem:[%s335] sm:$0xff]
                  %338 = vst [vmem:[%s336] sm:$0xff] %v337
                  %v339 = vld [vmem:[%s335 + $0x10] sm:$0xff]
                  %340 = vst [vmem:[%s336 + $0x8] sm:$0xff] %v339
                $region101: #{_lambda_.20} parent=95 // loop_footer
                  %s334 = sadd.s32 1, %s330
                $region102: #{_lambda_.20} parent=95 // loop_footer_branch
                  %329 = sbr.rel target = $region98
                $region103: #{_lambda_.20} parent=95 // loop_exit
                  _
              $region96: #{_lambda_.20} parent=80 // pred_fallthru
                _
              // Predicated region
              $region104: #{_lambda_.20} parent=80 // pred_check
                _
              $region105: #{_lambda_.20} parent=80 // pred_check_branch
                %342 = sbr.rel target = $region107
              $region106: #{_lambda_.20} parent=80 // pred_region
                _
              $region107: #{_lambda_.20} parent=80 // pred_fallthru
                _
            $region81: #{_lambda_.20} parent=76 // pred_fallthru
              _
            // Predicated region
            $region82: #{_lambda_.20} parent=76 // pred_check
              _
            $region83: #{_lambda_.20} parent=76 // pred_check_branch
              %312 = sbr.rel target = $region85
            $region84: #{_lambda_.20} parent=76 // pred_region
              %s314 = ssub.s32 256, 1
              loop: start=0, step=1, limit=1
              $region86: #{_lambda_.20} parent=84 // loop_pre_header
                _
              $region87: #{_lambda_.20} parent=84 // loop_header
                %s316 = sphi 0, %s320
                %p317 = scmp.ge.s32.totalorder %s316, 1
                %s321 = sphi %s306, %s306
                %s322 = sphi %s304, %s304
              $region88: #{_lambda_.20} parent=84 // loop_header_branch
                %319 = sbr.rel (%p317) target = $region92
              $region89: #{_lambda_.20} parent=84 // loop_body
                %v323 = vld [vmem:[%s321] sm:%s314]
                %324 = vst [vmem:[%s322] sm:%s314] %v323
                %v325 = vld [vmem:[%s321 + $0x10] sm:%s314]
                %326 = vst [vmem:[%s322 + $0x8] sm:%s314] %v325
              $region90: #{_lambda_.20} parent=84 // loop_footer
                %s320 = sadd.s32 1, %s316
              $region91: #{_lambda_.20} parent=84 // loop_footer_branch
                %315 = sbr.rel target = $region87
              $region92: #{_lambda_.20} parent=84 // loop_exit
                _
            $region85: #{_lambda_.20} parent=76 // pred_fallthru
              _
          $region77: #{_lambda_.20} parent=72 // pred_fallthru
            _
          %343 = vnop
        $region73: #{_lambda_.20} parent=27 // pred_fallthru
          _
      $region28: #{_lambda_.20} parent=5 // pred_fallthru
        _
      %p344 = scmp.le.s32.totalorder 1, %s11
      %p345 = scmp.lt.s32.totalorder %s11, 3
      %p346 = pnand %p344, %p345
      %p347 = pneg %p346
      // Predicated region
      $region108: #{_lambda_.20} parent=5 // pred_check
        _
      $region109: #{_lambda_.20} parent=5 // pred_check_branch
        %349 = sbr.rel (%p346) target = $region111
      $region110: #{_lambda_.20} parent=5 // pred_region
        %s350 = ssub.s32 %s11, 1
        %s351 = sand.u32 %s24, 1
        %s352 = sand.u32 %s24, 1
        %s353 = smul.addr %s352, 72
        %s354 = scalar_lea.vmem [#allocation2], %s353
        // Predicated region
        $region112: #{_lambda_.20} parent=110 // pred_check
          %p355 = pneg %p37
        $region113: #{_lambda_.20} parent=110 // pred_check_branch
          %357 = sbr.rel (%p355) target = $region115
        $region114: #{_lambda_.20} parent=110 // pred_region
          _
        $region115: #{_lambda_.20} parent=110 // pred_fallthru
          _
        %s358 = sand.u32 %s113, 1
        %s359 = sand.u32 %s113, 1
        %s360 = smul.addr %s359, 16
        %s361 = scalar_lea.vmem [#allocation3], %s360
        // Predicated region
        $region116: #{_lambda_.20} parent=110 // pred_check
          %p362 = pneg %p126
        $region117: #{_lambda_.20} parent=110 // pred_check_branch
          %364 = sbr.rel (%p362) target = $region119
        $region118: #{_lambda_.20} parent=110 // pred_region
          _
        $region119: #{_lambda_.20} parent=110 // pred_fallthru
          _
        %s365 = sand.u32 %s24, 1
        %s366 = sand.u32 %s24, 1
        %s367 = smul.addr %s366, 72
        %s368 = scalar_lea.vmem [#allocation2], %s367
        %p369 = pneg %p37
        %p370 = pneg %p34
        %p371 = pneg %p58
        %p372 = pneg %p55
        %p373 = pneg %p79
        %p374 = pneg %p76
        %p375 = pneg %p100
        %p376 = pneg %p97
        %s377 = sand.u32 %s113, 1
        %s378 = sand.u32 %s113, 1
        %s379 = smul.addr %s378, 16
        %s380 = scalar_lea.vmem [#allocation3], %s379
        %p381 = pneg %p126
        %p382 = pneg %p123
        %p383 = pneg %p152
        %p384 = pneg %p149
        %s385 = sand.u32 %s139, 1
        %s386 = sand.u32 %s139, 1
        %s387 = smul.addr %s386, 16
        %s388 = scalar_lea.vmem [#allocation4], %s387
        %v390 = vld [vmem:[%s1] sm:$0xff]
        %v391 = vld [vmem:[%s1 + $0x8] sm:$0xff]
        %v392 = vld [vmem:[%s354] sm:$0xf]
        %v393 = vld [vmem:[%s354 + $0x4] sm:$0xf]
        %v394 = vld [vmem:[%s354 + $0x8] sm:$0xf]
        %v395 = vld [vmem:[%s354 + $0xc] sm:$0xf]
        %v396 = vld [vmem:[%s354 + $0x10] sm:$0xf]
        %v397 = vld [vmem:[%s354 + $0x14] sm:$0xf]
        %v398 = vld [vmem:[%s354 + $0x18] sm:$0xf]
        %v399 = vld [vmem:[%s354 + $0x1c] sm:$0xf]
        %v400 = vld [vmem:[%s354 + $0x20] sm:$0xf]
        %v401 = vld [vmem:[%s354 + $0x24] sm:$0xf]
        %v402 = vld [vmem:[%s354 + $0x28] sm:$0xf]
        %v403 = vld [vmem:[%s354 + $0x2c] sm:$0xf]
        %v404 = vld [vmem:[%s354 + $0x30] sm:$0xf]
        %v405 = vld [vmem:[%s354 + $0x34] sm:$0xf]
        %v406 = vld [vmem:[%s354 + $0x38] sm:$0xf]
        %v407 = vld [vmem:[%s354 + $0x3c] sm:$0xf]
        %v408 = vld [vmem:[%s354 + $0x40] sm:$0xf]
        %v409 = vld [vmem:[%s354 + $0x44] sm:$0xf]
        %v412 = vunpack.c.l.b16 %v390
        %v413 = vunpack.c.h.b16 %v390
        %v414 = vunpack.c.l.b16 %v391
        %v415 = vunpack.c.h.b16 %v391
        %v416 = vpack.c.b16 %v414, %v412
        %v417 = vpack.c.b16 %v415, %v413
        %v437 = vunpack.c.l.b16 %v392
        %v438 = vunpack.c.l.b16 %v393
        %v439 = vunpack.c.l.b16 %v394
        %v440 = vunpack.c.l.b16 %v395
        %v441 = vunpack.c.l.b16 %v396
        %v442 = vunpack.c.l.b16 %v397
        %v443 = vunpack.c.l.b16 %v398
        %v444 = vunpack.c.l.b16 %v399
        %v445 = vunpack.c.l.b16 %v400
        %v446 = vunpack.c.l.b16 %v401
        %v447 = vunpack.c.l.b16 %v402
        %v448 = vunpack.c.l.b16 %v403
        %v449 = vunpack.c.l.b16 %v404
        %v450 = vunpack.c.l.b16 %v405
        %v451 = vunpack.c.l.b16 %v406
        %v452 = vunpack.c.l.b16 %v407
        %v453 = vunpack.c.l.b16 %v408
        %v454 = vunpack.c.l.b16 %v409
        %v455 = vpack.c.b16 %v438, %v437
        %v456 = vpack.c.b16 %v440, %v439
        %v457 = vpack.c.b16 %v442, %v441
        %v458 = vpack.c.b16 %v444, %v443
        %v459 = vpack.c.b16 %v446, %v445
        %v460 = vpack.c.b16 %v448, %v447
        %v461 = vpack.c.b16 %v450, %v449
        %v462 = vpack.c.b16 %v452, %v451
        %v463 = vpack.c.b16 %v454, %v453
        %vm473 = vcmask 130048
        %v475 = vsel %vm473, %v417, 0
        %477 = vmatpush.bf16.msra.mxu0 %v462
        %478 = vmatpush.bf16.msra.mxu0 %v461
        %479 = vmatpush.bf16.msra.mxu0 %v460
        %480 = vmatpush.bf16.msra.mxu0 %v459
        %481 = vmatpush.bf16.msra.mxu0 %v458
        %482 = vmatpush.bf16.msra.mxu0 %v457
        %483 = vmatpush.bf16.msra.mxu0 %v456
        %484 = vmatpush.bf16.msra.mxu0 %v455
        %485 = vmatmul.bf16.gmra.mxu0 %v416
        %v486 = vpop.f32.mrf.mxu0
        %v487 = vadd.f32 0.0, %v486
        %v488 = vpop.f32.mrf.mxu0
        %v489 = vadd.f32 0.0, %v488
        %490 = vdwg.mxu0
        %491 = vmatpush.bf16.msra.mxu0 0
        %492 = vmatpush.bf16.msra.mxu0 0
        %493 = vmatpush.bf16.msra.mxu0 0
        %494 = vmatpush.bf16.msra.mxu0 0
        %495 = vmatpush.bf16.msra.mxu0 0
        %496 = vmatpush.bf16.msra.mxu0 0
        %497 = vmatpush.bf16.msra.mxu0 0
        %498 = vmatpush.bf16.msra.mxu0 %v463
        %499 = vmatmul.bf16.gmra.mxu0 %v475
        %v500 = vpop.f32.mrf.mxu0
        %v501 = vadd.f32 %v487, %v500
        %v502 = vpop.f32.mrf.mxu0
        %v503 = vadd.f32 %v489, %v502
        %504 = vdwg.mxu0
        %v505 = vld [vmem:[%s2] sm:$0xff]
        %v506 = vld [vmem:[%s2 + $0x8] sm:$0xff]
        %508 = vset.pattern.permute.xlu0 0
        %509 = vperm.xlu0 %508, %v505
        %v510 = vpop.permute.xlu0 %509
        %513 = vset.pattern.permute.xlu0 0
        %514 = vperm.xlu0 %513, %v506
        %v515 = vpop.permute.xlu0 %514
        %v517 = vmul.f32 %v501, %v510
        %v518 = vmul.f32 %v503, %v515
        %v519 = vld [vmem:[%s3] sm:$0xff]
        %v520 = vld [vmem:[%s3 + $0x8] sm:$0xff]
        %522 = vset.pattern.permute.xlu0 0
        %523 = vperm.xlu0 %522, %v519
        %v524 = vpop.permute.xlu0 %523
        %527 = vset.pattern.permute.xlu0 0
        %528 = vperm.xlu0 %527, %v520
        %v529 = vpop.permute.xlu0 %528
        %v531 = vadd.f32 %v517, %v524
        %v532 = vadd.f32 %v518, %v529
        %v533 = vld [vmem:[%s361] sm:$0xff]
        %v534 = vld [vmem:[%s361 + $0x8] sm:$0xff]
        %v535 = vadd.f32 %v531, %v533
        %v536 = vadd.f32 %v532, %v534
        %v537 = vmax.f32 %v535, 0.0
        %v538 = vmax.f32 %v536, 0.0
        %539 = vst [vmem:[%s388] sm:$0xff] %v537
        %540 = vst [vmem:[%s388 + $0x8] sm:$0xff] %v538
        %s541 = sand.u32 %s139, 1
        %s542 = sand.u32 %s139, 1
        %s543 = smul.addr %s542, 16
        %s544 = scalar_lea.vmem [#allocation4], %s543
        // Predicated region
        $region120: #{_lambda_.20} parent=110 // pred_check
          %p545 = pneg %p149
        $region121: #{_lambda_.20} parent=110 // pred_check_branch
          %547 = sbr.rel (%p545) target = $region123
        $region122: #{_lambda_.20} parent=110 // pred_region
          %s548 = smul.addr %s16, 8
          %s549 = scalar_lea.vmem %s5, %s548
          // Predicated region
          $region124: #{_lambda_.20} parent=122 // pred_check
            _
          $region125: #{_lambda_.20} parent=122 // pred_check_branch
            %551 = sbr.rel (0) target = $region127
          $region126: #{_lambda_.20} parent=122 // pred_region
            // Predicated region
            $region128: #{_lambda_.20} parent=126 // pred_check
              _
            $region129: #{_lambda_.20} parent=126 // pred_check_branch
              %553 = sbr.rel (0) target = $region131
            $region130: #{_lambda_.20} parent=126 // pred_region
              // Predicated region
              $region143: #{_lambda_.20} parent=130 // pred_check
                _
              $region144: #{_lambda_.20} parent=130 // pred_check_branch
                %571 = sbr.rel (0) target = $region146
              $region145: #{_lambda_.20} parent=130 // pred_region
                loop: start=0, step=1, limit=1
                $region147: #{_lambda_.20} parent=145 // loop_pre_header
                  _
                $region148: #{_lambda_.20} parent=145 // loop_header
                  %s573 = sphi 0, %s577
                  %p574 = scmp.ge.s32.totalorder %s573, 1
                  %s578 = sphi %s544, %s544
                  %s579 = sphi %s549, %s549
                $region149: #{_lambda_.20} parent=145 // loop_header_branch
                  %576 = sbr.rel (%p574) target = $region153
                $region150: #{_lambda_.20} parent=145 // loop_body
                  %v580 = vld [vmem:[%s578] sm:$0xff]
                  %581 = vst [vmem:[%s579] sm:$0xff] %v580
                  %v582 = vld [vmem:[%s578 + $0x8] sm:$0xff]
                  %583 = vst [vmem:[%s579 + $0x10] sm:$0xff] %v582
                $region151: #{_lambda_.20} parent=145 // loop_footer
                  %s577 = sadd.s32 1, %s573
                $region152: #{_lambda_.20} parent=145 // loop_footer_branch
                  %572 = sbr.rel target = $region148
                $region153: #{_lambda_.20} parent=145 // loop_exit
                  _
              $region146: #{_lambda_.20} parent=130 // pred_fallthru
                _
              // Predicated region
              $region154: #{_lambda_.20} parent=130 // pred_check
                _
              $region155: #{_lambda_.20} parent=130 // pred_check_branch
                %585 = sbr.rel target = $region157
              $region156: #{_lambda_.20} parent=130 // pred_region
                _
              $region157: #{_lambda_.20} parent=130 // pred_fallthru
                _
            $region131: #{_lambda_.20} parent=126 // pred_fallthru
              _
            // Predicated region
            $region132: #{_lambda_.20} parent=126 // pred_check
              _
            $region133: #{_lambda_.20} parent=126 // pred_check_branch
              %555 = sbr.rel target = $region135
            $region134: #{_lambda_.20} parent=126 // pred_region
              %s557 = ssub.s32 256, 1
              loop: start=0, step=1, limit=1
              $region136: #{_lambda_.20} parent=134 // loop_pre_header
                _
              $region137: #{_lambda_.20} parent=134 // loop_header
                %s559 = sphi 0, %s563
                %p560 = scmp.ge.s32.totalorder %s559, 1
                %s564 = sphi %s544, %s544
                %s565 = sphi %s549, %s549
              $region138: #{_lambda_.20} parent=134 // loop_header_branch
                %562 = sbr.rel (%p560) target = $region142
              $region139: #{_lambda_.20} parent=134 // loop_body
                %v566 = vld [vmem:[%s564] sm:%s557]
                %567 = vst [vmem:[%s565] sm:%s557] %v566
                %v568 = vld [vmem:[%s564 + $0x8] sm:%s557]
                %569 = vst [vmem:[%s565 + $0x10] sm:%s557] %v568
              $region140: #{_lambda_.20} parent=134 // loop_footer
                %s563 = sadd.s32 1, %s559
              $region141: #{_lambda_.20} parent=134 // loop_footer_branch
                %558 = sbr.rel target = $region137
              $region142: #{_lambda_.20} parent=134 // loop_exit
                _
            $region135: #{_lambda_.20} parent=126 // pred_fallthru
              _
          $region127: #{_lambda_.20} parent=122 // pred_fallthru
            _
          %586 = vnop
        $region123: #{_lambda_.20} parent=110 // pred_fallthru
          _
      $region111: #{_lambda_.20} parent=5 // pred_fallthru
        _
      %p587 = scmp.le.s32.totalorder 2, %s11
      // Predicated region
      $region158: #{_lambda_.20} parent=5 // pred_check
        %p588 = pneg %p587
      $region159: #{_lambda_.20} parent=5 // pred_check_branch
        %590 = sbr.rel (%p588) target = $region161
      $region160: #{_lambda_.20} parent=5 // pred_region
        %s591 = ssub.s32 %s11, 2
        // Predicated region
        $region162: #{_lambda_.20} parent=160 // pred_check
          %p592 = pneg %p155
        $region163: #{_lambda_.20} parent=160 // pred_check_branch
          %594 = sbr.rel (%p592) target = $region165
        $region164: #{_lambda_.20} parent=160 // pred_region
          %s595 = sand.u32 %s140, 1
          %s596 = sand.u32 %s140, 1
          %s597 = smul.addr %s596, 16
          %s598 = scalar_lea.vmem [#allocation4], %s597
        $region165: #{_lambda_.20} parent=160 // pred_fallthru
          _
      $region161: #{_lambda_.20} parent=5 // pred_fallthru
        _
    $region6: #{_lambda_.20} parent=1 // loop_footer
      %s15 = sadd.s32 1, %s11
    $region7: #{_lambda_.20} parent=1 // loop_footer_branch
      %10 = sbr.rel target = $region3
    $region8: #{_lambda_.20} parent=1 // loop_exit
      _

// kernel: _lambda_.21
$region0: #{_lambda_.21}
  #allocation0 [shape = 'u32[]', space=smem, size = 0x4, offset = 0x4, fixed_abs, tag = 'smem constant byte address 0x4 - core index']
  #allocation1 [shape = 'u32[72,128]{1,0:T(1,128)}', space=vmem, size = 0x9000, scoped, tag = 'internal scratch']
  %s0 = inlined_call_operand.vmem [shape: bf16[8,256], index: 0, kind: input, shape index: {}]
  %s1 = inlined_call_operand.vmem [shape: bf16[256,32], index: 1, kind: input, shape index: {}]
  %s2 = inlined_call_operand.vmem [shape: f32[1,32], index: 2, kind: input, shape index: {}]
  %s3 = inlined_call_operand.vmem [shape: bf16[32,128], index: 3, kind: input, shape index: {}]
  %s4 = inlined_call_operand.vmem [shape: bf16[32,128], index: 4, kind: input, shape index: {}]
  %s5 = inlined_call_operand.vmem [shape: f32[1,128], index: 5, kind: input, shape index: {}]
  %s6 = inlined_call_operand.vmem [shape: bf16[32,128], index: 6, kind: input, shape index: {}]
  %s7 = inlined_call_operand.vmem [shape: bf16[32,128], index: 7, kind: input, shape index: {}]
  %s8 = inlined_call_operand.vmem [shape: f32[1,128], index: 8, kind: input, shape index: {}]
  %s9 = inlined_call_operand.vmem [shape: bf16[32,32], index: 9, kind: input, shape index: {}]
  %s10 = inlined_call_operand.vmem [shape: f32[1,32], index: 10, kind: input, shape index: {}]
  %s11 = inlined_call_operand.vmem [shape: bf16[32,10], index: 11, kind: input, shape index: {}]
  %s12 = inlined_call_operand.vmem [shape: f32[1,10], index: 12, kind: input, shape index: {}]
  %s13 = inlined_call_operand.hbm [shape: f32[2,32], index: 13, kind: output, shape index: {0}]
  %s14 = inlined_call_operand.hbm [shape: f32[2,10], index: 14, kind: output, shape index: {1}]
  %15 = xla_tuple %s13, %s14
  %s16 = sld [smem:[#allocation0]]
  $region70: #{_lambda_.21} parent=0
    _
  %s18 = ssub.s32 1, %s16
  %s19 = scalar_select 0, %s18, %s16
  $region1: #{_lambda_.21} parent=0
    #allocation2 [shape = 'u8[1024]{0}', space=vmem, size = 0x400, scoped, tag = 'output window, operand 0, single buffered']
    #allocation3 [shape = 's32[1]{0}', space=sflag, size = 0x4, scoped, tag = 'scoped memory for _lambda_.21']
    #allocation4 [shape = 'u8[1024]{0}', space=vmem, size = 0x400, scoped, tag = 'output window, operand 1, single buffered']
    #allocation5 [shape = 's32[1]{0}', space=sflag, size = 0x4, scoped, tag = 'scoped memory for _lambda_.21']
    %20 = vsyncpa [#allocation3], 0
    %21 = vsyncpa [#allocation5], 0
    // Predicated region
    $region2: #{_lambda_.21} parent=1 // pred_check
      _
    $region3: #{_lambda_.21} parent=1 // pred_check_branch
      %23 = sbr.rel (0) target = $region5
    $region4: #{_lambda_.21} parent=1 // pred_region
      _
    $region5: #{_lambda_.21} parent=1 // pred_fallthru
      _
    // Predicated region
    $region6: #{_lambda_.21} parent=1 // pred_check
      _
    $region7: #{_lambda_.21} parent=1 // pred_check_branch
      %25 = sbr.rel (0) target = $region9
    $region8: #{_lambda_.21} parent=1 // pred_region
      _
    $region9: #{_lambda_.21} parent=1 // pred_fallthru
      _
    // Predicated region
    $region10: #{_lambda_.21} parent=1 // pred_check
      _
    $region11: #{_lambda_.21} parent=1 // pred_check_branch
      %27 = sbr.rel (0) target = $region13
    $region12: #{_lambda_.21} parent=1 // pred_region
      _
    $region13: #{_lambda_.21} parent=1 // pred_fallthru
      _
    // Predicated region
    $region14: #{_lambda_.21} parent=1 // pred_check
      _
    $region15: #{_lambda_.21} parent=1 // pred_check_branch
      %29 = sbr.rel (0) target = $region17
    $region16: #{_lambda_.21} parent=1 // pred_region
      _
    $region17: #{_lambda_.21} parent=1 // pred_fallthru
      _
    // Predicated region
    $region18: #{_lambda_.21} parent=1 // pred_check
      _
    $region19: #{_lambda_.21} parent=1 // pred_check_branch
      %31 = sbr.rel (0) target = $region21
    $region20: #{_lambda_.21} parent=1 // pred_region
      _
    $region21: #{_lambda_.21} parent=1 // pred_fallthru
      _
    // Predicated region
    $region22: #{_lambda_.21} parent=1 // pred_check
      _
    $region23: #{_lambda_.21} parent=1 // pred_check_branch
      %33 = sbr.rel (0) target = $region25
    $region24: #{_lambda_.21} parent=1 // pred_region
      _
    $region25: #{_lambda_.21} parent=1 // pred_fallthru
      _
    // Predicated region
    $region26: #{_lambda_.21} parent=1 // pred_check
      _
    $region27: #{_lambda_.21} parent=1 // pred_check_branch
      %35 = sbr.rel (0) target = $region29
    $region28: #{_lambda_.21} parent=1 // pred_region
      _
    $region29: #{_lambda_.21} parent=1 // pred_fallthru
      _
    // Predicated region
    $region30: #{_lambda_.21} parent=1 // pred_check
      _
    $region31: #{_lambda_.21} parent=1 // pred_check_branch
      %37 = sbr.rel (0) target = $region33
    $region32: #{_lambda_.21} parent=1 // pred_region
      _
    $region33: #{_lambda_.21} parent=1 // pred_fallthru
      _
    // Predicated region
    $region34: #{_lambda_.21} parent=1 // pred_check
      _
    $region35: #{_lambda_.21} parent=1 // pred_check_branch
      %39 = sbr.rel (0) target = $region37
    $region36: #{_lambda_.21} parent=1 // pred_region
      _
    $region37: #{_lambda_.21} parent=1 // pred_fallthru
      _
    // Predicated region
    $region38: #{_lambda_.21} parent=1 // pred_check
      _
    $region39: #{_lambda_.21} parent=1 // pred_check_branch
      %41 = sbr.rel (0) target = $region41
    $region40: #{_lambda_.21} parent=1 // pred_region
      _
    $region41: #{_lambda_.21} parent=1 // pred_fallthru
      _
    // Predicated region
    $region42: #{_lambda_.21} parent=1 // pred_check
      _
    $region43: #{_lambda_.21} parent=1 // pred_check_branch
      %43 = sbr.rel (0) target = $region45
    $region44: #{_lambda_.21} parent=1 // pred_region
      _
    $region45: #{_lambda_.21} parent=1 // pred_fallthru
      _
    // Predicated region
    $region46: #{_lambda_.21} parent=1 // pred_check
      _
    $region47: #{_lambda_.21} parent=1 // pred_check_branch
      %45 = sbr.rel (0) target = $region49
    $region48: #{_lambda_.21} parent=1 // pred_region
      _
    $region49: #{_lambda_.21} parent=1 // pred_fallthru
      _
    // Predicated region
    $region50: #{_lambda_.21} parent=1 // pred_check
      _
    $region51: #{_lambda_.21} parent=1 // pred_check_branch
      %47 = sbr.rel (0) target = $region53
    $region52: #{_lambda_.21} parent=1 // pred_region
      _
    $region53: #{_lambda_.21} parent=1 // pred_fallthru
      _
    %v49 = vld [vmem:[%s0] sm:$0xff]
    %v50 = vld [vmem:[%s1] sm:$0xf]
    %v51 = vld [vmem:[%s1 + $0x4] sm:$0xf]
    %v52 = vld [vmem:[%s1 + $0x8] sm:$0xf]
    %v53 = vld [vmem:[%s1 + $0xc] sm:$0xf]
    %v54 = vld [vmem:[%s1 + $0x10] sm:$0xf]
    %v55 = vld [vmem:[%s1 + $0x14] sm:$0xf]
    %v56 = vld [vmem:[%s1 + $0x18] sm:$0xf]
    %v57 = vld [vmem:[%s1 + $0x1c] sm:$0xf]
    %v58 = vld [vmem:[%s1 + $0x20] sm:$0xf]
    %v59 = vld [vmem:[%s1 + $0x24] sm:$0xf]
    %v60 = vld [vmem:[%s1 + $0x28] sm:$0xf]
    %v61 = vld [vmem:[%s1 + $0x2c] sm:$0xf]
    %v62 = vld [vmem:[%s1 + $0x30] sm:$0xf]
    %v63 = vld [vmem:[%s1 + $0x34] sm:$0xf]
    %v64 = vld [vmem:[%s1 + $0x38] sm:$0xf]
    %v65 = vld [vmem:[%s1 + $0x3c] sm:$0xf]
    %v66 = vld [vmem:[%s1 + $0x40] sm:$0xf]
    %v67 = vld [vmem:[%s1 + $0x44] sm:$0xf]
    %v68 = vld [vmem:[%s1 + $0x48] sm:$0xf]
    %v69 = vld [vmem:[%s1 + $0x4c] sm:$0xf]
    %v70 = vld [vmem:[%s1 + $0x50] sm:$0xf]
    %v71 = vld [vmem:[%s1 + $0x54] sm:$0xf]
    %v72 = vld [vmem:[%s1 + $0x58] sm:$0xf]
    %v73 = vld [vmem:[%s1 + $0x5c] sm:$0xf]
    %v74 = vld [vmem:[%s1 + $0x60] sm:$0xf]
    %v75 = vld [vmem:[%s1 + $0x64] sm:$0xf]
    %v76 = vld [vmem:[%s1 + $0x68] sm:$0xf]
    %v77 = vld [vmem:[%s1 + $0x6c] sm:$0xf]
    %v78 = vld [vmem:[%s1 + $0x70] sm:$0xf]
    %v79 = vld [vmem:[%s1 + $0x74] sm:$0xf]
    %v80 = vld [vmem:[%s1 + $0x78] sm:$0xf]
    %v81 = vld [vmem:[%s1 + $0x7c] sm:$0xf]
    %v82 = vld [vmem:[%s2] sm:$0x1]
    %v84 = vperm.slane %v82, 0
    %v87 = vunpack.c.l.b16 %v49
    %v88 = vunpack.c.h.b16 %v49
    %v89 = vpack.c.b16 %v87, %v87
    %v90 = vpack.c.b16 %v88, %v88
    %v125 = vunpack.c.l.b16 %v50
    %v126 = vunpack.c.l.b16 %v51
    %v127 = vunpack.c.l.b16 %v52
    %v128 = vunpack.c.l.b16 %v53
    %v129 = vunpack.c.l.b16 %v54
    %v130 = vunpack.c.l.b16 %v55
    %v131 = vunpack.c.l.b16 %v56
    %v132 = vunpack.c.l.b16 %v57
    %v133 = vunpack.c.l.b16 %v58
    %v134 = vunpack.c.l.b16 %v59
    %v135 = vunpack.c.l.b16 %v60
    %v136 = vunpack.c.l.b16 %v61
    %v137 = vunpack.c.l.b16 %v62
    %v138 = vunpack.c.l.b16 %v63
    %v139 = vunpack.c.l.b16 %v64
    %v140 = vunpack.c.l.b16 %v65
    %v141 = vunpack.c.l.b16 %v66
    %v142 = vunpack.c.l.b16 %v67
    %v143 = vunpack.c.l.b16 %v68
    %v144 = vunpack.c.l.b16 %v69
    %v145 = vunpack.c.l.b16 %v70
    %v146 = vunpack.c.l.b16 %v71
    %v147 = vunpack.c.l.b16 %v72
    %v148 = vunpack.c.l.b16 %v73
    %v149 = vunpack.c.l.b16 %v74
    %v150 = vunpack.c.l.b16 %v75
    %v151 = vunpack.c.l.b16 %v76
    %v152 = vunpack.c.l.b16 %v77
    %v153 = vunpack.c.l.b16 %v78
    %v154 = vunpack.c.l.b16 %v79
    %v155 = vunpack.c.l.b16 %v80
    %v156 = vunpack.c.l.b16 %v81
    %v157 = vpack.c.b16 %v126, %v125
    %v158 = vpack.c.b16 %v128, %v127
    %v159 = vpack.c.b16 %v130, %v129
    %v160 = vpack.c.b16 %v132, %v131
    %v161 = vpack.c.b16 %v134, %v133
    %v162 = vpack.c.b16 %v136, %v135
    %v163 = vpack.c.b16 %v138, %v137
    %v164 = vpack.c.b16 %v140, %v139
    %v165 = vpack.c.b16 %v142, %v141
    %v166 = vpack.c.b16 %v144, %v143
    %v167 = vpack.c.b16 %v146, %v145
    %v168 = vpack.c.b16 %v148, %v147
    %v169 = vpack.c.b16 %v150, %v149
    %v170 = vpack.c.b16 %v152, %v151
    %v171 = vpack.c.b16 %v154, %v153
    %v172 = vpack.c.b16 %v156, %v155
    %189 = vmatpush.bf16.msra.mxu0 %v164
    %190 = vmatpush.bf16.msra.mxu0 %v163
    %191 = vmatpush.bf16.msra.mxu0 %v162
    %192 = vmatpush.bf16.msra.mxu0 %v161
    %193 = vmatpush.bf16.msra.mxu0 %v160
    %194 = vmatpush.bf16.msra.mxu0 %v159
    %195 = vmatpush.bf16.msra.mxu0 %v158
    %196 = vmatpush.bf16.msra.mxu0 %v157
    %197 = vmatmul.bf16.gmra.mxu0 %v89
    %v198 = vpop.f32.mrf.mxu0
    %v199 = vadd.f32 %v84, %v198
    %v200 = vpop.f32.mrf.mxu0
    %201 = vdwg.mxu0
    %202 = vmatpush.bf16.msra.mxu0 %v172
    %203 = vmatpush.bf16.msra.mxu0 %v171
    %204 = vmatpush.bf16.msra.mxu0 %v170
    %205 = vmatpush.bf16.msra.mxu0 %v169
    %206 = vmatpush.bf16.msra.mxu0 %v168
    %207 = vmatpush.bf16.msra.mxu0 %v167
    %208 = vmatpush.bf16.msra.mxu0 %v166
    %209 = vmatpush.bf16.msra.mxu0 %v165
    %210 = vmatmul.bf16.gmra.mxu0 %v90
    %v211 = vpop.f32.mrf.mxu0
    %v212 = vadd.f32 %v199, %v211
    %v213 = vpop.f32.mrf.mxu0
    %214 = vdwg.mxu0
    %v215 = vmax.f32 %v212, 0.0
    %v216 = vld [vmem:[%s3] sm:$0xf]
    %v217 = vld [vmem:[%s3 + $0x4] sm:$0xf]
    %v218 = vld [vmem:[%s3 + $0x8] sm:$0xf]
    %v219 = vld [vmem:[%s3 + $0xc] sm:$0xf]
    %v220 = vld [vmem:[%s6] sm:$0xf]
    %v221 = vld [vmem:[%s6 + $0x4] sm:$0xf]
    %v222 = vld [vmem:[%s6 + $0x8] sm:$0xf]
    %v223 = vld [vmem:[%s6 + $0xc] sm:$0xf]
    %v224 = vld [vmem:[%s4] sm:$0xf]
    %v225 = vld [vmem:[%s4 + $0x4] sm:$0xf]
    %v226 = vld [vmem:[%s4 + $0x8] sm:$0xf]
    %v227 = vld [vmem:[%s4 + $0xc] sm:$0xf]
    %v228 = vld [vmem:[%s7] sm:$0xf]
    %v229 = vld [vmem:[%s7 + $0x4] sm:$0xf]
    %v230 = vld [vmem:[%s7 + $0x8] sm:$0xf]
    %v231 = vld [vmem:[%s7 + $0xc] sm:$0xf]
    %v232 = vld [vmem:[%s5] sm:$0x1]
    %v233 = vld [vmem:[%s8] sm:$0x1]
    %v234 = vpack.c.bf16 %v215, %v215
    %v236 = vperm.slane %v232, 0
    %v242 = vunpack.c.l.b16 %v216
    %v243 = vunpack.c.l.b16 %v217
    %v244 = vunpack.c.l.b16 %v218
    %v245 = vunpack.c.l.b16 %v219
    %v246 = vpack.c.b16 %v243, %v242
    %v247 = vpack.c.b16 %v245, %v244
    %vm250 = vcmask 261120
    %v252 = vsel %vm250, %v234, 0
    %254 = vmatpush.bf16.msra.mxu0 0
    %255 = vmatpush.bf16.msra.mxu0 0
    %256 = vmatpush.bf16.msra.mxu0 0
    %257 = vmatpush.bf16.msra.mxu0 0
    %258 = vmatpush.bf16.msra.mxu0 0
    %259 = vmatpush.bf16.msra.mxu0 0
    %260 = vmatpush.bf16.msra.mxu0 %v247
    %261 = vmatpush.bf16.msra.mxu0 %v246
    %262 = vmatmul.bf16.gmra.mxu0 %v252
    %v263 = vpop.f32.mrf.mxu0
    %v264 = vadd.f32 %v236, %v263
    %v265 = vpop.f32.mrf.mxu0
    %266 = vdwg.mxu0
    %v271 = vunpack.c.l.b16 %v224
    %v272 = vunpack.c.l.b16 %v225
    %v273 = vunpack.c.l.b16 %v226
    %v274 = vunpack.c.l.b16 %v227
    %v275 = vpack.c.b16 %v272, %v271
    %v276 = vpack.c.b16 %v274, %v273
    %v280 = vsel %vm250, 0, 0
    %282 = vmatpush.bf16.msra.mxu0 0
    %283 = vmatpush.bf16.msra.mxu0 0
    %284 = vmatpush.bf16.msra.mxu0 0
    %285 = vmatpush.bf16.msra.mxu0 0
    %286 = vmatpush.bf16.msra.mxu0 0
    %287 = vmatpush.bf16.msra.mxu0 0
    %288 = vmatpush.bf16.msra.mxu0 %v276
    %289 = vmatpush.bf16.msra.mxu0 %v275
    %290 = vmatmul.bf16.gmra.mxu0 %v280
    %v291 = vpop.f32.mrf.mxu0
    %v292 = vadd.f32 0.0, %v291
    %v293 = vpop.f32.mrf.mxu0
    %294 = vdwg.mxu0
    %v295 = vadd.f32 %v264, %v292
    %v296 = vsub.f32 0.0, %v295
    %v297 = vmul.f32 %v296, 1.442695
    %v298 = vpow.pop %v297
    %v299 = vadd.f32 %v298, 1.0
    %v300 = vrcp.pop %v299
    %v301 = vtanh.pop %v295
    %v302 = vmul.f32 %v300, 0.0
    %304 = vrot.lane.b32.xlu0 %v301, 64
    %v305 = vpop.permute.xlu0 %304
    %v307 = vmul.f32 %v300, %v305
    %309 = vrot.lane.b32.xlu0 %v307, 32
    %v310 = vpop.permute.xlu0 %309
    %v312 = vadd.f32 %v302, %v310
    %v313 = vtanh.pop %v312
    %315 = vrot.lane.b32.xlu0 %v313, 64
    %v316 = vpop.permute.xlu0 %315
    %v318 = vmul.f32 %v300, %v316
    %v319 = vpack.c.bf16 %v318, %v318
    %v321 = vperm.slane %v233, 0
    %324 = vrot.lane.b32.xlu0 %v319, 32
    %v325 = vpop.permute.xlu0 %324
    %v330 = vunpack.c.l.b16 %v220
    %v331 = vunpack.c.l.b16 %v221
    %v332 = vunpack.c.l.b16 %v222
    %v333 = vunpack.c.l.b16 %v223
    %v334 = vpack.c.b16 %v331, %v330
    %v335 = vpack.c.b16 %v333, %v332
    %v339 = vsel %vm250, %v325, 0
    %341 = vmatpush.bf16.msra.mxu0 0
    %342 = vmatpush.bf16.msra.mxu0 0
    %343 = vmatpush.bf16.msra.mxu0 0
    %344 = vmatpush.bf16.msra.mxu0 0
    %345 = vmatpush.bf16.msra.mxu0 0
    %346 = vmatpush.bf16.msra.mxu0 0
    %347 = vmatpush.bf16.msra.mxu0 %v335
    %348 = vmatpush.bf16.msra.mxu0 %v334
    %349 = vmatmul.bf16.gmra.mxu0 %v339
    %v350 = vpop.f32.mrf.mxu0
    %v351 = vadd.f32 %v321, %v350
    %v352 = vpop.f32.mrf.mxu0
    %353 = vdwg.mxu0
    %v358 = vunpack.c.l.b16 %v228
    %v359 = vunpack.c.l.b16 %v229
    %v360 = vunpack.c.l.b16 %v230
    %v361 = vunpack.c.l.b16 %v231
    %v362 = vpack.c.b16 %v359, %v358
    %v363 = vpack.c.b16 %v361, %v360
    %366 = vmatpush.bf16.msra.mxu0 0
    %367 = vmatpush.bf16.msra.mxu0 0
    %368 = vmatpush.bf16.msra.mxu0 0
    %369 = vmatpush.bf16.msra.mxu0 0
    %370 = vmatpush.bf16.msra.mxu0 0
    %371 = vmatpush.bf16.msra.mxu0 0
    %372 = vmatpush.bf16.msra.mxu0 %v363
    %373 = vmatpush.bf16.msra.mxu0 %v362
    %374 = vmatmul.bf16.gmra.mxu0 %v280
    %v375 = vpop.f32.mrf.mxu0
    %v376 = vadd.f32 0.0, %v375
    %v377 = vpop.f32.mrf.mxu0
    %378 = vdwg.mxu0
    %v379 = vadd.f32 %v351, %v376
    %v380 = vsub.f32 0.0, %v379
    %v381 = vmul.f32 %v380, 1.442695
    %v382 = vpow.pop %v381
    %v383 = vadd.f32 %v382, 1.0
    %v384 = vrcp.pop %v383
    %v385 = vtanh.pop %v379
    %v386 = vmul.f32 %v384, 0.0
    %388 = vrot.lane.b32.xlu0 %v385, 64
    %v389 = vpop.permute.xlu0 %388
    %v391 = vmul.f32 %v384, %v389
    %393 = vrot.lane.b32.xlu0 %v391, 32
    %v394 = vpop.permute.xlu0 %393
    %v396 = vadd.f32 %v386, %v394
    %v397 = vtanh.pop %v396
    %399 = vrot.lane.b32.xlu0 %v397, 64
    %v400 = vpop.permute.xlu0 %399
    %v402 = vmul.f32 %v384, %v400
    %403 = vmatpush.bf16.msra.mxu0 0
    %404 = vmatpush.bf16.msra.mxu0 0
    %405 = vmatpush.bf16.msra.mxu0 0
    %406 = vmatpush.bf16.msra.mxu0 0
    %407 = vmatpush.bf16.msra.mxu0 0
    %408 = vmatpush.bf16.msra.mxu0 0
    %409 = vmatpush.bf16.msra.mxu0 %v276
    %410 = vmatpush.bf16.msra.mxu0 %v275
    %411 = vmatmul.bf16.gmra.mxu0 %v339
    %v412 = vpop.f32.mrf.mxu0
    %v413 = vadd.f32 0.0, %v412
    %v414 = vpop.f32.mrf.mxu0
    %415 = vdwg.mxu0
    %v417 = vrot.slane %v413, 6
    %v419 = vadd.f32 %v264, %v417
    %v420 = vsub.f32 0.0, %v419
    %v421 = vmul.f32 %v420, 1.442695
    %v422 = vpow.pop %v421
    %v423 = vadd.f32 %v422, 1.0
    %v424 = vrcp.pop %v423
    %v425 = vtanh.pop %v419
    %v427 = vrot.slane %v312, 6
    %v429 = vmul.f32 %v424, %v427
    %431 = vrot.lane.b32.xlu0 %v425, 64
    %v432 = vpop.permute.xlu0 %431
    %v434 = vmul.f32 %v424, %v432
    %436 = vrot.lane.b32.xlu0 %v434, 32
    %v437 = vpop.permute.xlu0 %436
    %v439 = vadd.f32 %v429, %v437
    %v440 = vtanh.pop %v439
    %442 = vrot.lane.b32.xlu0 %v440, 64
    %v443 = vpop.permute.xlu0 %442
    %v445 = vmul.f32 %v424, %v443
    %v446 = vpack.c.bf16 %v445, %v445
    %v448 = vrot.slane %v446, 1
    %449 = vrot.lane.b32.xlu0 %v448, 32
    %v450 = vpop.permute.xlu0 %449
    %v452 = vsel %vm250, %v450, 0
    %454 = vmatpush.bf16.msra.mxu0 0
    %455 = vmatpush.bf16.msra.mxu0 0
    %456 = vmatpush.bf16.msra.mxu0 0
    %457 = vmatpush.bf16.msra.mxu0 0
    %458 = vmatpush.bf16.msra.mxu0 0
    %459 = vmatpush.bf16.msra.mxu0 0
    %460 = vmatpush.bf16.msra.mxu0 %v335
    %461 = vmatpush.bf16.msra.mxu0 %v334
    %462 = vmatmul.bf16.gmra.mxu0 %v452
    %v463 = vpop.f32.mrf.mxu0
    %v464 = vadd.f32 %v321, %v463
    %v465 = vpop.f32.mrf.mxu0
    %466 = vdwg.mxu0
    %v467 = vpack.c.bf16 %v402, %v402
    %469 = vrot.lane.b32.xlu0 %v467, 32
    %v470 = vpop.permute.xlu0 %469
    %v472 = vsel %vm250, %v470, 0
    %474 = vmatpush.bf16.msra.mxu0 0
    %475 = vmatpush.bf16.msra.mxu0 0
    %476 = vmatpush.bf16.msra.mxu0 0
    %477 = vmatpush.bf16.msra.mxu0 0
    %478 = vmatpush.bf16.msra.mxu0 0
    %479 = vmatpush.bf16.msra.mxu0 0
    %480 = vmatpush.bf16.msra.mxu0 %v363
    %481 = vmatpush.bf16.msra.mxu0 %v362
    %482 = vmatmul.bf16.gmra.mxu0 %v472
    %v483 = vpop.f32.mrf.mxu0
    %v484 = vadd.f32 0.0, %v483
    %v485 = vpop.f32.mrf.mxu0
    %486 = vdwg.mxu0
    %v487 = vadd.f32 %v464, %v484
    %v488 = vsub.f32 0.0, %v487
    %v489 = vmul.f32 %v488, 1.442695
    %v490 = vpow.pop %v489
    %v491 = vadd.f32 %v490, 1.0
    %v492 = vrcp.pop %v491
    %v493 = vtanh.pop %v487
    %v494 = vmul.f32 %v492, %v396
    %496 = vrot.lane.b32.xlu0 %v493, 64
    %v497 = vpop.permute.xlu0 %496
    %v499 = vmul.f32 %v492, %v497
    %501 = vrot.lane.b32.xlu0 %v499, 32
    %v502 = vpop.permute.xlu0 %501
    %v504 = vadd.f32 %v494, %v502
    %v505 = vtanh.pop %v504
    %507 = vrot.lane.b32.xlu0 %v505, 64
    %v508 = vpop.permute.xlu0 %507
    %v510 = vmul.f32 %v492, %v508
    %511 = vmatpush.bf16.msra.mxu0 0
    %512 = vmatpush.bf16.msra.mxu0 0
    %513 = vmatpush.bf16.msra.mxu0 0
    %514 = vmatpush.bf16.msra.mxu0 0
    %515 = vmatpush.bf16.msra.mxu0 0
    %516 = vmatpush.bf16.msra.mxu0 0
    %517 = vmatpush.bf16.msra.mxu0 %v276
    %518 = vmatpush.bf16.msra.mxu0 %v275
    %519 = vmatmul.bf16.gmra.mxu0 %v452
    %v520 = vpop.f32.mrf.mxu0
    %v521 = vadd.f32 0.0, %v520
    %v522 = vpop.f32.mrf.mxu0
    %523 = vdwg.mxu0
    %v525 = vrot.slane %v521, 4
    %v527 = vadd.f32 %v264, %v525
    %v528 = vsub.f32 0.0, %v527
    %v529 = vmul.f32 %v528, 1.442695
    %v530 = vpow.pop %v529
    %v531 = vadd.f32 %v530, 1.0
    %v532 = vrcp.pop %v531
    %v533 = vtanh.pop %v527
    %v535 = vrot.slane %v439, 6
    %v537 = vmul.f32 %v532, %v535
    %539 = vrot.lane.b32.xlu0 %v533, 64
    %v540 = vpop.permute.xlu0 %539
    %v542 = vmul.f32 %v532, %v540
    %544 = vrot.lane.b32.xlu0 %v542, 32
    %v545 = vpop.permute.xlu0 %544
    %v547 = vadd.f32 %v537, %v545
    %v548 = vtanh.pop %v547
    %550 = vrot.lane.b32.xlu0 %v548, 64
    %v551 = vpop.permute.xlu0 %550
    %v553 = vmul.f32 %v532, %v551
    %v554 = vpack.c.bf16 %v553, %v553
    %v556 = vrot.slane %v554, 2
    %557 = vrot.lane.b32.xlu0 %v556, 32
    %v558 = vpop.permute.xlu0 %557
    %v560 = vsel %vm250, %v558, 0
    %562 = vmatpush.bf16.msra.mxu0 0
    %563 = vmatpush.bf16.msra.mxu0 0
    %564 = vmatpush.bf16.msra.mxu0 0
    %565 = vmatpush.bf16.msra.mxu0 0
    %566 = vmatpush.bf16.msra.mxu0 0
    %567 = vmatpush.bf16.msra.mxu0 0
    %568 = vmatpush.bf16.msra.mxu0 %v335
    %569 = vmatpush.bf16.msra.mxu0 %v334
    %570 = vmatmul.bf16.gmra.mxu0 %v560
    %v571 = vpop.f32.mrf.mxu0
    %v572 = vadd.f32 %v321, %v571
    %v573 = vpop.f32.mrf.mxu0
    %574 = vdwg.mxu0
    %v575 = vpack.c.bf16 %v510, %v510
    %577 = vrot.lane.b32.xlu0 %v575, 32
    %v578 = vpop.permute.xlu0 %577
    %v580 = vsel %vm250, %v578, 0
    %582 = vmatpush.bf16.msra.mxu0 0
    %583 = vmatpush.bf16.msra.mxu0 0
    %584 = vmatpush.bf16.msra.mxu0 0
    %585 = vmatpush.bf16.msra.mxu0 0
    %586 = vmatpush.bf16.msra.mxu0 0
    %587 = vmatpush.bf16.msra.mxu0 0
    %588 = vmatpush.bf16.msra.mxu0 %v363
    %589 = vmatpush.bf16.msra.mxu0 %v362
    %590 = vmatmul.bf16.gmra.mxu0 %v580
    %v591 = vpop.f32.mrf.mxu0
    %v592 = vadd.f32 0.0, %v591
    %v593 = vpop.f32.mrf.mxu0
    %594 = vdwg.mxu0
    %v595 = vadd.f32 %v572, %v592
    %v596 = vsub.f32 0.0, %v595
    %v597 = vmul.f32 %v596, 1.442695
    %v598 = vpow.pop %v597
    %v599 = vadd.f32 %v598, 1.0
    %v600 = vrcp.pop %v599
    %v601 = vtanh.pop %v595
    %v602 = vmul.f32 %v600, %v504
    %604 = vrot.lane.b32.xlu0 %v601, 64
    %v605 = vpop.permute.xlu0 %604
    %v607 = vmul.f32 %v600, %v605
    %609 = vrot.lane.b32.xlu0 %v607, 32
    %v610 = vpop.permute.xlu0 %609
    %v612 = vadd.f32 %v602, %v610
    %v613 = vtanh.pop %v612
    %615 = vrot.lane.b32.xlu0 %v613, 64
    %v616 = vpop.permute.xlu0 %615
    %v618 = vmul.f32 %v600, %v616
    %619 = vmatpush.bf16.msra.mxu0 0
    %620 = vmatpush.bf16.msra.mxu0 0
    %621 = vmatpush.bf16.msra.mxu0 0
    %622 = vmatpush.bf16.msra.mxu0 0
    %623 = vmatpush.bf16.msra.mxu0 0
    %624 = vmatpush.bf16.msra.mxu0 0
    %625 = vmatpush.bf16.msra.mxu0 %v276
    %626 = vmatpush.bf16.msra.mxu0 %v275
    %627 = vmatmul.bf16.gmra.mxu0 %v560
    %v628 = vpop.f32.mrf.mxu0
    %v629 = vadd.f32 0.0, %v628
    %v630 = vpop.f32.mrf.mxu0
    %631 = vdwg.mxu0
    %v633 = vrot.slane %v629, 2
    %v635 = vadd.f32 %v264, %v633
    %v636 = vsub.f32 0.0, %v635
    %v637 = vmul.f32 %v636, 1.442695
    %v638 = vpow.pop %v637
    %v639 = vadd.f32 %v638, 1.0
    %v640 = vrcp.pop %v639
    %v641 = vtanh.pop %v635
    %v643 = vrot.slane %v547, 6
    %v645 = vmul.f32 %v640, %v643
    %647 = vrot.lane.b32.xlu0 %v641, 64
    %v648 = vpop.permute.xlu0 %647
    %v650 = vmul.f32 %v640, %v648
    %652 = vrot.lane.b32.xlu0 %v650, 32
    %v653 = vpop.permute.xlu0 %652
    %v655 = vadd.f32 %v645, %v653
    %v656 = vtanh.pop %v655
    %658 = vrot.lane.b32.xlu0 %v656, 64
    %v659 = vpop.permute.xlu0 %658
    %v661 = vmul.f32 %v640, %v659
    %v662 = vpack.c.bf16 %v661, %v661
    %v664 = vrot.slane %v662, 3
    %665 = vrot.lane.b32.xlu0 %v664, 32
    %v666 = vpop.permute.xlu0 %665
    %v668 = vsel %vm250, %v666, 0
    %670 = vmatpush.bf16.msra.mxu0 0
    %671 = vmatpush.bf16.msra.mxu0 0
    %672 = vmatpush.bf16.msra.mxu0 0
    %673 = vmatpush.bf16.msra.mxu0 0
    %674 = vmatpush.bf16.msra.mxu0 0
    %675 = vmatpush.bf16.msra.mxu0 0
    %676 = vmatpush.bf16.msra.mxu0 %v335
    %677 = vmatpush.bf16.msra.mxu0 %v334
    %678 = vmatmul.bf16.gmra.mxu0 %v668
    %v679 = vpop.f32.mrf.mxu0
    %v680 = vadd.f32 %v321, %v679
    %v681 = vpop.f32.mrf.mxu0
    %682 = vdwg.mxu0
    %v683 = vpack.c.bf16 %v618, %v618
    %685 = vrot.lane.b32.xlu0 %v683, 32
    %v686 = vpop.permute.xlu0 %685
    %v688 = vsel %vm250, %v686, 0
    %690 = vmatpush.bf16.msra.mxu0 0
    %691 = vmatpush.bf16.msra.mxu0 0
    %692 = vmatpush.bf16.msra.mxu0 0
    %693 = vmatpush.bf16.msra.mxu0 0
    %694 = vmatpush.bf16.msra.mxu0 0
    %695 = vmatpush.bf16.msra.mxu0 0
    %696 = vmatpush.bf16.msra.mxu0 %v363
    %697 = vmatpush.bf16.msra.mxu0 %v362
    %698 = vmatmul.bf16.gmra.mxu0 %v688
    %v699 = vpop.f32.mrf.mxu0
    %v700 = vadd.f32 0.0, %v699
    %v701 = vpop.f32.mrf.mxu0
    %702 = vdwg.mxu0
    %v703 = vadd.f32 %v680, %v700
    %v704 = vsub.f32 0.0, %v703
    %v705 = vmul.f32 %v704, 1.442695
    %v706 = vpow.pop %v705
    %v707 = vadd.f32 %v706, 1.0
    %v708 = vrcp.pop %v707
    %v709 = vtanh.pop %v703
    %v710 = vmul.f32 %v708, %v612
    %712 = vrot.lane.b32.xlu0 %v709, 64
    %v713 = vpop.permute.xlu0 %712
    %v715 = vmul.f32 %v708, %v713
    %717 = vrot.lane.b32.xlu0 %v715, 32
    %v718 = vpop.permute.xlu0 %717
    %v720 = vadd.f32 %v710, %v718
    %v721 = vtanh.pop %v720
    %723 = vrot.lane.b32.xlu0 %v721, 64
    %v724 = vpop.permute.xlu0 %723
    %v726 = vmul.f32 %v708, %v724
    %v727 = vpack.c.bf16 %v726, %v726
    %v728 = vld [vmem:[%s9] sm:$0xf]
    %v729 = vld [vmem:[%s9 + $0x4] sm:$0xf]
    %v730 = vld [vmem:[%s9 + $0x8] sm:$0xf]
    %v731 = vld [vmem:[%s9 + $0xc] sm:$0xf]
    %v732 = vld [vmem:[%s10] sm:$0x1]
    %v734 = vperm.slane %v732, 0
    %737 = vrot.lane.b32.xlu0 %v727, 32
    %v738 = vpop.permute.xlu0 %737
    %v743 = vunpack.c.l.b16 %v728
    %v744 = vunpack.c.l.b16 %v729
    %v745 = vunpack.c.l.b16 %v730
    %v746 = vunpack.c.l.b16 %v731
    %v747 = vpack.c.b16 %v744, %v743
    %v748 = vpack.c.b16 %v746, %v745
    %v752 = vsel %vm250, %v738, 0
    %754 = vmatpush.bf16.msra.mxu0 0
    %755 = vmatpush.bf16.msra.mxu0 0
    %756 = vmatpush.bf16.msra.mxu0 0
    %757 = vmatpush.bf16.msra.mxu0 0
    %758 = vmatpush.bf16.msra.mxu0 0
    %759 = vmatpush.bf16.msra.mxu0 0
    %760 = vmatpush.bf16.msra.mxu0 %v748
    %761 = vmatpush.bf16.msra.mxu0 %v747
    %762 = vmatmul.bf16.gmra.mxu0 %v752
    %v763 = vpop.f32.mrf.mxu0
    %v764 = vadd.f32 %v734, %v763
    %v765 = vpop.f32.mrf.mxu0
    %766 = vdwg.mxu0
    %v767 = vmax.f32 %v764, 0.0
    %v768 = vpack.c.bf16 %v767, %v767
    %v769 = vld [vmem:[%s11] sm:$0xf]
    %v770 = vld [vmem:[%s11 + $0x4] sm:$0xf]
    %v771 = vld [vmem:[%s11 + $0x8] sm:$0xf]
    %v772 = vld [vmem:[%s11 + $0xc] sm:$0xf]
    %v773 = vld [vmem:[%s12] sm:$0x1]
    %v775 = vperm.slane %v773, 0
    %v781 = vunpack.c.l.b16 %v769
    %v782 = vunpack.c.l.b16 %v770
    %v783 = vunpack.c.l.b16 %v771
    %v784 = vunpack.c.l.b16 %v772
    %v785 = vpack.c.b16 %v782, %v781
    %v786 = vpack.c.b16 %v784, %v783
    %v790 = vsel %vm250, %v768, 0
    %792 = vmatpush.bf16.msra.mxu0 0
    %793 = vmatpush.bf16.msra.mxu0 0
    %794 = vmatpush.bf16.msra.mxu0 0
    %795 = vmatpush.bf16.msra.mxu0 0
    %796 = vmatpush.bf16.msra.mxu0 0
    %797 = vmatpush.bf16.msra.mxu0 0
    %798 = vmatpush.bf16.msra.mxu0 %v786
    %799 = vmatpush.bf16.msra.mxu0 %v785
    %800 = vmatmul.bf16.gmra.mxu0 %v790
    %v801 = vpop.f32.mrf.mxu0
    %v802 = vadd.f32 %v775, %v801
    %v803 = vpop.f32.mrf.mxu0
    %804 = vdwg.mxu0
    %vm805 = vcmask 254976
    %806 = vst.msk [vmem:[#allocation2] sm:$0x3] %vm805, %v767
    %vm807 = vcmask 74752
    %808 = vst.msk [vmem:[#allocation4] sm:$0x3] %vm807, %v802
    // Predicated region
    $region54: #{_lambda_.21} parent=1 // pred_check
      _
    $region55: #{_lambda_.21} parent=1 // pred_check_branch
      %810 = sbr.rel (0) target = $region57
    $region56: #{_lambda_.21} parent=1 // pred_region
      %812 = vsyncadd [#allocation3], 0
      %s814 = sshll.u32 [#allocation2], 4
      %s815 = int_to_ptr.vmem [resolvable:$true] %s814
      %s816 = sshll.u32 %s13, 4
      %s817 = int_to_ptr.hbm [resolvable:$true] %s816
      %819 = dma.vmem_to_hbm [thread:$0]  %s815, 32, %s817, [#allocation3]
    $region57: #{_lambda_.21} parent=1 // pred_fallthru
      _
    // Predicated region
    $region58: #{_lambda_.21} parent=1 // pred_check
      _
    $region59: #{_lambda_.21} parent=1 // pred_check_branch
      %821 = sbr.rel (0) target = $region61
    $region60: #{_lambda_.21} parent=1 // pred_region
      %823 = vsyncadd [#allocation5], 0
      %s825 = sshll.u32 [#allocation4], 4
      %s826 = int_to_ptr.vmem [resolvable:$true] %s825
      %s827 = sshll.u32 %s14, 4
      %s828 = int_to_ptr.hbm [resolvable:$true] %s827
      %830 = dma.vmem_to_hbm [thread:$0]  %s826, 32, %s828, [#allocation5]
    $region61: #{_lambda_.21} parent=1 // pred_fallthru
      _
    // Predicated region
    $region62: #{_lambda_.21} parent=1 // pred_check
      _
    $region63: #{_lambda_.21} parent=1 // pred_check_branch
      %832 = sbr.rel (0) target = $region65
    $region64: #{_lambda_.21} parent=1 // pred_region
      %834 = dma.done [#allocation3], 32
    $region65: #{_lambda_.21} parent=1 // pred_fallthru
      _
    // Predicated region
    $region66: #{_lambda_.21} parent=1 // pred_check
      _
    $region67: #{_lambda_.21} parent=1 // pred_check_branch
      %836 = sbr.rel (0) target = $region69
    $region68: #{_lambda_.21} parent=1 // pred_region
      %838 = dma.done [#allocation5], 32
    $region69: #{_lambda_.21} parent=1 // pred_fallthru
      _
    %839 = vsyncpa [#allocation3], 1
    %840 = vsyncpa [#allocation5], 1

</llo_original>
